<compile_context>
chip_gen: v5e
topology: v5e:2x2
jax: 0.10.0
libtpu: 0.0.40
codegen_flags: <defaults>
</compile_context>

<pallas_src>
import functools

import jax
import jax.numpy as jnp
from jax.experimental import pallas as pl
from jax.experimental.pallas import tpu as pltpu


# ----------------------------------------------------------------------------
# Embedded "parsed" darknet config (equivalent of parse_model_config output).
# ----------------------------------------------------------------------------
MODULE_DEFS = [
    {'type': 'net', 'channels': '4'},
    {'type': 'convolutional', 'batch_normalize': '1', 'filters': '8',
     'size': '3', 'stride': '1', 'groups': '1', 'activation': 'leaky'},    # 0
    {'type': 'maxpool', 'size': '2', 'stride': '2'},                        # 1
    {'type': 'convolutional', 'batch_normalize': '1', 'filters': '16',
     'size': '3', 'stride': '1', 'groups': '1', 'activation': 'leaky'},    # 2
    {'type': 'convolutional', 'batch_normalize': '1', 'filters': '8',
     'size': '1', 'stride': '1', 'groups': '1', 'activation': 'leaky'},    # 3
    {'type': 'convolutional', 'batch_normalize': '1', 'filters': '16',
     'size': '3', 'stride': '1', 'groups': '1', 'activation': 'leaky'},    # 4
    {'type': 'shortcut', 'from': '-3', 'activation': 'linear'},             # 5
    {'type': 'convolutional', 'batch_normalize': '0', 'filters': '12',
     'size': '1', 'stride': '1', 'groups': '1', 'activation': 'linear'},   # 6 (yolo head)
    {'type': 'yolo'},                                                       # 7
    {'type': 'route', 'layers': '-5'},                                      # 8
    {'type': 'convolutional', 'batch_normalize': '1', 'filters': '8',
     'size': '1', 'stride': '1', 'groups': '1', 'activation': 'leaky'},    # 9
    {'type': 'upsample', 'stride': '2'},                                    # 10
    {'type': 'route', 'layers': '-1, -11'},                                 # 11
    {'type': 'convolutional', 'batch_normalize': '1', 'filters': '16',
     'size': '3', 'stride': '1', 'groups': '1', 'activation': 'leaky'},    # 12
    {'type': 'convolutional', 'batch_normalize': '0', 'filters': '12',
     'size': '1', 'stride': '1', 'groups': '1', 'activation': 'linear'},   # 13 (yolo head)
    {'type': 'yolo'},                                                       # 14
]


# ----------------------------------------------------------------------------
# Pallas kernel: fused im2col conv + BatchNorm + activation (single shot).
# ----------------------------------------------------------------------------
def _conv_bn_act_kernel(x_ref, w_ref, g_ref, b_ref, o_ref, *,
                        k, B, Ho, Wo, use_bn, act):
    """One fused convolution layer, no grid (K = k*k*Cin <= 144 here).

    x_ref : (B, Hp, Wp, Cin)  zero-padded NHWC activation (f32 or bf16);
                              read from HBM exactly once.
    w_ref : (k, k, Cin, Cout) bf16 weights, tap-major.
    g_ref : (1, Cout) f32     BN gamma (unused when use_bn=False).
    b_ref : (1, Cout) f32     BN beta / conv bias.
    o_ref : (N, Cout)         N = B*Ho*Wo; bf16 for BN layers, f32 for heads.
    """
    cin = x_ref.shape[-1]
    n = B * Ho * Wo

    # Single full read of the activation; every shifted (kh,kw) window is
    # sliced from this resident f32 value (32-bit slicing is the
    # best-supported relayout path; the bf16 MXU cast happens per tap).
    xv = x_ref[...].astype(jnp.float32)

    acc = None
    for i in range(k):
        for j in range(k):
            win = xv[:, i:i + Ho, j:j + Wo, :]                 # (B, Ho, Wo, Cin)
            patch = win.reshape(n, cin).astype(jnp.bfloat16)   # lane dim = Cin
            part = jnp.dot(patch, w_ref[i, j],
                           preferred_element_type=jnp.float32)
            acc = part if acc is None else acc + part

    if use_bn:
        # nn.BatchNorm2d default (training mode): per-channel batch mean and
        # *biased* variance over (B, H, W) == over the N rows here.
        # One-pass stats: var = E[x^2] - E[x]^2.
        mean = jnp.sum(acc, axis=0, keepdims=True) * (1.0 / n)
        ex2 = jnp.sum(acc * acc, axis=0, keepdims=True) * (1.0 / n)
        var = jnp.maximum(ex2 - mean * mean, 0.0)
        y = (acc - mean) * (jax.lax.rsqrt(var + 1e-5) * g_ref[...]) + b_ref[...]
    else:
        y = acc + b_ref[...]                                   # conv bias

    if act == 'leaky':
        y = jnp.where(y > 0.0, y, 0.1 * y)
    elif act == 'relu':
        y = jnp.maximum(y, 0.0)

    o_ref[...] = y.astype(o_ref.dtype)


# ----------------------------------------------------------------------------
# Layer wrappers (NHWC everywhere; only the conv uses Pallas)
# ----------------------------------------------------------------------------
def conv_layer(x_nhwc, params, *, use_bn, k, stride, act, out_dtype):
    # TODO(synk): stride > 1 (not used by this config) needs strided window
    #             slicing in-kernel; add when porting real YOLO configs.
    assert stride == 1, "this synthetic darknet config only uses stride-1 convs"
    pad = (k - 1) // 2
    B, H, W, _ = x_nhwc.shape
    Ho, Wo = H, W
    # The in-kernel (B,Ho,Wo,Cin)->(N,Cin) collapse is layout-free only when
    # the window width is sublane aligned.
    assert Wo % 8 == 0

    x_in = (jnp.pad(x_nhwc, ((0, 0), (pad, pad), (pad, pad), (0, 0)))
            if pad else x_nhwc)

    w = params['w']                                            # (Cout, Cin, kh, kw)
    cout = w.shape[0]
    w_taps = jnp.transpose(w, (2, 3, 1, 0)).astype(jnp.bfloat16)  # (k,k,Cin,Cout)

    if use_bn:
        g = params['gamma'].reshape(1, cout).astype(jnp.float32)
        b = params['beta'].reshape(1, cout).astype(jnp.float32)
    else:
        g = jnp.ones((1, cout), jnp.float32)                   # unused placeholder
        b = params['bias'].reshape(1, cout).astype(jnp.float32)

    n = B * Ho * Wo
    vmem = pl.BlockSpec(memory_space=pltpu.MemorySpace.VMEM)
    out = pl.pallas_call(
        functools.partial(_conv_bn_act_kernel, k=k, B=B, Ho=Ho, Wo=Wo,
                          use_bn=use_bn, act=act),
        out_shape=jax.ShapeDtypeStruct((n, cout), out_dtype),  # unpadded lanes
        in_specs=[vmem, vmem, vmem, vmem],
        out_specs=vmem,
    )(x_in, w_taps, g, b)
    return out.reshape(B, Ho, Wo, cout)                        # NHWC


def maxpool_layer(x_nhwc, k, stride):
    # 2x2 / s2 only in this net; trivial elementwise max -> leave to XLA.
    assert k == 2 and stride == 2, "this synthetic net only uses 2x2/s2 maxpool"
    a = x_nhwc[:, 0::2, 0::2, :]
    b = x_nhwc[:, 0::2, 1::2, :]
    c = x_nhwc[:, 1::2, 0::2, :]
    d = x_nhwc[:, 1::2, 1::2, :]
    return jnp.maximum(jnp.maximum(a, b), jnp.maximum(c, d))


def upsample_layer(x_nhwc, factor):
    # F.interpolate(mode='nearest', integer scale) == repeat along H and W.
    x = jnp.repeat(x_nhwc, factor, axis=1)
    return jnp.repeat(x, factor, axis=2)


# ----------------------------------------------------------------------------
# Darknet.forward equivalent (NHWC internally, NCHW at the boundary)
# ----------------------------------------------------------------------------
def darknet_forward(x_nchw, params_list):
    x = jnp.transpose(x_nchw, (0, 2, 3, 1))            # single boundary transpose
    layer_outputs, yolo_outputs = [], []
    for i, mdef in enumerate(MODULE_DEFS[1:]):
        t = mdef['type']
        if t == 'convolutional':
            use_bn = bool(int(mdef['batch_normalize']))
            x = conv_layer(
                x, params_list[i], use_bn=use_bn,
                k=int(mdef['size']), stride=int(mdef['stride']),
                act=mdef['activation'],
                # intermediate layers feed other convs -> bf16 writeback;
                # the yolo heads (no BN, linear) are returned -> keep f32.
                out_dtype=jnp.bfloat16 if use_bn else jnp.float32)
        elif t == 'maxpool':
            x = maxpool_layer(x, int(mdef['size']), int(mdef['stride']))
        elif t == 'upsample':
            x = upsample_layer(x, int(mdef['stride']))
        elif t == 'route':
            x = jnp.concatenate(
                [layer_outputs[int(li)] for li in mdef['layers'].split(',')],
                axis=-1)                                # channel axis (NHWC)
        elif t == 'shortcut':
            x = layer_outputs[-1] + layer_outputs[int(mdef['from'])]
        elif t == 'yolo':
            yolo_outputs.append(x)
        layer_outputs.append(x)
    # back to NCHW only at the model boundary (PyTorch interface)
    return tuple(jnp.transpose(y, (0, 3, 1, 2)) for y in yolo_outputs)


# ----------------------------------------------------------------------------
# Deterministic parameter init (shapes follow create_modules)
# ----------------------------------------------------------------------------
def init_params(key):
    params = []
    out_filters = [int(MODULE_DEFS[0]['channels'])]
    for mdef in MODULE_DEFS[1:]:
        p = None
        filters = out_filters[-1]
        t = mdef['type']
        if t == 'convolutional':
            cin = out_filters[-1]
            cout = int(mdef['filters'])
            k = int(mdef['size'])
            key, k1, k2, k3 = jax.random.split(key, 4)
            p = {'w': 0.1 * jax.random.normal(k1, (cout, cin, k, k), jnp.float32)}
            if int(mdef['batch_normalize']):
                p['gamma'] = 1.0 + 0.1 * jax.random.normal(k2, (cout,), jnp.float32)
                p['beta'] = 0.1 * jax.random.normal(k3, (cout,), jnp.float32)
            else:
                p['bias'] = 0.1 * jax.random.normal(k2, (cout,), jnp.float32)
            filters = cout
        elif t == 'route':
            filters = sum(out_filters[1:][int(li)]
                          for li in mdef['layers'].split(','))
        elif t == 'shortcut':
            filters = out_filters[1:][int(mdef['from'])]
        # maxpool / upsample / yolo keep the current filter count
        params.append(p)
        out_filters.append(filters)
    return params


# TODO(synk): load_darknet_weights (.weights file parsing) has no in-script
# equivalent; parameters are synthesized deterministically instead.

if __name__ == "__main__":
    key = jax.random.PRNGKey(0)
    key, pkey, xkey = jax.random.split(key, 3)
    params_list = init_params(pkey)
    x = jax.random.normal(xkey, (2, 4, 16, 16), jnp.float32)   # NCHW, like PyTorch

    fwd = jax.jit(darknet_forward)
    outs = jax.block_until_ready(fwd(x, params_list))

    assert isinstance(outs, tuple) and len(outs) == 2
    assert outs[0].shape == (2, 12, 8, 8)
    assert outs[1].shape == (2, 12, 16, 16)
    assert all(bool(jnp.all(jnp.isfinite(o))) for o in outs)
    print("KERNEL_OK")
</pallas_src>

<mosaic_0001>
module attributes {stable_mosaic.version = 11 : i64} {
  func.func @_conv_bn_act_kernel(%arg0: memref<2x18x18x4xf32, #tpu.memory_space<vmem>>, %arg1: memref<3x3x4x8xbf16, #tpu.memory_space<vmem>>, %arg2: memref<1x8xf32, #tpu.memory_space<vmem>>, %arg3: memref<1x8xf32, #tpu.memory_space<vmem>>, %arg4: memref<512x8xbf16, #tpu.memory_space<vmem>>) attributes {dimension_semantics = [], scalar_prefetch = 0 : i64, scratch_operands = 0 : i64, tpu.core_type = #tpu.core_type<tc>} {
    %c0 = arith.constant 0 : index
    %c0_0 = arith.constant 0 : index
    %c0_1 = arith.constant 0 : index
    %c0_2 = arith.constant 0 : index
    %0 = vector.load %arg0[%c0, %c0_0, %c0_1, %c0_2] : memref<2x18x18x4xf32, #tpu.memory_space<vmem>>, vector<2x18x18x4xf32>
    %1 = vector.extract_strided_slice %0 {offsets = [0, 0, 0, 0], sizes = [2, 16, 16, 4], strides = [1, 1, 1, 1]} : vector<2x18x18x4xf32> to vector<2x16x16x4xf32>
    %2 = vector.shape_cast %1 : vector<2x16x16x4xf32> to vector<512x4xf32>
    %3 = arith.truncf %2 : vector<512x4xf32> to vector<512x4xbf16>
    %c0_3 = arith.constant 0 : index
    %c0_4 = arith.constant 0 : index
    %c0_5 = arith.constant 0 : index
    %c0_6 = arith.constant 0 : index
    %4 = vector.load %arg1[%c0_3, %c0_4, %c0_5, %c0_6] : memref<3x3x4x8xbf16, #tpu.memory_space<vmem>>, vector<1x1x4x8xbf16>
    %5 = vector.shape_cast %4 : vector<1x1x4x8xbf16> to vector<4x8xbf16>
    %cst = arith.constant dense<0.000000e+00> : vector<512x8xf32>
    %6 = tpu.matmul %3, %5, %cst {dimension_numbers = #tpu.dot_dimension_numbers<[1], [0], [0], [1], [0, 0, 1, 1], [], []>} : vector<512x4xbf16>, vector<4x8xbf16>, vector<512x8xf32> -> vector<512x8xf32>
    %7 = vector.extract_strided_slice %0 {offsets = [0, 0, 1, 0], sizes = [2, 16, 16, 4], strides = [1, 1, 1, 1]} : vector<2x18x18x4xf32> to vector<2x16x16x4xf32>
    %8 = vector.shape_cast %7 : vector<2x16x16x4xf32> to vector<512x4xf32>
    %9 = arith.truncf %8 : vector<512x4xf32> to vector<512x4xbf16>
    %c0_7 = arith.constant 0 : index
    %c1 = arith.constant 1 : index
    %c0_8 = arith.constant 0 : index
    %c0_9 = arith.constant 0 : index
    %10 = vector.load %arg1[%c0_7, %c1, %c0_8, %c0_9] : memref<3x3x4x8xbf16, #tpu.memory_space<vmem>>, vector<1x1x4x8xbf16>
    %11 = vector.shape_cast %10 : vector<1x1x4x8xbf16> to vector<4x8xbf16>
    %cst_10 = arith.constant dense<0.000000e+00> : vector<512x8xf32>
    %12 = tpu.matmul %9, %11, %cst_10 {dimension_numbers = #tpu.dot_dimension_numbers<[1], [0], [0], [1], [0, 0, 1, 1], [], []>} : vector<512x4xbf16>, vector<4x8xbf16>, vector<512x8xf32> -> vector<512x8xf32>
    %13 = arith.addf %6, %12 : vector<512x8xf32>
    %14 = vector.extract_strided_slice %0 {offsets = [0, 0, 2, 0], sizes = [2, 16, 16, 4], strides = [1, 1, 1, 1]} : vector<2x18x18x4xf32> to vector<2x16x16x4xf32>
    %15 = vector.shape_cast %14 : vector<2x16x16x4xf32> to vector<512x4xf32>
    %16 = arith.truncf %15 : vector<512x4xf32> to vector<512x4xbf16>
    %c0_11 = arith.constant 0 : index
    %c2 = arith.constant 2 : index
    %c0_12 = arith.constant 0 : index
    %c0_13 = arith.constant 0 : index
    %17 = vector.load %arg1[%c0_11, %c2, %c0_12, %c0_13] : memref<3x3x4x8xbf16, #tpu.memory_space<vmem>>, vector<1x1x4x8xbf16>
    %18 = vector.shape_cast %17 : vector<1x1x4x8xbf16> to vector<4x8xbf16>
    %cst_14 = arith.constant dense<0.000000e+00> : vector<512x8xf32>
    %19 = tpu.matmul %16, %18, %cst_14 {dimension_numbers = #tpu.dot_dimension_numbers<[1], [0], [0], [1], [0, 0, 1, 1], [], []>} : vector<512x4xbf16>, vector<4x8xbf16>, vector<512x8xf32> -> vector<512x8xf32>
    %20 = arith.addf %13, %19 : vector<512x8xf32>
    %21 = vector.extract_strided_slice %0 {offsets = [0, 1, 0, 0], sizes = [2, 16, 16, 4], strides = [1, 1, 1, 1]} : vector<2x18x18x4xf32> to vector<2x16x16x4xf32>
    %22 = vector.shape_cast %21 : vector<2x16x16x4xf32> to vector<512x4xf32>
    %23 = arith.truncf %22 : vector<512x4xf32> to vector<512x4xbf16>
    %c1_15 = arith.constant 1 : index
    %c0_16 = arith.constant 0 : index
    %c0_17 = arith.constant 0 : index
    %c0_18 = arith.constant 0 : index
    %24 = vector.load %arg1[%c1_15, %c0_16, %c0_17, %c0_18] : memref<3x3x4x8xbf16, #tpu.memory_space<vmem>>, vector<1x1x4x8xbf16>
    %25 = vector.shape_cast %24 : vector<1x1x4x8xbf16> to vector<4x8xbf16>
    %cst_19 = arith.constant dense<0.000000e+00> : vector<512x8xf32>
    %26 = tpu.matmul %23, %25, %cst_19 {dimension_numbers = #tpu.dot_dimension_numbers<[1], [0], [0], [1], [0, 0, 1, 1], [], []>} : vector<512x4xbf16>, vector<4x8xbf16>, vector<512x8xf32> -> vector<512x8xf32>
    %27 = arith.addf %20, %26 : vector<512x8xf32>
    %28 = vector.extract_strided_slice %0 {offsets = [0, 1, 1, 0], sizes = [2, 16, 16, 4], strides = [1, 1, 1, 1]} : vector<2x18x18x4xf32> to vector<2x16x16x4xf32>
    %29 = vector.shape_cast %28 : vector<2x16x16x4xf32> to vector<512x4xf32>
    %30 = arith.truncf %29 : vector<512x4xf32> to vector<512x4xbf16>
    %c1_20 = arith.constant 1 : index
    %c1_21 = arith.constant 1 : index
    %c0_22 = arith.constant 0 : index
    %c0_23 = arith.constant 0 : index
    %31 = vector.load %arg1[%c1_20, %c1_21, %c0_22, %c0_23] : memref<3x3x4x8xbf16, #tpu.memory_space<vmem>>, vector<1x1x4x8xbf16>
    %32 = vector.shape_cast %31 : vector<1x1x4x8xbf16> to vector<4x8xbf16>
    %cst_24 = arith.constant dense<0.000000e+00> : vector<512x8xf32>
    %33 = tpu.matmul %30, %32, %cst_24 {dimension_numbers = #tpu.dot_dimension_numbers<[1], [0], [0], [1], [0, 0, 1, 1], [], []>} : vector<512x4xbf16>, vector<4x8xbf16>, vector<512x8xf32> -> vector<512x8xf32>
    %34 = arith.addf %27, %33 : vector<512x8xf32>
    %35 = vector.extract_strided_slice %0 {offsets = [0, 1, 2, 0], sizes = [2, 16, 16, 4], strides = [1, 1, 1, 1]} : vector<2x18x18x4xf32> to vector<2x16x16x4xf32>
    %36 = vector.shape_cast %35 : vector<2x16x16x4xf32> to vector<512x4xf32>
    %37 = arith.truncf %36 : vector<512x4xf32> to vector<512x4xbf16>
    %c1_25 = arith.constant 1 : index
    %c2_26 = arith.constant 2 : index
    %c0_27 = arith.constant 0 : index
    %c0_28 = arith.constant 0 : index
    %38 = vector.load %arg1[%c1_25, %c2_26, %c0_27, %c0_28] : memref<3x3x4x8xbf16, #tpu.memory_space<vmem>>, vector<1x1x4x8xbf16>
    %39 = vector.shape_cast %38 : vector<1x1x4x8xbf16> to vector<4x8xbf16>
    %cst_29 = arith.constant dense<0.000000e+00> : vector<512x8xf32>
    %40 = tpu.matmul %37, %39, %cst_29 {dimension_numbers = #tpu.dot_dimension_numbers<[1], [0], [0], [1], [0, 0, 1, 1], [], []>} : vector<512x4xbf16>, vector<4x8xbf16>, vector<512x8xf32> -> vector<512x8xf32>
    %41 = arith.addf %34, %40 : vector<512x8xf32>
    %42 = vector.extract_strided_slice %0 {offsets = [0, 2, 0, 0], sizes = [2, 16, 16, 4], strides = [1, 1, 1, 1]} : vector<2x18x18x4xf32> to vector<2x16x16x4xf32>
    %43 = vector.shape_cast %42 : vector<2x16x16x4xf32> to vector<512x4xf32>
    %44 = arith.truncf %43 : vector<512x4xf32> to vector<512x4xbf16>
    %c2_30 = arith.constant 2 : index
    %c0_31 = arith.constant 0 : index
    %c0_32 = arith.constant 0 : index
    %c0_33 = arith.constant 0 : index
    %45 = vector.load %arg1[%c2_30, %c0_31, %c0_32, %c0_33] : memref<3x3x4x8xbf16, #tpu.memory_space<vmem>>, vector<1x1x4x8xbf16>
    %46 = vector.shape_cast %45 : vector<1x1x4x8xbf16> to vector<4x8xbf16>
    %cst_34 = arith.constant dense<0.000000e+00> : vector<512x8xf32>
    %47 = tpu.matmul %44, %46, %cst_34 {dimension_numbers = #tpu.dot_dimension_numbers<[1], [0], [0], [1], [0, 0, 1, 1], [], []>} : vector<512x4xbf16>, vector<4x8xbf16>, vector<512x8xf32> -> vector<512x8xf32>
    %48 = arith.addf %41, %47 : vector<512x8xf32>
    %49 = vector.extract_strided_slice %0 {offsets = [0, 2, 1, 0], sizes = [2, 16, 16, 4], strides = [1, 1, 1, 1]} : vector<2x18x18x4xf32> to vector<2x16x16x4xf32>
    %50 = vector.shape_cast %49 : vector<2x16x16x4xf32> to vector<512x4xf32>
    %51 = arith.truncf %50 : vector<512x4xf32> to vector<512x4xbf16>
    %c2_35 = arith.constant 2 : index
    %c1_36 = arith.constant 1 : index
    %c0_37 = arith.constant 0 : index
    %c0_38 = arith.constant 0 : index
    %52 = vector.load %arg1[%c2_35, %c1_36, %c0_37, %c0_38] : memref<3x3x4x8xbf16, #tpu.memory_space<vmem>>, vector<1x1x4x8xbf16>
    %53 = vector.shape_cast %52 : vector<1x1x4x8xbf16> to vector<4x8xbf16>
    %cst_39 = arith.constant dense<0.000000e+00> : vector<512x8xf32>
    %54 = tpu.matmul %51, %53, %cst_39 {dimension_numbers = #tpu.dot_dimension_numbers<[1], [0], [0], [1], [0, 0, 1, 1], [], []>} : vector<512x4xbf16>, vector<4x8xbf16>, vector<512x8xf32> -> vector<512x8xf32>
    %55 = arith.addf %48, %54 : vector<512x8xf32>
    %56 = vector.extract_strided_slice %0 {offsets = [0, 2, 2, 0], sizes = [2, 16, 16, 4], strides = [1, 1, 1, 1]} : vector<2x18x18x4xf32> to vector<2x16x16x4xf32>
    %57 = vector.shape_cast %56 : vector<2x16x16x4xf32> to vector<512x4xf32>
    %58 = arith.truncf %57 : vector<512x4xf32> to vector<512x4xbf16>
    %c2_40 = arith.constant 2 : index
    %c2_41 = arith.constant 2 : index
    %c0_42 = arith.constant 0 : index
    %c0_43 = arith.constant 0 : index
    %59 = vector.load %arg1[%c2_40, %c2_41, %c0_42, %c0_43] : memref<3x3x4x8xbf16, #tpu.memory_space<vmem>>, vector<1x1x4x8xbf16>
    %60 = vector.shape_cast %59 : vector<1x1x4x8xbf16> to vector<4x8xbf16>
    %cst_44 = arith.constant dense<0.000000e+00> : vector<512x8xf32>
    %61 = tpu.matmul %58, %60, %cst_44 {dimension_numbers = #tpu.dot_dimension_numbers<[1], [0], [0], [1], [0, 0, 1, 1], [], []>} : vector<512x4xbf16>, vector<4x8xbf16>, vector<512x8xf32> -> vector<512x8xf32>
    %62 = arith.addf %55, %61 : vector<512x8xf32>
    %cst_45 = arith.constant dense<0.000000e+00> : vector<8xf32>
    %63 = vector.multi_reduction <add>, %62, %cst_45 [0] : vector<512x8xf32> to vector<8xf32>
    %64 = vector.shape_cast %63 : vector<8xf32> to vector<1x8xf32>
    %cst_46 = arith.constant 0.001953125 : f32
    %65 = vector.broadcast %cst_46 : f32 to vector<1x8xf32>
    %66 = arith.mulf %64, %65 : vector<1x8xf32>
    %67 = arith.mulf %62, %62 : vector<512x8xf32>
    %cst_47 = arith.constant dense<0.000000e+00> : vector<8xf32>
    %68 = vector.multi_reduction <add>, %67, %cst_47 [0] : vector<512x8xf32> to vector<8xf32>
    %69 = vector.shape_cast %68 : vector<8xf32> to vector<1x8xf32>
    %cst_48 = arith.constant 0.001953125 : f32
    %70 = vector.broadcast %cst_48 : f32 to vector<1x8xf32>
    %71 = arith.mulf %69, %70 : vector<1x8xf32>
    %72 = arith.mulf %66, %66 : vector<1x8xf32>
    %73 = arith.subf %71, %72 : vector<1x8xf32>
    %cst_49 = arith.constant 0.000000e+00 : f32
    %74 = vector.broadcast %cst_49 : f32 to vector<1x8xf32>
    %75 = arith.maximumf %73, %74 : vector<1x8xf32>
    %76 = vector.broadcast %66 : vector<1x8xf32> to vector<512x8xf32>
    %77 = arith.subf %62, %76 : vector<512x8xf32>
    %cst_50 = arith.constant 9.99999974E-6 : f32
    %78 = vector.broadcast %cst_50 : f32 to vector<1x8xf32>
    %79 = arith.addf %75, %78 : vector<1x8xf32>
    %80 = math.rsqrt %79 : vector<1x8xf32>
    %c0_51 = arith.constant 0 : index
    %c0_52 = arith.constant 0 : index
    %81 = vector.load %arg2[%c0_51, %c0_52] : memref<1x8xf32, #tpu.memory_space<vmem>>, vector<1x8xf32>
    %82 = arith.mulf %80, %81 : vector<1x8xf32>
    %83 = vector.broadcast %82 : vector<1x8xf32> to vector<512x8xf32>
    %84 = arith.mulf %77, %83 : vector<512x8xf32>
    %c0_53 = arith.constant 0 : index
    %c0_54 = arith.constant 0 : index
    %85 = vector.load %arg3[%c0_53, %c0_54] : memref<1x8xf32, #tpu.memory_space<vmem>>, vector<1x8xf32>
    %86 = vector.broadcast %85 : vector<1x8xf32> to vector<512x8xf32>
    %87 = arith.addf %84, %86 : vector<512x8xf32>
    %cst_55 = arith.constant 0.000000e+00 : f32
    %88 = vector.broadcast %cst_55 : f32 to vector<512x8xf32>
    %89 = arith.cmpf ogt, %87, %88 : vector<512x8xf32>
    %cst_56 = arith.constant 1.000000e-01 : f32
    %90 = vector.broadcast %cst_56 : f32 to vector<512x8xf32>
    %91 = arith.mulf %90, %87 : vector<512x8xf32>
    %92 = arith.select %89, %87, %91 : vector<512x8xi1>, vector<512x8xf32>
    %93 = arith.truncf %92 : vector<512x8xf32> to vector<512x8xbf16>
    %c0_57 = arith.constant 0 : index
    %c0_58 = arith.constant 0 : index
    %94 = vector.load %arg4[%c0_57, %c0_58] : memref<512x8xbf16, #tpu.memory_space<vmem>>, vector<512x8xbf16>
    tpu.vector_store %arg4[%c0_57, %c0_58], %93 {strides = array<i32>} : memref<512x8xbf16, #tpu.memory_space<vmem>>, vector<512x8xbf16>,
    return
  }
}

module attributes {stable_mosaic.version = 11 : i64} {
  func.func @_conv_bn_act_kernel(%arg0: memref<2x8x8x16xbf16, #tpu.memory_space<vmem>>, %arg1: memref<1x1x16x8xbf16, #tpu.memory_space<vmem>>, %arg2: memref<1x8xf32, #tpu.memory_space<vmem>>, %arg3: memref<1x8xf32, #tpu.memory_space<vmem>>, %arg4: memref<128x8xbf16, #tpu.memory_space<vmem>>) attributes {dimension_semantics = [], scalar_prefetch = 0 : i64, scratch_operands = 0 : i64, tpu.core_type = #tpu.core_type<tc>} {
    %c0 = arith.constant 0 : index
    %c0_0 = arith.constant 0 : index
    %c0_1 = arith.constant 0 : index
    %c0_2 = arith.constant 0 : index
    %0 = vector.load %arg0[%c0, %c0_0, %c0_1, %c0_2] : memref<2x8x8x16xbf16, #tpu.memory_space<vmem>>, vector<2x8x8x16xbf16>
    %1 = arith.extf %0 : vector<2x8x8x16xbf16> to vector<2x8x8x16xf32>
    %2 = vector.shape_cast %1 : vector<2x8x8x16xf32> to vector<128x16xf32>
    %3 = arith.truncf %2 : vector<128x16xf32> to vector<128x16xbf16>
    %c0_3 = arith.constant 0 : index
    %c0_4 = arith.constant 0 : index
    %c0_5 = arith.constant 0 : index
    %c0_6 = arith.constant 0 : index
    %4 = vector.load %arg1[%c0_3, %c0_4, %c0_5, %c0_6] : memref<1x1x16x8xbf16, #tpu.memory_space<vmem>>, vector<1x1x16x8xbf16>
    %5 = vector.shape_cast %4 : vector<1x1x16x8xbf16> to vector<16x8xbf16>
    %cst = arith.constant dense<0.000000e+00> : vector<128x8xf32>
    %6 = tpu.matmul %3, %5, %cst {dimension_numbers = #tpu.dot_dimension_numbers<[1], [0], [0], [1], [0, 0, 1, 1], [], []>} : vector<128x16xbf16>, vector<16x8xbf16>, vector<128x8xf32> -> vector<128x8xf32>
    %cst_7 = arith.constant dense<0.000000e+00> : vector<8xf32>
    %7 = vector.multi_reduction <add>, %6, %cst_7 [0] : vector<128x8xf32> to vector<8xf32>
    %8 = vector.shape_cast %7 : vector<8xf32> to vector<1x8xf32>
    %cst_8 = arith.constant 7.812500e-03 : f32
    %9 = vector.broadcast %cst_8 : f32 to vector<1x8xf32>
    %10 = arith.mulf %8, %9 : vector<1x8xf32>
    %11 = arith.mulf %6, %6 : vector<128x8xf32>
    %cst_9 = arith.constant dense<0.000000e+00> : vector<8xf32>
    %12 = vector.multi_reduction <add>, %11, %cst_9 [0] : vector<128x8xf32> to vector<8xf32>
    %13 = vector.shape_cast %12 : vector<8xf32> to vector<1x8xf32>
    %cst_10 = arith.constant 7.812500e-03 : f32
    %14 = vector.broadcast %cst_10 : f32 to vector<1x8xf32>
    %15 = arith.mulf %13, %14 : vector<1x8xf32>
    %16 = arith.mulf %10, %10 : vector<1x8xf32>
    %17 = arith.subf %15, %16 : vector<1x8xf32>
    %cst_11 = arith.constant 0.000000e+00 : f32
    %18 = vector.broadcast %cst_11 : f32 to vector<1x8xf32>
    %19 = arith.maximumf %17, %18 : vector<1x8xf32>
    %20 = vector.broadcast %10 : vector<1x8xf32> to vector<128x8xf32>
    %21 = arith.subf %6, %20 : vector<128x8xf32>
    %cst_12 = arith.constant 9.99999974E-6 : f32
    %22 = vector.broadcast %cst_12 : f32 to vector<1x8xf32>
    %23 = arith.addf %19, %22 : vector<1x8xf32>
    %24 = math.rsqrt %23 : vector<1x8xf32>
    %c0_13 = arith.constant 0 : index
    %c0_14 = arith.constant 0 : index
    %25 = vector.load %arg2[%c0_13, %c0_14] : memref<1x8xf32, #tpu.memory_space<vmem>>, vector<1x8xf32>
    %26 = arith.mulf %24, %25 : vector<1x8xf32>
    %27 = vector.broadcast %26 : vector<1x8xf32> to vector<128x8xf32>
    %28 = arith.mulf %21, %27 : vector<128x8xf32>
    %c0_15 = arith.constant 0 : index
    %c0_16 = arith.constant 0 : index
    %29 = vector.load %arg3[%c0_15, %c0_16] : memref<1x8xf32, #tpu.memory_space<vmem>>, vector<1x8xf32>
    %30 = vector.broadcast %29 : vector<1x8xf32> to vector<128x8xf32>
    %31 = arith.addf %28, %30 : vector<128x8xf32>
    %cst_17 = arith.constant 0.000000e+00 : f32
    %32 = vector.broadcast %cst_17 : f32 to vector<128x8xf32>
    %33 = arith.cmpf ogt, %31, %32 : vector<128x8xf32>
    %cst_18 = arith.constant 1.000000e-01 : f32
    %34 = vector.broadcast %cst_18 : f32 to vector<128x8xf32>
    %35 = arith.mulf %34, %31 : vector<128x8xf32>
    %36 = arith.select %33, %31, %35 : vector<128x8xi1>, vector<128x8xf32>
    %37 = arith.truncf %36 : vector<128x8xf32> to vector<128x8xbf16>
    %c0_19 = arith.constant 0 : index
    %c0_20 = arith.constant 0 : index
    %38 = vector.load %arg4[%c0_19, %c0_20] : memref<128x8xbf16, #tpu.memory_space<vmem>>, vector<128x8xbf16>
    tpu.vector_store %arg4[%c0_19, %c0_20], %37 {strides = array<i32>} : memref<128x8xbf16, #tpu.memory_space<vmem>>, vector<128x8xbf16>,
    return
  }
}

module attributes {stable_mosaic.version = 11 : i64} {
  func.func @_conv_bn_act_kernel(%arg0: memref<2x10x10x8xbf16, #tpu.memory_space<vmem>>, %arg1: memref<3x3x8x16xbf16, #tpu.memory_space<vmem>>, %arg2: memref<1x16xf32, #tpu.memory_space<vmem>>, %arg3: memref<1x16xf32, #tpu.memory_space<vmem>>, %arg4: memref<128x16xbf16, #tpu.memory_space<vmem>>) attributes {dimension_semantics = [], scalar_prefetch = 0 : i64, scratch_operands = 0 : i64, tpu.core_type = #tpu.core_type<tc>} {
    %c0 = arith.constant 0 : index
    %c0_0 = arith.constant 0 : index
    %c0_1 = arith.constant 0 : index
    %c0_2 = arith.constant 0 : index
    %0 = vector.load %arg0[%c0, %c0_0, %c0_1, %c0_2] : memref<2x10x10x8xbf16, #tpu.memory_space<vmem>>, vector<2x10x10x8xbf16>
    %1 = arith.extf %0 : vector<2x10x10x8xbf16> to vector<2x10x10x8xf32>
    %2 = vector.extract_strided_slice %1 {offsets = [0, 0, 0, 0], sizes = [2, 8, 8, 8], strides = [1, 1, 1, 1]} : vector<2x10x10x8xf32> to vector<2x8x8x8xf32>
    %3 = vector.shape_cast %2 : vector<2x8x8x8xf32> to vector<128x8xf32>
    %4 = arith.truncf %3 : vector<128x8xf32> to vector<128x8xbf16>
    %c0_3 = arith.constant 0 : index
    %c0_4 = arith.constant 0 : index
    %c0_5 = arith.constant 0 : index
    %c0_6 = arith.constant 0 : index
    %5 = vector.load %arg1[%c0_3, %c0_4, %c0_5, %c0_6] : memref<3x3x8x16xbf16, #tpu.memory_space<vmem>>, vector<1x1x8x16xbf16>
    %6 = vector.shape_cast %5 : vector<1x1x8x16xbf16> to vector<8x16xbf16>
    %cst = arith.constant dense<0.000000e+00> : vector<128x16xf32>
    %7 = tpu.matmul %4, %6, %cst {dimension_numbers = #tpu.dot_dimension_numbers<[1], [0], [0], [1], [0, 0, 1, 1], [], []>} : vector<128x8xbf16>, vector<8x16xbf16>, vector<128x16xf32> -> vector<128x16xf32>
    %8 = vector.extract_strided_slice %1 {offsets = [0, 0, 1, 0], sizes = [2, 8, 8, 8], strides = [1, 1, 1, 1]} : vector<2x10x10x8xf32> to vector<2x8x8x8xf32>
    %9 = vector.shape_cast %8 : vector<2x8x8x8xf32> to vector<128x8xf32>
    %10 = arith.truncf %9 : vector<128x8xf32> to vector<128x8xbf16>
    %c0_7 = arith.constant 0 : index
    %c1 = arith.constant 1 : index
    %c0_8 = arith.constant 0 : index
    %c0_9 = arith.constant 0 : index
    %11 = vector.load %arg1[%c0_7, %c1, %c0_8, %c0_9] : memref<3x3x8x16xbf16, #tpu.memory_space<vmem>>, vector<1x1x8x16xbf16>
    %12 = vector.shape_cast %11 : vector<1x1x8x16xbf16> to vector<8x16xbf16>
    %cst_10 = arith.constant dense<0.000000e+00> : vector<128x16xf32>
    %13 = tpu.matmul %10, %12, %cst_10 {dimension_numbers = #tpu.dot_dimension_numbers<[1], [0], [0], [1], [0, 0, 1, 1], [], []>} : vector<128x8xbf16>, vector<8x16xbf16>, vector<128x16xf32> -> vector<128x16xf32>
    %14 = arith.addf %7, %13 : vector<128x16xf32>
    %15 = vector.extract_strided_slice %1 {offsets = [0, 0, 2, 0], sizes = [2, 8, 8, 8], strides = [1, 1, 1, 1]} : vector<2x10x10x8xf32> to vector<2x8x8x8xf32>
    %16 = vector.shape_cast %15 : vector<2x8x8x8xf32> to vector<128x8xf32>
    %17 = arith.truncf %16 : vector<128x8xf32> to vector<128x8xbf16>
    %c0_11 = arith.constant 0 : index
    %c2 = arith.constant 2 : index
    %c0_12 = arith.constant 0 : index
    %c0_13 = arith.constant 0 : index
    %18 = vector.load %arg1[%c0_11, %c2, %c0_12, %c0_13] : memref<3x3x8x16xbf16, #tpu.memory_space<vmem>>, vector<1x1x8x16xbf16>
    %19 = vector.shape_cast %18 : vector<1x1x8x16xbf16> to vector<8x16xbf16>
    %cst_14 = arith.constant dense<0.000000e+00> : vector<128x16xf32>
    %20 = tpu.matmul %17, %19, %cst_14 {dimension_numbers = #tpu.dot_dimension_numbers<[1], [0], [0], [1], [0, 0, 1, 1], [], []>} : vector<128x8xbf16>, vector<8x16xbf16>, vector<128x16xf32> -> vector<128x16xf32>
    %21 = arith.addf %14, %20 : vector<128x16xf32>
    %22 = vector.extract_strided_slice %1 {offsets = [0, 1, 0, 0], sizes = [2, 8, 8, 8], strides = [1, 1, 1, 1]} : vector<2x10x10x8xf32> to vector<2x8x8x8xf32>
    %23 = vector.shape_cast %22 : vector<2x8x8x8xf32> to vector<128x8xf32>
    %24 = arith.truncf %23 : vector<128x8xf32> to vector<128x8xbf16>
    %c1_15 = arith.constant 1 : index
    %c0_16 = arith.constant 0 : index
    %c0_17 = arith.constant 0 : index
    %c0_18 = arith.constant 0 : index
    %25 = vector.load %arg1[%c1_15, %c0_16, %c0_17, %c0_18] : memref<3x3x8x16xbf16, #tpu.memory_space<vmem>>, vector<1x1x8x16xbf16>
    %26 = vector.shape_cast %25 : vector<1x1x8x16xbf16> to vector<8x16xbf16>
    %cst_19 = arith.constant dense<0.000000e+00> : vector<128x16xf32>
    %27 = tpu.matmul %24, %26, %cst_19 {dimension_numbers = #tpu.dot_dimension_numbers<[1], [0], [0], [1], [0, 0, 1, 1], [], []>} : vector<128x8xbf16>, vector<8x16xbf16>, vector<128x16xf32> -> vector<128x16xf32>
    %28 = arith.addf %21, %27 : vector<128x16xf32>
    %29 = vector.extract_strided_slice %1 {offsets = [0, 1, 1, 0], sizes = [2, 8, 8, 8], strides = [1, 1, 1, 1]} : vector<2x10x10x8xf32> to vector<2x8x8x8xf32>
    %30 = vector.shape_cast %29 : vector<2x8x8x8xf32> to vector<128x8xf32>
    %31 = arith.truncf %30 : vector<128x8xf32> to vector<128x8xbf16>
    %c1_20 = arith.constant 1 : index
    %c1_21 = arith.constant 1 : index
    %c0_22 = arith.constant 0 : index
    %c0_23 = arith.constant 0 : index
    %32 = vector.load %arg1[%c1_20, %c1_21, %c0_22, %c0_23] : memref<3x3x8x16xbf16, #tpu.memory_space<vmem>>, vector<1x1x8x16xbf16>
    %33 = vector.shape_cast %32 : vector<1x1x8x16xbf16> to vector<8x16xbf16>
    %cst_24 = arith.constant dense<0.000000e+00> : vector<128x16xf32>
    %34 = tpu.matmul %31, %33, %cst_24 {dimension_numbers = #tpu.dot_dimension_numbers<[1], [0], [0], [1], [0, 0, 1, 1], [], []>} : vector<128x8xbf16>, vector<8x16xbf16>, vector<128x16xf32> -> vector<128x16xf32>
    %35 = arith.addf %28, %34 : vector<128x16xf32>
    %36 = vector.extract_strided_slice %1 {offsets = [0, 1, 2, 0], sizes = [2, 8, 8, 8], strides = [1, 1, 1, 1]} : vector<2x10x10x8xf32> to vector<2x8x8x8xf32>
    %37 = vector.shape_cast %36 : vector<2x8x8x8xf32> to vector<128x8xf32>
    %38 = arith.truncf %37 : vector<128x8xf32> to vector<128x8xbf16>
    %c1_25 = arith.constant 1 : index
    %c2_26 = arith.constant 2 : index
    %c0_27 = arith.constant 0 : index
    %c0_28 = arith.constant 0 : index
    %39 = vector.load %arg1[%c1_25, %c2_26, %c0_27, %c0_28] : memref<3x3x8x16xbf16, #tpu.memory_space<vmem>>, vector<1x1x8x16xbf16>
    %40 = vector.shape_cast %39 : vector<1x1x8x16xbf16> to vector<8x16xbf16>
    %cst_29 = arith.constant dense<0.000000e+00> : vector<128x16xf32>
    %41 = tpu.matmul %38, %40, %cst_29 {dimension_numbers = #tpu.dot_dimension_numbers<[1], [0], [0], [1], [0, 0, 1, 1], [], []>} : vector<128x8xbf16>, vector<8x16xbf16>, vector<128x16xf32> -> vector<128x16xf32>
    %42 = arith.addf %35, %41 : vector<128x16xf32>
    %43 = vector.extract_strided_slice %1 {offsets = [0, 2, 0, 0], sizes = [2, 8, 8, 8], strides = [1, 1, 1, 1]} : vector<2x10x10x8xf32> to vector<2x8x8x8xf32>
    %44 = vector.shape_cast %43 : vector<2x8x8x8xf32> to vector<128x8xf32>
    %45 = arith.truncf %44 : vector<128x8xf32> to vector<128x8xbf16>
    %c2_30 = arith.constant 2 : index
    %c0_31 = arith.constant 0 : index
    %c0_32 = arith.constant 0 : index
    %c0_33 = arith.constant 0 : index
    %46 = vector.load %arg1[%c2_30, %c0_31, %c0_32, %c0_33] : memref<3x3x8x16xbf16, #tpu.memory_space<vmem>>, vector<1x1x8x16xbf16>
    %47 = vector.shape_cast %46 : vector<1x1x8x16xbf16> to vector<8x16xbf16>
    %cst_34 = arith.constant dense<0.000000e+00> : vector<128x16xf32>
    %48 = tpu.matmul %45, %47, %cst_34 {dimension_numbers = #tpu.dot_dimension_numbers<[1], [0], [0], [1], [0, 0, 1, 1], [], []>} : vector<128x8xbf16>, vector<8x16xbf16>, vector<128x16xf32> -> vector<128x16xf32>
    %49 = arith.addf %42, %48 : vector<128x16xf32>
    %50 = vector.extract_strided_slice %1 {offsets = [0, 2, 1, 0], sizes = [2, 8, 8, 8], strides = [1, 1, 1, 1]} : vector<2x10x10x8xf32> to vector<2x8x8x8xf32>
    %51 = vector.shape_cast %50 : vector<2x8x8x8xf32> to vector<128x8xf32>
    %52 = arith.truncf %51 : vector<128x8xf32> to vector<128x8xbf16>
    %c2_35 = arith.constant 2 : index
    %c1_36 = arith.constant 1 : index
    %c0_37 = arith.constant 0 : index
    %c0_38 = arith.constant 0 : index
    %53 = vector.load %arg1[%c2_35, %c1_36, %c0_37, %c0_38] : memref<3x3x8x16xbf16, #tpu.memory_space<vmem>>, vector<1x1x8x16xbf16>
    %54 = vector.shape_cast %53 : vector<1x1x8x16xbf16> to vector<8x16xbf16>
    %cst_39 = arith.constant dense<0.000000e+00> : vector<128x16xf32>
    %55 = tpu.matmul %52, %54, %cst_39 {dimension_numbers = #tpu.dot_dimension_numbers<[1], [0], [0], [1], [0, 0, 1, 1], [], []>} : vector<128x8xbf16>, vector<8x16xbf16>, vector<128x16xf32> -> vector<128x16xf32>
    %56 = arith.addf %49, %55 : vector<128x16xf32>
    %57 = vector.extract_strided_slice %1 {offsets = [0, 2, 2, 0], sizes = [2, 8, 8, 8], strides = [1, 1, 1, 1]} : vector<2x10x10x8xf32> to vector<2x8x8x8xf32>
    %58 = vector.shape_cast %57 : vector<2x8x8x8xf32> to vector<128x8xf32>
    %59 = arith.truncf %58 : vector<128x8xf32> to vector<128x8xbf16>
    %c2_40 = arith.constant 2 : index
    %c2_41 = arith.constant 2 : index
    %c0_42 = arith.constant 0 : index
    %c0_43 = arith.constant 0 : index
    %60 = vector.load %arg1[%c2_40, %c2_41, %c0_42, %c0_43] : memref<3x3x8x16xbf16, #tpu.memory_space<vmem>>, vector<1x1x8x16xbf16>
    %61 = vector.shape_cast %60 : vector<1x1x8x16xbf16> to vector<8x16xbf16>
    %cst_44 = arith.constant dense<0.000000e+00> : vector<128x16xf32>
    %62 = tpu.matmul %59, %61, %cst_44 {dimension_numbers = #tpu.dot_dimension_numbers<[1], [0], [0], [1], [0, 0, 1, 1], [], []>} : vector<128x8xbf16>, vector<8x16xbf16>, vector<128x16xf32> -> vector<128x16xf32>
    %63 = arith.addf %56, %62 : vector<128x16xf32>
    %cst_45 = arith.constant dense<0.000000e+00> : vector<16xf32>
    %64 = vector.multi_reduction <add>, %63, %cst_45 [0] : vector<128x16xf32> to vector<16xf32>
    %65 = vector.shape_cast %64 : vector<16xf32> to vector<1x16xf32>
    %cst_46 = arith.constant 7.812500e-03 : f32
    %66 = vector.broadcast %cst_46 : f32 to vector<1x16xf32>
    %67 = arith.mulf %65, %66 : vector<1x16xf32>
    %68 = arith.mulf %63, %63 : vector<128x16xf32>
    %cst_47 = arith.constant dense<0.000000e+00> : vector<16xf32>
    %69 = vector.multi_reduction <add>, %68, %cst_47 [0] : vector<128x16xf32> to vector<16xf32>
    %70 = vector.shape_cast %69 : vector<16xf32> to vector<1x16xf32>
    %cst_48 = arith.constant 7.812500e-03 : f32
    %71 = vector.broadcast %cst_48 : f32 to vector<1x16xf32>
    %72 = arith.mulf %70, %71 : vector<1x16xf32>
    %73 = arith.mulf %67, %67 : vector<1x16xf32>
    %74 = arith.subf %72, %73 : vector<1x16xf32>
    %cst_49 = arith.constant 0.000000e+00 : f32
    %75 = vector.broadcast %cst_49 : f32 to vector<1x16xf32>
    %76 = arith.maximumf %74, %75 : vector<1x16xf32>
    %77 = vector.broadcast %67 : vector<1x16xf32> to vector<128x16xf32>
    %78 = arith.subf %63, %77 : vector<128x16xf32>
    %cst_50 = arith.constant 9.99999974E-6 : f32
    %79 = vector.broadcast %cst_50 : f32 to vector<1x16xf32>
    %80 = arith.addf %76, %79 : vector<1x16xf32>
    %81 = math.rsqrt %80 : vector<1x16xf32>
    %c0_51 = arith.constant 0 : index
    %c0_52 = arith.constant 0 : index
    %82 = vector.load %arg2[%c0_51, %c0_52] : memref<1x16xf32, #tpu.memory_space<vmem>>, vector<1x16xf32>
    %83 = arith.mulf %81, %82 : vector<1x16xf32>
    %84 = vector.broadcast %83 : vector<1x16xf32> to vector<128x16xf32>
    %85 = arith.mulf %78, %84 : vector<128x16xf32>
    %c0_53 = arith.constant 0 : index
    %c0_54 = arith.constant 0 : index
    %86 = vector.load %arg3[%c0_53, %c0_54] : memref<1x16xf32, #tpu.memory_space<vmem>>, vector<1x16xf32>
    %87 = vector.broadcast %86 : vector<1x16xf32> to vector<128x16xf32>
    %88 = arith.addf %85, %87 : vector<128x16xf32>
    %cst_55 = arith.constant 0.000000e+00 : f32
    %89 = vector.broadcast %cst_55 : f32 to vector<128x16xf32>
    %90 = arith.cmpf ogt, %88, %89 : vector<128x16xf32>
    %cst_56 = arith.constant 1.000000e-01 : f32
    %91 = vector.broadcast %cst_56 : f32 to vector<128x16xf32>
    %92 = arith.mulf %91, %88 : vector<128x16xf32>
    %93 = arith.select %90, %88, %92 : vector<128x16xi1>, vector<128x16xf32>
    %94 = arith.truncf %93 : vector<128x16xf32> to vector<128x16xbf16>
    %c0_57 = arith.constant 0 : index
    %c0_58 = arith.constant 0 : index
    %95 = vector.load %arg4[%c0_57, %c0_58] : memref<128x16xbf16, #tpu.memory_space<vmem>>, vector<128x16xbf16>
    tpu.vector_store %arg4[%c0_57, %c0_58], %94 {strides = array<i32>} : memref<128x16xbf16, #tpu.memory_space<vmem>>, vector<128x16xbf16>,
    return
  }
}

module attributes {stable_mosaic.version = 11 : i64} {
  func.func @_conv_bn_act_kernel(%arg0: memref<2x8x8x16xbf16, #tpu.memory_space<vmem>>, %arg1: memref<1x1x16x12xbf16, #tpu.memory_space<vmem>>, %arg2: memref<1x12xf32, #tpu.memory_space<vmem>>, %arg3: memref<1x12xf32, #tpu.memory_space<vmem>>, %arg4: memref<128x12xf32, #tpu.memory_space<vmem>>) attributes {dimension_semantics = [], scalar_prefetch = 0 : i64, scratch_operands = 0 : i64, tpu.core_type = #tpu.core_type<tc>} {
    %c0 = arith.constant 0 : index
    %c0_0 = arith.constant 0 : index
    %c0_1 = arith.constant 0 : index
    %c0_2 = arith.constant 0 : index
    %0 = vector.load %arg0[%c0, %c0_0, %c0_1, %c0_2] : memref<2x8x8x16xbf16, #tpu.memory_space<vmem>>, vector<2x8x8x16xbf16>
    %1 = arith.extf %0 : vector<2x8x8x16xbf16> to vector<2x8x8x16xf32>
    %2 = vector.shape_cast %1 : vector<2x8x8x16xf32> to vector<128x16xf32>
    %3 = arith.truncf %2 : vector<128x16xf32> to vector<128x16xbf16>
    %c0_3 = arith.constant 0 : index
    %c0_4 = arith.constant 0 : index
    %c0_5 = arith.constant 0 : index
    %c0_6 = arith.constant 0 : index
    %4 = vector.load %arg1[%c0_3, %c0_4, %c0_5, %c0_6] : memref<1x1x16x12xbf16, #tpu.memory_space<vmem>>, vector<1x1x16x12xbf16>
    %5 = vector.shape_cast %4 : vector<1x1x16x12xbf16> to vector<16x12xbf16>
    %cst = arith.constant dense<0.000000e+00> : vector<128x12xf32>
    %6 = tpu.matmul %3, %5, %cst {dimension_numbers = #tpu.dot_dimension_numbers<[1], [0], [0], [1], [0, 0, 1, 1], [], []>} : vector<128x16xbf16>, vector<16x12xbf16>, vector<128x12xf32> -> vector<128x12xf32>
    %c0_7 = arith.constant 0 : index
    %c0_8 = arith.constant 0 : index
    %7 = vector.load %arg3[%c0_7, %c0_8] : memref<1x12xf32, #tpu.memory_space<vmem>>, vector<1x12xf32>
    %8 = vector.broadcast %7 : vector<1x12xf32> to vector<128x12xf32>
    %9 = arith.addf %6, %8 : vector<128x12xf32>
    %c0_9 = arith.constant 0 : index
    %c0_10 = arith.constant 0 : index
    %10 = vector.load %arg4[%c0_9, %c0_10] : memref<128x12xf32, #tpu.memory_space<vmem>>, vector<128x12xf32>
    tpu.vector_store %arg4[%c0_9, %c0_10], %9 {strides = array<i32>} : memref<128x12xf32, #tpu.memory_space<vmem>>, vector<128x12xf32>,
    return
  }
}

module attributes {stable_mosaic.version = 11 : i64} {
  func.func @_conv_bn_act_kernel(%arg0: memref<2x8x8x8xbf16, #tpu.memory_space<vmem>>, %arg1: memref<1x1x8x8xbf16, #tpu.memory_space<vmem>>, %arg2: memref<1x8xf32, #tpu.memory_space<vmem>>, %arg3: memref<1x8xf32, #tpu.memory_space<vmem>>, %arg4: memref<128x8xbf16, #tpu.memory_space<vmem>>) attributes {dimension_semantics = [], scalar_prefetch = 0 : i64, scratch_operands = 0 : i64, tpu.core_type = #tpu.core_type<tc>} {
    %c0 = arith.constant 0 : index
    %c0_0 = arith.constant 0 : index
    %c0_1 = arith.constant 0 : index
    %c0_2 = arith.constant 0 : index
    %0 = vector.load %arg0[%c0, %c0_0, %c0_1, %c0_2] : memref<2x8x8x8xbf16, #tpu.memory_space<vmem>>, vector<2x8x8x8xbf16>
    %1 = arith.extf %0 : vector<2x8x8x8xbf16> to vector<2x8x8x8xf32>
    %2 = vector.shape_cast %1 : vector<2x8x8x8xf32> to vector<128x8xf32>
    %3 = arith.truncf %2 : vector<128x8xf32> to vector<128x8xbf16>
    %c0_3 = arith.constant 0 : index
    %c0_4 = arith.constant 0 : index
    %c0_5 = arith.constant 0 : index
    %c0_6 = arith.constant 0 : index
    %4 = vector.load %arg1[%c0_3, %c0_4, %c0_5, %c0_6] : memref<1x1x8x8xbf16, #tpu.memory_space<vmem>>, vector<1x1x8x8xbf16>
    %5 = vector.shape_cast %4 : vector<1x1x8x8xbf16> to vector<8x8xbf16>
    %cst = arith.constant dense<0.000000e+00> : vector<128x8xf32>
    %6 = tpu.matmul %3, %5, %cst {dimension_numbers = #tpu.dot_dimension_numbers<[1], [0], [0], [1], [0, 0, 1, 1], [], []>} : vector<128x8xbf16>, vector<8x8xbf16>, vector<128x8xf32> -> vector<128x8xf32>
    %cst_7 = arith.constant dense<0.000000e+00> : vector<8xf32>
    %7 = vector.multi_reduction <add>, %6, %cst_7 [0] : vector<128x8xf32> to vector<8xf32>
    %8 = vector.shape_cast %7 : vector<8xf32> to vector<1x8xf32>
    %cst_8 = arith.constant 7.812500e-03 : f32
    %9 = vector.broadcast %cst_8 : f32 to vector<1x8xf32>
    %10 = arith.mulf %8, %9 : vector<1x8xf32>
    %11 = arith.mulf %6, %6 : vector<128x8xf32>
    %cst_9 = arith.constant dense<0.000000e+00> : vector<8xf32>
    %12 = vector.multi_reduction <add>, %11, %cst_9 [0] : vector<128x8xf32> to vector<8xf32>
    %13 = vector.shape_cast %12 : vector<8xf32> to vector<1x8xf32>
    %cst_10 = arith.constant 7.812500e-03 : f32
    %14 = vector.broadcast %cst_10 : f32 to vector<1x8xf32>
    %15 = arith.mulf %13, %14 : vector<1x8xf32>
    %16 = arith.mulf %10, %10 : vector<1x8xf32>
    %17 = arith.subf %15, %16 : vector<1x8xf32>
    %cst_11 = arith.constant 0.000000e+00 : f32
    %18 = vector.broadcast %cst_11 : f32 to vector<1x8xf32>
    %19 = arith.maximumf %17, %18 : vector<1x8xf32>
    %20 = vector.broadcast %10 : vector<1x8xf32> to vector<128x8xf32>
    %21 = arith.subf %6, %20 : vector<128x8xf32>
    %cst_12 = arith.constant 9.99999974E-6 : f32
    %22 = vector.broadcast %cst_12 : f32 to vector<1x8xf32>
    %23 = arith.addf %19, %22 : vector<1x8xf32>
    %24 = math.rsqrt %23 : vector<1x8xf32>
    %c0_13 = arith.constant 0 : index
    %c0_14 = arith.constant 0 : index
    %25 = vector.load %arg2[%c0_13, %c0_14] : memref<1x8xf32, #tpu.memory_space<vmem>>, vector<1x8xf32>
    %26 = arith.mulf %24, %25 : vector<1x8xf32>
    %27 = vector.broadcast %26 : vector<1x8xf32> to vector<128x8xf32>
    %28 = arith.mulf %21, %27 : vector<128x8xf32>
    %c0_15 = arith.constant 0 : index
    %c0_16 = arith.constant 0 : index
    %29 = vector.load %arg3[%c0_15, %c0_16] : memref<1x8xf32, #tpu.memory_space<vmem>>, vector<1x8xf32>
    %30 = vector.broadcast %29 : vector<1x8xf32> to vector<128x8xf32>
    %31 = arith.addf %28, %30 : vector<128x8xf32>
    %cst_17 = arith.constant 0.000000e+00 : f32
    %32 = vector.broadcast %cst_17 : f32 to vector<128x8xf32>
    %33 = arith.cmpf ogt, %31, %32 : vector<128x8xf32>
    %cst_18 = arith.constant 1.000000e-01 : f32
    %34 = vector.broadcast %cst_18 : f32 to vector<128x8xf32>
    %35 = arith.mulf %34, %31 : vector<128x8xf32>
    %36 = arith.select %33, %31, %35 : vector<128x8xi1>, vector<128x8xf32>
    %37 = arith.truncf %36 : vector<128x8xf32> to vector<128x8xbf16>
    %c0_19 = arith.constant 0 : index
    %c0_20 = arith.constant 0 : index
    %38 = vector.load %arg4[%c0_19, %c0_20] : memref<128x8xbf16, #tpu.memory_space<vmem>>, vector<128x8xbf16>
    tpu.vector_store %arg4[%c0_19, %c0_20], %37 {strides = array<i32>} : memref<128x8xbf16, #tpu.memory_space<vmem>>, vector<128x8xbf16>,
    return
  }
}

module attributes {stable_mosaic.version = 11 : i64} {
  func.func @_conv_bn_act_kernel(%arg0: memref<2x18x18x16xbf16, #tpu.memory_space<vmem>>, %arg1: memref<3x3x16x16xbf16, #tpu.memory_space<vmem>>, %arg2: memref<1x16xf32, #tpu.memory_space<vmem>>, %arg3: memref<1x16xf32, #tpu.memory_space<vmem>>, %arg4: memref<512x16xbf16, #tpu.memory_space<vmem>>) attributes {dimension_semantics = [], scalar_prefetch = 0 : i64, scratch_operands = 0 : i64, tpu.core_type = #tpu.core_type<tc>} {
    %c0 = arith.constant 0 : index
    %c0_0 = arith.constant 0 : index
    %c0_1 = arith.constant 0 : index
    %c0_2 = arith.constant 0 : index
    %0 = vector.load %arg0[%c0, %c0_0, %c0_1, %c0_2] : memref<2x18x18x16xbf16, #tpu.memory_space<vmem>>, vector<2x18x18x16xbf16>
    %1 = arith.extf %0 : vector<2x18x18x16xbf16> to vector<2x18x18x16xf32>
    %2 = vector.extract_strided_slice %1 {offsets = [0, 0, 0, 0], sizes = [2, 16, 16, 16], strides = [1, 1, 1, 1]} : vector<2x18x18x16xf32> to vector<2x16x16x16xf32>
    %3 = vector.shape_cast %2 : vector<2x16x16x16xf32> to vector<512x16xf32>
    %4 = arith.truncf %3 : vector<512x16xf32> to vector<512x16xbf16>
    %c0_3 = arith.constant 0 : index
    %c0_4 = arith.constant 0 : index
    %c0_5 = arith.constant 0 : index
    %c0_6 = arith.constant 0 : index
    %5 = vector.load %arg1[%c0_3, %c0_4, %c0_5, %c0_6] : memref<3x3x16x16xbf16, #tpu.memory_space<vmem>>, vector<1x1x16x16xbf16>
    %6 = vector.shape_cast %5 : vector<1x1x16x16xbf16> to vector<16x16xbf16>
    %cst = arith.constant dense<0.000000e+00> : vector<512x16xf32>
    %7 = tpu.matmul %4, %6, %cst {dimension_numbers = #tpu.dot_dimension_numbers<[1], [0], [0], [1], [0, 0, 1, 1], [], []>} : vector<512x16xbf16>, vector<16x16xbf16>, vector<512x16xf32> -> vector<512x16xf32>
    %8 = vector.extract_strided_slice %1 {offsets = [0, 0, 1, 0], sizes = [2, 16, 16, 16], strides = [1, 1, 1, 1]} : vector<2x18x18x16xf32> to vector<2x16x16x16xf32>
    %9 = vector.shape_cast %8 : vector<2x16x16x16xf32> to vector<512x16xf32>
    %10 = arith.truncf %9 : vector<512x16xf32> to vector<512x16xbf16>
    %c0_7 = arith.constant 0 : index
    %c1 = arith.constant 1 : index
    %c0_8 = arith.constant 0 : index
    %c0_9 = arith.constant 0 : index
    %11 = vector.load %arg1[%c0_7, %c1, %c0_8, %c0_9] : memref<3x3x16x16xbf16, #tpu.memory_space<vmem>>, vector<1x1x16x16xbf16>
    %12 = vector.shape_cast %11 : vector<1x1x16x16xbf16> to vector<16x16xbf16>
    %cst_10 = arith.constant dense<0.000000e+00> : vector<512x16xf32>
    %13 = tpu.matmul %10, %12, %cst_10 {dimension_numbers = #tpu.dot_dimension_numbers<[1], [0], [0], [1], [0, 0, 1, 1], [], []>} : vector<512x16xbf16>, vector<16x16xbf16>, vector<512x16xf32> -> vector<512x16xf32>
    %14 = arith.addf %7, %13 : vector<512x16xf32>
    %15 = vector.extract_strided_slice %1 {offsets = [0, 0, 2, 0], sizes = [2, 16, 16, 16], strides = [1, 1, 1, 1]} : vector<2x18x18x16xf32> to vector<2x16x16x16xf32>
    %16 = vector.shape_cast %15 : vector<2x16x16x16xf32> to vector<512x16xf32>
    %17 = arith.truncf %16 : vector<512x16xf32> to vector<512x16xbf16>
    %c0_11 = arith.constant 0 : index
    %c2 = arith.constant 2 : index
    %c0_12 = arith.constant 0 : index
    %c0_13 = arith.constant 0 : index
    %18 = vector.load %arg1[%c0_11, %c2, %c0_12, %c0_13] : memref<3x3x16x16xbf16, #tpu.memory_space<vmem>>, vector<1x1x16x16xbf16>
    %19 = vector.shape_cast %18 : vector<1x1x16x16xbf16> to vector<16x16xbf16>
    %cst_14 = arith.constant dense<0.000000e+00> : vector<512x16xf32>
    %20 = tpu.matmul %17, %19, %cst_14 {dimension_numbers = #tpu.dot_dimension_numbers<[1], [0], [0], [1], [0, 0, 1, 1], [], []>} : vector<512x16xbf16>, vector<16x16xbf16>, vector<512x16xf32> -> vector<512x16xf32>
    %21 = arith.addf %14, %20 : vector<512x16xf32>
    %22 = vector.extract_strided_slice %1 {offsets = [0, 1, 0, 0], sizes = [2, 16, 16, 16], strides = [1, 1, 1, 1]} : vector<2x18x18x16xf32> to vector<2x16x16x16xf32>
    %23 = vector.shape_cast %22 : vector<2x16x16x16xf32> to vector<512x16xf32>
    %24 = arith.truncf %23 : vector<512x16xf32> to vector<512x16xbf16>
    %c1_15 = arith.constant 1 : index
    %c0_16 = arith.constant 0 : index
    %c0_17 = arith.constant 0 : index
    %c0_18 = arith.constant 0 : index
    %25 = vector.load %arg1[%c1_15, %c0_16, %c0_17, %c0_18] : memref<3x3x16x16xbf16, #tpu.memory_space<vmem>>, vector<1x1x16x16xbf16>
    %26 = vector.shape_cast %25 : vector<1x1x16x16xbf16> to vector<16x16xbf16>
    %cst_19 = arith.constant dense<0.000000e+00> : vector<512x16xf32>
    %27 = tpu.matmul %24, %26, %cst_19 {dimension_numbers = #tpu.dot_dimension_numbers<[1], [0], [0], [1], [0, 0, 1, 1], [], []>} : vector<512x16xbf16>, vector<16x16xbf16>, vector<512x16xf32> -> vector<512x16xf32>
    %28 = arith.addf %21, %27 : vector<512x16xf32>
    %29 = vector.extract_strided_slice %1 {offsets = [0, 1, 1, 0], sizes = [2, 16, 16, 16], strides = [1, 1, 1, 1]} : vector<2x18x18x16xf32> to vector<2x16x16x16xf32>
    %30 = vector.shape_cast %29 : vector<2x16x16x16xf32> to vector<512x16xf32>
    %31 = arith.truncf %30 : vector<512x16xf32> to vector<512x16xbf16>
    %c1_20 = arith.constant 1 : index
    %c1_21 = arith.constant 1 : index
    %c0_22 = arith.constant 0 : index
    %c0_23 = arith.constant 0 : index
    %32 = vector.load %arg1[%c1_20, %c1_21, %c0_22, %c0_23] : memref<3x3x16x16xbf16, #tpu.memory_space<vmem>>, vector<1x1x16x16xbf16>
    %33 = vector.shape_cast %32 : vector<1x1x16x16xbf16> to vector<16x16xbf16>
    %cst_24 = arith.constant dense<0.000000e+00> : vector<512x16xf32>
    %34 = tpu.matmul %31, %33, %cst_24 {dimension_numbers = #tpu.dot_dimension_numbers<[1], [0], [0], [1], [0, 0, 1, 1], [], []>} : vector<512x16xbf16>, vector<16x16xbf16>, vector<512x16xf32> -> vector<512x16xf32>
    %35 = arith.addf %28, %34 : vector<512x16xf32>
    %36 = vector.extract_strided_slice %1 {offsets = [0, 1, 2, 0], sizes = [2, 16, 16, 16], strides = [1, 1, 1, 1]} : vector<2x18x18x16xf32> to vector<2x16x16x16xf32>
    %37 = vector.shape_cast %36 : vector<2x16x16x16xf32> to vector<512x16xf32>
    %38 = arith.truncf %37 : vector<512x16xf32> to vector<512x16xbf16>
    %c1_25 = arith.constant 1 : index
    %c2_26 = arith.constant 2 : index
    %c0_27 = arith.constant 0 : index
    %c0_28 = arith.constant 0 : index
    %39 = vector.load %arg1[%c1_25, %c2_26, %c0_27, %c0_28] : memref<3x3x16x16xbf16, #tpu.memory_space<vmem>>, vector<1x1x16x16xbf16>
    %40 = vector.shape_cast %39 : vector<1x1x16x16xbf16> to vector<16x16xbf16>
    %cst_29 = arith.constant dense<0.000000e+00> : vector<512x16xf32>
    %41 = tpu.matmul %38, %40, %cst_29 {dimension_numbers = #tpu.dot_dimension_numbers<[1], [0], [0], [1], [0, 0, 1, 1], [], []>} : vector<512x16xbf16>, vector<16x16xbf16>, vector<512x16xf32> -> vector<512x16xf32>
    %42 = arith.addf %35, %41 : vector<512x16xf32>
    %43 = vector.extract_strided_slice %1 {offsets = [0, 2, 0, 0], sizes = [2, 16, 16, 16], strides = [1, 1, 1, 1]} : vector<2x18x18x16xf32> to vector<2x16x16x16xf32>
    %44 = vector.shape_cast %43 : vector<2x16x16x16xf32> to vector<512x16xf32>
    %45 = arith.truncf %44 : vector<512x16xf32> to vector<512x16xbf16>
    %c2_30 = arith.constant 2 : index
    %c0_31 = arith.constant 0 : index
    %c0_32 = arith.constant 0 : index
    %c0_33 = arith.constant 0 : index
    %46 = vector.load %arg1[%c2_30, %c0_31, %c0_32, %c0_33] : memref<3x3x16x16xbf16, #tpu.memory_space<vmem>>, vector<1x1x16x16xbf16>
    %47 = vector.shape_cast %46 : vector<1x1x16x16xbf16> to vector<16x16xbf16>
    %cst_34 = arith.constant dense<0.000000e+00> : vector<512x16xf32>
    %48 = tpu.matmul %45, %47, %cst_34 {dimension_numbers = #tpu.dot_dimension_numbers<[1], [0], [0], [1], [0, 0, 1, 1], [], []>} : vector<512x16xbf16>, vector<16x16xbf16>, vector<512x16xf32> -> vector<512x16xf32>
    %49 = arith.addf %42, %48 : vector<512x16xf32>
    %50 = vector.extract_strided_slice %1 {offsets = [0, 2, 1, 0], sizes = [2, 16, 16, 16], strides = [1, 1, 1, 1]} : vector<2x18x18x16xf32> to vector<2x16x16x16xf32>
    %51 = vector.shape_cast %50 : vector<2x16x16x16xf32> to vector<512x16xf32>
    %52 = arith.truncf %51 : vector<512x16xf32> to vector<512x16xbf16>
    %c2_35 = arith.constant 2 : index
    %c1_36 = arith.constant 1 : index
    %c0_37 = arith.constant 0 : index
    %c0_38 = arith.constant 0 : index
    %53 = vector.load %arg1[%c2_35, %c1_36, %c0_37, %c0_38] : memref<3x3x16x16xbf16, #tpu.memory_space<vmem>>, vector<1x1x16x16xbf16>
    %54 = vector.shape_cast %53 : vector<1x1x16x16xbf16> to vector<16x16xbf16>
    %cst_39 = arith.constant dense<0.000000e+00> : vector<512x16xf32>
    %55 = tpu.matmul %52, %54, %cst_39 {dimension_numbers = #tpu.dot_dimension_numbers<[1], [0], [0], [1], [0, 0, 1, 1], [], []>} : vector<512x16xbf16>, vector<16x16xbf16>, vector<512x16xf32> -> vector<512x16xf32>
    %56 = arith.addf %49, %55 : vector<512x16xf32>
    %57 = vector.extract_strided_slice %1 {offsets = [0, 2, 2, 0], sizes = [2, 16, 16, 16], strides = [1, 1, 1, 1]} : vector<2x18x18x16xf32> to vector<2x16x16x16xf32>
    %58 = vector.shape_cast %57 : vector<2x16x16x16xf32> to vector<512x16xf32>
    %59 = arith.truncf %58 : vector<512x16xf32> to vector<512x16xbf16>
    %c2_40 = arith.constant 2 : index
    %c2_41 = arith.constant 2 : index
    %c0_42 = arith.constant 0 : index
    %c0_43 = arith.constant 0 : index
    %60 = vector.load %arg1[%c2_40, %c2_41, %c0_42, %c0_43] : memref<3x3x16x16xbf16, #tpu.memory_space<vmem>>, vector<1x1x16x16xbf16>
    %61 = vector.shape_cast %60 : vector<1x1x16x16xbf16> to vector<16x16xbf16>
    %cst_44 = arith.constant dense<0.000000e+00> : vector<512x16xf32>
    %62 = tpu.matmul %59, %61, %cst_44 {dimension_numbers = #tpu.dot_dimension_numbers<[1], [0], [0], [1], [0, 0, 1, 1], [], []>} : vector<512x16xbf16>, vector<16x16xbf16>, vector<512x16xf32> -> vector<512x16xf32>
    %63 = arith.addf %56, %62 : vector<512x16xf32>
    %cst_45 = arith.constant dense<0.000000e+00> : vector<16xf32>
    %64 = vector.multi_reduction <add>, %63, %cst_45 [0] : vector<512x16xf32> to vector<16xf32>
    %65 = vector.shape_cast %64 : vector<16xf32> to vector<1x16xf32>
    %cst_46 = arith.constant 0.001953125 : f32
    %66 = vector.broadcast %cst_46 : f32 to vector<1x16xf32>
    %67 = arith.mulf %65, %66 : vector<1x16xf32>
    %68 = arith.mulf %63, %63 : vector<512x16xf32>
    %cst_47 = arith.constant dense<0.000000e+00> : vector<16xf32>
    %69 = vector.multi_reduction <add>, %68, %cst_47 [0] : vector<512x16xf32> to vector<16xf32>
    %70 = vector.shape_cast %69 : vector<16xf32> to vector<1x16xf32>
    %cst_48 = arith.constant 0.001953125 : f32
    %71 = vector.broadcast %cst_48 : f32 to vector<1x16xf32>
    %72 = arith.mulf %70, %71 : vector<1x16xf32>
    %73 = arith.mulf %67, %67 : vector<1x16xf32>
    %74 = arith.subf %72, %73 : vector<1x16xf32>
    %cst_49 = arith.constant 0.000000e+00 : f32
    %75 = vector.broadcast %cst_49 : f32 to vector<1x16xf32>
    %76 = arith.maximumf %74, %75 : vector<1x16xf32>
    %77 = vector.broadcast %67 : vector<1x16xf32> to vector<512x16xf32>
    %78 = arith.subf %63, %77 : vector<512x16xf32>
    %cst_50 = arith.constant 9.99999974E-6 : f32
    %79 = vector.broadcast %cst_50 : f32 to vector<1x16xf32>
    %80 = arith.addf %76, %79 : vector<1x16xf32>
    %81 = math.rsqrt %80 : vector<1x16xf32>
    %c0_51 = arith.constant 0 : index
    %c0_52 = arith.constant 0 : index
    %82 = vector.load %arg2[%c0_51, %c0_52] : memref<1x16xf32, #tpu.memory_space<vmem>>, vector<1x16xf32>
    %83 = arith.mulf %81, %82 : vector<1x16xf32>
    %84 = vector.broadcast %83 : vector<1x16xf32> to vector<512x16xf32>
    %85 = arith.mulf %78, %84 : vector<512x16xf32>
    %c0_53 = arith.constant 0 : index
    %c0_54 = arith.constant 0 : index
    %86 = vector.load %arg3[%c0_53, %c0_54] : memref<1x16xf32, #tpu.memory_space<vmem>>, vector<1x16xf32>
    %87 = vector.broadcast %86 : vector<1x16xf32> to vector<512x16xf32>
    %88 = arith.addf %85, %87 : vector<512x16xf32>
    %cst_55 = arith.constant 0.000000e+00 : f32
    %89 = vector.broadcast %cst_55 : f32 to vector<512x16xf32>
    %90 = arith.cmpf ogt, %88, %89 : vector<512x16xf32>
    %cst_56 = arith.constant 1.000000e-01 : f32
    %91 = vector.broadcast %cst_56 : f32 to vector<512x16xf32>
    %92 = arith.mulf %91, %88 : vector<512x16xf32>
    %93 = arith.select %90, %88, %92 : vector<512x16xi1>, vector<512x16xf32>
    %94 = arith.truncf %93 : vector<512x16xf32> to vector<512x16xbf16>
    %c0_57 = arith.constant 0 : index
    %c0_58 = arith.constant 0 : index
    %95 = vector.load %arg4[%c0_57, %c0_58] : memref<512x16xbf16, #tpu.memory_space<vmem>>, vector<512x16xbf16>
    tpu.vector_store %arg4[%c0_57, %c0_58], %94 {strides = array<i32>} : memref<512x16xbf16, #tpu.memory_space<vmem>>, vector<512x16xbf16>,
    return
  }
}

module attributes {stable_mosaic.version = 11 : i64} {
  func.func @_conv_bn_act_kernel(%arg0: memref<2x16x16x16xbf16, #tpu.memory_space<vmem>>, %arg1: memref<1x1x16x12xbf16, #tpu.memory_space<vmem>>, %arg2: memref<1x12xf32, #tpu.memory_space<vmem>>, %arg3: memref<1x12xf32, #tpu.memory_space<vmem>>, %arg4: memref<512x12xf32, #tpu.memory_space<vmem>>) attributes {dimension_semantics = [], scalar_prefetch = 0 : i64, scratch_operands = 0 : i64, tpu.core_type = #tpu.core_type<tc>} {
    %c0 = arith.constant 0 : index
    %c0_0 = arith.constant 0 : index
    %c0_1 = arith.constant 0 : index
    %c0_2 = arith.constant 0 : index
    %0 = vector.load %arg0[%c0, %c0_0, %c0_1, %c0_2] : memref<2x16x16x16xbf16, #tpu.memory_space<vmem>>, vector<2x16x16x16xbf16>
    %1 = arith.extf %0 : vector<2x16x16x16xbf16> to vector<2x16x16x16xf32>
    %2 = vector.shape_cast %1 : vector<2x16x16x16xf32> to vector<512x16xf32>
    %3 = arith.truncf %2 : vector<512x16xf32> to vector<512x16xbf16>
    %c0_3 = arith.constant 0 : index
    %c0_4 = arith.constant 0 : index
    %c0_5 = arith.constant 0 : index
    %c0_6 = arith.constant 0 : index
    %4 = vector.load %arg1[%c0_3, %c0_4, %c0_5, %c0_6] : memref<1x1x16x12xbf16, #tpu.memory_space<vmem>>, vector<1x1x16x12xbf16>
    %5 = vector.shape_cast %4 : vector<1x1x16x12xbf16> to vector<16x12xbf16>
    %cst = arith.constant dense<0.000000e+00> : vector<512x12xf32>
    %6 = tpu.matmul %3, %5, %cst {dimension_numbers = #tpu.dot_dimension_numbers<[1], [0], [0], [1], [0, 0, 1, 1], [], []>} : vector<512x16xbf16>, vector<16x12xbf16>, vector<512x12xf32> -> vector<512x12xf32>
    %c0_7 = arith.constant 0 : index
    %c0_8 = arith.constant 0 : index
    %7 = vector.load %arg3[%c0_7, %c0_8] : memref<1x12xf32, #tpu.memory_space<vmem>>, vector<1x12xf32>
    %8 = vector.broadcast %7 : vector<1x12xf32> to vector<512x12xf32>
    %9 = arith.addf %6, %8 : vector<512x12xf32>
    %c0_9 = arith.constant 0 : index
    %c0_10 = arith.constant 0 : index
    %10 = vector.load %arg4[%c0_9, %c0_10] : memref<512x12xf32, #tpu.memory_space<vmem>>, vector<512x12xf32>
    tpu.vector_store %arg4[%c0_9, %c0_10], %9 {strides = array<i32>} : memref<512x12xf32, #tpu.memory_space<vmem>>, vector<512x12xf32>,
    return
  }
}

</mosaic_0001>

<llo_original>
// kernel: darknet_forward.12
$region0: #{darknet_forward.12}
  #allocation0 [shape = 'u32[]', space=smem, size = 0x4, offset = 0x4, fixed_abs, tag = 'smem constant byte address 0x4 - core index']
  #allocation1 [shape = 'u32[72,128]{1,0:T(1,128)}', space=vmem, size = 0x9000, scoped, tag = 'internal scratch']
  %s0 = inlined_call_operand.vmem [shape: bf16[2,8,8,16], index: 0, kind: input, shape index: {}]
  %s1 = inlined_call_operand.vmem [shape: bf16[1,1,16,12], index: 1, kind: input, shape index: {}]
  %s2 = inlined_call_operand.vmem [shape: f32[1,12], index: 2, kind: input, shape index: {}]
  %s3 = inlined_call_operand.vmem [shape: f32[1,12], index: 3, kind: input, shape index: {}]
  %s4 = inlined_call_operand.hbm [shape: f32[128,12], index: 4, kind: output, shape index: {}]
  %s5 = sld [smem:[#allocation0]]
  $region26: #{darknet_forward.12} parent=0
    _
  %s7 = ssub.s32 1, %s5
  %s8 = scalar_select 0, %s7, %s5
  $region1: #{darknet_forward.12} parent=0
    #allocation2 [shape = 'u8[65536]{0}', space=vmem, size = 0x10000, scoped, tag = 'output window, operand 0, single buffered']
    #allocation3 [shape = 's32[1]{0}', space=sflag, size = 0x4, scoped, tag = 'scoped memory for darknet_forward.12']
    %9 = vsyncpa [#allocation3], 0
    // Predicated region
    $region2: #{darknet_forward.12} parent=1 // pred_check
      _
    $region3: #{darknet_forward.12} parent=1 // pred_check_branch
      %11 = sbr.rel (0) target = $region5
    $region4: #{darknet_forward.12} parent=1 // pred_region
      _
    $region5: #{darknet_forward.12} parent=1 // pred_fallthru
      _
    // Predicated region
    $region6: #{darknet_forward.12} parent=1 // pred_check
      _
    $region7: #{darknet_forward.12} parent=1 // pred_check_branch
      %13 = sbr.rel (0) target = $region9
    $region8: #{darknet_forward.12} parent=1 // pred_region
      _
    $region9: #{darknet_forward.12} parent=1 // pred_fallthru
      _
    // Predicated region
    $region10: #{darknet_forward.12} parent=1 // pred_check
      _
    $region11: #{darknet_forward.12} parent=1 // pred_check_branch
      %15 = sbr.rel (0) target = $region13
    $region12: #{darknet_forward.12} parent=1 // pred_region
      _
    $region13: #{darknet_forward.12} parent=1 // pred_fallthru
      _
    // Predicated region
    $region14: #{darknet_forward.12} parent=1 // pred_check
      _
    $region15: #{darknet_forward.12} parent=1 // pred_check_branch
      %17 = sbr.rel (0) target = $region17
    $region16: #{darknet_forward.12} parent=1 // pred_region
      _
    $region17: #{darknet_forward.12} parent=1 // pred_fallthru
      _
    %v19 = vld [vmem:[%s0] sm:$0xf]
    %v20 = vld [vmem:[%s0 + $0x4] sm:$0xf]
    %v21 = vld [vmem:[%s0 + $0x8] sm:$0xf]
    %v22 = vld [vmem:[%s0 + $0xc] sm:$0xf]
    %v23 = vld [vmem:[%s0 + $0x10] sm:$0xf]
    %v24 = vld [vmem:[%s0 + $0x14] sm:$0xf]
    %v25 = vld [vmem:[%s0 + $0x18] sm:$0xf]
    %v26 = vld [vmem:[%s0 + $0x1c] sm:$0xf]
    %v27 = vld [vmem:[%s0 + $0x20] sm:$0xf]
    %v28 = vld [vmem:[%s0 + $0x24] sm:$0xf]
    %v29 = vld [vmem:[%s0 + $0x28] sm:$0xf]
    %v30 = vld [vmem:[%s0 + $0x2c] sm:$0xf]
    %v31 = vld [vmem:[%s0 + $0x30] sm:$0xf]
    %v32 = vld [vmem:[%s0 + $0x34] sm:$0xf]
    %v33 = vld [vmem:[%s0 + $0x38] sm:$0xf]
    %v34 = vld [vmem:[%s0 + $0x3c] sm:$0xf]
    %v35 = vunpack.c.l.bf16 %v19
    %v36 = vunpack.c.l.bf16 %v20
    %v37 = vunpack.c.l.bf16 %v21
    %v38 = vunpack.c.l.bf16 %v22
    %v39 = vunpack.c.l.bf16 %v23
    %v40 = vunpack.c.l.bf16 %v24
    %v41 = vunpack.c.l.bf16 %v25
    %v42 = vunpack.c.l.bf16 %v26
    %v43 = vunpack.c.l.bf16 %v27
    %v44 = vunpack.c.l.bf16 %v28
    %v45 = vunpack.c.l.bf16 %v29
    %v46 = vunpack.c.l.bf16 %v30
    %v47 = vunpack.c.l.bf16 %v31
    %v48 = vunpack.c.l.bf16 %v32
    %v49 = vunpack.c.l.bf16 %v33
    %v50 = vunpack.c.l.bf16 %v34
    %v51 = vpack.c.bf16 %v36, %v35
    %v52 = vpack.c.bf16 %v38, %v37
    %v53 = vpack.c.bf16 %v40, %v39
    %v54 = vpack.c.bf16 %v42, %v41
    %v55 = vpack.c.bf16 %v44, %v43
    %v56 = vpack.c.bf16 %v46, %v45
    %v57 = vpack.c.bf16 %v48, %v47
    %v58 = vpack.c.bf16 %v50, %v49
    %v59 = vld [vmem:[%s1] sm:$0xf]
    %v60 = vld [vmem:[%s1 + $0x4] sm:$0xf]
    %v61 = vld [vmem:[%s3] sm:$0x1]
    %v63 = vperm.slane %v61, 0
    %v67 = vunpack.c.l.b16 %v59
    %v68 = vunpack.c.l.b16 %v60
    %v69 = vpack.c.b16 %v68, %v67
    %vm71 = vcmask 130048
    %v73 = vsel %vm71, %v51, 0
    %v76 = vsel %vm71, %v52, 0
    %v79 = vsel %vm71, %v53, 0
    %v82 = vsel %vm71, %v54, 0
    %v85 = vsel %vm71, %v55, 0
    %v88 = vsel %vm71, %v56, 0
    %v91 = vsel %vm71, %v57, 0
    %v94 = vsel %vm71, %v58, 0
    %96 = vmatpush.bf16.msra.mxu0 0
    %97 = vmatpush.bf16.msra.mxu0 0
    %98 = vmatpush.bf16.msra.mxu0 0
    %99 = vmatpush.bf16.msra.mxu0 0
    %100 = vmatpush.bf16.msra.mxu0 0
    %101 = vmatpush.bf16.msra.mxu0 0
    %102 = vmatpush.bf16.msra.mxu0 0
    %103 = vmatpush.bf16.msra.mxu0 %v69
    %104 = vmatmul.bf16.gmra.mxu0 %v73
    %v105 = vpop.f32.mrf.mxu0
    %v106 = vadd.f32 %v63, %v105
    %v107 = vpop.f32.mrf.mxu0
    %v108 = vadd.f32 %v63, %v107
    %109 = vmatmul.bf16.gmra.mxu0 %v76
    %v110 = vpop.f32.mrf.mxu0
    %v111 = vadd.f32 %v63, %v110
    %v112 = vpop.f32.mrf.mxu0
    %v113 = vadd.f32 %v63, %v112
    %114 = vmatmul.bf16.gmra.mxu0 %v79
    %v115 = vpop.f32.mrf.mxu0
    %v116 = vadd.f32 %v63, %v115
    %v117 = vpop.f32.mrf.mxu0
    %v118 = vadd.f32 %v63, %v117
    %119 = vmatmul.bf16.gmra.mxu0 %v82
    %v120 = vpop.f32.mrf.mxu0
    %v121 = vadd.f32 %v63, %v120
    %v122 = vpop.f32.mrf.mxu0
    %v123 = vadd.f32 %v63, %v122
    %124 = vmatmul.bf16.gmra.mxu0 %v85
    %v125 = vpop.f32.mrf.mxu0
    %v126 = vadd.f32 %v63, %v125
    %v127 = vpop.f32.mrf.mxu0
    %v128 = vadd.f32 %v63, %v127
    %129 = vmatmul.bf16.gmra.mxu0 %v88
    %v130 = vpop.f32.mrf.mxu0
    %v131 = vadd.f32 %v63, %v130
    %v132 = vpop.f32.mrf.mxu0
    %v133 = vadd.f32 %v63, %v132
    %134 = vmatmul.bf16.gmra.mxu0 %v91
    %v135 = vpop.f32.mrf.mxu0
    %v136 = vadd.f32 %v63, %v135
    %v137 = vpop.f32.mrf.mxu0
    %v138 = vadd.f32 %v63, %v137
    %139 = vmatmul.bf16.gmra.mxu0 %v94
    %v140 = vpop.f32.mrf.mxu0
    %v141 = vadd.f32 %v63, %v140
    %v142 = vpop.f32.mrf.mxu0
    %v143 = vadd.f32 %v63, %v142
    %144 = vdwg.mxu0
    %vm145 = vcmask 97280
    %146 = vst.msk [vmem:[#allocation2] sm:$0xff] %vm145, %v106
    %147 = vst.msk [vmem:[#allocation2 + $0x8] sm:$0xff] %vm145, %v108
    %148 = vst.msk [vmem:[#allocation2 + $0x10] sm:$0xff] %vm145, %v111
    %149 = vst.msk [vmem:[#allocation2 + $0x18] sm:$0xff] %vm145, %v113
    %150 = vst.msk [vmem:[#allocation2 + $0x20] sm:$0xff] %vm145, %v116
    %151 = vst.msk [vmem:[#allocation2 + $0x28] sm:$0xff] %vm145, %v118
    %152 = vst.msk [vmem:[#allocation2 + $0x30] sm:$0xff] %vm145, %v121
    %153 = vst.msk [vmem:[#allocation2 + $0x38] sm:$0xff] %vm145, %v123
    %154 = vst.msk [vmem:[#allocation2 + $0x40] sm:$0xff] %vm145, %v126
    %155 = vst.msk [vmem:[#allocation2 + $0x48] sm:$0xff] %vm145, %v128
    %156 = vst.msk [vmem:[#allocation2 + $0x50] sm:$0xff] %vm145, %v131
    %157 = vst.msk [vmem:[#allocation2 + $0x58] sm:$0xff] %vm145, %v133
    %158 = vst.msk [vmem:[#allocation2 + $0x60] sm:$0xff] %vm145, %v136
    %159 = vst.msk [vmem:[#allocation2 + $0x68] sm:$0xff] %vm145, %v138
    %160 = vst.msk [vmem:[#allocation2 + $0x70] sm:$0xff] %vm145, %v141
    %161 = vst.msk [vmem:[#allocation2 + $0x78] sm:$0xff] %vm145, %v143
    // Predicated region
    $region18: #{darknet_forward.12} parent=1 // pred_check
      _
    $region19: #{darknet_forward.12} parent=1 // pred_check_branch
      %163 = sbr.rel (0) target = $region21
    $region20: #{darknet_forward.12} parent=1 // pred_region
      %165 = vsyncadd [#allocation3], 0
      %s166 = sshll.u32 [#allocation2], 4
      %s167 = int_to_ptr.vmem [resolvable:$true] %s166
      %s168 = sshll.u32 %s4, 4
      %s169 = int_to_ptr.hbm [resolvable:$true] %s168
      %174 = dma.vmem_to_hbm [thread:$0]  %s167, 2048, %s169, [#allocation3], 128, 128, 8
    $region21: #{darknet_forward.12} parent=1 // pred_fallthru
      _
    // Predicated region
    $region22: #{darknet_forward.12} parent=1 // pred_check
      _
    $region23: #{darknet_forward.12} parent=1 // pred_check_branch
      %176 = sbr.rel (0) target = $region25
    $region24: #{darknet_forward.12} parent=1 // pred_region
      %178 = dma.done [#allocation3], 2048
    $region25: #{darknet_forward.12} parent=1 // pred_fallthru
      _
    %179 = vsyncpa [#allocation3], 1

// kernel: darknet_forward.10
$region0: #{darknet_forward.10}
  #allocation0 [shape = 'u32[]', space=smem, size = 0x4, offset = 0x4, fixed_abs, tag = 'smem constant byte address 0x4 - core index']
  #allocation1 [shape = 'u32[72,128]{1,0:T(1,128)}', space=vmem, size = 0x9000, scoped, tag = 'internal scratch']
  %s0 = inlined_call_operand.vmem [shape: bf16[2,8,8,16], index: 0, kind: input, shape index: {}]
  %s1 = inlined_call_operand.vmem [shape: bf16[1,1,16,8], index: 1, kind: input, shape index: {}]
  %s2 = inlined_call_operand.vmem [shape: f32[1,8], index: 2, kind: input, shape index: {}]
  %s3 = inlined_call_operand.vmem [shape: f32[1,8], index: 3, kind: input, shape index: {}]
  %s4 = inlined_call_operand.vmem [shape: bf16[128,8], index: 4, kind: output, shape index: {}]
  %s5 = sld [smem:[#allocation0]]
  $region26: #{darknet_forward.10} parent=0
    _
  %s7 = ssub.s32 1, %s5
  %s8 = scalar_select 0, %s7, %s5
  // Predicated region
  $region2: #{darknet_forward.10} parent=0 // pred_check
    _
  $region3: #{darknet_forward.10} parent=0 // pred_check_branch
    %10 = sbr.rel (0) target = $region5
  $region4: #{darknet_forward.10} parent=0 // pred_region
    _
  $region5: #{darknet_forward.10} parent=0 // pred_fallthru
    _
  // Predicated region
  $region6: #{darknet_forward.10} parent=0 // pred_check
    _
  $region7: #{darknet_forward.10} parent=0 // pred_check_branch
    %12 = sbr.rel (0) target = $region9
  $region8: #{darknet_forward.10} parent=0 // pred_region
    _
  $region9: #{darknet_forward.10} parent=0 // pred_fallthru
    _
  // Predicated region
  $region10: #{darknet_forward.10} parent=0 // pred_check
    _
  $region11: #{darknet_forward.10} parent=0 // pred_check_branch
    %14 = sbr.rel (0) target = $region13
  $region12: #{darknet_forward.10} parent=0 // pred_region
    _
  $region13: #{darknet_forward.10} parent=0 // pred_fallthru
    _
  // Predicated region
  $region14: #{darknet_forward.10} parent=0 // pred_check
    _
  $region15: #{darknet_forward.10} parent=0 // pred_check_branch
    %16 = sbr.rel (0) target = $region17
  $region16: #{darknet_forward.10} parent=0 // pred_region
    _
  $region17: #{darknet_forward.10} parent=0 // pred_fallthru
    _
  %v18 = vld [vmem:[%s0] sm:$0xf]
  %v19 = vld [vmem:[%s0 + $0x4] sm:$0xf]
  %v20 = vld [vmem:[%s0 + $0x8] sm:$0xf]
  %v21 = vld [vmem:[%s0 + $0xc] sm:$0xf]
  %v22 = vld [vmem:[%s0 + $0x10] sm:$0xf]
  %v23 = vld [vmem:[%s0 + $0x14] sm:$0xf]
  %v24 = vld [vmem:[%s0 + $0x18] sm:$0xf]
  %v25 = vld [vmem:[%s0 + $0x1c] sm:$0xf]
  %v26 = vld [vmem:[%s0 + $0x20] sm:$0xf]
  %v27 = vld [vmem:[%s0 + $0x24] sm:$0xf]
  %v28 = vld [vmem:[%s0 + $0x28] sm:$0xf]
  %v29 = vld [vmem:[%s0 + $0x2c] sm:$0xf]
  %v30 = vld [vmem:[%s0 + $0x30] sm:$0xf]
  %v31 = vld [vmem:[%s0 + $0x34] sm:$0xf]
  %v32 = vld [vmem:[%s0 + $0x38] sm:$0xf]
  %v33 = vld [vmem:[%s0 + $0x3c] sm:$0xf]
  %v34 = vunpack.c.l.bf16 %v18
  %v35 = vunpack.c.l.bf16 %v19
  %v36 = vunpack.c.l.bf16 %v20
  %v37 = vunpack.c.l.bf16 %v21
  %v38 = vunpack.c.l.bf16 %v22
  %v39 = vunpack.c.l.bf16 %v23
  %v40 = vunpack.c.l.bf16 %v24
  %v41 = vunpack.c.l.bf16 %v25
  %v42 = vunpack.c.l.bf16 %v26
  %v43 = vunpack.c.l.bf16 %v27
  %v44 = vunpack.c.l.bf16 %v28
  %v45 = vunpack.c.l.bf16 %v29
  %v46 = vunpack.c.l.bf16 %v30
  %v47 = vunpack.c.l.bf16 %v31
  %v48 = vunpack.c.l.bf16 %v32
  %v49 = vunpack.c.l.bf16 %v33
  %v50 = vpack.c.bf16 %v35, %v34
  %v51 = vpack.c.bf16 %v37, %v36
  %v52 = vpack.c.bf16 %v39, %v38
  %v53 = vpack.c.bf16 %v41, %v40
  %v54 = vpack.c.bf16 %v43, %v42
  %v55 = vpack.c.bf16 %v45, %v44
  %v56 = vpack.c.bf16 %v47, %v46
  %v57 = vpack.c.bf16 %v49, %v48
  %v58 = vld [vmem:[%s1] sm:$0xf]
  %v59 = vld [vmem:[%s1 + $0x4] sm:$0xf]
  %v62 = vunpack.c.l.b16 %v58
  %v63 = vunpack.c.l.b16 %v59
  %v64 = vpack.c.b16 %v63, %v62
  %vm66 = vcmask 130048
  %v68 = vsel %vm66, %v50, 0
  %v71 = vsel %vm66, %v51, 0
  %v74 = vsel %vm66, %v52, 0
  %v77 = vsel %vm66, %v53, 0
  %v80 = vsel %vm66, %v54, 0
  %v83 = vsel %vm66, %v55, 0
  %v86 = vsel %vm66, %v56, 0
  %v89 = vsel %vm66, %v57, 0
  %91 = vmatpush.bf16.msra.mxu0 0
  %92 = vmatpush.bf16.msra.mxu0 0
  %93 = vmatpush.bf16.msra.mxu0 0
  %94 = vmatpush.bf16.msra.mxu0 0
  %95 = vmatpush.bf16.msra.mxu0 0
  %96 = vmatpush.bf16.msra.mxu0 0
  %97 = vmatpush.bf16.msra.mxu0 0
  %98 = vmatpush.bf16.msra.mxu0 %v64
  %99 = vmatmul.bf16.gmra.mxu0 %v68
  %v100 = vpop.f32.mrf.mxu0
  %v101 = vadd.f32 0.0, %v100
  %v102 = vpop.f32.mrf.mxu0
  %v103 = vadd.f32 0.0, %v102
  %104 = vmatmul.bf16.gmra.mxu0 %v71
  %v105 = vpop.f32.mrf.mxu0
  %v106 = vadd.f32 0.0, %v105
  %v107 = vpop.f32.mrf.mxu0
  %v108 = vadd.f32 0.0, %v107
  %109 = vmatmul.bf16.gmra.mxu0 %v74
  %v110 = vpop.f32.mrf.mxu0
  %v111 = vadd.f32 0.0, %v110
  %v112 = vpop.f32.mrf.mxu0
  %v113 = vadd.f32 0.0, %v112
  %114 = vmatmul.bf16.gmra.mxu0 %v77
  %v115 = vpop.f32.mrf.mxu0
  %v116 = vadd.f32 0.0, %v115
  %v117 = vpop.f32.mrf.mxu0
  %v118 = vadd.f32 0.0, %v117
  %119 = vmatmul.bf16.gmra.mxu0 %v80
  %v120 = vpop.f32.mrf.mxu0
  %v121 = vadd.f32 0.0, %v120
  %v122 = vpop.f32.mrf.mxu0
  %v123 = vadd.f32 0.0, %v122
  %124 = vmatmul.bf16.gmra.mxu0 %v83
  %v125 = vpop.f32.mrf.mxu0
  %v126 = vadd.f32 0.0, %v125
  %v127 = vpop.f32.mrf.mxu0
  %v128 = vadd.f32 0.0, %v127
  %129 = vmatmul.bf16.gmra.mxu0 %v86
  %v130 = vpop.f32.mrf.mxu0
  %v131 = vadd.f32 0.0, %v130
  %v132 = vpop.f32.mrf.mxu0
  %v133 = vadd.f32 0.0, %v132
  %134 = vmatmul.bf16.gmra.mxu0 %v89
  %v135 = vpop.f32.mrf.mxu0
  %v136 = vadd.f32 0.0, %v135
  %v137 = vpop.f32.mrf.mxu0
  %v138 = vadd.f32 0.0, %v137
  %139 = vdwg.mxu0
  %vm140 = vcmask 64512
  %v141 = vsel %vm140, %v101, 0.0
  %v142 = vsel %vm140, %v103, 0.0
  %v143 = vadd.f32 %v141, %v142
  %v144 = vsel %vm140, %v106, 0.0
  %v145 = vadd.f32 %v143, %v144
  %v146 = vsel %vm140, %v108, 0.0
  %v147 = vadd.f32 %v145, %v146
  %v148 = vsel %vm140, %v111, 0.0
  %v149 = vadd.f32 %v147, %v148
  %v150 = vsel %vm140, %v113, 0.0
  %v151 = vadd.f32 %v149, %v150
  %v152 = vsel %vm140, %v116, 0.0
  %v153 = vadd.f32 %v151, %v152
  %v154 = vsel %vm140, %v118, 0.0
  %v155 = vadd.f32 %v153, %v154
  %v156 = vsel %vm140, %v121, 0.0
  %v157 = vadd.f32 %v155, %v156
  %v158 = vsel %vm140, %v123, 0.0
  %v159 = vadd.f32 %v157, %v158
  %v160 = vsel %vm140, %v126, 0.0
  %v161 = vadd.f32 %v159, %v160
  %v162 = vsel %vm140, %v128, 0.0
  %v163 = vadd.f32 %v161, %v162
  %v164 = vsel %vm140, %v131, 0.0
  %v165 = vadd.f32 %v163, %v164
  %v166 = vsel %vm140, %v133, 0.0
  %v167 = vadd.f32 %v165, %v166
  %v168 = vsel %vm140, %v136, 0.0
  %v169 = vadd.f32 %v167, %v168
  %v170 = vsel %vm140, %v138, 0.0
  %v171 = vadd.f32 %v169, %v170
  %v172 = vrot.slane %v171, 4
  %v173 = vadd.f32 %v171, %v172
  %v174 = vrot.slane %v173, 2
  %v175 = vadd.f32 %v173, %v174
  %v176 = vrot.slane %v175, 1
  %v177 = vadd.f32 %v175, %v176
  %v178 = vmul.f32 %v177, 0.0078125
  %v179 = vmul.f32 %v101, %v101
  %v180 = vmul.f32 %v103, %v103
  %v181 = vmul.f32 %v106, %v106
  %v182 = vmul.f32 %v108, %v108
  %v183 = vmul.f32 %v111, %v111
  %v184 = vmul.f32 %v113, %v113
  %v185 = vmul.f32 %v116, %v116
  %v186 = vmul.f32 %v118, %v118
  %v187 = vmul.f32 %v121, %v121
  %v188 = vmul.f32 %v123, %v123
  %v189 = vmul.f32 %v126, %v126
  %v190 = vmul.f32 %v128, %v128
  %v191 = vmul.f32 %v131, %v131
  %v192 = vmul.f32 %v133, %v133
  %v193 = vmul.f32 %v136, %v136
  %v194 = vmul.f32 %v138, %v138
  %v195 = vsel %vm140, %v179, 0.0
  %v196 = vsel %vm140, %v180, 0.0
  %v197 = vadd.f32 %v195, %v196
  %v198 = vsel %vm140, %v181, 0.0
  %v199 = vadd.f32 %v197, %v198
  %v200 = vsel %vm140, %v182, 0.0
  %v201 = vadd.f32 %v199, %v200
  %v202 = vsel %vm140, %v183, 0.0
  %v203 = vadd.f32 %v201, %v202
  %v204 = vsel %vm140, %v184, 0.0
  %v205 = vadd.f32 %v203, %v204
  %v206 = vsel %vm140, %v185, 0.0
  %v207 = vadd.f32 %v205, %v206
  %v208 = vsel %vm140, %v186, 0.0
  %v209 = vadd.f32 %v207, %v208
  %v210 = vsel %vm140, %v187, 0.0
  %v211 = vadd.f32 %v209, %v210
  %v212 = vsel %vm140, %v188, 0.0
  %v213 = vadd.f32 %v211, %v212
  %v214 = vsel %vm140, %v189, 0.0
  %v215 = vadd.f32 %v213, %v214
  %v216 = vsel %vm140, %v190, 0.0
  %v217 = vadd.f32 %v215, %v216
  %v218 = vsel %vm140, %v191, 0.0
  %v219 = vadd.f32 %v217, %v218
  %v220 = vsel %vm140, %v192, 0.0
  %v221 = vadd.f32 %v219, %v220
  %v222 = vsel %vm140, %v193, 0.0
  %v223 = vadd.f32 %v221, %v222
  %v224 = vsel %vm140, %v194, 0.0
  %v225 = vadd.f32 %v223, %v224
  %v226 = vrot.slane %v225, 4
  %v227 = vadd.f32 %v225, %v226
  %v228 = vrot.slane %v227, 2
  %v229 = vadd.f32 %v227, %v228
  %v230 = vrot.slane %v229, 1
  %v231 = vadd.f32 %v229, %v230
  %v232 = vmul.f32 %v231, 0.0078125
  %v233 = vmul.f32 %v178, %v178
  %v234 = vsub.f32 %v232, %v233
  %v235 = vmax.f32 %v234, 0.0
  %v236 = vsub.f32 %v101, %v178
  %v237 = vsub.f32 %v103, %v178
  %v238 = vsub.f32 %v106, %v178
  %v239 = vsub.f32 %v108, %v178
  %v240 = vsub.f32 %v111, %v178
  %v241 = vsub.f32 %v113, %v178
  %v242 = vsub.f32 %v116, %v178
  %v243 = vsub.f32 %v118, %v178
  %v244 = vsub.f32 %v121, %v178
  %v245 = vsub.f32 %v123, %v178
  %v246 = vsub.f32 %v126, %v178
  %v247 = vsub.f32 %v128, %v178
  %v248 = vsub.f32 %v131, %v178
  %v249 = vsub.f32 %v133, %v178
  %v250 = vsub.f32 %v136, %v178
  %v251 = vsub.f32 %v138, %v178
  %v252 = vadd.f32 %v235, 1e-05
  %v253 = vrsqrt.pop %v252
  %v254 = vmul.f32 %v253, %v252
  %v255 = vmul.f32 %v254, %v253
  %v256 = vmul.f32 0.5, %v255
  %v257 = vsub.f32 1.5, %v256
  %v258 = vmul.f32 %v253, %v257
  %vm259 = vweird.f32 %v252
  %vm260 = vweird.f32 %v253
  %vm261 = vmor %vm259, %vm260
  %v262 = vsel %vm261, %v253, %v258
  %v263 = vld [vmem:[%s2] sm:$0x1]
  %v264 = vmul.f32 %v262, %v263
  %v265 = vperm.slane %v264, 0
  %v266 = vmul.f32 %v236, %v265
  %v267 = vmul.f32 %v237, %v265
  %v268 = vmul.f32 %v238, %v265
  %v269 = vmul.f32 %v239, %v265
  %v270 = vmul.f32 %v240, %v265
  %v271 = vmul.f32 %v241, %v265
  %v272 = vmul.f32 %v242, %v265
  %v273 = vmul.f32 %v243, %v265
  %v274 = vmul.f32 %v244, %v265
  %v275 = vmul.f32 %v245, %v265
  %v276 = vmul.f32 %v246, %v265
  %v277 = vmul.f32 %v247, %v265
  %v278 = vmul.f32 %v248, %v265
  %v279 = vmul.f32 %v249, %v265
  %v280 = vmul.f32 %v250, %v265
  %v281 = vmul.f32 %v251, %v265
  %v282 = vld [vmem:[%s3] sm:$0x1]
  %v284 = vperm.slane %v282, 0
  %v286 = vadd.f32 %v266, %v284
  %v287 = vadd.f32 %v267, %v284
  %v288 = vadd.f32 %v268, %v284
  %v289 = vadd.f32 %v269, %v284
  %v290 = vadd.f32 %v270, %v284
  %v291 = vadd.f32 %v271, %v284
  %v292 = vadd.f32 %v272, %v284
  %v293 = vadd.f32 %v273, %v284
  %v294 = vadd.f32 %v274, %v284
  %v295 = vadd.f32 %v275, %v284
  %v296 = vadd.f32 %v276, %v284
  %v297 = vadd.f32 %v277, %v284
  %v298 = vadd.f32 %v278, %v284
  %v299 = vadd.f32 %v279, %v284
  %v300 = vadd.f32 %v280, %v284
  %v301 = vadd.f32 %v281, %v284
  %vm302 = vcmp.gt.f32.partialorder %v286, 0.0
  %vm303 = vcmp.gt.f32.partialorder %v287, 0.0
  %vm304 = vcmp.gt.f32.partialorder %v288, 0.0
  %vm305 = vcmp.gt.f32.partialorder %v289, 0.0
  %vm306 = vcmp.gt.f32.partialorder %v290, 0.0
  %vm307 = vcmp.gt.f32.partialorder %v291, 0.0
  %vm308 = vcmp.gt.f32.partialorder %v292, 0.0
  %vm309 = vcmp.gt.f32.partialorder %v293, 0.0
  %vm310 = vcmp.gt.f32.partialorder %v294, 0.0
  %vm311 = vcmp.gt.f32.partialorder %v295, 0.0
  %vm312 = vcmp.gt.f32.partialorder %v296, 0.0
  %vm313 = vcmp.gt.f32.partialorder %v297, 0.0
  %vm314 = vcmp.gt.f32.partialorder %v298, 0.0
  %vm315 = vcmp.gt.f32.partialorder %v299, 0.0
  %vm316 = vcmp.gt.f32.partialorder %v300, 0.0
  %vm317 = vcmp.gt.f32.partialorder %v301, 0.0
  %v318 = vmul.f32 %v286, 0.1
  %v319 = vmul.f32 %v287, 0.1
  %v320 = vmul.f32 %v288, 0.1
  %v321 = vmul.f32 %v289, 0.1
  %v322 = vmul.f32 %v290, 0.1
  %v323 = vmul.f32 %v291, 0.1
  %v324 = vmul.f32 %v292, 0.1
  %v325 = vmul.f32 %v293, 0.1
  %v326 = vmul.f32 %v294, 0.1
  %v327 = vmul.f32 %v295, 0.1
  %v328 = vmul.f32 %v296, 0.1
  %v329 = vmul.f32 %v297, 0.1
  %v330 = vmul.f32 %v298, 0.1
  %v331 = vmul.f32 %v299, 0.1
  %v332 = vmul.f32 %v300, 0.1
  %v333 = vmul.f32 %v301, 0.1
  %v334 = vsel %vm302, %v286, %v318
  %v335 = vsel %vm303, %v287, %v319
  %v336 = vsel %vm304, %v288, %v320
  %v337 = vsel %vm305, %v289, %v321
  %v338 = vsel %vm306, %v290, %v322
  %v339 = vsel %vm307, %v291, %v323
  %v340 = vsel %vm308, %v292, %v324
  %v341 = vsel %vm309, %v293, %v325
  %v342 = vsel %vm310, %v294, %v326
  %v343 = vsel %vm311, %v295, %v327
  %v344 = vsel %vm312, %v296, %v328
  %v345 = vsel %vm313, %v297, %v329
  %v346 = vsel %vm314, %v298, %v330
  %v347 = vsel %vm315, %v299, %v331
  %v348 = vsel %vm316, %v300, %v332
  %v349 = vsel %vm317, %v301, %v333
  %v350 = vpack.c.bf16 %v334, %v334
  %v351 = vpack.c.bf16 %v335, %v335
  %v352 = vpack.c.bf16 %v336, %v336
  %v353 = vpack.c.bf16 %v337, %v337
  %v354 = vpack.c.bf16 %v338, %v338
  %v355 = vpack.c.bf16 %v339, %v339
  %v356 = vpack.c.bf16 %v340, %v340
  %v357 = vpack.c.bf16 %v341, %v341
  %v358 = vpack.c.bf16 %v342, %v342
  %v359 = vpack.c.bf16 %v343, %v343
  %v360 = vpack.c.bf16 %v344, %v344
  %v361 = vpack.c.bf16 %v345, %v345
  %v362 = vpack.c.bf16 %v346, %v346
  %v363 = vpack.c.bf16 %v347, %v347
  %v364 = vpack.c.bf16 %v348, %v348
  %v365 = vpack.c.bf16 %v349, %v349
  %vm366 = vcmask 60416
  %367 = vst.msk [vmem:[%s4] sm:$0xf] %vm366, %v350
  %368 = vst.msk [vmem:[%s4 + $0x4] sm:$0xf] %vm366, %v351
  %369 = vst.msk [vmem:[%s4 + $0x8] sm:$0xf] %vm366, %v352
  %370 = vst.msk [vmem:[%s4 + $0xc] sm:$0xf] %vm366, %v353
  %371 = vst.msk [vmem:[%s4 + $0x10] sm:$0xf] %vm366, %v354
  %372 = vst.msk [vmem:[%s4 + $0x14] sm:$0xf] %vm366, %v355
  %373 = vst.msk [vmem:[%s4 + $0x18] sm:$0xf] %vm366, %v356
  %374 = vst.msk [vmem:[%s4 + $0x1c] sm:$0xf] %vm366, %v357
  %375 = vst.msk [vmem:[%s4 + $0x20] sm:$0xf] %vm366, %v358
  %376 = vst.msk [vmem:[%s4 + $0x24] sm:$0xf] %vm366, %v359
  %377 = vst.msk [vmem:[%s4 + $0x28] sm:$0xf] %vm366, %v360
  %378 = vst.msk [vmem:[%s4 + $0x2c] sm:$0xf] %vm366, %v361
  %379 = vst.msk [vmem:[%s4 + $0x30] sm:$0xf] %vm366, %v362
  %380 = vst.msk [vmem:[%s4 + $0x34] sm:$0xf] %vm366, %v363
  %381 = vst.msk [vmem:[%s4 + $0x38] sm:$0xf] %vm366, %v364
  %382 = vst.msk [vmem:[%s4 + $0x3c] sm:$0xf] %vm366, %v365
  // Predicated region
  $region18: #{darknet_forward.10} parent=0 // pred_check
    _
  $region19: #{darknet_forward.10} parent=0 // pred_check_branch
    %384 = sbr.rel (0) target = $region21
  $region20: #{darknet_forward.10} parent=0 // pred_region
    _
  $region21: #{darknet_forward.10} parent=0 // pred_fallthru
    _
  // Predicated region
  $region22: #{darknet_forward.10} parent=0 // pred_check
    _
  $region23: #{darknet_forward.10} parent=0 // pred_check_branch
    %386 = sbr.rel (0) target = $region25
  $region24: #{darknet_forward.10} parent=0 // pred_region
    _
  $region25: #{darknet_forward.10} parent=0 // pred_fallthru
    _

// kernel: darknet_forward.13
$region0: #{darknet_forward.13}
  #allocation0 [shape = 'u32[]', space=smem, size = 0x4, offset = 0x4, fixed_abs, tag = 'smem constant byte address 0x4 - core index']
  #allocation1 [shape = 'u32[72,128]{1,0:T(1,128)}', space=vmem, size = 0x9000, scoped, tag = 'internal scratch']
  %s0 = inlined_call_operand.vmem [shape: bf16[2,8,8,8], index: 0, kind: input, shape index: {}]
  %s1 = inlined_call_operand.vmem [shape: bf16[1,1,8,8], index: 1, kind: input, shape index: {}]
  %s2 = inlined_call_operand.vmem [shape: f32[1,8], index: 2, kind: input, shape index: {}]
  %s3 = inlined_call_operand.vmem [shape: f32[1,8], index: 3, kind: input, shape index: {}]
  %s4 = inlined_call_operand.vmem [shape: bf16[128,8], index: 4, kind: output, shape index: {}]
  %s5 = sld [smem:[#allocation0]]
  $region26: #{darknet_forward.13} parent=0
    _
  %s7 = ssub.s32 1, %s5
  %s8 = scalar_select 0, %s7, %s5
  // Predicated region
  $region2: #{darknet_forward.13} parent=0 // pred_check
    _
  $region3: #{darknet_forward.13} parent=0 // pred_check_branch
    %10 = sbr.rel (0) target = $region5
  $region4: #{darknet_forward.13} parent=0 // pred_region
    _
  $region5: #{darknet_forward.13} parent=0 // pred_fallthru
    _
  // Predicated region
  $region6: #{darknet_forward.13} parent=0 // pred_check
    _
  $region7: #{darknet_forward.13} parent=0 // pred_check_branch
    %12 = sbr.rel (0) target = $region9
  $region8: #{darknet_forward.13} parent=0 // pred_region
    _
  $region9: #{darknet_forward.13} parent=0 // pred_fallthru
    _
  // Predicated region
  $region10: #{darknet_forward.13} parent=0 // pred_check
    _
  $region11: #{darknet_forward.13} parent=0 // pred_check_branch
    %14 = sbr.rel (0) target = $region13
  $region12: #{darknet_forward.13} parent=0 // pred_region
    _
  $region13: #{darknet_forward.13} parent=0 // pred_fallthru
    _
  // Predicated region
  $region14: #{darknet_forward.13} parent=0 // pred_check
    _
  $region15: #{darknet_forward.13} parent=0 // pred_check_branch
    %16 = sbr.rel (0) target = $region17
  $region16: #{darknet_forward.13} parent=0 // pred_region
    _
  $region17: #{darknet_forward.13} parent=0 // pred_fallthru
    _
  %v18 = vld [vmem:[%s0] sm:$0xf]
  %v19 = vld [vmem:[%s0 + $0x4] sm:$0xf]
  %v20 = vld [vmem:[%s0 + $0x8] sm:$0xf]
  %v21 = vld [vmem:[%s0 + $0xc] sm:$0xf]
  %v22 = vld [vmem:[%s0 + $0x10] sm:$0xf]
  %v23 = vld [vmem:[%s0 + $0x14] sm:$0xf]
  %v24 = vld [vmem:[%s0 + $0x18] sm:$0xf]
  %v25 = vld [vmem:[%s0 + $0x1c] sm:$0xf]
  %v26 = vld [vmem:[%s0 + $0x20] sm:$0xf]
  %v27 = vld [vmem:[%s0 + $0x24] sm:$0xf]
  %v28 = vld [vmem:[%s0 + $0x28] sm:$0xf]
  %v29 = vld [vmem:[%s0 + $0x2c] sm:$0xf]
  %v30 = vld [vmem:[%s0 + $0x30] sm:$0xf]
  %v31 = vld [vmem:[%s0 + $0x34] sm:$0xf]
  %v32 = vld [vmem:[%s0 + $0x38] sm:$0xf]
  %v33 = vld [vmem:[%s0 + $0x3c] sm:$0xf]
  %v34 = vunpack.c.l.bf16 %v18
  %v35 = vunpack.c.l.bf16 %v19
  %v36 = vunpack.c.l.bf16 %v20
  %v37 = vunpack.c.l.bf16 %v21
  %v38 = vunpack.c.l.bf16 %v22
  %v39 = vunpack.c.l.bf16 %v23
  %v40 = vunpack.c.l.bf16 %v24
  %v41 = vunpack.c.l.bf16 %v25
  %v42 = vunpack.c.l.bf16 %v26
  %v43 = vunpack.c.l.bf16 %v27
  %v44 = vunpack.c.l.bf16 %v28
  %v45 = vunpack.c.l.bf16 %v29
  %v46 = vunpack.c.l.bf16 %v30
  %v47 = vunpack.c.l.bf16 %v31
  %v48 = vunpack.c.l.bf16 %v32
  %v49 = vunpack.c.l.bf16 %v33
  %v50 = vpack.c.bf16 %v35, %v34
  %v51 = vpack.c.bf16 %v37, %v36
  %v52 = vpack.c.bf16 %v39, %v38
  %v53 = vpack.c.bf16 %v41, %v40
  %v54 = vpack.c.bf16 %v43, %v42
  %v55 = vpack.c.bf16 %v45, %v44
  %v56 = vpack.c.bf16 %v47, %v46
  %v57 = vpack.c.bf16 %v49, %v48
  %v58 = vld [vmem:[%s1] sm:$0xf]
  %vm59 = vcmask 64512
  %v61 = vsel %vm59, %v50, 0
  %v64 = vsel %vm59, %v51, 0
  %v67 = vsel %vm59, %v52, 0
  %v70 = vsel %vm59, %v53, 0
  %v73 = vsel %vm59, %v54, 0
  %v76 = vsel %vm59, %v55, 0
  %v79 = vsel %vm59, %v56, 0
  %v82 = vsel %vm59, %v57, 0
  %vm84 = vcmask 1043456
  %v86 = vsel %vm84, %v58, 0
  %88 = vmatpush.bf16.msra.mxu0 0
  %89 = vmatpush.bf16.msra.mxu0 0
  %90 = vmatpush.bf16.msra.mxu0 0
  %91 = vmatpush.bf16.msra.mxu0 0
  %92 = vmatpush.bf16.msra.mxu0 0
  %93 = vmatpush.bf16.msra.mxu0 0
  %94 = vmatpush.bf16.msra.mxu0 0
  %95 = vmatpush.bf16.msra.mxu0 %v86
  %96 = vmatmul.bf16.gmra.mxu0 %v61
  %v97 = vpop.f32.mrf.mxu0
  %v98 = vadd.f32 0.0, %v97
  %v99 = vpop.f32.mrf.mxu0
  %v100 = vadd.f32 0.0, %v99
  %101 = vmatmul.bf16.gmra.mxu0 %v64
  %v102 = vpop.f32.mrf.mxu0
  %v103 = vadd.f32 0.0, %v102
  %v104 = vpop.f32.mrf.mxu0
  %v105 = vadd.f32 0.0, %v104
  %106 = vmatmul.bf16.gmra.mxu0 %v67
  %v107 = vpop.f32.mrf.mxu0
  %v108 = vadd.f32 0.0, %v107
  %v109 = vpop.f32.mrf.mxu0
  %v110 = vadd.f32 0.0, %v109
  %111 = vmatmul.bf16.gmra.mxu0 %v70
  %v112 = vpop.f32.mrf.mxu0
  %v113 = vadd.f32 0.0, %v112
  %v114 = vpop.f32.mrf.mxu0
  %v115 = vadd.f32 0.0, %v114
  %116 = vmatmul.bf16.gmra.mxu0 %v73
  %v117 = vpop.f32.mrf.mxu0
  %v118 = vadd.f32 0.0, %v117
  %v119 = vpop.f32.mrf.mxu0
  %v120 = vadd.f32 0.0, %v119
  %121 = vmatmul.bf16.gmra.mxu0 %v76
  %v122 = vpop.f32.mrf.mxu0
  %v123 = vadd.f32 0.0, %v122
  %v124 = vpop.f32.mrf.mxu0
  %v125 = vadd.f32 0.0, %v124
  %126 = vmatmul.bf16.gmra.mxu0 %v79
  %v127 = vpop.f32.mrf.mxu0
  %v128 = vadd.f32 0.0, %v127
  %v129 = vpop.f32.mrf.mxu0
  %v130 = vadd.f32 0.0, %v129
  %131 = vmatmul.bf16.gmra.mxu0 %v82
  %v132 = vpop.f32.mrf.mxu0
  %v133 = vadd.f32 0.0, %v132
  %v134 = vpop.f32.mrf.mxu0
  %v135 = vadd.f32 0.0, %v134
  %136 = vdwg.mxu0
  %v137 = vsel %vm59, %v98, 0.0
  %v138 = vsel %vm59, %v100, 0.0
  %v139 = vadd.f32 %v137, %v138
  %v140 = vsel %vm59, %v103, 0.0
  %v141 = vadd.f32 %v139, %v140
  %v142 = vsel %vm59, %v105, 0.0
  %v143 = vadd.f32 %v141, %v142
  %v144 = vsel %vm59, %v108, 0.0
  %v145 = vadd.f32 %v143, %v144
  %v146 = vsel %vm59, %v110, 0.0
  %v147 = vadd.f32 %v145, %v146
  %v148 = vsel %vm59, %v113, 0.0
  %v149 = vadd.f32 %v147, %v148
  %v150 = vsel %vm59, %v115, 0.0
  %v151 = vadd.f32 %v149, %v150
  %v152 = vsel %vm59, %v118, 0.0
  %v153 = vadd.f32 %v151, %v152
  %v154 = vsel %vm59, %v120, 0.0
  %v155 = vadd.f32 %v153, %v154
  %v156 = vsel %vm59, %v123, 0.0
  %v157 = vadd.f32 %v155, %v156
  %v158 = vsel %vm59, %v125, 0.0
  %v159 = vadd.f32 %v157, %v158
  %v160 = vsel %vm59, %v128, 0.0
  %v161 = vadd.f32 %v159, %v160
  %v162 = vsel %vm59, %v130, 0.0
  %v163 = vadd.f32 %v161, %v162
  %v164 = vsel %vm59, %v133, 0.0
  %v165 = vadd.f32 %v163, %v164
  %v166 = vsel %vm59, %v135, 0.0
  %v167 = vadd.f32 %v165, %v166
  %v168 = vrot.slane %v167, 4
  %v169 = vadd.f32 %v167, %v168
  %v170 = vrot.slane %v169, 2
  %v171 = vadd.f32 %v169, %v170
  %v172 = vrot.slane %v171, 1
  %v173 = vadd.f32 %v171, %v172
  %v174 = vmul.f32 %v173, 0.0078125
  %v175 = vmul.f32 %v98, %v98
  %v176 = vmul.f32 %v100, %v100
  %v177 = vmul.f32 %v103, %v103
  %v178 = vmul.f32 %v105, %v105
  %v179 = vmul.f32 %v108, %v108
  %v180 = vmul.f32 %v110, %v110
  %v181 = vmul.f32 %v113, %v113
  %v182 = vmul.f32 %v115, %v115
  %v183 = vmul.f32 %v118, %v118
  %v184 = vmul.f32 %v120, %v120
  %v185 = vmul.f32 %v123, %v123
  %v186 = vmul.f32 %v125, %v125
  %v187 = vmul.f32 %v128, %v128
  %v188 = vmul.f32 %v130, %v130
  %v189 = vmul.f32 %v133, %v133
  %v190 = vmul.f32 %v135, %v135
  %v191 = vsel %vm59, %v175, 0.0
  %v192 = vsel %vm59, %v176, 0.0
  %v193 = vadd.f32 %v191, %v192
  %v194 = vsel %vm59, %v177, 0.0
  %v195 = vadd.f32 %v193, %v194
  %v196 = vsel %vm59, %v178, 0.0
  %v197 = vadd.f32 %v195, %v196
  %v198 = vsel %vm59, %v179, 0.0
  %v199 = vadd.f32 %v197, %v198
  %v200 = vsel %vm59, %v180, 0.0
  %v201 = vadd.f32 %v199, %v200
  %v202 = vsel %vm59, %v181, 0.0
  %v203 = vadd.f32 %v201, %v202
  %v204 = vsel %vm59, %v182, 0.0
  %v205 = vadd.f32 %v203, %v204
  %v206 = vsel %vm59, %v183, 0.0
  %v207 = vadd.f32 %v205, %v206
  %v208 = vsel %vm59, %v184, 0.0
  %v209 = vadd.f32 %v207, %v208
  %v210 = vsel %vm59, %v185, 0.0
  %v211 = vadd.f32 %v209, %v210
  %v212 = vsel %vm59, %v186, 0.0
  %v213 = vadd.f32 %v211, %v212
  %v214 = vsel %vm59, %v187, 0.0
  %v215 = vadd.f32 %v213, %v214
  %v216 = vsel %vm59, %v188, 0.0
  %v217 = vadd.f32 %v215, %v216
  %v218 = vsel %vm59, %v189, 0.0
  %v219 = vadd.f32 %v217, %v218
  %v220 = vsel %vm59, %v190, 0.0
  %v221 = vadd.f32 %v219, %v220
  %v222 = vrot.slane %v221, 4
  %v223 = vadd.f32 %v221, %v222
  %v224 = vrot.slane %v223, 2
  %v225 = vadd.f32 %v223, %v224
  %v226 = vrot.slane %v225, 1
  %v227 = vadd.f32 %v225, %v226
  %v228 = vmul.f32 %v227, 0.0078125
  %v229 = vmul.f32 %v174, %v174
  %v230 = vsub.f32 %v228, %v229
  %v231 = vmax.f32 %v230, 0.0
  %v232 = vsub.f32 %v98, %v174
  %v233 = vsub.f32 %v100, %v174
  %v234 = vsub.f32 %v103, %v174
  %v235 = vsub.f32 %v105, %v174
  %v236 = vsub.f32 %v108, %v174
  %v237 = vsub.f32 %v110, %v174
  %v238 = vsub.f32 %v113, %v174
  %v239 = vsub.f32 %v115, %v174
  %v240 = vsub.f32 %v118, %v174
  %v241 = vsub.f32 %v120, %v174
  %v242 = vsub.f32 %v123, %v174
  %v243 = vsub.f32 %v125, %v174
  %v244 = vsub.f32 %v128, %v174
  %v245 = vsub.f32 %v130, %v174
  %v246 = vsub.f32 %v133, %v174
  %v247 = vsub.f32 %v135, %v174
  %v248 = vadd.f32 %v231, 1e-05
  %v249 = vrsqrt.pop %v248
  %v250 = vmul.f32 %v249, %v248
  %v251 = vmul.f32 %v250, %v249
  %v252 = vmul.f32 0.5, %v251
  %v253 = vsub.f32 1.5, %v252
  %v254 = vmul.f32 %v249, %v253
  %vm255 = vweird.f32 %v248
  %vm256 = vweird.f32 %v249
  %vm257 = vmor %vm255, %vm256
  %v258 = vsel %vm257, %v249, %v254
  %v259 = vld [vmem:[%s2] sm:$0x1]
  %v260 = vmul.f32 %v258, %v259
  %v261 = vperm.slane %v260, 0
  %v262 = vmul.f32 %v232, %v261
  %v263 = vmul.f32 %v233, %v261
  %v264 = vmul.f32 %v234, %v261
  %v265 = vmul.f32 %v235, %v261
  %v266 = vmul.f32 %v236, %v261
  %v267 = vmul.f32 %v237, %v261
  %v268 = vmul.f32 %v238, %v261
  %v269 = vmul.f32 %v239, %v261
  %v270 = vmul.f32 %v240, %v261
  %v271 = vmul.f32 %v241, %v261
  %v272 = vmul.f32 %v242, %v261
  %v273 = vmul.f32 %v243, %v261
  %v274 = vmul.f32 %v244, %v261
  %v275 = vmul.f32 %v245, %v261
  %v276 = vmul.f32 %v246, %v261
  %v277 = vmul.f32 %v247, %v261
  %v278 = vld [vmem:[%s3] sm:$0x1]
  %v280 = vperm.slane %v278, 0
  %v282 = vadd.f32 %v262, %v280
  %v283 = vadd.f32 %v263, %v280
  %v284 = vadd.f32 %v264, %v280
  %v285 = vadd.f32 %v265, %v280
  %v286 = vadd.f32 %v266, %v280
  %v287 = vadd.f32 %v267, %v280
  %v288 = vadd.f32 %v268, %v280
  %v289 = vadd.f32 %v269, %v280
  %v290 = vadd.f32 %v270, %v280
  %v291 = vadd.f32 %v271, %v280
  %v292 = vadd.f32 %v272, %v280
  %v293 = vadd.f32 %v273, %v280
  %v294 = vadd.f32 %v274, %v280
  %v295 = vadd.f32 %v275, %v280
  %v296 = vadd.f32 %v276, %v280
  %v297 = vadd.f32 %v277, %v280
  %vm298 = vcmp.gt.f32.partialorder %v282, 0.0
  %vm299 = vcmp.gt.f32.partialorder %v283, 0.0
  %vm300 = vcmp.gt.f32.partialorder %v284, 0.0
  %vm301 = vcmp.gt.f32.partialorder %v285, 0.0
  %vm302 = vcmp.gt.f32.partialorder %v286, 0.0
  %vm303 = vcmp.gt.f32.partialorder %v287, 0.0
  %vm304 = vcmp.gt.f32.partialorder %v288, 0.0
  %vm305 = vcmp.gt.f32.partialorder %v289, 0.0
  %vm306 = vcmp.gt.f32.partialorder %v290, 0.0
  %vm307 = vcmp.gt.f32.partialorder %v291, 0.0
  %vm308 = vcmp.gt.f32.partialorder %v292, 0.0
  %vm309 = vcmp.gt.f32.partialorder %v293, 0.0
  %vm310 = vcmp.gt.f32.partialorder %v294, 0.0
  %vm311 = vcmp.gt.f32.partialorder %v295, 0.0
  %vm312 = vcmp.gt.f32.partialorder %v296, 0.0
  %vm313 = vcmp.gt.f32.partialorder %v297, 0.0
  %v314 = vmul.f32 %v282, 0.1
  %v315 = vmul.f32 %v283, 0.1
  %v316 = vmul.f32 %v284, 0.1
  %v317 = vmul.f32 %v285, 0.1
  %v318 = vmul.f32 %v286, 0.1
  %v319 = vmul.f32 %v287, 0.1
  %v320 = vmul.f32 %v288, 0.1
  %v321 = vmul.f32 %v289, 0.1
  %v322 = vmul.f32 %v290, 0.1
  %v323 = vmul.f32 %v291, 0.1
  %v324 = vmul.f32 %v292, 0.1
  %v325 = vmul.f32 %v293, 0.1
  %v326 = vmul.f32 %v294, 0.1
  %v327 = vmul.f32 %v295, 0.1
  %v328 = vmul.f32 %v296, 0.1
  %v329 = vmul.f32 %v297, 0.1
  %v330 = vsel %vm298, %v282, %v314
  %v331 = vsel %vm299, %v283, %v315
  %v332 = vsel %vm300, %v284, %v316
  %v333 = vsel %vm301, %v285, %v317
  %v334 = vsel %vm302, %v286, %v318
  %v335 = vsel %vm303, %v287, %v319
  %v336 = vsel %vm304, %v288, %v320
  %v337 = vsel %vm305, %v289, %v321
  %v338 = vsel %vm306, %v290, %v322
  %v339 = vsel %vm307, %v291, %v323
  %v340 = vsel %vm308, %v292, %v324
  %v341 = vsel %vm309, %v293, %v325
  %v342 = vsel %vm310, %v294, %v326
  %v343 = vsel %vm311, %v295, %v327
  %v344 = vsel %vm312, %v296, %v328
  %v345 = vsel %vm313, %v297, %v329
  %v346 = vpack.c.bf16 %v330, %v330
  %v347 = vpack.c.bf16 %v331, %v331
  %v348 = vpack.c.bf16 %v332, %v332
  %v349 = vpack.c.bf16 %v333, %v333
  %v350 = vpack.c.bf16 %v334, %v334
  %v351 = vpack.c.bf16 %v335, %v335
  %v352 = vpack.c.bf16 %v336, %v336
  %v353 = vpack.c.bf16 %v337, %v337
  %v354 = vpack.c.bf16 %v338, %v338
  %v355 = vpack.c.bf16 %v339, %v339
  %v356 = vpack.c.bf16 %v340, %v340
  %v357 = vpack.c.bf16 %v341, %v341
  %v358 = vpack.c.bf16 %v342, %v342
  %v359 = vpack.c.bf16 %v343, %v343
  %v360 = vpack.c.bf16 %v344, %v344
  %v361 = vpack.c.bf16 %v345, %v345
  %vm362 = vcmask 60416
  %363 = vst.msk [vmem:[%s4] sm:$0xf] %vm362, %v346
  %364 = vst.msk [vmem:[%s4 + $0x4] sm:$0xf] %vm362, %v347
  %365 = vst.msk [vmem:[%s4 + $0x8] sm:$0xf] %vm362, %v348
  %366 = vst.msk [vmem:[%s4 + $0xc] sm:$0xf] %vm362, %v349
  %367 = vst.msk [vmem:[%s4 + $0x10] sm:$0xf] %vm362, %v350
  %368 = vst.msk [vmem:[%s4 + $0x14] sm:$0xf] %vm362, %v351
  %369 = vst.msk [vmem:[%s4 + $0x18] sm:$0xf] %vm362, %v352
  %370 = vst.msk [vmem:[%s4 + $0x1c] sm:$0xf] %vm362, %v353
  %371 = vst.msk [vmem:[%s4 + $0x20] sm:$0xf] %vm362, %v354
  %372 = vst.msk [vmem:[%s4 + $0x24] sm:$0xf] %vm362, %v355
  %373 = vst.msk [vmem:[%s4 + $0x28] sm:$0xf] %vm362, %v356
  %374 = vst.msk [vmem:[%s4 + $0x2c] sm:$0xf] %vm362, %v357
  %375 = vst.msk [vmem:[%s4 + $0x30] sm:$0xf] %vm362, %v358
  %376 = vst.msk [vmem:[%s4 + $0x34] sm:$0xf] %vm362, %v359
  %377 = vst.msk [vmem:[%s4 + $0x38] sm:$0xf] %vm362, %v360
  %378 = vst.msk [vmem:[%s4 + $0x3c] sm:$0xf] %vm362, %v361
  // Predicated region
  $region18: #{darknet_forward.13} parent=0 // pred_check
    _
  $region19: #{darknet_forward.13} parent=0 // pred_check_branch
    %380 = sbr.rel (0) target = $region21
  $region20: #{darknet_forward.13} parent=0 // pred_region
    _
  $region21: #{darknet_forward.13} parent=0 // pred_fallthru
    _
  // Predicated region
  $region22: #{darknet_forward.13} parent=0 // pred_check
    _
  $region23: #{darknet_forward.13} parent=0 // pred_check_branch
    %382 = sbr.rel (0) target = $region25
  $region24: #{darknet_forward.13} parent=0 // pred_region
    _
  $region25: #{darknet_forward.13} parent=0 // pred_fallthru
    _

// kernel: darknet_forward.9
$region0: #{darknet_forward.9}
  #allocation0 [shape = 'u32[]', space=smem, size = 0x4, offset = 0x4, fixed_abs, tag = 'smem constant byte address 0x4 - core index']
  #allocation1 [shape = 'u32[72,128]{1,0:T(1,128)}', space=vmem, size = 0x9000, scoped, tag = 'internal scratch']
  %s0 = inlined_call_operand.vmem [shape: bf16[2,10,10,8], index: 0, kind: input, shape index: {}]
  %s1 = inlined_call_operand.vmem [shape: bf16[3,3,8,16], index: 1, kind: input, shape index: {}]
  %s2 = inlined_call_operand.vmem [shape: f32[1,16], index: 2, kind: input, shape index: {}]
  %s3 = inlined_call_operand.vmem [shape: f32[1,16], index: 3, kind: input, shape index: {}]
  %s4 = inlined_call_operand.vmem [shape: bf16[128,16], index: 4, kind: output, shape index: {}]
  %s5 = sld [smem:[#allocation0]]
  $region26: #{darknet_forward.9} parent=0
    _
  %s7 = ssub.s32 1, %s5
  %s8 = scalar_select 0, %s7, %s5
  // Predicated region
  $region2: #{darknet_forward.9} parent=0 // pred_check
    _
  $region3: #{darknet_forward.9} parent=0 // pred_check_branch
    %10 = sbr.rel (0) target = $region5
  $region4: #{darknet_forward.9} parent=0 // pred_region
    _
  $region5: #{darknet_forward.9} parent=0 // pred_fallthru
    _
  // Predicated region
  $region6: #{darknet_forward.9} parent=0 // pred_check
    _
  $region7: #{darknet_forward.9} parent=0 // pred_check_branch
    %12 = sbr.rel (0) target = $region9
  $region8: #{darknet_forward.9} parent=0 // pred_region
    _
  $region9: #{darknet_forward.9} parent=0 // pred_fallthru
    _
  // Predicated region
  $region10: #{darknet_forward.9} parent=0 // pred_check
    _
  $region11: #{darknet_forward.9} parent=0 // pred_check_branch
    %14 = sbr.rel (0) target = $region13
  $region12: #{darknet_forward.9} parent=0 // pred_region
    _
  $region13: #{darknet_forward.9} parent=0 // pred_fallthru
    _
  // Predicated region
  $region14: #{darknet_forward.9} parent=0 // pred_check
    _
  $region15: #{darknet_forward.9} parent=0 // pred_check_branch
    %16 = sbr.rel (0) target = $region17
  $region16: #{darknet_forward.9} parent=0 // pred_region
    _
  $region17: #{darknet_forward.9} parent=0 // pred_fallthru
    _
  %v18 = vld [vmem:[%s0] sm:$0xf]
  %v19 = vld [vmem:[%s0 + $0x4] sm:$0x1]
  %v20 = vld [vmem:[%s0 + $0x8] sm:$0xf]
  %v21 = vld [vmem:[%s0 + $0xc] sm:$0x1]
  %v22 = vld [vmem:[%s0 + $0x10] sm:$0xf]
  %v23 = vld [vmem:[%s0 + $0x14] sm:$0x1]
  %v24 = vld [vmem:[%s0 + $0x18] sm:$0xf]
  %v25 = vld [vmem:[%s0 + $0x1c] sm:$0x1]
  %v26 = vld [vmem:[%s0 + $0x20] sm:$0xf]
  %v27 = vld [vmem:[%s0 + $0x24] sm:$0x1]
  %v28 = vld [vmem:[%s0 + $0x28] sm:$0xf]
  %v29 = vld [vmem:[%s0 + $0x2c] sm:$0x1]
  %v30 = vld [vmem:[%s0 + $0x30] sm:$0xf]
  %v31 = vld [vmem:[%s0 + $0x34] sm:$0x1]
  %v32 = vld [vmem:[%s0 + $0x38] sm:$0xf]
  %v33 = vld [vmem:[%s0 + $0x3c] sm:$0x1]
  %v34 = vld [vmem:[%s0 + $0x40] sm:$0xf]
  %v35 = vld [vmem:[%s0 + $0x44] sm:$0x1]
  %v36 = vld [vmem:[%s0 + $0x48] sm:$0xf]
  %v37 = vld [vmem:[%s0 + $0x4c] sm:$0x1]
  %v38 = vld [vmem:[%s0 + $0x50] sm:$0xf]
  %v39 = vld [vmem:[%s0 + $0x54] sm:$0x1]
  %v40 = vld [vmem:[%s0 + $0x58] sm:$0xf]
  %v41 = vld [vmem:[%s0 + $0x5c] sm:$0x1]
  %v42 = vld [vmem:[%s0 + $0x60] sm:$0xf]
  %v43 = vld [vmem:[%s0 + $0x64] sm:$0x1]
  %v44 = vld [vmem:[%s0 + $0x68] sm:$0xf]
  %v45 = vld [vmem:[%s0 + $0x6c] sm:$0x1]
  %v46 = vld [vmem:[%s0 + $0x70] sm:$0xf]
  %v47 = vld [vmem:[%s0 + $0x74] sm:$0x1]
  %v48 = vld [vmem:[%s0 + $0x78] sm:$0xf]
  %v49 = vld [vmem:[%s0 + $0x7c] sm:$0x1]
  %v50 = vld [vmem:[%s0 + $0x80] sm:$0xf]
  %v51 = vld [vmem:[%s0 + $0x84] sm:$0x1]
  %v52 = vld [vmem:[%s0 + $0x88] sm:$0xf]
  %v53 = vld [vmem:[%s0 + $0x8c] sm:$0x1]
  %v54 = vld [vmem:[%s0 + $0x90] sm:$0xf]
  %v55 = vld [vmem:[%s0 + $0x94] sm:$0x1]
  %v56 = vld [vmem:[%s0 + $0x98] sm:$0xf]
  %v57 = vld [vmem:[%s0 + $0x9c] sm:$0x1]
  %v58 = vunpack.c.l.bf16 %v18
  %v59 = vunpack.c.l.bf16 %v19
  %v60 = vunpack.c.l.bf16 %v20
  %v61 = vunpack.c.l.bf16 %v21
  %v62 = vunpack.c.l.bf16 %v22
  %v63 = vunpack.c.l.bf16 %v23
  %v64 = vunpack.c.l.bf16 %v24
  %v65 = vunpack.c.l.bf16 %v25
  %v66 = vunpack.c.l.bf16 %v26
  %v67 = vunpack.c.l.bf16 %v27
  %v68 = vunpack.c.l.bf16 %v28
  %v69 = vunpack.c.l.bf16 %v29
  %v70 = vunpack.c.l.bf16 %v30
  %v71 = vunpack.c.l.bf16 %v31
  %v72 = vunpack.c.l.bf16 %v32
  %v73 = vunpack.c.l.bf16 %v33
  %v74 = vunpack.c.l.bf16 %v34
  %v75 = vunpack.c.l.bf16 %v35
  %v76 = vunpack.c.l.bf16 %v36
  %v77 = vunpack.c.l.bf16 %v37
  %v78 = vunpack.c.l.bf16 %v38
  %v79 = vunpack.c.l.bf16 %v39
  %v80 = vunpack.c.l.bf16 %v40
  %v81 = vunpack.c.l.bf16 %v41
  %v82 = vunpack.c.l.bf16 %v42
  %v83 = vunpack.c.l.bf16 %v43
  %v84 = vunpack.c.l.bf16 %v44
  %v85 = vunpack.c.l.bf16 %v45
  %v86 = vunpack.c.l.bf16 %v46
  %v87 = vunpack.c.l.bf16 %v47
  %v88 = vunpack.c.l.bf16 %v48
  %v89 = vunpack.c.l.bf16 %v49
  %v90 = vunpack.c.l.bf16 %v50
  %v91 = vunpack.c.l.bf16 %v51
  %v92 = vunpack.c.l.bf16 %v52
  %v93 = vunpack.c.l.bf16 %v53
  %v94 = vunpack.c.l.bf16 %v54
  %v95 = vunpack.c.l.bf16 %v55
  %v96 = vunpack.c.l.bf16 %v56
  %v97 = vunpack.c.l.bf16 %v57
  %v98 = vpack.c.bf16 %v60, %v58
  %v99 = vpack.c.bf16 %v64, %v62
  %v100 = vpack.c.bf16 %v68, %v66
  %v101 = vpack.c.bf16 %v72, %v70
  %v102 = vpack.c.bf16 %v80, %v78
  %v103 = vpack.c.bf16 %v84, %v82
  %v104 = vpack.c.bf16 %v88, %v86
  %v105 = vpack.c.bf16 %v92, %v90
  %v106 = vld [vmem:[%s1] sm:$0xf]
  %vm139 = vcmask 1046528
  %v140 = vrot.slane %v58, 1
  %v141 = vrot.slane %v59, 1
  %v142 = vsel %vm139, %v140, %v141
  %v143 = vrot.slane %v60, 1
  %v144 = vrot.slane %v61, 1
  %v145 = vsel %vm139, %v143, %v144
  %v146 = vrot.slane %v62, 1
  %v147 = vrot.slane %v63, 1
  %v148 = vsel %vm139, %v146, %v147
  %v149 = vrot.slane %v64, 1
  %v150 = vrot.slane %v65, 1
  %v151 = vsel %vm139, %v149, %v150
  %v152 = vrot.slane %v66, 1
  %v153 = vrot.slane %v67, 1
  %v154 = vsel %vm139, %v152, %v153
  %v155 = vrot.slane %v68, 1
  %v156 = vrot.slane %v69, 1
  %v157 = vsel %vm139, %v155, %v156
  %v158 = vrot.slane %v70, 1
  %v159 = vrot.slane %v71, 1
  %v160 = vsel %vm139, %v158, %v159
  %v161 = vrot.slane %v72, 1
  %v162 = vrot.slane %v73, 1
  %v163 = vsel %vm139, %v161, %v162
  %v164 = vrot.slane %v78, 1
  %v165 = vrot.slane %v79, 1
  %v166 = vsel %vm139, %v164, %v165
  %v167 = vrot.slane %v80, 1
  %v168 = vrot.slane %v81, 1
  %v169 = vsel %vm139, %v167, %v168
  %v170 = vrot.slane %v82, 1
  %v171 = vrot.slane %v83, 1
  %v172 = vsel %vm139, %v170, %v171
  %v173 = vrot.slane %v84, 1
  %v174 = vrot.slane %v85, 1
  %v175 = vsel %vm139, %v173, %v174
  %v176 = vrot.slane %v86, 1
  %v177 = vrot.slane %v87, 1
  %v178 = vsel %vm139, %v176, %v177
  %v179 = vrot.slane %v88, 1
  %v180 = vrot.slane %v89, 1
  %v181 = vsel %vm139, %v179, %v180
  %v182 = vrot.slane %v90, 1
  %v183 = vrot.slane %v91, 1
  %v184 = vsel %vm139, %v182, %v183
  %v185 = vrot.slane %v92, 1
  %v186 = vrot.slane %v93, 1
  %v187 = vsel %vm139, %v185, %v186
  %v204 = vpack.c.bf16 %v145, %v142
  %v205 = vpack.c.bf16 %v151, %v148
  %v206 = vpack.c.bf16 %v157, %v154
  %v207 = vpack.c.bf16 %v163, %v160
  %v208 = vpack.c.bf16 %v169, %v166
  %v209 = vpack.c.bf16 %v175, %v172
  %v210 = vpack.c.bf16 %v181, %v178
  %v211 = vpack.c.bf16 %v187, %v184
  %s212 = scalar_lea.vmem %s1, 4
  %v213 = vld [vmem:[%s212] sm:$0xf]
  %vm214 = vcmask 64512
  %v216 = vsel %vm214, %v204, 0
  %v219 = vsel %vm214, %v205, 0
  %v222 = vsel %vm214, %v206, 0
  %v225 = vsel %vm214, %v207, 0
  %v228 = vsel %vm214, %v208, 0
  %v231 = vsel %vm214, %v209, 0
  %v234 = vsel %vm214, %v210, 0
  %v237 = vsel %vm214, %v211, 0
  %vm239 = vcmask 1043456
  %v241 = vsel %vm239, %v213, 0
  %243 = vmatpush.bf16.msra.mxu0 0
  %244 = vmatpush.bf16.msra.mxu0 0
  %245 = vmatpush.bf16.msra.mxu0 0
  %246 = vmatpush.bf16.msra.mxu0 0
  %247 = vmatpush.bf16.msra.mxu0 0
  %248 = vmatpush.bf16.msra.mxu0 0
  %249 = vmatpush.bf16.msra.mxu0 0
  %250 = vmatpush.bf16.msra.mxu0 %v241
  %251 = vmatmul.bf16.gmra.mxu0 %v216
  %v252 = vpop.f32.mrf.mxu0
  %v253 = vadd.f32 0.0, %v252
  %v254 = vpop.f32.mrf.mxu0
  %v255 = vadd.f32 0.0, %v254
  %256 = vmatmul.bf16.gmra.mxu0 %v219
  %v257 = vpop.f32.mrf.mxu0
  %v258 = vadd.f32 0.0, %v257
  %v259 = vpop.f32.mrf.mxu0
  %v260 = vadd.f32 0.0, %v259
  %261 = vmatmul.bf16.gmra.mxu0 %v222
  %v262 = vpop.f32.mrf.mxu0
  %v263 = vadd.f32 0.0, %v262
  %v264 = vpop.f32.mrf.mxu0
  %v265 = vadd.f32 0.0, %v264
  %266 = vmatmul.bf16.gmra.mxu0 %v225
  %v267 = vpop.f32.mrf.mxu0
  %v268 = vadd.f32 0.0, %v267
  %v269 = vpop.f32.mrf.mxu0
  %v270 = vadd.f32 0.0, %v269
  %271 = vmatmul.bf16.gmra.mxu0 %v228
  %v272 = vpop.f32.mrf.mxu0
  %v273 = vadd.f32 0.0, %v272
  %v274 = vpop.f32.mrf.mxu0
  %v275 = vadd.f32 0.0, %v274
  %276 = vmatmul.bf16.gmra.mxu0 %v231
  %v277 = vpop.f32.mrf.mxu0
  %v278 = vadd.f32 0.0, %v277
  %v279 = vpop.f32.mrf.mxu0
  %v280 = vadd.f32 0.0, %v279
  %281 = vmatmul.bf16.gmra.mxu0 %v234
  %v282 = vpop.f32.mrf.mxu0
  %v283 = vadd.f32 0.0, %v282
  %v284 = vpop.f32.mrf.mxu0
  %v285 = vadd.f32 0.0, %v284
  %286 = vmatmul.bf16.gmra.mxu0 %v237
  %v287 = vpop.f32.mrf.mxu0
  %v288 = vadd.f32 0.0, %v287
  %v289 = vpop.f32.mrf.mxu0
  %v290 = vadd.f32 0.0, %v289
  %291 = vdwg.mxu0
  %v293 = vsel %vm214, %v98, 0
  %v296 = vsel %vm214, %v99, 0
  %v299 = vsel %vm214, %v100, 0
  %v302 = vsel %vm214, %v101, 0
  %v305 = vsel %vm214, %v102, 0
  %v308 = vsel %vm214, %v103, 0
  %v311 = vsel %vm214, %v104, 0
  %v314 = vsel %vm214, %v105, 0
  %v317 = vsel %vm239, %v106, 0
  %319 = vmatpush.bf16.msra.mxu0 0
  %320 = vmatpush.bf16.msra.mxu0 0
  %321 = vmatpush.bf16.msra.mxu0 0
  %322 = vmatpush.bf16.msra.mxu0 0
  %323 = vmatpush.bf16.msra.mxu0 0
  %324 = vmatpush.bf16.msra.mxu0 0
  %325 = vmatpush.bf16.msra.mxu0 0
  %326 = vmatpush.bf16.msra.mxu0 %v317
  %327 = vmatmul.bf16.gmra.mxu0 %v293
  %v328 = vpop.f32.mrf.mxu0
  %v329 = vadd.f32 %v253, %v328
  %v330 = vpop.f32.mrf.mxu0
  %v331 = vadd.f32 %v255, %v330
  %332 = vmatmul.bf16.gmra.mxu0 %v296
  %v333 = vpop.f32.mrf.mxu0
  %v334 = vadd.f32 %v258, %v333
  %v335 = vpop.f32.mrf.mxu0
  %v336 = vadd.f32 %v260, %v335
  %337 = vmatmul.bf16.gmra.mxu0 %v299
  %v338 = vpop.f32.mrf.mxu0
  %v339 = vadd.f32 %v263, %v338
  %v340 = vpop.f32.mrf.mxu0
  %v341 = vadd.f32 %v265, %v340
  %342 = vmatmul.bf16.gmra.mxu0 %v302
  %v343 = vpop.f32.mrf.mxu0
  %v344 = vadd.f32 %v268, %v343
  %v345 = vpop.f32.mrf.mxu0
  %v346 = vadd.f32 %v270, %v345
  %347 = vmatmul.bf16.gmra.mxu0 %v305
  %v348 = vpop.f32.mrf.mxu0
  %v349 = vadd.f32 %v273, %v348
  %v350 = vpop.f32.mrf.mxu0
  %v351 = vadd.f32 %v275, %v350
  %352 = vmatmul.bf16.gmra.mxu0 %v308
  %v353 = vpop.f32.mrf.mxu0
  %v354 = vadd.f32 %v278, %v353
  %v355 = vpop.f32.mrf.mxu0
  %v356 = vadd.f32 %v280, %v355
  %357 = vmatmul.bf16.gmra.mxu0 %v311
  %v358 = vpop.f32.mrf.mxu0
  %v359 = vadd.f32 %v283, %v358
  %v360 = vpop.f32.mrf.mxu0
  %v361 = vadd.f32 %v285, %v360
  %362 = vmatmul.bf16.gmra.mxu0 %v314
  %v363 = vpop.f32.mrf.mxu0
  %v364 = vadd.f32 %v288, %v363
  %v365 = vpop.f32.mrf.mxu0
  %v366 = vadd.f32 %v290, %v365
  %367 = vdwg.mxu0
  %vm368 = vcmask 1045504
  %v369 = vrot.slane %v58, 2
  %v370 = vrot.slane %v59, 2
  %v371 = vsel %vm368, %v369, %v370
  %v372 = vrot.slane %v60, 2
  %v373 = vrot.slane %v61, 2
  %v374 = vsel %vm368, %v372, %v373
  %v375 = vrot.slane %v62, 2
  %v376 = vrot.slane %v63, 2
  %v377 = vsel %vm368, %v375, %v376
  %v378 = vrot.slane %v64, 2
  %v379 = vrot.slane %v65, 2
  %v380 = vsel %vm368, %v378, %v379
  %v381 = vrot.slane %v66, 2
  %v382 = vrot.slane %v67, 2
  %v383 = vsel %vm368, %v381, %v382
  %v384 = vrot.slane %v68, 2
  %v385 = vrot.slane %v69, 2
  %v386 = vsel %vm368, %v384, %v385
  %v387 = vrot.slane %v70, 2
  %v388 = vrot.slane %v71, 2
  %v389 = vsel %vm368, %v387, %v388
  %v390 = vrot.slane %v72, 2
  %v391 = vrot.slane %v73, 2
  %v392 = vsel %vm368, %v390, %v391
  %v393 = vrot.slane %v78, 2
  %v394 = vrot.slane %v79, 2
  %v395 = vsel %vm368, %v393, %v394
  %v396 = vrot.slane %v80, 2
  %v397 = vrot.slane %v81, 2
  %v398 = vsel %vm368, %v396, %v397
  %v399 = vrot.slane %v82, 2
  %v400 = vrot.slane %v83, 2
  %v401 = vsel %vm368, %v399, %v400
  %v402 = vrot.slane %v84, 2
  %v403 = vrot.slane %v85, 2
  %v404 = vsel %vm368, %v402, %v403
  %v405 = vrot.slane %v86, 2
  %v406 = vrot.slane %v87, 2
  %v407 = vsel %vm368, %v405, %v406
  %v408 = vrot.slane %v88, 2
  %v409 = vrot.slane %v89, 2
  %v410 = vsel %vm368, %v408, %v409
  %v411 = vrot.slane %v90, 2
  %v412 = vrot.slane %v91, 2
  %v413 = vsel %vm368, %v411, %v412
  %v414 = vrot.slane %v92, 2
  %v415 = vrot.slane %v93, 2
  %v416 = vsel %vm368, %v414, %v415
  %v433 = vpack.c.bf16 %v374, %v371
  %v434 = vpack.c.bf16 %v380, %v377
  %v435 = vpack.c.bf16 %v386, %v383
  %v436 = vpack.c.bf16 %v392, %v389
  %v437 = vpack.c.bf16 %v398, %v395
  %v438 = vpack.c.bf16 %v404, %v401
  %v439 = vpack.c.bf16 %v410, %v407
  %v440 = vpack.c.bf16 %v416, %v413
  %s441 = scalar_lea.vmem %s1, 8
  %v442 = vld [vmem:[%s441] sm:$0xf]
  %v444 = vsel %vm214, %v433, 0
  %v447 = vsel %vm214, %v434, 0
  %v450 = vsel %vm214, %v435, 0
  %v453 = vsel %vm214, %v436, 0
  %v456 = vsel %vm214, %v437, 0
  %v459 = vsel %vm214, %v438, 0
  %v462 = vsel %vm214, %v439, 0
  %v465 = vsel %vm214, %v440, 0
  %v468 = vsel %vm239, %v442, 0
  %470 = vmatpush.bf16.msra.mxu0 0
  %471 = vmatpush.bf16.msra.mxu0 0
  %472 = vmatpush.bf16.msra.mxu0 0
  %473 = vmatpush.bf16.msra.mxu0 0
  %474 = vmatpush.bf16.msra.mxu0 0
  %475 = vmatpush.bf16.msra.mxu0 0
  %476 = vmatpush.bf16.msra.mxu0 0
  %477 = vmatpush.bf16.msra.mxu0 %v468
  %478 = vmatmul.bf16.gmra.mxu0 %v444
  %v479 = vpop.f32.mrf.mxu0
  %v480 = vadd.f32 0.0, %v479
  %v481 = vpop.f32.mrf.mxu0
  %v482 = vadd.f32 0.0, %v481
  %483 = vmatmul.bf16.gmra.mxu0 %v447
  %v484 = vpop.f32.mrf.mxu0
  %v485 = vadd.f32 0.0, %v484
  %v486 = vpop.f32.mrf.mxu0
  %v487 = vadd.f32 0.0, %v486
  %488 = vmatmul.bf16.gmra.mxu0 %v450
  %v489 = vpop.f32.mrf.mxu0
  %v490 = vadd.f32 0.0, %v489
  %v491 = vpop.f32.mrf.mxu0
  %v492 = vadd.f32 0.0, %v491
  %493 = vmatmul.bf16.gmra.mxu0 %v453
  %v494 = vpop.f32.mrf.mxu0
  %v495 = vadd.f32 0.0, %v494
  %v496 = vpop.f32.mrf.mxu0
  %v497 = vadd.f32 0.0, %v496
  %498 = vmatmul.bf16.gmra.mxu0 %v456
  %v499 = vpop.f32.mrf.mxu0
  %v500 = vadd.f32 0.0, %v499
  %v501 = vpop.f32.mrf.mxu0
  %v502 = vadd.f32 0.0, %v501
  %503 = vmatmul.bf16.gmra.mxu0 %v459
  %v504 = vpop.f32.mrf.mxu0
  %v505 = vadd.f32 0.0, %v504
  %v506 = vpop.f32.mrf.mxu0
  %v507 = vadd.f32 0.0, %v506
  %508 = vmatmul.bf16.gmra.mxu0 %v462
  %v509 = vpop.f32.mrf.mxu0
  %v510 = vadd.f32 0.0, %v509
  %v511 = vpop.f32.mrf.mxu0
  %v512 = vadd.f32 0.0, %v511
  %513 = vmatmul.bf16.gmra.mxu0 %v465
  %v514 = vpop.f32.mrf.mxu0
  %v515 = vadd.f32 0.0, %v514
  %v516 = vpop.f32.mrf.mxu0
  %v517 = vadd.f32 0.0, %v516
  %518 = vdwg.mxu0
  %v519 = vadd.f32 %v329, %v480
  %v520 = vadd.f32 %v331, %v482
  %v521 = vadd.f32 %v334, %v485
  %v522 = vadd.f32 %v336, %v487
  %v523 = vadd.f32 %v339, %v490
  %v524 = vadd.f32 %v341, %v492
  %v525 = vadd.f32 %v344, %v495
  %v526 = vadd.f32 %v346, %v497
  %v527 = vadd.f32 %v349, %v500
  %v528 = vadd.f32 %v351, %v502
  %v529 = vadd.f32 %v354, %v505
  %v530 = vadd.f32 %v356, %v507
  %v531 = vadd.f32 %v359, %v510
  %v532 = vadd.f32 %v361, %v512
  %v533 = vadd.f32 %v364, %v515
  %v534 = vadd.f32 %v366, %v517
  %v535 = vpack.c.bf16 %v62, %v60
  %v536 = vpack.c.bf16 %v66, %v64
  %v537 = vpack.c.bf16 %v70, %v68
  %v538 = vpack.c.bf16 %v74, %v72
  %v539 = vpack.c.bf16 %v82, %v80
  %v540 = vpack.c.bf16 %v86, %v84
  %v541 = vpack.c.bf16 %v90, %v88
  %v542 = vpack.c.bf16 %v94, %v92
  %s543 = scalar_lea.vmem %s1, 12
  %v544 = vld [vmem:[%s543] sm:$0xf]
  %v546 = vsel %vm214, %v535, 0
  %v549 = vsel %vm214, %v536, 0
  %v552 = vsel %vm214, %v537, 0
  %v555 = vsel %vm214, %v538, 0
  %v558 = vsel %vm214, %v539, 0
  %v561 = vsel %vm214, %v540, 0
  %v564 = vsel %vm214, %v541, 0
  %v567 = vsel %vm214, %v542, 0
  %v570 = vsel %vm239, %v544, 0
  %572 = vmatpush.bf16.msra.mxu0 0
  %573 = vmatpush.bf16.msra.mxu0 0
  %574 = vmatpush.bf16.msra.mxu0 0
  %575 = vmatpush.bf16.msra.mxu0 0
  %576 = vmatpush.bf16.msra.mxu0 0
  %577 = vmatpush.bf16.msra.mxu0 0
  %578 = vmatpush.bf16.msra.mxu0 0
  %579 = vmatpush.bf16.msra.mxu0 %v570
  %580 = vmatmul.bf16.gmra.mxu0 %v546
  %v581 = vpop.f32.mrf.mxu0
  %v582 = vadd.f32 0.0, %v581
  %v583 = vpop.f32.mrf.mxu0
  %v584 = vadd.f32 0.0, %v583
  %585 = vmatmul.bf16.gmra.mxu0 %v549
  %v586 = vpop.f32.mrf.mxu0
  %v587 = vadd.f32 0.0, %v586
  %v588 = vpop.f32.mrf.mxu0
  %v589 = vadd.f32 0.0, %v588
  %590 = vmatmul.bf16.gmra.mxu0 %v552
  %v591 = vpop.f32.mrf.mxu0
  %v592 = vadd.f32 0.0, %v591
  %v593 = vpop.f32.mrf.mxu0
  %v594 = vadd.f32 0.0, %v593
  %595 = vmatmul.bf16.gmra.mxu0 %v555
  %v596 = vpop.f32.mrf.mxu0
  %v597 = vadd.f32 0.0, %v596
  %v598 = vpop.f32.mrf.mxu0
  %v599 = vadd.f32 0.0, %v598
  %600 = vmatmul.bf16.gmra.mxu0 %v558
  %v601 = vpop.f32.mrf.mxu0
  %v602 = vadd.f32 0.0, %v601
  %v603 = vpop.f32.mrf.mxu0
  %v604 = vadd.f32 0.0, %v603
  %605 = vmatmul.bf16.gmra.mxu0 %v561
  %v606 = vpop.f32.mrf.mxu0
  %v607 = vadd.f32 0.0, %v606
  %v608 = vpop.f32.mrf.mxu0
  %v609 = vadd.f32 0.0, %v608
  %610 = vmatmul.bf16.gmra.mxu0 %v564
  %v611 = vpop.f32.mrf.mxu0
  %v612 = vadd.f32 0.0, %v611
  %v613 = vpop.f32.mrf.mxu0
  %v614 = vadd.f32 0.0, %v613
  %615 = vmatmul.bf16.gmra.mxu0 %v567
  %v616 = vpop.f32.mrf.mxu0
  %v617 = vadd.f32 0.0, %v616
  %v618 = vpop.f32.mrf.mxu0
  %v619 = vadd.f32 0.0, %v618
  %620 = vdwg.mxu0
  %v621 = vadd.f32 %v519, %v582
  %v622 = vadd.f32 %v520, %v584
  %v623 = vadd.f32 %v521, %v587
  %v624 = vadd.f32 %v522, %v589
  %v625 = vadd.f32 %v523, %v592
  %v626 = vadd.f32 %v524, %v594
  %v627 = vadd.f32 %v525, %v597
  %v628 = vadd.f32 %v526, %v599
  %v629 = vadd.f32 %v527, %v602
  %v630 = vadd.f32 %v528, %v604
  %v631 = vadd.f32 %v529, %v607
  %v632 = vadd.f32 %v530, %v609
  %v633 = vadd.f32 %v531, %v612
  %v634 = vadd.f32 %v532, %v614
  %v635 = vadd.f32 %v533, %v617
  %v636 = vadd.f32 %v534, %v619
  %v641 = vrot.slane %v74, 1
  %v642 = vrot.slane %v75, 1
  %v643 = vsel %vm139, %v641, %v642
  %v644 = vrot.slane %v94, 1
  %v645 = vrot.slane %v95, 1
  %v646 = vsel %vm139, %v644, %v645
  %v649 = vpack.c.bf16 %v148, %v145
  %v650 = vpack.c.bf16 %v154, %v151
  %v651 = vpack.c.bf16 %v160, %v157
  %v652 = vpack.c.bf16 %v643, %v163
  %v653 = vpack.c.bf16 %v172, %v169
  %v654 = vpack.c.bf16 %v178, %v175
  %v655 = vpack.c.bf16 %v184, %v181
  %v656 = vpack.c.bf16 %v646, %v187
  %s657 = scalar_lea.vmem %s1, 16
  %v658 = vld [vmem:[%s657] sm:$0xf]
  %v660 = vsel %vm214, %v649, 0
  %v663 = vsel %vm214, %v650, 0
  %v666 = vsel %vm214, %v651, 0
  %v669 = vsel %vm214, %v652, 0
  %v672 = vsel %vm214, %v653, 0
  %v675 = vsel %vm214, %v654, 0
  %v678 = vsel %vm214, %v655, 0
  %v681 = vsel %vm214, %v656, 0
  %v684 = vsel %vm239, %v658, 0
  %686 = vmatpush.bf16.msra.mxu0 0
  %687 = vmatpush.bf16.msra.mxu0 0
  %688 = vmatpush.bf16.msra.mxu0 0
  %689 = vmatpush.bf16.msra.mxu0 0
  %690 = vmatpush.bf16.msra.mxu0 0
  %691 = vmatpush.bf16.msra.mxu0 0
  %692 = vmatpush.bf16.msra.mxu0 0
  %693 = vmatpush.bf16.msra.mxu0 %v684
  %694 = vmatmul.bf16.gmra.mxu0 %v660
  %v695 = vpop.f32.mrf.mxu0
  %v696 = vadd.f32 0.0, %v695
  %v697 = vpop.f32.mrf.mxu0
  %v698 = vadd.f32 0.0, %v697
  %699 = vmatmul.bf16.gmra.mxu0 %v663
  %v700 = vpop.f32.mrf.mxu0
  %v701 = vadd.f32 0.0, %v700
  %v702 = vpop.f32.mrf.mxu0
  %v703 = vadd.f32 0.0, %v702
  %704 = vmatmul.bf16.gmra.mxu0 %v666
  %v705 = vpop.f32.mrf.mxu0
  %v706 = vadd.f32 0.0, %v705
  %v707 = vpop.f32.mrf.mxu0
  %v708 = vadd.f32 0.0, %v707
  %709 = vmatmul.bf16.gmra.mxu0 %v669
  %v710 = vpop.f32.mrf.mxu0
  %v711 = vadd.f32 0.0, %v710
  %v712 = vpop.f32.mrf.mxu0
  %v713 = vadd.f32 0.0, %v712
  %714 = vmatmul.bf16.gmra.mxu0 %v672
  %v715 = vpop.f32.mrf.mxu0
  %v716 = vadd.f32 0.0, %v715
  %v717 = vpop.f32.mrf.mxu0
  %v718 = vadd.f32 0.0, %v717
  %719 = vmatmul.bf16.gmra.mxu0 %v675
  %v720 = vpop.f32.mrf.mxu0
  %v721 = vadd.f32 0.0, %v720
  %v722 = vpop.f32.mrf.mxu0
  %v723 = vadd.f32 0.0, %v722
  %724 = vmatmul.bf16.gmra.mxu0 %v678
  %v725 = vpop.f32.mrf.mxu0
  %v726 = vadd.f32 0.0, %v725
  %v727 = vpop.f32.mrf.mxu0
  %v728 = vadd.f32 0.0, %v727
  %729 = vmatmul.bf16.gmra.mxu0 %v681
  %v730 = vpop.f32.mrf.mxu0
  %v731 = vadd.f32 0.0, %v730
  %v732 = vpop.f32.mrf.mxu0
  %v733 = vadd.f32 0.0, %v732
  %734 = vdwg.mxu0
  %v735 = vadd.f32 %v621, %v696
  %v736 = vadd.f32 %v622, %v698
  %v737 = vadd.f32 %v623, %v701
  %v738 = vadd.f32 %v624, %v703
  %v739 = vadd.f32 %v625, %v706
  %v740 = vadd.f32 %v626, %v708
  %v741 = vadd.f32 %v627, %v711
  %v742 = vadd.f32 %v628, %v713
  %v743 = vadd.f32 %v629, %v716
  %v744 = vadd.f32 %v630, %v718
  %v745 = vadd.f32 %v631, %v721
  %v746 = vadd.f32 %v632, %v723
  %v747 = vadd.f32 %v633, %v726
  %v748 = vadd.f32 %v634, %v728
  %v749 = vadd.f32 %v635, %v731
  %v750 = vadd.f32 %v636, %v733
  %v751 = vrot.slane %v74, 2
  %v752 = vrot.slane %v75, 2
  %v753 = vsel %vm368, %v751, %v752
  %v754 = vrot.slane %v94, 2
  %v755 = vrot.slane %v95, 2
  %v756 = vsel %vm368, %v754, %v755
  %v759 = vpack.c.bf16 %v377, %v374
  %v760 = vpack.c.bf16 %v383, %v380
  %v761 = vpack.c.bf16 %v389, %v386
  %v762 = vpack.c.bf16 %v753, %v392
  %v763 = vpack.c.bf16 %v401, %v398
  %v764 = vpack.c.bf16 %v407, %v404
  %v765 = vpack.c.bf16 %v413, %v410
  %v766 = vpack.c.bf16 %v756, %v416
  %s767 = scalar_lea.vmem %s1, 20
  %v768 = vld [vmem:[%s767] sm:$0xf]
  %v770 = vsel %vm214, %v759, 0
  %v773 = vsel %vm214, %v760, 0
  %v776 = vsel %vm214, %v761, 0
  %v779 = vsel %vm214, %v762, 0
  %v782 = vsel %vm214, %v763, 0
  %v785 = vsel %vm214, %v764, 0
  %v788 = vsel %vm214, %v765, 0
  %v791 = vsel %vm214, %v766, 0
  %v794 = vsel %vm239, %v768, 0
  %796 = vmatpush.bf16.msra.mxu0 0
  %797 = vmatpush.bf16.msra.mxu0 0
  %798 = vmatpush.bf16.msra.mxu0 0
  %799 = vmatpush.bf16.msra.mxu0 0
  %800 = vmatpush.bf16.msra.mxu0 0
  %801 = vmatpush.bf16.msra.mxu0 0
  %802 = vmatpush.bf16.msra.mxu0 0
  %803 = vmatpush.bf16.msra.mxu0 %v794
  %804 = vmatmul.bf16.gmra.mxu0 %v770
  %v805 = vpop.f32.mrf.mxu0
  %v806 = vadd.f32 0.0, %v805
  %v807 = vpop.f32.mrf.mxu0
  %v808 = vadd.f32 0.0, %v807
  %809 = vmatmul.bf16.gmra.mxu0 %v773
  %v810 = vpop.f32.mrf.mxu0
  %v811 = vadd.f32 0.0, %v810
  %v812 = vpop.f32.mrf.mxu0
  %v813 = vadd.f32 0.0, %v812
  %814 = vmatmul.bf16.gmra.mxu0 %v776
  %v815 = vpop.f32.mrf.mxu0
  %v816 = vadd.f32 0.0, %v815
  %v817 = vpop.f32.mrf.mxu0
  %v818 = vadd.f32 0.0, %v817
  %819 = vmatmul.bf16.gmra.mxu0 %v779
  %v820 = vpop.f32.mrf.mxu0
  %v821 = vadd.f32 0.0, %v820
  %v822 = vpop.f32.mrf.mxu0
  %v823 = vadd.f32 0.0, %v822
  %824 = vmatmul.bf16.gmra.mxu0 %v782
  %v825 = vpop.f32.mrf.mxu0
  %v826 = vadd.f32 0.0, %v825
  %v827 = vpop.f32.mrf.mxu0
  %v828 = vadd.f32 0.0, %v827
  %829 = vmatmul.bf16.gmra.mxu0 %v785
  %v830 = vpop.f32.mrf.mxu0
  %v831 = vadd.f32 0.0, %v830
  %v832 = vpop.f32.mrf.mxu0
  %v833 = vadd.f32 0.0, %v832
  %834 = vmatmul.bf16.gmra.mxu0 %v788
  %v835 = vpop.f32.mrf.mxu0
  %v836 = vadd.f32 0.0, %v835
  %v837 = vpop.f32.mrf.mxu0
  %v838 = vadd.f32 0.0, %v837
  %839 = vmatmul.bf16.gmra.mxu0 %v791
  %v840 = vpop.f32.mrf.mxu0
  %v841 = vadd.f32 0.0, %v840
  %v842 = vpop.f32.mrf.mxu0
  %v843 = vadd.f32 0.0, %v842
  %844 = vdwg.mxu0
  %v845 = vadd.f32 %v735, %v806
  %v846 = vadd.f32 %v736, %v808
  %v847 = vadd.f32 %v737, %v811
  %v848 = vadd.f32 %v738, %v813
  %v849 = vadd.f32 %v739, %v816
  %v850 = vadd.f32 %v740, %v818
  %v851 = vadd.f32 %v741, %v821
  %v852 = vadd.f32 %v742, %v823
  %v853 = vadd.f32 %v743, %v826
  %v854 = vadd.f32 %v744, %v828
  %v855 = vadd.f32 %v745, %v831
  %v856 = vadd.f32 %v746, %v833
  %v857 = vadd.f32 %v747, %v836
  %v858 = vadd.f32 %v748, %v838
  %v859 = vadd.f32 %v749, %v841
  %v860 = vadd.f32 %v750, %v843
  %v861 = vpack.c.bf16 %v76, %v74
  %v862 = vpack.c.bf16 %v96, %v94
  %s863 = scalar_lea.vmem %s1, 24
  %v864 = vld [vmem:[%s863] sm:$0xf]
  %v866 = vsel %vm214, %v861, 0
  %v869 = vsel %vm214, %v862, 0
  %v872 = vsel %vm239, %v864, 0
  %874 = vmatpush.bf16.msra.mxu0 0
  %875 = vmatpush.bf16.msra.mxu0 0
  %876 = vmatpush.bf16.msra.mxu0 0
  %877 = vmatpush.bf16.msra.mxu0 0
  %878 = vmatpush.bf16.msra.mxu0 0
  %879 = vmatpush.bf16.msra.mxu0 0
  %880 = vmatpush.bf16.msra.mxu0 0
  %881 = vmatpush.bf16.msra.mxu0 %v872
  %882 = vmatmul.bf16.gmra.mxu0 %v296
  %v883 = vpop.f32.mrf.mxu0
  %v884 = vadd.f32 0.0, %v883
  %v885 = vpop.f32.mrf.mxu0
  %v886 = vadd.f32 0.0, %v885
  %887 = vmatmul.bf16.gmra.mxu0 %v299
  %v888 = vpop.f32.mrf.mxu0
  %v889 = vadd.f32 0.0, %v888
  %v890 = vpop.f32.mrf.mxu0
  %v891 = vadd.f32 0.0, %v890
  %892 = vmatmul.bf16.gmra.mxu0 %v302
  %v893 = vpop.f32.mrf.mxu0
  %v894 = vadd.f32 0.0, %v893
  %v895 = vpop.f32.mrf.mxu0
  %v896 = vadd.f32 0.0, %v895
  %897 = vmatmul.bf16.gmra.mxu0 %v866
  %v898 = vpop.f32.mrf.mxu0
  %v899 = vadd.f32 0.0, %v898
  %v900 = vpop.f32.mrf.mxu0
  %v901 = vadd.f32 0.0, %v900
  %902 = vmatmul.bf16.gmra.mxu0 %v308
  %v903 = vpop.f32.mrf.mxu0
  %v904 = vadd.f32 0.0, %v903
  %v905 = vpop.f32.mrf.mxu0
  %v906 = vadd.f32 0.0, %v905
  %907 = vmatmul.bf16.gmra.mxu0 %v311
  %v908 = vpop.f32.mrf.mxu0
  %v909 = vadd.f32 0.0, %v908
  %v910 = vpop.f32.mrf.mxu0
  %v911 = vadd.f32 0.0, %v910
  %912 = vmatmul.bf16.gmra.mxu0 %v314
  %v913 = vpop.f32.mrf.mxu0
  %v914 = vadd.f32 0.0, %v913
  %v915 = vpop.f32.mrf.mxu0
  %v916 = vadd.f32 0.0, %v915
  %917 = vmatmul.bf16.gmra.mxu0 %v869
  %v918 = vpop.f32.mrf.mxu0
  %v919 = vadd.f32 0.0, %v918
  %v920 = vpop.f32.mrf.mxu0
  %v921 = vadd.f32 0.0, %v920
  %922 = vdwg.mxu0
  %v923 = vadd.f32 %v845, %v884
  %v924 = vadd.f32 %v846, %v886
  %v925 = vadd.f32 %v847, %v889
  %v926 = vadd.f32 %v848, %v891
  %v927 = vadd.f32 %v849, %v894
  %v928 = vadd.f32 %v850, %v896
  %v929 = vadd.f32 %v851, %v899
  %v930 = vadd.f32 %v852, %v901
  %v931 = vadd.f32 %v853, %v904
  %v932 = vadd.f32 %v854, %v906
  %v933 = vadd.f32 %v855, %v909
  %v934 = vadd.f32 %v856, %v911
  %v935 = vadd.f32 %v857, %v914
  %v936 = vadd.f32 %v858, %v916
  %v937 = vadd.f32 %v859, %v919
  %v938 = vadd.f32 %v860, %v921
  %v943 = vrot.slane %v76, 1
  %v944 = vrot.slane %v77, 1
  %v945 = vsel %vm139, %v943, %v944
  %v946 = vrot.slane %v96, 1
  %v947 = vrot.slane %v97, 1
  %v948 = vsel %vm139, %v946, %v947
  %v951 = vpack.c.bf16 %v945, %v643
  %v952 = vpack.c.bf16 %v948, %v646
  %s953 = scalar_lea.vmem %s1, 28
  %v954 = vld [vmem:[%s953] sm:$0xf]
  %v956 = vsel %vm214, %v951, 0
  %v959 = vsel %vm214, %v952, 0
  %v962 = vsel %vm239, %v954, 0
  %964 = vmatpush.bf16.msra.mxu0 0
  %965 = vmatpush.bf16.msra.mxu0 0
  %966 = vmatpush.bf16.msra.mxu0 0
  %967 = vmatpush.bf16.msra.mxu0 0
  %968 = vmatpush.bf16.msra.mxu0 0
  %969 = vmatpush.bf16.msra.mxu0 0
  %970 = vmatpush.bf16.msra.mxu0 0
  %971 = vmatpush.bf16.msra.mxu0 %v962
  %972 = vmatmul.bf16.gmra.mxu0 %v219
  %v973 = vpop.f32.mrf.mxu0
  %v974 = vadd.f32 0.0, %v973
  %v975 = vpop.f32.mrf.mxu0
  %v976 = vadd.f32 0.0, %v975
  %977 = vmatmul.bf16.gmra.mxu0 %v222
  %v978 = vpop.f32.mrf.mxu0
  %v979 = vadd.f32 0.0, %v978
  %v980 = vpop.f32.mrf.mxu0
  %v981 = vadd.f32 0.0, %v980
  %982 = vmatmul.bf16.gmra.mxu0 %v225
  %v983 = vpop.f32.mrf.mxu0
  %v984 = vadd.f32 0.0, %v983
  %v985 = vpop.f32.mrf.mxu0
  %v986 = vadd.f32 0.0, %v985
  %987 = vmatmul.bf16.gmra.mxu0 %v956
  %v988 = vpop.f32.mrf.mxu0
  %v989 = vadd.f32 0.0, %v988
  %v990 = vpop.f32.mrf.mxu0
  %v991 = vadd.f32 0.0, %v990
  %992 = vmatmul.bf16.gmra.mxu0 %v231
  %v993 = vpop.f32.mrf.mxu0
  %v994 = vadd.f32 0.0, %v993
  %v995 = vpop.f32.mrf.mxu0
  %v996 = vadd.f32 0.0, %v995
  %997 = vmatmul.bf16.gmra.mxu0 %v234
  %v998 = vpop.f32.mrf.mxu0
  %v999 = vadd.f32 0.0, %v998
  %v1000 = vpop.f32.mrf.mxu0
  %v1001 = vadd.f32 0.0, %v1000
  %1002 = vmatmul.bf16.gmra.mxu0 %v237
  %v1003 = vpop.f32.mrf.mxu0
  %v1004 = vadd.f32 0.0, %v1003
  %v1005 = vpop.f32.mrf.mxu0
  %v1006 = vadd.f32 0.0, %v1005
  %1007 = vmatmul.bf16.gmra.mxu0 %v959
  %v1008 = vpop.f32.mrf.mxu0
  %v1009 = vadd.f32 0.0, %v1008
  %v1010 = vpop.f32.mrf.mxu0
  %v1011 = vadd.f32 0.0, %v1010
  %1012 = vdwg.mxu0
  %v1013 = vadd.f32 %v923, %v974
  %v1014 = vadd.f32 %v924, %v976
  %v1015 = vadd.f32 %v925, %v979
  %v1016 = vadd.f32 %v926, %v981
  %v1017 = vadd.f32 %v927, %v984
  %v1018 = vadd.f32 %v928, %v986
  %v1019 = vadd.f32 %v929, %v989
  %v1020 = vadd.f32 %v930, %v991
  %v1021 = vadd.f32 %v931, %v994
  %v1022 = vadd.f32 %v932, %v996
  %v1023 = vadd.f32 %v933, %v999
  %v1024 = vadd.f32 %v934, %v1001
  %v1025 = vadd.f32 %v935, %v1004
  %v1026 = vadd.f32 %v936, %v1006
  %v1027 = vadd.f32 %v937, %v1009
  %v1028 = vadd.f32 %v938, %v1011
  %v1029 = vrot.slane %v76, 2
  %v1030 = vrot.slane %v77, 2
  %v1031 = vsel %vm368, %v1029, %v1030
  %v1032 = vrot.slane %v96, 2
  %v1033 = vrot.slane %v97, 2
  %v1034 = vsel %vm368, %v1032, %v1033
  %v1037 = vpack.c.bf16 %v1031, %v753
  %v1038 = vpack.c.bf16 %v1034, %v756
  %s1039 = scalar_lea.vmem %s1, 32
  %v1040 = vld [vmem:[%s1039] sm:$0xf]
  %v1042 = vsel %vm214, %v1037, 0
  %v1045 = vsel %vm214, %v1038, 0
  %v1048 = vsel %vm239, %v1040, 0
  %1050 = vmatpush.bf16.msra.mxu0 0
  %1051 = vmatpush.bf16.msra.mxu0 0
  %1052 = vmatpush.bf16.msra.mxu0 0
  %1053 = vmatpush.bf16.msra.mxu0 0
  %1054 = vmatpush.bf16.msra.mxu0 0
  %1055 = vmatpush.bf16.msra.mxu0 0
  %1056 = vmatpush.bf16.msra.mxu0 0
  %1057 = vmatpush.bf16.msra.mxu0 %v1048
  %1058 = vmatmul.bf16.gmra.mxu0 %v447
  %v1059 = vpop.f32.mrf.mxu0
  %v1060 = vadd.f32 0.0, %v1059
  %v1061 = vpop.f32.mrf.mxu0
  %v1062 = vadd.f32 0.0, %v1061
  %1063 = vmatmul.bf16.gmra.mxu0 %v450
  %v1064 = vpop.f32.mrf.mxu0
  %v1065 = vadd.f32 0.0, %v1064
  %v1066 = vpop.f32.mrf.mxu0
  %v1067 = vadd.f32 0.0, %v1066
  %1068 = vmatmul.bf16.gmra.mxu0 %v453
  %v1069 = vpop.f32.mrf.mxu0
  %v1070 = vadd.f32 0.0, %v1069
  %v1071 = vpop.f32.mrf.mxu0
  %v1072 = vadd.f32 0.0, %v1071
  %1073 = vmatmul.bf16.gmra.mxu0 %v1042
  %v1074 = vpop.f32.mrf.mxu0
  %v1075 = vadd.f32 0.0, %v1074
  %v1076 = vpop.f32.mrf.mxu0
  %v1077 = vadd.f32 0.0, %v1076
  %1078 = vmatmul.bf16.gmra.mxu0 %v459
  %v1079 = vpop.f32.mrf.mxu0
  %v1080 = vadd.f32 0.0, %v1079
  %v1081 = vpop.f32.mrf.mxu0
  %v1082 = vadd.f32 0.0, %v1081
  %1083 = vmatmul.bf16.gmra.mxu0 %v462
  %v1084 = vpop.f32.mrf.mxu0
  %v1085 = vadd.f32 0.0, %v1084
  %v1086 = vpop.f32.mrf.mxu0
  %v1087 = vadd.f32 0.0, %v1086
  %1088 = vmatmul.bf16.gmra.mxu0 %v465
  %v1089 = vpop.f32.mrf.mxu0
  %v1090 = vadd.f32 0.0, %v1089
  %v1091 = vpop.f32.mrf.mxu0
  %v1092 = vadd.f32 0.0, %v1091
  %1093 = vmatmul.bf16.gmra.mxu0 %v1045
  %v1094 = vpop.f32.mrf.mxu0
  %v1095 = vadd.f32 0.0, %v1094
  %v1096 = vpop.f32.mrf.mxu0
  %v1097 = vadd.f32 0.0, %v1096
  %1098 = vdwg.mxu0
  %v1099 = vadd.f32 %v1013, %v1060
  %v1100 = vadd.f32 %v1014, %v1062
  %v1101 = vadd.f32 %v1015, %v1065
  %v1102 = vadd.f32 %v1016, %v1067
  %v1103 = vadd.f32 %v1017, %v1070
  %v1104 = vadd.f32 %v1018, %v1072
  %v1105 = vadd.f32 %v1019, %v1075
  %v1106 = vadd.f32 %v1020, %v1077
  %v1107 = vadd.f32 %v1021, %v1080
  %v1108 = vadd.f32 %v1022, %v1082
  %v1109 = vadd.f32 %v1023, %v1085
  %v1110 = vadd.f32 %v1024, %v1087
  %v1111 = vadd.f32 %v1025, %v1090
  %v1112 = vadd.f32 %v1026, %v1092
  %v1113 = vadd.f32 %v1027, %v1095
  %v1114 = vadd.f32 %v1028, %v1097
  %vm1115 = vcmask 130048
  %v1116 = vsel %vm1115, %v1099, 0.0
  %v1117 = vsel %vm1115, %v1100, 0.0
  %v1118 = vadd.f32 %v1116, %v1117
  %v1119 = vsel %vm1115, %v1101, 0.0
  %v1120 = vadd.f32 %v1118, %v1119
  %v1121 = vsel %vm1115, %v1102, 0.0
  %v1122 = vadd.f32 %v1120, %v1121
  %v1123 = vsel %vm1115, %v1103, 0.0
  %v1124 = vadd.f32 %v1122, %v1123
  %v1125 = vsel %vm1115, %v1104, 0.0
  %v1126 = vadd.f32 %v1124, %v1125
  %v1127 = vsel %vm1115, %v1105, 0.0
  %v1128 = vadd.f32 %v1126, %v1127
  %v1129 = vsel %vm1115, %v1106, 0.0
  %v1130 = vadd.f32 %v1128, %v1129
  %v1131 = vsel %vm1115, %v1107, 0.0
  %v1132 = vadd.f32 %v1130, %v1131
  %v1133 = vsel %vm1115, %v1108, 0.0
  %v1134 = vadd.f32 %v1132, %v1133
  %v1135 = vsel %vm1115, %v1109, 0.0
  %v1136 = vadd.f32 %v1134, %v1135
  %v1137 = vsel %vm1115, %v1110, 0.0
  %v1138 = vadd.f32 %v1136, %v1137
  %v1139 = vsel %vm1115, %v1111, 0.0
  %v1140 = vadd.f32 %v1138, %v1139
  %v1141 = vsel %vm1115, %v1112, 0.0
  %v1142 = vadd.f32 %v1140, %v1141
  %v1143 = vsel %vm1115, %v1113, 0.0
  %v1144 = vadd.f32 %v1142, %v1143
  %v1145 = vsel %vm1115, %v1114, 0.0
  %v1146 = vadd.f32 %v1144, %v1145
  %v1147 = vrot.slane %v1146, 4
  %v1148 = vadd.f32 %v1146, %v1147
  %v1149 = vrot.slane %v1148, 2
  %v1150 = vadd.f32 %v1148, %v1149
  %v1151 = vrot.slane %v1150, 1
  %v1152 = vadd.f32 %v1150, %v1151
  %v1153 = vmul.f32 %v1152, 0.0078125
  %v1154 = vmul.f32 %v1099, %v1099
  %v1155 = vmul.f32 %v1100, %v1100
  %v1156 = vmul.f32 %v1101, %v1101
  %v1157 = vmul.f32 %v1102, %v1102
  %v1158 = vmul.f32 %v1103, %v1103
  %v1159 = vmul.f32 %v1104, %v1104
  %v1160 = vmul.f32 %v1105, %v1105
  %v1161 = vmul.f32 %v1106, %v1106
  %v1162 = vmul.f32 %v1107, %v1107
  %v1163 = vmul.f32 %v1108, %v1108
  %v1164 = vmul.f32 %v1109, %v1109
  %v1165 = vmul.f32 %v1110, %v1110
  %v1166 = vmul.f32 %v1111, %v1111
  %v1167 = vmul.f32 %v1112, %v1112
  %v1168 = vmul.f32 %v1113, %v1113
  %v1169 = vmul.f32 %v1114, %v1114
  %v1170 = vsel %vm1115, %v1154, 0.0
  %v1171 = vsel %vm1115, %v1155, 0.0
  %v1172 = vadd.f32 %v1170, %v1171
  %v1173 = vsel %vm1115, %v1156, 0.0
  %v1174 = vadd.f32 %v1172, %v1173
  %v1175 = vsel %vm1115, %v1157, 0.0
  %v1176 = vadd.f32 %v1174, %v1175
  %v1177 = vsel %vm1115, %v1158, 0.0
  %v1178 = vadd.f32 %v1176, %v1177
  %v1179 = vsel %vm1115, %v1159, 0.0
  %v1180 = vadd.f32 %v1178, %v1179
  %v1181 = vsel %vm1115, %v1160, 0.0
  %v1182 = vadd.f32 %v1180, %v1181
  %v1183 = vsel %vm1115, %v1161, 0.0
  %v1184 = vadd.f32 %v1182, %v1183
  %v1185 = vsel %vm1115, %v1162, 0.0
  %v1186 = vadd.f32 %v1184, %v1185
  %v1187 = vsel %vm1115, %v1163, 0.0
  %v1188 = vadd.f32 %v1186, %v1187
  %v1189 = vsel %vm1115, %v1164, 0.0
  %v1190 = vadd.f32 %v1188, %v1189
  %v1191 = vsel %vm1115, %v1165, 0.0
  %v1192 = vadd.f32 %v1190, %v1191
  %v1193 = vsel %vm1115, %v1166, 0.0
  %v1194 = vadd.f32 %v1192, %v1193
  %v1195 = vsel %vm1115, %v1167, 0.0
  %v1196 = vadd.f32 %v1194, %v1195
  %v1197 = vsel %vm1115, %v1168, 0.0
  %v1198 = vadd.f32 %v1196, %v1197
  %v1199 = vsel %vm1115, %v1169, 0.0
  %v1200 = vadd.f32 %v1198, %v1199
  %v1201 = vrot.slane %v1200, 4
  %v1202 = vadd.f32 %v1200, %v1201
  %v1203 = vrot.slane %v1202, 2
  %v1204 = vadd.f32 %v1202, %v1203
  %v1205 = vrot.slane %v1204, 1
  %v1206 = vadd.f32 %v1204, %v1205
  %v1207 = vmul.f32 %v1206, 0.0078125
  %v1208 = vmul.f32 %v1153, %v1153
  %v1209 = vsub.f32 %v1207, %v1208
  %v1210 = vmax.f32 %v1209, 0.0
  %v1211 = vsub.f32 %v1099, %v1153
  %v1212 = vsub.f32 %v1100, %v1153
  %v1213 = vsub.f32 %v1101, %v1153
  %v1214 = vsub.f32 %v1102, %v1153
  %v1215 = vsub.f32 %v1103, %v1153
  %v1216 = vsub.f32 %v1104, %v1153
  %v1217 = vsub.f32 %v1105, %v1153
  %v1218 = vsub.f32 %v1106, %v1153
  %v1219 = vsub.f32 %v1107, %v1153
  %v1220 = vsub.f32 %v1108, %v1153
  %v1221 = vsub.f32 %v1109, %v1153
  %v1222 = vsub.f32 %v1110, %v1153
  %v1223 = vsub.f32 %v1111, %v1153
  %v1224 = vsub.f32 %v1112, %v1153
  %v1225 = vsub.f32 %v1113, %v1153
  %v1226 = vsub.f32 %v1114, %v1153
  %v1227 = vadd.f32 %v1210, 1e-05
  %v1228 = vrsqrt.pop %v1227
  %v1229 = vmul.f32 %v1228, %v1227
  %v1230 = vmul.f32 %v1229, %v1228
  %v1231 = vmul.f32 0.5, %v1230
  %v1232 = vsub.f32 1.5, %v1231
  %v1233 = vmul.f32 %v1228, %v1232
  %vm1234 = vweird.f32 %v1227
  %vm1235 = vweird.f32 %v1228
  %vm1236 = vmor %vm1234, %vm1235
  %v1237 = vsel %vm1236, %v1228, %v1233
  %v1238 = vld [vmem:[%s2] sm:$0x1]
  %v1239 = vmul.f32 %v1237, %v1238
  %v1240 = vperm.slane %v1239, 0
  %v1241 = vmul.f32 %v1211, %v1240
  %v1242 = vmul.f32 %v1212, %v1240
  %v1243 = vmul.f32 %v1213, %v1240
  %v1244 = vmul.f32 %v1214, %v1240
  %v1245 = vmul.f32 %v1215, %v1240
  %v1246 = vmul.f32 %v1216, %v1240
  %v1247 = vmul.f32 %v1217, %v1240
  %v1248 = vmul.f32 %v1218, %v1240
  %v1249 = vmul.f32 %v1219, %v1240
  %v1250 = vmul.f32 %v1220, %v1240
  %v1251 = vmul.f32 %v1221, %v1240
  %v1252 = vmul.f32 %v1222, %v1240
  %v1253 = vmul.f32 %v1223, %v1240
  %v1254 = vmul.f32 %v1224, %v1240
  %v1255 = vmul.f32 %v1225, %v1240
  %v1256 = vmul.f32 %v1226, %v1240
  %v1257 = vld [vmem:[%s3] sm:$0x1]
  %v1259 = vperm.slane %v1257, 0
  %v1261 = vadd.f32 %v1241, %v1259
  %v1262 = vadd.f32 %v1242, %v1259
  %v1263 = vadd.f32 %v1243, %v1259
  %v1264 = vadd.f32 %v1244, %v1259
  %v1265 = vadd.f32 %v1245, %v1259
  %v1266 = vadd.f32 %v1246, %v1259
  %v1267 = vadd.f32 %v1247, %v1259
  %v1268 = vadd.f32 %v1248, %v1259
  %v1269 = vadd.f32 %v1249, %v1259
  %v1270 = vadd.f32 %v1250, %v1259
  %v1271 = vadd.f32 %v1251, %v1259
  %v1272 = vadd.f32 %v1252, %v1259
  %v1273 = vadd.f32 %v1253, %v1259
  %v1274 = vadd.f32 %v1254, %v1259
  %v1275 = vadd.f32 %v1255, %v1259
  %v1276 = vadd.f32 %v1256, %v1259
  %vm1277 = vcmp.gt.f32.partialorder %v1261, 0.0
  %vm1278 = vcmp.gt.f32.partialorder %v1262, 0.0
  %vm1279 = vcmp.gt.f32.partialorder %v1263, 0.0
  %vm1280 = vcmp.gt.f32.partialorder %v1264, 0.0
  %vm1281 = vcmp.gt.f32.partialorder %v1265, 0.0
  %vm1282 = vcmp.gt.f32.partialorder %v1266, 0.0
  %vm1283 = vcmp.gt.f32.partialorder %v1267, 0.0
  %vm1284 = vcmp.gt.f32.partialorder %v1268, 0.0
  %vm1285 = vcmp.gt.f32.partialorder %v1269, 0.0
  %vm1286 = vcmp.gt.f32.partialorder %v1270, 0.0
  %vm1287 = vcmp.gt.f32.partialorder %v1271, 0.0
  %vm1288 = vcmp.gt.f32.partialorder %v1272, 0.0
  %vm1289 = vcmp.gt.f32.partialorder %v1273, 0.0
  %vm1290 = vcmp.gt.f32.partialorder %v1274, 0.0
  %vm1291 = vcmp.gt.f32.partialorder %v1275, 0.0
  %vm1292 = vcmp.gt.f32.partialorder %v1276, 0.0
  %v1293 = vmul.f32 %v1261, 0.1
  %v1294 = vmul.f32 %v1262, 0.1
  %v1295 = vmul.f32 %v1263, 0.1
  %v1296 = vmul.f32 %v1264, 0.1
  %v1297 = vmul.f32 %v1265, 0.1
  %v1298 = vmul.f32 %v1266, 0.1
  %v1299 = vmul.f32 %v1267, 0.1
  %v1300 = vmul.f32 %v1268, 0.1
  %v1301 = vmul.f32 %v1269, 0.1
  %v1302 = vmul.f32 %v1270, 0.1
  %v1303 = vmul.f32 %v1271, 0.1
  %v1304 = vmul.f32 %v1272, 0.1
  %v1305 = vmul.f32 %v1273, 0.1
  %v1306 = vmul.f32 %v1274, 0.1
  %v1307 = vmul.f32 %v1275, 0.1
  %v1308 = vmul.f32 %v1276, 0.1
  %v1309 = vsel %vm1277, %v1261, %v1293
  %v1310 = vsel %vm1278, %v1262, %v1294
  %v1311 = vsel %vm1279, %v1263, %v1295
  %v1312 = vsel %vm1280, %v1264, %v1296
  %v1313 = vsel %vm1281, %v1265, %v1297
  %v1314 = vsel %vm1282, %v1266, %v1298
  %v1315 = vsel %vm1283, %v1267, %v1299
  %v1316 = vsel %vm1284, %v1268, %v1300
  %v1317 = vsel %vm1285, %v1269, %v1301
  %v1318 = vsel %vm1286, %v1270, %v1302
  %v1319 = vsel %vm1287, %v1271, %v1303
  %v1320 = vsel %vm1288, %v1272, %v1304
  %v1321 = vsel %vm1289, %v1273, %v1305
  %v1322 = vsel %vm1290, %v1274, %v1306
  %v1323 = vsel %vm1291, %v1275, %v1307
  %v1324 = vsel %vm1292, %v1276, %v1308
  %v1325 = vpack.c.bf16 %v1309, %v1309
  %v1326 = vpack.c.bf16 %v1310, %v1310
  %v1327 = vpack.c.bf16 %v1311, %v1311
  %v1328 = vpack.c.bf16 %v1312, %v1312
  %v1329 = vpack.c.bf16 %v1313, %v1313
  %v1330 = vpack.c.bf16 %v1314, %v1314
  %v1331 = vpack.c.bf16 %v1315, %v1315
  %v1332 = vpack.c.bf16 %v1316, %v1316
  %v1333 = vpack.c.bf16 %v1317, %v1317
  %v1334 = vpack.c.bf16 %v1318, %v1318
  %v1335 = vpack.c.bf16 %v1319, %v1319
  %v1336 = vpack.c.bf16 %v1320, %v1320
  %v1337 = vpack.c.bf16 %v1321, %v1321
  %v1338 = vpack.c.bf16 %v1322, %v1322
  %v1339 = vpack.c.bf16 %v1323, %v1323
  %v1340 = vpack.c.bf16 %v1324, %v1324
  %vm1341 = vcmask 125952
  %1342 = vst.msk [vmem:[%s4] sm:$0xf] %vm1341, %v1325
  %1343 = vst.msk [vmem:[%s4 + $0x4] sm:$0xf] %vm1341, %v1326
  %1344 = vst.msk [vmem:[%s4 + $0x8] sm:$0xf] %vm1341, %v1327
  %1345 = vst.msk [vmem:[%s4 + $0xc] sm:$0xf] %vm1341, %v1328
  %1346 = vst.msk [vmem:[%s4 + $0x10] sm:$0xf] %vm1341, %v1329
  %1347 = vst.msk [vmem:[%s4 + $0x14] sm:$0xf] %vm1341, %v1330
  %1348 = vst.msk [vmem:[%s4 + $0x18] sm:$0xf] %vm1341, %v1331
  %1349 = vst.msk [vmem:[%s4 + $0x1c] sm:$0xf] %vm1341, %v1332
  %1350 = vst.msk [vmem:[%s4 + $0x20] sm:$0xf] %vm1341, %v1333
  %1351 = vst.msk [vmem:[%s4 + $0x24] sm:$0xf] %vm1341, %v1334
  %1352 = vst.msk [vmem:[%s4 + $0x28] sm:$0xf] %vm1341, %v1335
  %1353 = vst.msk [vmem:[%s4 + $0x2c] sm:$0xf] %vm1341, %v1336
  %1354 = vst.msk [vmem:[%s4 + $0x30] sm:$0xf] %vm1341, %v1337
  %1355 = vst.msk [vmem:[%s4 + $0x34] sm:$0xf] %vm1341, %v1338
  %1356 = vst.msk [vmem:[%s4 + $0x38] sm:$0xf] %vm1341, %v1339
  %1357 = vst.msk [vmem:[%s4 + $0x3c] sm:$0xf] %vm1341, %v1340
  // Predicated region
  $region18: #{darknet_forward.9} parent=0 // pred_check
    _
  $region19: #{darknet_forward.9} parent=0 // pred_check_branch
    %1359 = sbr.rel (0) target = $region21
  $region20: #{darknet_forward.9} parent=0 // pred_region
    _
  $region21: #{darknet_forward.9} parent=0 // pred_fallthru
    _
  // Predicated region
  $region22: #{darknet_forward.9} parent=0 // pred_check
    _
  $region23: #{darknet_forward.9} parent=0 // pred_check_branch
    %1361 = sbr.rel (0) target = $region25
  $region24: #{darknet_forward.9} parent=0 // pred_region
    _
  $region25: #{darknet_forward.9} parent=0 // pred_fallthru
    _

// kernel: darknet_forward.8
$region0: #{darknet_forward.8}
  #allocation0 [shape = 'u32[]', space=smem, size = 0x4, offset = 0x4, fixed_abs, tag = 'smem constant byte address 0x4 - core index']
  #allocation1 [shape = 'u32[72,128]{1,0:T(1,128)}', space=vmem, size = 0x9000, scoped, tag = 'internal scratch']
  %s0 = inlined_call_operand.vmem [shape: f32[2,18,18,4], index: 0, kind: input, shape index: {}]
  %s1 = inlined_call_operand.vmem [shape: bf16[3,3,4,8], index: 1, kind: input, shape index: {}]
  %s2 = inlined_call_operand.vmem [shape: f32[1,8], index: 2, kind: input, shape index: {}]
  %s3 = inlined_call_operand.vmem [shape: f32[1,8], index: 3, kind: input, shape index: {}]
  %s4 = inlined_call_operand.vmem [shape: bf16[512,8], index: 4, kind: output, shape index: {}]
  %s5 = sld [smem:[#allocation0]]
  $region26: #{darknet_forward.8} parent=0
    _
  %s7 = ssub.s32 1, %s5
  %s8 = scalar_select 0, %s7, %s5
  // Predicated region
  $region2: #{darknet_forward.8} parent=0 // pred_check
    _
  $region3: #{darknet_forward.8} parent=0 // pred_check_branch
    %10 = sbr.rel (0) target = $region5
  $region4: #{darknet_forward.8} parent=0 // pred_region
    _
  $region5: #{darknet_forward.8} parent=0 // pred_fallthru
    _
  // Predicated region
  $region6: #{darknet_forward.8} parent=0 // pred_check
    _
  $region7: #{darknet_forward.8} parent=0 // pred_check_branch
    %12 = sbr.rel (0) target = $region9
  $region8: #{darknet_forward.8} parent=0 // pred_region
    _
  $region9: #{darknet_forward.8} parent=0 // pred_fallthru
    _
  // Predicated region
  $region10: #{darknet_forward.8} parent=0 // pred_check
    _
  $region11: #{darknet_forward.8} parent=0 // pred_check_branch
    %14 = sbr.rel (0) target = $region13
  $region12: #{darknet_forward.8} parent=0 // pred_region
    _
  $region13: #{darknet_forward.8} parent=0 // pred_fallthru
    _
  // Predicated region
  $region14: #{darknet_forward.8} parent=0 // pred_check
    _
  $region15: #{darknet_forward.8} parent=0 // pred_check_branch
    %16 = sbr.rel (0) target = $region17
  $region16: #{darknet_forward.8} parent=0 // pred_region
    _
  $region17: #{darknet_forward.8} parent=0 // pred_fallthru
    _
  %v18 = vld [vmem:[%s0] sm:$0xff]
  %v19 = vld [vmem:[%s0 + $0x8] sm:$0xff]
  %v20 = vld [vmem:[%s0 + $0x10] sm:$0x3]
  %v21 = vld [vmem:[%s0 + $0x18] sm:$0xff]
  %v22 = vld [vmem:[%s0 + $0x20] sm:$0xff]
  %v23 = vld [vmem:[%s0 + $0x28] sm:$0x3]
  %v24 = vld [vmem:[%s0 + $0x30] sm:$0xff]
  %v25 = vld [vmem:[%s0 + $0x38] sm:$0xff]
  %v26 = vld [vmem:[%s0 + $0x40] sm:$0x3]
  %v27 = vld [vmem:[%s0 + $0x48] sm:$0xff]
  %v28 = vld [vmem:[%s0 + $0x50] sm:$0xff]
  %v29 = vld [vmem:[%s0 + $0x58] sm:$0x3]
  %v30 = vld [vmem:[%s0 + $0x60] sm:$0xff]
  %v31 = vld [vmem:[%s0 + $0x68] sm:$0xff]
  %v32 = vld [vmem:[%s0 + $0x70] sm:$0x3]
  %v33 = vld [vmem:[%s0 + $0x78] sm:$0xff]
  %v34 = vld [vmem:[%s0 + $0x80] sm:$0xff]
  %v35 = vld [vmem:[%s0 + $0x88] sm:$0x3]
  %v36 = vld [vmem:[%s0 + $0x90] sm:$0xff]
  %v37 = vld [vmem:[%s0 + $0x98] sm:$0xff]
  %v38 = vld [vmem:[%s0 + $0xa0] sm:$0x3]
  %v39 = vld [vmem:[%s0 + $0xa8] sm:$0xff]
  %v40 = vld [vmem:[%s0 + $0xb0] sm:$0xff]
  %v41 = vld [vmem:[%s0 + $0xb8] sm:$0x3]
  %v42 = vld [vmem:[%s0 + $0xc0] sm:$0xff]
  %v43 = vld [vmem:[%s0 + $0xc8] sm:$0xff]
  %v44 = vld [vmem:[%s0 + $0xd0] sm:$0x3]
  %v45 = vld [vmem:[%s0 + $0xd8] sm:$0xff]
  %v46 = vld [vmem:[%s0 + $0xe0] sm:$0xff]
  %v47 = vld [vmem:[%s0 + $0xe8] sm:$0x3]
  %v48 = vld [vmem:[%s0 + $0xf0] sm:$0xff]
  %v49 = vld [vmem:[%s0 + $0xf8] sm:$0xff]
  %v50 = vld [vmem:[%s0 + $0x100] sm:$0x3]
  %v51 = vld [vmem:[%s0 + $0x108] sm:$0xff]
  %v52 = vld [vmem:[%s0 + $0x110] sm:$0xff]
  %v53 = vld [vmem:[%s0 + $0x118] sm:$0x3]
  %v54 = vld [vmem:[%s0 + $0x120] sm:$0xff]
  %v55 = vld [vmem:[%s0 + $0x128] sm:$0xff]
  %v56 = vld [vmem:[%s0 + $0x130] sm:$0x3]
  %v57 = vld [vmem:[%s0 + $0x138] sm:$0xff]
  %v58 = vld [vmem:[%s0 + $0x140] sm:$0xff]
  %v59 = vld [vmem:[%s0 + $0x148] sm:$0x3]
  %v60 = vld [vmem:[%s0 + $0x150] sm:$0xff]
  %v61 = vld [vmem:[%s0 + $0x158] sm:$0xff]
  %v62 = vld [vmem:[%s0 + $0x160] sm:$0x3]
  %v63 = vld [vmem:[%s0 + $0x168] sm:$0xff]
  %v64 = vld [vmem:[%s0 + $0x170] sm:$0xff]
  %v65 = vld [vmem:[%s0 + $0x178] sm:$0x3]
  %v66 = vld [vmem:[%s0 + $0x180] sm:$0xff]
  %v67 = vld [vmem:[%s0 + $0x188] sm:$0xff]
  %v68 = vld [vmem:[%s0 + $0x190] sm:$0x3]
  %v69 = vld [vmem:[%s0 + $0x198] sm:$0xff]
  %v70 = vld [vmem:[%s0 + $0x1a0] sm:$0xff]
  %v71 = vld [vmem:[%s0 + $0x1a8] sm:$0x3]
  %v72 = vld [vmem:[%s0 + $0x1b0] sm:$0xff]
  %v73 = vld [vmem:[%s0 + $0x1b8] sm:$0xff]
  %v74 = vld [vmem:[%s0 + $0x1c0] sm:$0x3]
  %v75 = vld [vmem:[%s0 + $0x1c8] sm:$0xff]
  %v76 = vld [vmem:[%s0 + $0x1d0] sm:$0xff]
  %v77 = vld [vmem:[%s0 + $0x1d8] sm:$0x3]
  %v78 = vld [vmem:[%s0 + $0x1e0] sm:$0xff]
  %v79 = vld [vmem:[%s0 + $0x1e8] sm:$0xff]
  %v80 = vld [vmem:[%s0 + $0x1f0] sm:$0x3]
  %v81 = vld [vmem:[%s0 + $0x1f8] sm:$0xff]
  %v82 = vld [vmem:[%s0 + $0x200] sm:$0xff]
  %v83 = vld [vmem:[%s0 + $0x208] sm:$0x3]
  %v84 = vld [vmem:[%s0 + $0x210] sm:$0xff]
  %v85 = vld [vmem:[%s0 + $0x218] sm:$0xff]
  %v86 = vld [vmem:[%s0 + $0x220] sm:$0x3]
  %v87 = vld [vmem:[%s0 + $0x228] sm:$0xff]
  %v88 = vld [vmem:[%s0 + $0x230] sm:$0xff]
  %v89 = vld [vmem:[%s0 + $0x238] sm:$0x3]
  %v90 = vld [vmem:[%s0 + $0x240] sm:$0xff]
  %v91 = vld [vmem:[%s0 + $0x248] sm:$0xff]
  %v92 = vld [vmem:[%s0 + $0x250] sm:$0x3]
  %v93 = vld [vmem:[%s0 + $0x258] sm:$0xff]
  %v94 = vld [vmem:[%s0 + $0x260] sm:$0xff]
  %v95 = vld [vmem:[%s0 + $0x268] sm:$0x3]
  %v96 = vld [vmem:[%s0 + $0x270] sm:$0xff]
  %v97 = vld [vmem:[%s0 + $0x278] sm:$0xff]
  %v98 = vld [vmem:[%s0 + $0x280] sm:$0x3]
  %v99 = vld [vmem:[%s0 + $0x288] sm:$0xff]
  %v100 = vld [vmem:[%s0 + $0x290] sm:$0xff]
  %v101 = vld [vmem:[%s0 + $0x298] sm:$0x3]
  %v102 = vld [vmem:[%s0 + $0x2a0] sm:$0xff]
  %v103 = vld [vmem:[%s0 + $0x2a8] sm:$0xff]
  %v104 = vld [vmem:[%s0 + $0x2b0] sm:$0x3]
  %v105 = vld [vmem:[%s0 + $0x2b8] sm:$0xff]
  %v106 = vld [vmem:[%s0 + $0x2c0] sm:$0xff]
  %v107 = vld [vmem:[%s0 + $0x2c8] sm:$0x3]
  %v108 = vld [vmem:[%s0 + $0x2d0] sm:$0xff]
  %v109 = vld [vmem:[%s0 + $0x2d8] sm:$0xff]
  %v110 = vld [vmem:[%s0 + $0x2e0] sm:$0x3]
  %v111 = vld [vmem:[%s0 + $0x2e8] sm:$0xff]
  %v112 = vld [vmem:[%s0 + $0x2f0] sm:$0xff]
  %v113 = vld [vmem:[%s0 + $0x2f8] sm:$0x3]
  %v114 = vld [vmem:[%s0 + $0x300] sm:$0xff]
  %v115 = vld [vmem:[%s0 + $0x308] sm:$0xff]
  %v116 = vld [vmem:[%s0 + $0x310] sm:$0x3]
  %v117 = vld [vmem:[%s0 + $0x318] sm:$0xff]
  %v118 = vld [vmem:[%s0 + $0x320] sm:$0xff]
  %v119 = vld [vmem:[%s0 + $0x328] sm:$0x3]
  %v120 = vld [vmem:[%s0 + $0x330] sm:$0xff]
  %v121 = vld [vmem:[%s0 + $0x338] sm:$0xff]
  %v122 = vld [vmem:[%s0 + $0x340] sm:$0x3]
  %v123 = vld [vmem:[%s0 + $0x348] sm:$0xff]
  %v124 = vld [vmem:[%s0 + $0x350] sm:$0xff]
  %v125 = vld [vmem:[%s0 + $0x358] sm:$0x3]
  %v126 = vpack.c.bf16 %v19, %v18
  %v127 = vpack.c.bf16 %v22, %v21
  %v128 = vpack.c.bf16 %v25, %v24
  %v129 = vpack.c.bf16 %v28, %v27
  %v130 = vpack.c.bf16 %v31, %v30
  %v131 = vpack.c.bf16 %v34, %v33
  %v132 = vpack.c.bf16 %v37, %v36
  %v133 = vpack.c.bf16 %v40, %v39
  %v134 = vpack.c.bf16 %v43, %v42
  %v135 = vpack.c.bf16 %v46, %v45
  %v136 = vpack.c.bf16 %v49, %v48
  %v137 = vpack.c.bf16 %v52, %v51
  %v138 = vpack.c.bf16 %v55, %v54
  %v139 = vpack.c.bf16 %v58, %v57
  %v140 = vpack.c.bf16 %v61, %v60
  %v141 = vpack.c.bf16 %v64, %v63
  %v142 = vpack.c.bf16 %v73, %v72
  %v143 = vpack.c.bf16 %v76, %v75
  %v144 = vpack.c.bf16 %v79, %v78
  %v145 = vpack.c.bf16 %v82, %v81
  %v146 = vpack.c.bf16 %v85, %v84
  %v147 = vpack.c.bf16 %v88, %v87
  %v148 = vpack.c.bf16 %v91, %v90
  %v149 = vpack.c.bf16 %v94, %v93
  %v150 = vpack.c.bf16 %v97, %v96
  %v151 = vpack.c.bf16 %v100, %v99
  %v152 = vpack.c.bf16 %v103, %v102
  %v153 = vpack.c.bf16 %v106, %v105
  %v154 = vpack.c.bf16 %v109, %v108
  %v155 = vpack.c.bf16 %v112, %v111
  %v156 = vpack.c.bf16 %v115, %v114
  %v157 = vpack.c.bf16 %v118, %v117
  %v158 = vld [vmem:[%s1] sm:$0x3]
  %vm255 = vcmask 1046528
  %v256 = vrot.slane %v18, 1
  %v257 = vrot.slane %v19, 1
  %v258 = vsel %vm255, %v256, %v257
  %v259 = vrot.slane %v20, 1
  %v260 = vsel %vm255, %v257, %v259
  %v261 = vrot.slane %v21, 1
  %v262 = vrot.slane %v22, 1
  %v263 = vsel %vm255, %v261, %v262
  %v264 = vrot.slane %v23, 1
  %v265 = vsel %vm255, %v262, %v264
  %v266 = vrot.slane %v24, 1
  %v267 = vrot.slane %v25, 1
  %v268 = vsel %vm255, %v266, %v267
  %v269 = vrot.slane %v26, 1
  %v270 = vsel %vm255, %v267, %v269
  %v271 = vrot.slane %v27, 1
  %v272 = vrot.slane %v28, 1
  %v273 = vsel %vm255, %v271, %v272
  %v274 = vrot.slane %v29, 1
  %v275 = vsel %vm255, %v272, %v274
  %v276 = vrot.slane %v30, 1
  %v277 = vrot.slane %v31, 1
  %v278 = vsel %vm255, %v276, %v277
  %v279 = vrot.slane %v32, 1
  %v280 = vsel %vm255, %v277, %v279
  %v281 = vrot.slane %v33, 1
  %v282 = vrot.slane %v34, 1
  %v283 = vsel %vm255, %v281, %v282
  %v284 = vrot.slane %v35, 1
  %v285 = vsel %vm255, %v282, %v284
  %v286 = vrot.slane %v36, 1
  %v287 = vrot.slane %v37, 1
  %v288 = vsel %vm255, %v286, %v287
  %v289 = vrot.slane %v38, 1
  %v290 = vsel %vm255, %v287, %v289
  %v291 = vrot.slane %v39, 1
  %v292 = vrot.slane %v40, 1
  %v293 = vsel %vm255, %v291, %v292
  %v294 = vrot.slane %v41, 1
  %v295 = vsel %vm255, %v292, %v294
  %v296 = vrot.slane %v42, 1
  %v297 = vrot.slane %v43, 1
  %v298 = vsel %vm255, %v296, %v297
  %v299 = vrot.slane %v44, 1
  %v300 = vsel %vm255, %v297, %v299
  %v301 = vrot.slane %v45, 1
  %v302 = vrot.slane %v46, 1
  %v303 = vsel %vm255, %v301, %v302
  %v304 = vrot.slane %v47, 1
  %v305 = vsel %vm255, %v302, %v304
  %v306 = vrot.slane %v48, 1
  %v307 = vrot.slane %v49, 1
  %v308 = vsel %vm255, %v306, %v307
  %v309 = vrot.slane %v50, 1
  %v310 = vsel %vm255, %v307, %v309
  %v311 = vrot.slane %v51, 1
  %v312 = vrot.slane %v52, 1
  %v313 = vsel %vm255, %v311, %v312
  %v314 = vrot.slane %v53, 1
  %v315 = vsel %vm255, %v312, %v314
  %v316 = vrot.slane %v54, 1
  %v317 = vrot.slane %v55, 1
  %v318 = vsel %vm255, %v316, %v317
  %v319 = vrot.slane %v56, 1
  %v320 = vsel %vm255, %v317, %v319
  %v321 = vrot.slane %v57, 1
  %v322 = vrot.slane %v58, 1
  %v323 = vsel %vm255, %v321, %v322
  %v324 = vrot.slane %v59, 1
  %v325 = vsel %vm255, %v322, %v324
  %v326 = vrot.slane %v60, 1
  %v327 = vrot.slane %v61, 1
  %v328 = vsel %vm255, %v326, %v327
  %v329 = vrot.slane %v62, 1
  %v330 = vsel %vm255, %v327, %v329
  %v331 = vrot.slane %v63, 1
  %v332 = vrot.slane %v64, 1
  %v333 = vsel %vm255, %v331, %v332
  %v334 = vrot.slane %v65, 1
  %v335 = vsel %vm255, %v332, %v334
  %v336 = vrot.slane %v72, 1
  %v337 = vrot.slane %v73, 1
  %v338 = vsel %vm255, %v336, %v337
  %v339 = vrot.slane %v74, 1
  %v340 = vsel %vm255, %v337, %v339
  %v341 = vrot.slane %v75, 1
  %v342 = vrot.slane %v76, 1
  %v343 = vsel %vm255, %v341, %v342
  %v344 = vrot.slane %v77, 1
  %v345 = vsel %vm255, %v342, %v344
  %v346 = vrot.slane %v78, 1
  %v347 = vrot.slane %v79, 1
  %v348 = vsel %vm255, %v346, %v347
  %v349 = vrot.slane %v80, 1
  %v350 = vsel %vm255, %v347, %v349
  %v351 = vrot.slane %v81, 1
  %v352 = vrot.slane %v82, 1
  %v353 = vsel %vm255, %v351, %v352
  %v354 = vrot.slane %v83, 1
  %v355 = vsel %vm255, %v352, %v354
  %v356 = vrot.slane %v84, 1
  %v357 = vrot.slane %v85, 1
  %v358 = vsel %vm255, %v356, %v357
  %v359 = vrot.slane %v86, 1
  %v360 = vsel %vm255, %v357, %v359
  %v361 = vrot.slane %v87, 1
  %v362 = vrot.slane %v88, 1
  %v363 = vsel %vm255, %v361, %v362
  %v364 = vrot.slane %v89, 1
  %v365 = vsel %vm255, %v362, %v364
  %v366 = vrot.slane %v90, 1
  %v367 = vrot.slane %v91, 1
  %v368 = vsel %vm255, %v366, %v367
  %v369 = vrot.slane %v92, 1
  %v370 = vsel %vm255, %v367, %v369
  %v371 = vrot.slane %v93, 1
  %v372 = vrot.slane %v94, 1
  %v373 = vsel %vm255, %v371, %v372
  %v374 = vrot.slane %v95, 1
  %v375 = vsel %vm255, %v372, %v374
  %v376 = vrot.slane %v96, 1
  %v377 = vrot.slane %v97, 1
  %v378 = vsel %vm255, %v376, %v377
  %v379 = vrot.slane %v98, 1
  %v380 = vsel %vm255, %v377, %v379
  %v381 = vrot.slane %v99, 1
  %v382 = vrot.slane %v100, 1
  %v383 = vsel %vm255, %v381, %v382
  %v384 = vrot.slane %v101, 1
  %v385 = vsel %vm255, %v382, %v384
  %v386 = vrot.slane %v102, 1
  %v387 = vrot.slane %v103, 1
  %v388 = vsel %vm255, %v386, %v387
  %v389 = vrot.slane %v104, 1
  %v390 = vsel %vm255, %v387, %v389
  %v391 = vrot.slane %v105, 1
  %v392 = vrot.slane %v106, 1
  %v393 = vsel %vm255, %v391, %v392
  %v394 = vrot.slane %v107, 1
  %v395 = vsel %vm255, %v392, %v394
  %v396 = vrot.slane %v108, 1
  %v397 = vrot.slane %v109, 1
  %v398 = vsel %vm255, %v396, %v397
  %v399 = vrot.slane %v110, 1
  %v400 = vsel %vm255, %v397, %v399
  %v401 = vrot.slane %v111, 1
  %v402 = vrot.slane %v112, 1
  %v403 = vsel %vm255, %v401, %v402
  %v404 = vrot.slane %v113, 1
  %v405 = vsel %vm255, %v402, %v404
  %v406 = vrot.slane %v114, 1
  %v407 = vrot.slane %v115, 1
  %v408 = vsel %vm255, %v406, %v407
  %v409 = vrot.slane %v116, 1
  %v410 = vsel %vm255, %v407, %v409
  %v411 = vrot.slane %v117, 1
  %v412 = vrot.slane %v118, 1
  %v413 = vsel %vm255, %v411, %v412
  %v414 = vrot.slane %v119, 1
  %v415 = vsel %vm255, %v412, %v414
  %v480 = vpack.c.bf16 %v260, %v258
  %v481 = vpack.c.bf16 %v265, %v263
  %v482 = vpack.c.bf16 %v270, %v268
  %v483 = vpack.c.bf16 %v275, %v273
  %v484 = vpack.c.bf16 %v280, %v278
  %v485 = vpack.c.bf16 %v285, %v283
  %v486 = vpack.c.bf16 %v290, %v288
  %v487 = vpack.c.bf16 %v295, %v293
  %v488 = vpack.c.bf16 %v300, %v298
  %v489 = vpack.c.bf16 %v305, %v303
  %v490 = vpack.c.bf16 %v310, %v308
  %v491 = vpack.c.bf16 %v315, %v313
  %v492 = vpack.c.bf16 %v320, %v318
  %v493 = vpack.c.bf16 %v325, %v323
  %v494 = vpack.c.bf16 %v330, %v328
  %v495 = vpack.c.bf16 %v335, %v333
  %v496 = vpack.c.bf16 %v340, %v338
  %v497 = vpack.c.bf16 %v345, %v343
  %v498 = vpack.c.bf16 %v350, %v348
  %v499 = vpack.c.bf16 %v355, %v353
  %v500 = vpack.c.bf16 %v360, %v358
  %v501 = vpack.c.bf16 %v365, %v363
  %v502 = vpack.c.bf16 %v370, %v368
  %v503 = vpack.c.bf16 %v375, %v373
  %v504 = vpack.c.bf16 %v380, %v378
  %v505 = vpack.c.bf16 %v385, %v383
  %v506 = vpack.c.bf16 %v390, %v388
  %v507 = vpack.c.bf16 %v395, %v393
  %v508 = vpack.c.bf16 %v400, %v398
  %v509 = vpack.c.bf16 %v405, %v403
  %v510 = vpack.c.bf16 %v410, %v408
  %v511 = vpack.c.bf16 %v415, %v413
  %s512 = scalar_lea.vmem %s1, 2
  %v513 = vld [vmem:[%s512] sm:$0x3]
  %vm514 = vcmask 31744
  %v516 = vsel %vm514, %v480, 0
  %v519 = vsel %vm514, %v481, 0
  %v522 = vsel %vm514, %v482, 0
  %v525 = vsel %vm514, %v483, 0
  %v528 = vsel %vm514, %v484, 0
  %v531 = vsel %vm514, %v485, 0
  %v534 = vsel %vm514, %v486, 0
  %v537 = vsel %vm514, %v487, 0
  %v540 = vsel %vm514, %v488, 0
  %v543 = vsel %vm514, %v489, 0
  %v546 = vsel %vm514, %v490, 0
  %v549 = vsel %vm514, %v491, 0
  %v552 = vsel %vm514, %v492, 0
  %v555 = vsel %vm514, %v493, 0
  %v558 = vsel %vm514, %v494, 0
  %v561 = vsel %vm514, %v495, 0
  %v564 = vsel %vm514, %v496, 0
  %v567 = vsel %vm514, %v497, 0
  %v570 = vsel %vm514, %v498, 0
  %v573 = vsel %vm514, %v499, 0
  %v576 = vsel %vm514, %v500, 0
  %v579 = vsel %vm514, %v501, 0
  %v582 = vsel %vm514, %v502, 0
  %v585 = vsel %vm514, %v503, 0
  %v588 = vsel %vm514, %v504, 0
  %v591 = vsel %vm514, %v505, 0
  %v594 = vsel %vm514, %v506, 0
  %v597 = vsel %vm514, %v507, 0
  %v600 = vsel %vm514, %v508, 0
  %v603 = vsel %vm514, %v509, 0
  %v606 = vsel %vm514, %v510, 0
  %v609 = vsel %vm514, %v511, 0
  %vm611 = vcmask 1041408
  %v613 = vsel %vm611, %v513, 0
  %615 = vmatpush.bf16.msra.mxu0 0
  %616 = vmatpush.bf16.msra.mxu0 0
  %617 = vmatpush.bf16.msra.mxu0 0
  %618 = vmatpush.bf16.msra.mxu0 0
  %619 = vmatpush.bf16.msra.mxu0 0
  %620 = vmatpush.bf16.msra.mxu0 0
  %621 = vmatpush.bf16.msra.mxu0 0
  %622 = vmatpush.bf16.msra.mxu0 %v613
  %623 = vmatmul.bf16.gmra.mxu0 %v516
  %v624 = vpop.f32.mrf.mxu0
  %v625 = vadd.f32 0.0, %v624
  %v626 = vpop.f32.mrf.mxu0
  %v627 = vadd.f32 0.0, %v626
  %628 = vmatmul.bf16.gmra.mxu0 %v519
  %v629 = vpop.f32.mrf.mxu0
  %v630 = vadd.f32 0.0, %v629
  %v631 = vpop.f32.mrf.mxu0
  %v632 = vadd.f32 0.0, %v631
  %633 = vmatmul.bf16.gmra.mxu0 %v522
  %v634 = vpop.f32.mrf.mxu0
  %v635 = vadd.f32 0.0, %v634
  %v636 = vpop.f32.mrf.mxu0
  %v637 = vadd.f32 0.0, %v636
  %638 = vmatmul.bf16.gmra.mxu0 %v525
  %v639 = vpop.f32.mrf.mxu0
  %v640 = vadd.f32 0.0, %v639
  %v641 = vpop.f32.mrf.mxu0
  %v642 = vadd.f32 0.0, %v641
  %643 = vmatmul.bf16.gmra.mxu0 %v528
  %v644 = vpop.f32.mrf.mxu0
  %v645 = vadd.f32 0.0, %v644
  %v646 = vpop.f32.mrf.mxu0
  %v647 = vadd.f32 0.0, %v646
  %648 = vmatmul.bf16.gmra.mxu0 %v531
  %v649 = vpop.f32.mrf.mxu0
  %v650 = vadd.f32 0.0, %v649
  %v651 = vpop.f32.mrf.mxu0
  %v652 = vadd.f32 0.0, %v651
  %653 = vmatmul.bf16.gmra.mxu0 %v534
  %v654 = vpop.f32.mrf.mxu0
  %v655 = vadd.f32 0.0, %v654
  %v656 = vpop.f32.mrf.mxu0
  %v657 = vadd.f32 0.0, %v656
  %658 = vmatmul.bf16.gmra.mxu0 %v537
  %v659 = vpop.f32.mrf.mxu0
  %v660 = vadd.f32 0.0, %v659
  %v661 = vpop.f32.mrf.mxu0
  %v662 = vadd.f32 0.0, %v661
  %663 = vmatmul.bf16.gmra.mxu0 %v540
  %v664 = vpop.f32.mrf.mxu0
  %v665 = vadd.f32 0.0, %v664
  %v666 = vpop.f32.mrf.mxu0
  %v667 = vadd.f32 0.0, %v666
  %668 = vmatmul.bf16.gmra.mxu0 %v543
  %v669 = vpop.f32.mrf.mxu0
  %v670 = vadd.f32 0.0, %v669
  %v671 = vpop.f32.mrf.mxu0
  %v672 = vadd.f32 0.0, %v671
  %673 = vmatmul.bf16.gmra.mxu0 %v546
  %v674 = vpop.f32.mrf.mxu0
  %v675 = vadd.f32 0.0, %v674
  %v676 = vpop.f32.mrf.mxu0
  %v677 = vadd.f32 0.0, %v676
  %678 = vmatmul.bf16.gmra.mxu0 %v549
  %v679 = vpop.f32.mrf.mxu0
  %v680 = vadd.f32 0.0, %v679
  %v681 = vpop.f32.mrf.mxu0
  %v682 = vadd.f32 0.0, %v681
  %683 = vmatmul.bf16.gmra.mxu0 %v552
  %v684 = vpop.f32.mrf.mxu0
  %v685 = vadd.f32 0.0, %v684
  %v686 = vpop.f32.mrf.mxu0
  %v687 = vadd.f32 0.0, %v686
  %688 = vmatmul.bf16.gmra.mxu0 %v555
  %v689 = vpop.f32.mrf.mxu0
  %v690 = vadd.f32 0.0, %v689
  %v691 = vpop.f32.mrf.mxu0
  %v692 = vadd.f32 0.0, %v691
  %693 = vmatmul.bf16.gmra.mxu0 %v558
  %v694 = vpop.f32.mrf.mxu0
  %v695 = vadd.f32 0.0, %v694
  %v696 = vpop.f32.mrf.mxu0
  %v697 = vadd.f32 0.0, %v696
  %698 = vmatmul.bf16.gmra.mxu0 %v561
  %v699 = vpop.f32.mrf.mxu0
  %v700 = vadd.f32 0.0, %v699
  %v701 = vpop.f32.mrf.mxu0
  %v702 = vadd.f32 0.0, %v701
  %703 = vmatmul.bf16.gmra.mxu0 %v564
  %v704 = vpop.f32.mrf.mxu0
  %v705 = vadd.f32 0.0, %v704
  %v706 = vpop.f32.mrf.mxu0
  %v707 = vadd.f32 0.0, %v706
  %708 = vmatmul.bf16.gmra.mxu0 %v567
  %v709 = vpop.f32.mrf.mxu0
  %v710 = vadd.f32 0.0, %v709
  %v711 = vpop.f32.mrf.mxu0
  %v712 = vadd.f32 0.0, %v711
  %713 = vmatmul.bf16.gmra.mxu0 %v570
  %v714 = vpop.f32.mrf.mxu0
  %v715 = vadd.f32 0.0, %v714
  %v716 = vpop.f32.mrf.mxu0
  %v717 = vadd.f32 0.0, %v716
  %718 = vmatmul.bf16.gmra.mxu0 %v573
  %v719 = vpop.f32.mrf.mxu0
  %v720 = vadd.f32 0.0, %v719
  %v721 = vpop.f32.mrf.mxu0
  %v722 = vadd.f32 0.0, %v721
  %723 = vmatmul.bf16.gmra.mxu0 %v576
  %v724 = vpop.f32.mrf.mxu0
  %v725 = vadd.f32 0.0, %v724
  %v726 = vpop.f32.mrf.mxu0
  %v727 = vadd.f32 0.0, %v726
  %728 = vmatmul.bf16.gmra.mxu0 %v579
  %v729 = vpop.f32.mrf.mxu0
  %v730 = vadd.f32 0.0, %v729
  %v731 = vpop.f32.mrf.mxu0
  %v732 = vadd.f32 0.0, %v731
  %733 = vmatmul.bf16.gmra.mxu0 %v582
  %v734 = vpop.f32.mrf.mxu0
  %v735 = vadd.f32 0.0, %v734
  %v736 = vpop.f32.mrf.mxu0
  %v737 = vadd.f32 0.0, %v736
  %738 = vmatmul.bf16.gmra.mxu0 %v585
  %v739 = vpop.f32.mrf.mxu0
  %v740 = vadd.f32 0.0, %v739
  %v741 = vpop.f32.mrf.mxu0
  %v742 = vadd.f32 0.0, %v741
  %743 = vmatmul.bf16.gmra.mxu0 %v588
  %v744 = vpop.f32.mrf.mxu0
  %v745 = vadd.f32 0.0, %v744
  %v746 = vpop.f32.mrf.mxu0
  %v747 = vadd.f32 0.0, %v746
  %748 = vmatmul.bf16.gmra.mxu0 %v591
  %v749 = vpop.f32.mrf.mxu0
  %v750 = vadd.f32 0.0, %v749
  %v751 = vpop.f32.mrf.mxu0
  %v752 = vadd.f32 0.0, %v751
  %753 = vmatmul.bf16.gmra.mxu0 %v594
  %v754 = vpop.f32.mrf.mxu0
  %v755 = vadd.f32 0.0, %v754
  %v756 = vpop.f32.mrf.mxu0
  %v757 = vadd.f32 0.0, %v756
  %758 = vmatmul.bf16.gmra.mxu0 %v597
  %v759 = vpop.f32.mrf.mxu0
  %v760 = vadd.f32 0.0, %v759
  %v761 = vpop.f32.mrf.mxu0
  %v762 = vadd.f32 0.0, %v761
  %763 = vmatmul.bf16.gmra.mxu0 %v600
  %v764 = vpop.f32.mrf.mxu0
  %v765 = vadd.f32 0.0, %v764
  %v766 = vpop.f32.mrf.mxu0
  %v767 = vadd.f32 0.0, %v766
  %768 = vmatmul.bf16.gmra.mxu0 %v603
  %v769 = vpop.f32.mrf.mxu0
  %v770 = vadd.f32 0.0, %v769
  %v771 = vpop.f32.mrf.mxu0
  %v772 = vadd.f32 0.0, %v771
  %773 = vmatmul.bf16.gmra.mxu0 %v606
  %v774 = vpop.f32.mrf.mxu0
  %v775 = vadd.f32 0.0, %v774
  %v776 = vpop.f32.mrf.mxu0
  %v777 = vadd.f32 0.0, %v776
  %778 = vmatmul.bf16.gmra.mxu0 %v609
  %v779 = vpop.f32.mrf.mxu0
  %v780 = vadd.f32 0.0, %v779
  %v781 = vpop.f32.mrf.mxu0
  %v782 = vadd.f32 0.0, %v781
  %783 = vdwg.mxu0
  %v785 = vsel %vm514, %v126, 0
  %v788 = vsel %vm514, %v127, 0
  %v791 = vsel %vm514, %v128, 0
  %v794 = vsel %vm514, %v129, 0
  %v797 = vsel %vm514, %v130, 0
  %v800 = vsel %vm514, %v131, 0
  %v803 = vsel %vm514, %v132, 0
  %v806 = vsel %vm514, %v133, 0
  %v809 = vsel %vm514, %v134, 0
  %v812 = vsel %vm514, %v135, 0
  %v815 = vsel %vm514, %v136, 0
  %v818 = vsel %vm514, %v137, 0
  %v821 = vsel %vm514, %v138, 0
  %v824 = vsel %vm514, %v139, 0
  %v827 = vsel %vm514, %v140, 0
  %v830 = vsel %vm514, %v141, 0
  %v833 = vsel %vm514, %v142, 0
  %v836 = vsel %vm514, %v143, 0
  %v839 = vsel %vm514, %v144, 0
  %v842 = vsel %vm514, %v145, 0
  %v845 = vsel %vm514, %v146, 0
  %v848 = vsel %vm514, %v147, 0
  %v851 = vsel %vm514, %v148, 0
  %v854 = vsel %vm514, %v149, 0
  %v857 = vsel %vm514, %v150, 0
  %v860 = vsel %vm514, %v151, 0
  %v863 = vsel %vm514, %v152, 0
  %v866 = vsel %vm514, %v153, 0
  %v869 = vsel %vm514, %v154, 0
  %v872 = vsel %vm514, %v155, 0
  %v875 = vsel %vm514, %v156, 0
  %v878 = vsel %vm514, %v157, 0
  %v881 = vsel %vm611, %v158, 0
  %883 = vmatpush.bf16.msra.mxu0 0
  %884 = vmatpush.bf16.msra.mxu0 0
  %885 = vmatpush.bf16.msra.mxu0 0
  %886 = vmatpush.bf16.msra.mxu0 0
  %887 = vmatpush.bf16.msra.mxu0 0
  %888 = vmatpush.bf16.msra.mxu0 0
  %889 = vmatpush.bf16.msra.mxu0 0
  %890 = vmatpush.bf16.msra.mxu0 %v881
  %891 = vmatmul.bf16.gmra.mxu0 %v785
  %v892 = vpop.f32.mrf.mxu0
  %v893 = vadd.f32 %v625, %v892
  %v894 = vpop.f32.mrf.mxu0
  %v895 = vadd.f32 %v627, %v894
  %896 = vmatmul.bf16.gmra.mxu0 %v788
  %v897 = vpop.f32.mrf.mxu0
  %v898 = vadd.f32 %v630, %v897
  %v899 = vpop.f32.mrf.mxu0
  %v900 = vadd.f32 %v632, %v899
  %901 = vmatmul.bf16.gmra.mxu0 %v791
  %v902 = vpop.f32.mrf.mxu0
  %v903 = vadd.f32 %v635, %v902
  %v904 = vpop.f32.mrf.mxu0
  %v905 = vadd.f32 %v637, %v904
  %906 = vmatmul.bf16.gmra.mxu0 %v794
  %v907 = vpop.f32.mrf.mxu0
  %v908 = vadd.f32 %v640, %v907
  %v909 = vpop.f32.mrf.mxu0
  %v910 = vadd.f32 %v642, %v909
  %911 = vmatmul.bf16.gmra.mxu0 %v797
  %v912 = vpop.f32.mrf.mxu0
  %v913 = vadd.f32 %v645, %v912
  %v914 = vpop.f32.mrf.mxu0
  %v915 = vadd.f32 %v647, %v914
  %916 = vmatmul.bf16.gmra.mxu0 %v800
  %v917 = vpop.f32.mrf.mxu0
  %v918 = vadd.f32 %v650, %v917
  %v919 = vpop.f32.mrf.mxu0
  %v920 = vadd.f32 %v652, %v919
  %921 = vmatmul.bf16.gmra.mxu0 %v803
  %v922 = vpop.f32.mrf.mxu0
  %v923 = vadd.f32 %v655, %v922
  %v924 = vpop.f32.mrf.mxu0
  %v925 = vadd.f32 %v657, %v924
  %926 = vmatmul.bf16.gmra.mxu0 %v806
  %v927 = vpop.f32.mrf.mxu0
  %v928 = vadd.f32 %v660, %v927
  %v929 = vpop.f32.mrf.mxu0
  %v930 = vadd.f32 %v662, %v929
  %931 = vmatmul.bf16.gmra.mxu0 %v809
  %v932 = vpop.f32.mrf.mxu0
  %v933 = vadd.f32 %v665, %v932
  %v934 = vpop.f32.mrf.mxu0
  %v935 = vadd.f32 %v667, %v934
  %936 = vmatmul.bf16.gmra.mxu0 %v812
  %v937 = vpop.f32.mrf.mxu0
  %v938 = vadd.f32 %v670, %v937
  %v939 = vpop.f32.mrf.mxu0
  %v940 = vadd.f32 %v672, %v939
  %941 = vmatmul.bf16.gmra.mxu0 %v815
  %v942 = vpop.f32.mrf.mxu0
  %v943 = vadd.f32 %v675, %v942
  %v944 = vpop.f32.mrf.mxu0
  %v945 = vadd.f32 %v677, %v944
  %946 = vmatmul.bf16.gmra.mxu0 %v818
  %v947 = vpop.f32.mrf.mxu0
  %v948 = vadd.f32 %v680, %v947
  %v949 = vpop.f32.mrf.mxu0
  %v950 = vadd.f32 %v682, %v949
  %951 = vmatmul.bf16.gmra.mxu0 %v821
  %v952 = vpop.f32.mrf.mxu0
  %v953 = vadd.f32 %v685, %v952
  %v954 = vpop.f32.mrf.mxu0
  %v955 = vadd.f32 %v687, %v954
  %956 = vmatmul.bf16.gmra.mxu0 %v824
  %v957 = vpop.f32.mrf.mxu0
  %v958 = vadd.f32 %v690, %v957
  %v959 = vpop.f32.mrf.mxu0
  %v960 = vadd.f32 %v692, %v959
  %961 = vmatmul.bf16.gmra.mxu0 %v827
  %v962 = vpop.f32.mrf.mxu0
  %v963 = vadd.f32 %v695, %v962
  %v964 = vpop.f32.mrf.mxu0
  %v965 = vadd.f32 %v697, %v964
  %966 = vmatmul.bf16.gmra.mxu0 %v830
  %v967 = vpop.f32.mrf.mxu0
  %v968 = vadd.f32 %v700, %v967
  %v969 = vpop.f32.mrf.mxu0
  %v970 = vadd.f32 %v702, %v969
  %971 = vmatmul.bf16.gmra.mxu0 %v833
  %v972 = vpop.f32.mrf.mxu0
  %v973 = vadd.f32 %v705, %v972
  %v974 = vpop.f32.mrf.mxu0
  %v975 = vadd.f32 %v707, %v974
  %976 = vmatmul.bf16.gmra.mxu0 %v836
  %v977 = vpop.f32.mrf.mxu0
  %v978 = vadd.f32 %v710, %v977
  %v979 = vpop.f32.mrf.mxu0
  %v980 = vadd.f32 %v712, %v979
  %981 = vmatmul.bf16.gmra.mxu0 %v839
  %v982 = vpop.f32.mrf.mxu0
  %v983 = vadd.f32 %v715, %v982
  %v984 = vpop.f32.mrf.mxu0
  %v985 = vadd.f32 %v717, %v984
  %986 = vmatmul.bf16.gmra.mxu0 %v842
  %v987 = vpop.f32.mrf.mxu0
  %v988 = vadd.f32 %v720, %v987
  %v989 = vpop.f32.mrf.mxu0
  %v990 = vadd.f32 %v722, %v989
  %991 = vmatmul.bf16.gmra.mxu0 %v845
  %v992 = vpop.f32.mrf.mxu0
  %v993 = vadd.f32 %v725, %v992
  %v994 = vpop.f32.mrf.mxu0
  %v995 = vadd.f32 %v727, %v994
  %996 = vmatmul.bf16.gmra.mxu0 %v848
  %v997 = vpop.f32.mrf.mxu0
  %v998 = vadd.f32 %v730, %v997
  %v999 = vpop.f32.mrf.mxu0
  %v1000 = vadd.f32 %v732, %v999
  %1001 = vmatmul.bf16.gmra.mxu0 %v851
  %v1002 = vpop.f32.mrf.mxu0
  %v1003 = vadd.f32 %v735, %v1002
  %v1004 = vpop.f32.mrf.mxu0
  %v1005 = vadd.f32 %v737, %v1004
  %1006 = vmatmul.bf16.gmra.mxu0 %v854
  %v1007 = vpop.f32.mrf.mxu0
  %v1008 = vadd.f32 %v740, %v1007
  %v1009 = vpop.f32.mrf.mxu0
  %v1010 = vadd.f32 %v742, %v1009
  %1011 = vmatmul.bf16.gmra.mxu0 %v857
  %v1012 = vpop.f32.mrf.mxu0
  %v1013 = vadd.f32 %v745, %v1012
  %v1014 = vpop.f32.mrf.mxu0
  %v1015 = vadd.f32 %v747, %v1014
  %1016 = vmatmul.bf16.gmra.mxu0 %v860
  %v1017 = vpop.f32.mrf.mxu0
  %v1018 = vadd.f32 %v750, %v1017
  %v1019 = vpop.f32.mrf.mxu0
  %v1020 = vadd.f32 %v752, %v1019
  %1021 = vmatmul.bf16.gmra.mxu0 %v863
  %v1022 = vpop.f32.mrf.mxu0
  %v1023 = vadd.f32 %v755, %v1022
  %v1024 = vpop.f32.mrf.mxu0
  %v1025 = vadd.f32 %v757, %v1024
  %1026 = vmatmul.bf16.gmra.mxu0 %v866
  %v1027 = vpop.f32.mrf.mxu0
  %v1028 = vadd.f32 %v760, %v1027
  %v1029 = vpop.f32.mrf.mxu0
  %v1030 = vadd.f32 %v762, %v1029
  %1031 = vmatmul.bf16.gmra.mxu0 %v869
  %v1032 = vpop.f32.mrf.mxu0
  %v1033 = vadd.f32 %v765, %v1032
  %v1034 = vpop.f32.mrf.mxu0
  %v1035 = vadd.f32 %v767, %v1034
  %1036 = vmatmul.bf16.gmra.mxu0 %v872
  %v1037 = vpop.f32.mrf.mxu0
  %v1038 = vadd.f32 %v770, %v1037
  %v1039 = vpop.f32.mrf.mxu0
  %v1040 = vadd.f32 %v772, %v1039
  %1041 = vmatmul.bf16.gmra.mxu0 %v875
  %v1042 = vpop.f32.mrf.mxu0
  %v1043 = vadd.f32 %v775, %v1042
  %v1044 = vpop.f32.mrf.mxu0
  %v1045 = vadd.f32 %v777, %v1044
  %1046 = vmatmul.bf16.gmra.mxu0 %v878
  %v1047 = vpop.f32.mrf.mxu0
  %v1048 = vadd.f32 %v780, %v1047
  %v1049 = vpop.f32.mrf.mxu0
  %v1050 = vadd.f32 %v782, %v1049
  %1051 = vdwg.mxu0
  %vm1052 = vcmask 1045504
  %v1053 = vrot.slane %v18, 2
  %v1054 = vrot.slane %v19, 2
  %v1055 = vsel %vm1052, %v1053, %v1054
  %v1056 = vrot.slane %v20, 2
  %v1057 = vsel %vm1052, %v1054, %v1056
  %v1058 = vrot.slane %v21, 2
  %v1059 = vrot.slane %v22, 2
  %v1060 = vsel %vm1052, %v1058, %v1059
  %v1061 = vrot.slane %v23, 2
  %v1062 = vsel %vm1052, %v1059, %v1061
  %v1063 = vrot.slane %v24, 2
  %v1064 = vrot.slane %v25, 2
  %v1065 = vsel %vm1052, %v1063, %v1064
  %v1066 = vrot.slane %v26, 2
  %v1067 = vsel %vm1052, %v1064, %v1066
  %v1068 = vrot.slane %v27, 2
  %v1069 = vrot.slane %v28, 2
  %v1070 = vsel %vm1052, %v1068, %v1069
  %v1071 = vrot.slane %v29, 2
  %v1072 = vsel %vm1052, %v1069, %v1071
  %v1073 = vrot.slane %v30, 2
  %v1074 = vrot.slane %v31, 2
  %v1075 = vsel %vm1052, %v1073, %v1074
  %v1076 = vrot.slane %v32, 2
  %v1077 = vsel %vm1052, %v1074, %v1076
  %v1078 = vrot.slane %v33, 2
  %v1079 = vrot.slane %v34, 2
  %v1080 = vsel %vm1052, %v1078, %v1079
  %v1081 = vrot.slane %v35, 2
  %v1082 = vsel %vm1052, %v1079, %v1081
  %v1083 = vrot.slane %v36, 2
  %v1084 = vrot.slane %v37, 2
  %v1085 = vsel %vm1052, %v1083, %v1084
  %v1086 = vrot.slane %v38, 2
  %v1087 = vsel %vm1052, %v1084, %v1086
  %v1088 = vrot.slane %v39, 2
  %v1089 = vrot.slane %v40, 2
  %v1090 = vsel %vm1052, %v1088, %v1089
  %v1091 = vrot.slane %v41, 2
  %v1092 = vsel %vm1052, %v1089, %v1091
  %v1093 = vrot.slane %v42, 2
  %v1094 = vrot.slane %v43, 2
  %v1095 = vsel %vm1052, %v1093, %v1094
  %v1096 = vrot.slane %v44, 2
  %v1097 = vsel %vm1052, %v1094, %v1096
  %v1098 = vrot.slane %v45, 2
  %v1099 = vrot.slane %v46, 2
  %v1100 = vsel %vm1052, %v1098, %v1099
  %v1101 = vrot.slane %v47, 2
  %v1102 = vsel %vm1052, %v1099, %v1101
  %v1103 = vrot.slane %v48, 2
  %v1104 = vrot.slane %v49, 2
  %v1105 = vsel %vm1052, %v1103, %v1104
  %v1106 = vrot.slane %v50, 2
  %v1107 = vsel %vm1052, %v1104, %v1106
  %v1108 = vrot.slane %v51, 2
  %v1109 = vrot.slane %v52, 2
  %v1110 = vsel %vm1052, %v1108, %v1109
  %v1111 = vrot.slane %v53, 2
  %v1112 = vsel %vm1052, %v1109, %v1111
  %v1113 = vrot.slane %v54, 2
  %v1114 = vrot.slane %v55, 2
  %v1115 = vsel %vm1052, %v1113, %v1114
  %v1116 = vrot.slane %v56, 2
  %v1117 = vsel %vm1052, %v1114, %v1116
  %v1118 = vrot.slane %v57, 2
  %v1119 = vrot.slane %v58, 2
  %v1120 = vsel %vm1052, %v1118, %v1119
  %v1121 = vrot.slane %v59, 2
  %v1122 = vsel %vm1052, %v1119, %v1121
  %v1123 = vrot.slane %v60, 2
  %v1124 = vrot.slane %v61, 2
  %v1125 = vsel %vm1052, %v1123, %v1124
  %v1126 = vrot.slane %v62, 2
  %v1127 = vsel %vm1052, %v1124, %v1126
  %v1128 = vrot.slane %v63, 2
  %v1129 = vrot.slane %v64, 2
  %v1130 = vsel %vm1052, %v1128, %v1129
  %v1131 = vrot.slane %v65, 2
  %v1132 = vsel %vm1052, %v1129, %v1131
  %v1133 = vrot.slane %v72, 2
  %v1134 = vrot.slane %v73, 2
  %v1135 = vsel %vm1052, %v1133, %v1134
  %v1136 = vrot.slane %v74, 2
  %v1137 = vsel %vm1052, %v1134, %v1136
  %v1138 = vrot.slane %v75, 2
  %v1139 = vrot.slane %v76, 2
  %v1140 = vsel %vm1052, %v1138, %v1139
  %v1141 = vrot.slane %v77, 2
  %v1142 = vsel %vm1052, %v1139, %v1141
  %v1143 = vrot.slane %v78, 2
  %v1144 = vrot.slane %v79, 2
  %v1145 = vsel %vm1052, %v1143, %v1144
  %v1146 = vrot.slane %v80, 2
  %v1147 = vsel %vm1052, %v1144, %v1146
  %v1148 = vrot.slane %v81, 2
  %v1149 = vrot.slane %v82, 2
  %v1150 = vsel %vm1052, %v1148, %v1149
  %v1151 = vrot.slane %v83, 2
  %v1152 = vsel %vm1052, %v1149, %v1151
  %v1153 = vrot.slane %v84, 2
  %v1154 = vrot.slane %v85, 2
  %v1155 = vsel %vm1052, %v1153, %v1154
  %v1156 = vrot.slane %v86, 2
  %v1157 = vsel %vm1052, %v1154, %v1156
  %v1158 = vrot.slane %v87, 2
  %v1159 = vrot.slane %v88, 2
  %v1160 = vsel %vm1052, %v1158, %v1159
  %v1161 = vrot.slane %v89, 2
  %v1162 = vsel %vm1052, %v1159, %v1161
  %v1163 = vrot.slane %v90, 2
  %v1164 = vrot.slane %v91, 2
  %v1165 = vsel %vm1052, %v1163, %v1164
  %v1166 = vrot.slane %v92, 2
  %v1167 = vsel %vm1052, %v1164, %v1166
  %v1168 = vrot.slane %v93, 2
  %v1169 = vrot.slane %v94, 2
  %v1170 = vsel %vm1052, %v1168, %v1169
  %v1171 = vrot.slane %v95, 2
  %v1172 = vsel %vm1052, %v1169, %v1171
  %v1173 = vrot.slane %v96, 2
  %v1174 = vrot.slane %v97, 2
  %v1175 = vsel %vm1052, %v1173, %v1174
  %v1176 = vrot.slane %v98, 2
  %v1177 = vsel %vm1052, %v1174, %v1176
  %v1178 = vrot.slane %v99, 2
  %v1179 = vrot.slane %v100, 2
  %v1180 = vsel %vm1052, %v1178, %v1179
  %v1181 = vrot.slane %v101, 2
  %v1182 = vsel %vm1052, %v1179, %v1181
  %v1183 = vrot.slane %v102, 2
  %v1184 = vrot.slane %v103, 2
  %v1185 = vsel %vm1052, %v1183, %v1184
  %v1186 = vrot.slane %v104, 2
  %v1187 = vsel %vm1052, %v1184, %v1186
  %v1188 = vrot.slane %v105, 2
  %v1189 = vrot.slane %v106, 2
  %v1190 = vsel %vm1052, %v1188, %v1189
  %v1191 = vrot.slane %v107, 2
  %v1192 = vsel %vm1052, %v1189, %v1191
  %v1193 = vrot.slane %v108, 2
  %v1194 = vrot.slane %v109, 2
  %v1195 = vsel %vm1052, %v1193, %v1194
  %v1196 = vrot.slane %v110, 2
  %v1197 = vsel %vm1052, %v1194, %v1196
  %v1198 = vrot.slane %v111, 2
  %v1199 = vrot.slane %v112, 2
  %v1200 = vsel %vm1052, %v1198, %v1199
  %v1201 = vrot.slane %v113, 2
  %v1202 = vsel %vm1052, %v1199, %v1201
  %v1203 = vrot.slane %v114, 2
  %v1204 = vrot.slane %v115, 2
  %v1205 = vsel %vm1052, %v1203, %v1204
  %v1206 = vrot.slane %v116, 2
  %v1207 = vsel %vm1052, %v1204, %v1206
  %v1208 = vrot.slane %v117, 2
  %v1209 = vrot.slane %v118, 2
  %v1210 = vsel %vm1052, %v1208, %v1209
  %v1211 = vrot.slane %v119, 2
  %v1212 = vsel %vm1052, %v1209, %v1211
  %v1277 = vpack.c.bf16 %v1057, %v1055
  %v1278 = vpack.c.bf16 %v1062, %v1060
  %v1279 = vpack.c.bf16 %v1067, %v1065
  %v1280 = vpack.c.bf16 %v1072, %v1070
  %v1281 = vpack.c.bf16 %v1077, %v1075
  %v1282 = vpack.c.bf16 %v1082, %v1080
  %v1283 = vpack.c.bf16 %v1087, %v1085
  %v1284 = vpack.c.bf16 %v1092, %v1090
  %v1285 = vpack.c.bf16 %v1097, %v1095
  %v1286 = vpack.c.bf16 %v1102, %v1100
  %v1287 = vpack.c.bf16 %v1107, %v1105
  %v1288 = vpack.c.bf16 %v1112, %v1110
  %v1289 = vpack.c.bf16 %v1117, %v1115
  %v1290 = vpack.c.bf16 %v1122, %v1120
  %v1291 = vpack.c.bf16 %v1127, %v1125
  %v1292 = vpack.c.bf16 %v1132, %v1130
  %v1293 = vpack.c.bf16 %v1137, %v1135
  %v1294 = vpack.c.bf16 %v1142, %v1140
  %v1295 = vpack.c.bf16 %v1147, %v1145
  %v1296 = vpack.c.bf16 %v1152, %v1150
  %v1297 = vpack.c.bf16 %v1157, %v1155
  %v1298 = vpack.c.bf16 %v1162, %v1160
  %v1299 = vpack.c.bf16 %v1167, %v1165
  %v1300 = vpack.c.bf16 %v1172, %v1170
  %v1301 = vpack.c.bf16 %v1177, %v1175
  %v1302 = vpack.c.bf16 %v1182, %v1180
  %v1303 = vpack.c.bf16 %v1187, %v1185
  %v1304 = vpack.c.bf16 %v1192, %v1190
  %v1305 = vpack.c.bf16 %v1197, %v1195
  %v1306 = vpack.c.bf16 %v1202, %v1200
  %v1307 = vpack.c.bf16 %v1207, %v1205
  %v1308 = vpack.c.bf16 %v1212, %v1210
  %s1309 = scalar_lea.vmem %s1, 4
  %v1310 = vld [vmem:[%s1309] sm:$0x3]
  %v1312 = vsel %vm514, %v1277, 0
  %v1315 = vsel %vm514, %v1278, 0
  %v1318 = vsel %vm514, %v1279, 0
  %v1321 = vsel %vm514, %v1280, 0
  %v1324 = vsel %vm514, %v1281, 0
  %v1327 = vsel %vm514, %v1282, 0
  %v1330 = vsel %vm514, %v1283, 0
  %v1333 = vsel %vm514, %v1284, 0
  %v1336 = vsel %vm514, %v1285, 0
  %v1339 = vsel %vm514, %v1286, 0
  %v1342 = vsel %vm514, %v1287, 0
  %v1345 = vsel %vm514, %v1288, 0
  %v1348 = vsel %vm514, %v1289, 0
  %v1351 = vsel %vm514, %v1290, 0
  %v1354 = vsel %vm514, %v1291, 0
  %v1357 = vsel %vm514, %v1292, 0
  %v1360 = vsel %vm514, %v1293, 0
  %v1363 = vsel %vm514, %v1294, 0
  %v1366 = vsel %vm514, %v1295, 0
  %v1369 = vsel %vm514, %v1296, 0
  %v1372 = vsel %vm514, %v1297, 0
  %v1375 = vsel %vm514, %v1298, 0
  %v1378 = vsel %vm514, %v1299, 0
  %v1381 = vsel %vm514, %v1300, 0
  %v1384 = vsel %vm514, %v1301, 0
  %v1387 = vsel %vm514, %v1302, 0
  %v1390 = vsel %vm514, %v1303, 0
  %v1393 = vsel %vm514, %v1304, 0
  %v1396 = vsel %vm514, %v1305, 0
  %v1399 = vsel %vm514, %v1306, 0
  %v1402 = vsel %vm514, %v1307, 0
  %v1405 = vsel %vm514, %v1308, 0
  %v1408 = vsel %vm611, %v1310, 0
  %1410 = vmatpush.bf16.msra.mxu0 0
  %1411 = vmatpush.bf16.msra.mxu0 0
  %1412 = vmatpush.bf16.msra.mxu0 0
  %1413 = vmatpush.bf16.msra.mxu0 0
  %1414 = vmatpush.bf16.msra.mxu0 0
  %1415 = vmatpush.bf16.msra.mxu0 0
  %1416 = vmatpush.bf16.msra.mxu0 0
  %1417 = vmatpush.bf16.msra.mxu0 %v1408
  %1418 = vmatmul.bf16.gmra.mxu0 %v1312
  %v1419 = vpop.f32.mrf.mxu0
  %v1420 = vadd.f32 0.0, %v1419
  %v1421 = vpop.f32.mrf.mxu0
  %v1422 = vadd.f32 0.0, %v1421
  %1423 = vmatmul.bf16.gmra.mxu0 %v1315
  %v1424 = vpop.f32.mrf.mxu0
  %v1425 = vadd.f32 0.0, %v1424
  %v1426 = vpop.f32.mrf.mxu0
  %v1427 = vadd.f32 0.0, %v1426
  %1428 = vmatmul.bf16.gmra.mxu0 %v1318
  %v1429 = vpop.f32.mrf.mxu0
  %v1430 = vadd.f32 0.0, %v1429
  %v1431 = vpop.f32.mrf.mxu0
  %v1432 = vadd.f32 0.0, %v1431
  %1433 = vmatmul.bf16.gmra.mxu0 %v1321
  %v1434 = vpop.f32.mrf.mxu0
  %v1435 = vadd.f32 0.0, %v1434
  %v1436 = vpop.f32.mrf.mxu0
  %v1437 = vadd.f32 0.0, %v1436
  %1438 = vmatmul.bf16.gmra.mxu0 %v1324
  %v1439 = vpop.f32.mrf.mxu0
  %v1440 = vadd.f32 0.0, %v1439
  %v1441 = vpop.f32.mrf.mxu0
  %v1442 = vadd.f32 0.0, %v1441
  %1443 = vmatmul.bf16.gmra.mxu0 %v1327
  %v1444 = vpop.f32.mrf.mxu0
  %v1445 = vadd.f32 0.0, %v1444
  %v1446 = vpop.f32.mrf.mxu0
  %v1447 = vadd.f32 0.0, %v1446
  %1448 = vmatmul.bf16.gmra.mxu0 %v1330
  %v1449 = vpop.f32.mrf.mxu0
  %v1450 = vadd.f32 0.0, %v1449
  %v1451 = vpop.f32.mrf.mxu0
  %v1452 = vadd.f32 0.0, %v1451
  %1453 = vmatmul.bf16.gmra.mxu0 %v1333
  %v1454 = vpop.f32.mrf.mxu0
  %v1455 = vadd.f32 0.0, %v1454
  %v1456 = vpop.f32.mrf.mxu0
  %v1457 = vadd.f32 0.0, %v1456
  %1458 = vmatmul.bf16.gmra.mxu0 %v1336
  %v1459 = vpop.f32.mrf.mxu0
  %v1460 = vadd.f32 0.0, %v1459
  %v1461 = vpop.f32.mrf.mxu0
  %v1462 = vadd.f32 0.0, %v1461
  %1463 = vmatmul.bf16.gmra.mxu0 %v1339
  %v1464 = vpop.f32.mrf.mxu0
  %v1465 = vadd.f32 0.0, %v1464
  %v1466 = vpop.f32.mrf.mxu0
  %v1467 = vadd.f32 0.0, %v1466
  %1468 = vmatmul.bf16.gmra.mxu0 %v1342
  %v1469 = vpop.f32.mrf.mxu0
  %v1470 = vadd.f32 0.0, %v1469
  %v1471 = vpop.f32.mrf.mxu0
  %v1472 = vadd.f32 0.0, %v1471
  %1473 = vmatmul.bf16.gmra.mxu0 %v1345
  %v1474 = vpop.f32.mrf.mxu0
  %v1475 = vadd.f32 0.0, %v1474
  %v1476 = vpop.f32.mrf.mxu0
  %v1477 = vadd.f32 0.0, %v1476
  %1478 = vmatmul.bf16.gmra.mxu0 %v1348
  %v1479 = vpop.f32.mrf.mxu0
  %v1480 = vadd.f32 0.0, %v1479
  %v1481 = vpop.f32.mrf.mxu0
  %v1482 = vadd.f32 0.0, %v1481
  %1483 = vmatmul.bf16.gmra.mxu0 %v1351
  %v1484 = vpop.f32.mrf.mxu0
  %v1485 = vadd.f32 0.0, %v1484
  %v1486 = vpop.f32.mrf.mxu0
  %v1487 = vadd.f32 0.0, %v1486
  %1488 = vmatmul.bf16.gmra.mxu0 %v1354
  %v1489 = vpop.f32.mrf.mxu0
  %v1490 = vadd.f32 0.0, %v1489
  %v1491 = vpop.f32.mrf.mxu0
  %v1492 = vadd.f32 0.0, %v1491
  %1493 = vmatmul.bf16.gmra.mxu0 %v1357
  %v1494 = vpop.f32.mrf.mxu0
  %v1495 = vadd.f32 0.0, %v1494
  %v1496 = vpop.f32.mrf.mxu0
  %v1497 = vadd.f32 0.0, %v1496
  %1498 = vmatmul.bf16.gmra.mxu0 %v1360
  %v1499 = vpop.f32.mrf.mxu0
  %v1500 = vadd.f32 0.0, %v1499
  %v1501 = vpop.f32.mrf.mxu0
  %v1502 = vadd.f32 0.0, %v1501
  %1503 = vmatmul.bf16.gmra.mxu0 %v1363
  %v1504 = vpop.f32.mrf.mxu0
  %v1505 = vadd.f32 0.0, %v1504
  %v1506 = vpop.f32.mrf.mxu0
  %v1507 = vadd.f32 0.0, %v1506
  %1508 = vmatmul.bf16.gmra.mxu0 %v1366
  %v1509 = vpop.f32.mrf.mxu0
  %v1510 = vadd.f32 0.0, %v1509
  %v1511 = vpop.f32.mrf.mxu0
  %v1512 = vadd.f32 0.0, %v1511
  %1513 = vmatmul.bf16.gmra.mxu0 %v1369
  %v1514 = vpop.f32.mrf.mxu0
  %v1515 = vadd.f32 0.0, %v1514
  %v1516 = vpop.f32.mrf.mxu0
  %v1517 = vadd.f32 0.0, %v1516
  %1518 = vmatmul.bf16.gmra.mxu0 %v1372
  %v1519 = vpop.f32.mrf.mxu0
  %v1520 = vadd.f32 0.0, %v1519
  %v1521 = vpop.f32.mrf.mxu0
  %v1522 = vadd.f32 0.0, %v1521
  %1523 = vmatmul.bf16.gmra.mxu0 %v1375
  %v1524 = vpop.f32.mrf.mxu0
  %v1525 = vadd.f32 0.0, %v1524
  %v1526 = vpop.f32.mrf.mxu0
  %v1527 = vadd.f32 0.0, %v1526
  %1528 = vmatmul.bf16.gmra.mxu0 %v1378
  %v1529 = vpop.f32.mrf.mxu0
  %v1530 = vadd.f32 0.0, %v1529
  %v1531 = vpop.f32.mrf.mxu0
  %v1532 = vadd.f32 0.0, %v1531
  %1533 = vmatmul.bf16.gmra.mxu0 %v1381
  %v1534 = vpop.f32.mrf.mxu0
  %v1535 = vadd.f32 0.0, %v1534
  %v1536 = vpop.f32.mrf.mxu0
  %v1537 = vadd.f32 0.0, %v1536
  %1538 = vmatmul.bf16.gmra.mxu0 %v1384
  %v1539 = vpop.f32.mrf.mxu0
  %v1540 = vadd.f32 0.0, %v1539
  %v1541 = vpop.f32.mrf.mxu0
  %v1542 = vadd.f32 0.0, %v1541
  %1543 = vmatmul.bf16.gmra.mxu0 %v1387
  %v1544 = vpop.f32.mrf.mxu0
  %v1545 = vadd.f32 0.0, %v1544
  %v1546 = vpop.f32.mrf.mxu0
  %v1547 = vadd.f32 0.0, %v1546
  %1548 = vmatmul.bf16.gmra.mxu0 %v1390
  %v1549 = vpop.f32.mrf.mxu0
  %v1550 = vadd.f32 0.0, %v1549
  %v1551 = vpop.f32.mrf.mxu0
  %v1552 = vadd.f32 0.0, %v1551
  %1553 = vmatmul.bf16.gmra.mxu0 %v1393
  %v1554 = vpop.f32.mrf.mxu0
  %v1555 = vadd.f32 0.0, %v1554
  %v1556 = vpop.f32.mrf.mxu0
  %v1557 = vadd.f32 0.0, %v1556
  %1558 = vmatmul.bf16.gmra.mxu0 %v1396
  %v1559 = vpop.f32.mrf.mxu0
  %v1560 = vadd.f32 0.0, %v1559
  %v1561 = vpop.f32.mrf.mxu0
  %v1562 = vadd.f32 0.0, %v1561
  %1563 = vmatmul.bf16.gmra.mxu0 %v1399
  %v1564 = vpop.f32.mrf.mxu0
  %v1565 = vadd.f32 0.0, %v1564
  %v1566 = vpop.f32.mrf.mxu0
  %v1567 = vadd.f32 0.0, %v1566
  %1568 = vmatmul.bf16.gmra.mxu0 %v1402
  %v1569 = vpop.f32.mrf.mxu0
  %v1570 = vadd.f32 0.0, %v1569
  %v1571 = vpop.f32.mrf.mxu0
  %v1572 = vadd.f32 0.0, %v1571
  %1573 = vmatmul.bf16.gmra.mxu0 %v1405
  %v1574 = vpop.f32.mrf.mxu0
  %v1575 = vadd.f32 0.0, %v1574
  %v1576 = vpop.f32.mrf.mxu0
  %v1577 = vadd.f32 0.0, %v1576
  %1578 = vdwg.mxu0
  %v1579 = vadd.f32 %v893, %v1420
  %v1580 = vadd.f32 %v895, %v1422
  %v1581 = vadd.f32 %v898, %v1425
  %v1582 = vadd.f32 %v900, %v1427
  %v1583 = vadd.f32 %v903, %v1430
  %v1584 = vadd.f32 %v905, %v1432
  %v1585 = vadd.f32 %v908, %v1435
  %v1586 = vadd.f32 %v910, %v1437
  %v1587 = vadd.f32 %v913, %v1440
  %v1588 = vadd.f32 %v915, %v1442
  %v1589 = vadd.f32 %v918, %v1445
  %v1590 = vadd.f32 %v920, %v1447
  %v1591 = vadd.f32 %v923, %v1450
  %v1592 = vadd.f32 %v925, %v1452
  %v1593 = vadd.f32 %v928, %v1455
  %v1594 = vadd.f32 %v930, %v1457
  %v1595 = vadd.f32 %v933, %v1460
  %v1596 = vadd.f32 %v935, %v1462
  %v1597 = vadd.f32 %v938, %v1465
  %v1598 = vadd.f32 %v940, %v1467
  %v1599 = vadd.f32 %v943, %v1470
  %v1600 = vadd.f32 %v945, %v1472
  %v1601 = vadd.f32 %v948, %v1475
  %v1602 = vadd.f32 %v950, %v1477
  %v1603 = vadd.f32 %v953, %v1480
  %v1604 = vadd.f32 %v955, %v1482
  %v1605 = vadd.f32 %v958, %v1485
  %v1606 = vadd.f32 %v960, %v1487
  %v1607 = vadd.f32 %v963, %v1490
  %v1608 = vadd.f32 %v965, %v1492
  %v1609 = vadd.f32 %v968, %v1495
  %v1610 = vadd.f32 %v970, %v1497
  %v1611 = vadd.f32 %v973, %v1500
  %v1612 = vadd.f32 %v975, %v1502
  %v1613 = vadd.f32 %v978, %v1505
  %v1614 = vadd.f32 %v980, %v1507
  %v1615 = vadd.f32 %v983, %v1510
  %v1616 = vadd.f32 %v985, %v1512
  %v1617 = vadd.f32 %v988, %v1515
  %v1618 = vadd.f32 %v990, %v1517
  %v1619 = vadd.f32 %v993, %v1520
  %v1620 = vadd.f32 %v995, %v1522
  %v1621 = vadd.f32 %v998, %v1525
  %v1622 = vadd.f32 %v1000, %v1527
  %v1623 = vadd.f32 %v1003, %v1530
  %v1624 = vadd.f32 %v1005, %v1532
  %v1625 = vadd.f32 %v1008, %v1535
  %v1626 = vadd.f32 %v1010, %v1537
  %v1627 = vadd.f32 %v1013, %v1540
  %v1628 = vadd.f32 %v1015, %v1542
  %v1629 = vadd.f32 %v1018, %v1545
  %v1630 = vadd.f32 %v1020, %v1547
  %v1631 = vadd.f32 %v1023, %v1550
  %v1632 = vadd.f32 %v1025, %v1552
  %v1633 = vadd.f32 %v1028, %v1555
  %v1634 = vadd.f32 %v1030, %v1557
  %v1635 = vadd.f32 %v1033, %v1560
  %v1636 = vadd.f32 %v1035, %v1562
  %v1637 = vadd.f32 %v1038, %v1565
  %v1638 = vadd.f32 %v1040, %v1567
  %v1639 = vadd.f32 %v1043, %v1570
  %v1640 = vadd.f32 %v1045, %v1572
  %v1641 = vadd.f32 %v1048, %v1575
  %v1642 = vadd.f32 %v1050, %v1577
  %v1643 = vpack.c.bf16 %v67, %v66
  %v1644 = vpack.c.bf16 %v121, %v120
  %s1645 = scalar_lea.vmem %s1, 6
  %v1646 = vld [vmem:[%s1645] sm:$0x3]
  %v1648 = vsel %vm514, %v1643, 0
  %v1651 = vsel %vm514, %v1644, 0
  %v1654 = vsel %vm611, %v1646, 0
  %1656 = vmatpush.bf16.msra.mxu0 0
  %1657 = vmatpush.bf16.msra.mxu0 0
  %1658 = vmatpush.bf16.msra.mxu0 0
  %1659 = vmatpush.bf16.msra.mxu0 0
  %1660 = vmatpush.bf16.msra.mxu0 0
  %1661 = vmatpush.bf16.msra.mxu0 0
  %1662 = vmatpush.bf16.msra.mxu0 0
  %1663 = vmatpush.bf16.msra.mxu0 %v1654
  %1664 = vmatmul.bf16.gmra.mxu0 %v788
  %v1665 = vpop.f32.mrf.mxu0
  %v1666 = vadd.f32 0.0, %v1665
  %v1667 = vpop.f32.mrf.mxu0
  %v1668 = vadd.f32 0.0, %v1667
  %1669 = vmatmul.bf16.gmra.mxu0 %v791
  %v1670 = vpop.f32.mrf.mxu0
  %v1671 = vadd.f32 0.0, %v1670
  %v1672 = vpop.f32.mrf.mxu0
  %v1673 = vadd.f32 0.0, %v1672
  %1674 = vmatmul.bf16.gmra.mxu0 %v794
  %v1675 = vpop.f32.mrf.mxu0
  %v1676 = vadd.f32 0.0, %v1675
  %v1677 = vpop.f32.mrf.mxu0
  %v1678 = vadd.f32 0.0, %v1677
  %1679 = vmatmul.bf16.gmra.mxu0 %v797
  %v1680 = vpop.f32.mrf.mxu0
  %v1681 = vadd.f32 0.0, %v1680
  %v1682 = vpop.f32.mrf.mxu0
  %v1683 = vadd.f32 0.0, %v1682
  %1684 = vmatmul.bf16.gmra.mxu0 %v800
  %v1685 = vpop.f32.mrf.mxu0
  %v1686 = vadd.f32 0.0, %v1685
  %v1687 = vpop.f32.mrf.mxu0
  %v1688 = vadd.f32 0.0, %v1687
  %1689 = vmatmul.bf16.gmra.mxu0 %v803
  %v1690 = vpop.f32.mrf.mxu0
  %v1691 = vadd.f32 0.0, %v1690
  %v1692 = vpop.f32.mrf.mxu0
  %v1693 = vadd.f32 0.0, %v1692
  %1694 = vmatmul.bf16.gmra.mxu0 %v806
  %v1695 = vpop.f32.mrf.mxu0
  %v1696 = vadd.f32 0.0, %v1695
  %v1697 = vpop.f32.mrf.mxu0
  %v1698 = vadd.f32 0.0, %v1697
  %1699 = vmatmul.bf16.gmra.mxu0 %v809
  %v1700 = vpop.f32.mrf.mxu0
  %v1701 = vadd.f32 0.0, %v1700
  %v1702 = vpop.f32.mrf.mxu0
  %v1703 = vadd.f32 0.0, %v1702
  %1704 = vmatmul.bf16.gmra.mxu0 %v812
  %v1705 = vpop.f32.mrf.mxu0
  %v1706 = vadd.f32 0.0, %v1705
  %v1707 = vpop.f32.mrf.mxu0
  %v1708 = vadd.f32 0.0, %v1707
  %1709 = vmatmul.bf16.gmra.mxu0 %v815
  %v1710 = vpop.f32.mrf.mxu0
  %v1711 = vadd.f32 0.0, %v1710
  %v1712 = vpop.f32.mrf.mxu0
  %v1713 = vadd.f32 0.0, %v1712
  %1714 = vmatmul.bf16.gmra.mxu0 %v818
  %v1715 = vpop.f32.mrf.mxu0
  %v1716 = vadd.f32 0.0, %v1715
  %v1717 = vpop.f32.mrf.mxu0
  %v1718 = vadd.f32 0.0, %v1717
  %1719 = vmatmul.bf16.gmra.mxu0 %v821
  %v1720 = vpop.f32.mrf.mxu0
  %v1721 = vadd.f32 0.0, %v1720
  %v1722 = vpop.f32.mrf.mxu0
  %v1723 = vadd.f32 0.0, %v1722
  %1724 = vmatmul.bf16.gmra.mxu0 %v824
  %v1725 = vpop.f32.mrf.mxu0
  %v1726 = vadd.f32 0.0, %v1725
  %v1727 = vpop.f32.mrf.mxu0
  %v1728 = vadd.f32 0.0, %v1727
  %1729 = vmatmul.bf16.gmra.mxu0 %v827
  %v1730 = vpop.f32.mrf.mxu0
  %v1731 = vadd.f32 0.0, %v1730
  %v1732 = vpop.f32.mrf.mxu0
  %v1733 = vadd.f32 0.0, %v1732
  %1734 = vmatmul.bf16.gmra.mxu0 %v830
  %v1735 = vpop.f32.mrf.mxu0
  %v1736 = vadd.f32 0.0, %v1735
  %v1737 = vpop.f32.mrf.mxu0
  %v1738 = vadd.f32 0.0, %v1737
  %1739 = vmatmul.bf16.gmra.mxu0 %v1648
  %v1740 = vpop.f32.mrf.mxu0
  %v1741 = vadd.f32 0.0, %v1740
  %v1742 = vpop.f32.mrf.mxu0
  %v1743 = vadd.f32 0.0, %v1742
  %1744 = vmatmul.bf16.gmra.mxu0 %v836
  %v1745 = vpop.f32.mrf.mxu0
  %v1746 = vadd.f32 0.0, %v1745
  %v1747 = vpop.f32.mrf.mxu0
  %v1748 = vadd.f32 0.0, %v1747
  %1749 = vmatmul.bf16.gmra.mxu0 %v839
  %v1750 = vpop.f32.mrf.mxu0
  %v1751 = vadd.f32 0.0, %v1750
  %v1752 = vpop.f32.mrf.mxu0
  %v1753 = vadd.f32 0.0, %v1752
  %1754 = vmatmul.bf16.gmra.mxu0 %v842
  %v1755 = vpop.f32.mrf.mxu0
  %v1756 = vadd.f32 0.0, %v1755
  %v1757 = vpop.f32.mrf.mxu0
  %v1758 = vadd.f32 0.0, %v1757
  %1759 = vmatmul.bf16.gmra.mxu0 %v845
  %v1760 = vpop.f32.mrf.mxu0
  %v1761 = vadd.f32 0.0, %v1760
  %v1762 = vpop.f32.mrf.mxu0
  %v1763 = vadd.f32 0.0, %v1762
  %1764 = vmatmul.bf16.gmra.mxu0 %v848
  %v1765 = vpop.f32.mrf.mxu0
  %v1766 = vadd.f32 0.0, %v1765
  %v1767 = vpop.f32.mrf.mxu0
  %v1768 = vadd.f32 0.0, %v1767
  %1769 = vmatmul.bf16.gmra.mxu0 %v851
  %v1770 = vpop.f32.mrf.mxu0
  %v1771 = vadd.f32 0.0, %v1770
  %v1772 = vpop.f32.mrf.mxu0
  %v1773 = vadd.f32 0.0, %v1772
  %1774 = vmatmul.bf16.gmra.mxu0 %v854
  %v1775 = vpop.f32.mrf.mxu0
  %v1776 = vadd.f32 0.0, %v1775
  %v1777 = vpop.f32.mrf.mxu0
  %v1778 = vadd.f32 0.0, %v1777
  %1779 = vmatmul.bf16.gmra.mxu0 %v857
  %v1780 = vpop.f32.mrf.mxu0
  %v1781 = vadd.f32 0.0, %v1780
  %v1782 = vpop.f32.mrf.mxu0
  %v1783 = vadd.f32 0.0, %v1782
  %1784 = vmatmul.bf16.gmra.mxu0 %v860
  %v1785 = vpop.f32.mrf.mxu0
  %v1786 = vadd.f32 0.0, %v1785
  %v1787 = vpop.f32.mrf.mxu0
  %v1788 = vadd.f32 0.0, %v1787
  %1789 = vmatmul.bf16.gmra.mxu0 %v863
  %v1790 = vpop.f32.mrf.mxu0
  %v1791 = vadd.f32 0.0, %v1790
  %v1792 = vpop.f32.mrf.mxu0
  %v1793 = vadd.f32 0.0, %v1792
  %1794 = vmatmul.bf16.gmra.mxu0 %v866
  %v1795 = vpop.f32.mrf.mxu0
  %v1796 = vadd.f32 0.0, %v1795
  %v1797 = vpop.f32.mrf.mxu0
  %v1798 = vadd.f32 0.0, %v1797
  %1799 = vmatmul.bf16.gmra.mxu0 %v869
  %v1800 = vpop.f32.mrf.mxu0
  %v1801 = vadd.f32 0.0, %v1800
  %v1802 = vpop.f32.mrf.mxu0
  %v1803 = vadd.f32 0.0, %v1802
  %1804 = vmatmul.bf16.gmra.mxu0 %v872
  %v1805 = vpop.f32.mrf.mxu0
  %v1806 = vadd.f32 0.0, %v1805
  %v1807 = vpop.f32.mrf.mxu0
  %v1808 = vadd.f32 0.0, %v1807
  %1809 = vmatmul.bf16.gmra.mxu0 %v875
  %v1810 = vpop.f32.mrf.mxu0
  %v1811 = vadd.f32 0.0, %v1810
  %v1812 = vpop.f32.mrf.mxu0
  %v1813 = vadd.f32 0.0, %v1812
  %1814 = vmatmul.bf16.gmra.mxu0 %v878
  %v1815 = vpop.f32.mrf.mxu0
  %v1816 = vadd.f32 0.0, %v1815
  %v1817 = vpop.f32.mrf.mxu0
  %v1818 = vadd.f32 0.0, %v1817
  %1819 = vmatmul.bf16.gmra.mxu0 %v1651
  %v1820 = vpop.f32.mrf.mxu0
  %v1821 = vadd.f32 0.0, %v1820
  %v1822 = vpop.f32.mrf.mxu0
  %v1823 = vadd.f32 0.0, %v1822
  %1824 = vdwg.mxu0
  %v1825 = vadd.f32 %v1579, %v1666
  %v1826 = vadd.f32 %v1580, %v1668
  %v1827 = vadd.f32 %v1581, %v1671
  %v1828 = vadd.f32 %v1582, %v1673
  %v1829 = vadd.f32 %v1583, %v1676
  %v1830 = vadd.f32 %v1584, %v1678
  %v1831 = vadd.f32 %v1585, %v1681
  %v1832 = vadd.f32 %v1586, %v1683
  %v1833 = vadd.f32 %v1587, %v1686
  %v1834 = vadd.f32 %v1588, %v1688
  %v1835 = vadd.f32 %v1589, %v1691
  %v1836 = vadd.f32 %v1590, %v1693
  %v1837 = vadd.f32 %v1591, %v1696
  %v1838 = vadd.f32 %v1592, %v1698
  %v1839 = vadd.f32 %v1593, %v1701
  %v1840 = vadd.f32 %v1594, %v1703
  %v1841 = vadd.f32 %v1595, %v1706
  %v1842 = vadd.f32 %v1596, %v1708
  %v1843 = vadd.f32 %v1597, %v1711
  %v1844 = vadd.f32 %v1598, %v1713
  %v1845 = vadd.f32 %v1599, %v1716
  %v1846 = vadd.f32 %v1600, %v1718
  %v1847 = vadd.f32 %v1601, %v1721
  %v1848 = vadd.f32 %v1602, %v1723
  %v1849 = vadd.f32 %v1603, %v1726
  %v1850 = vadd.f32 %v1604, %v1728
  %v1851 = vadd.f32 %v1605, %v1731
  %v1852 = vadd.f32 %v1606, %v1733
  %v1853 = vadd.f32 %v1607, %v1736
  %v1854 = vadd.f32 %v1608, %v1738
  %v1855 = vadd.f32 %v1609, %v1741
  %v1856 = vadd.f32 %v1610, %v1743
  %v1857 = vadd.f32 %v1611, %v1746
  %v1858 = vadd.f32 %v1612, %v1748
  %v1859 = vadd.f32 %v1613, %v1751
  %v1860 = vadd.f32 %v1614, %v1753
  %v1861 = vadd.f32 %v1615, %v1756
  %v1862 = vadd.f32 %v1616, %v1758
  %v1863 = vadd.f32 %v1617, %v1761
  %v1864 = vadd.f32 %v1618, %v1763
  %v1865 = vadd.f32 %v1619, %v1766
  %v1866 = vadd.f32 %v1620, %v1768
  %v1867 = vadd.f32 %v1621, %v1771
  %v1868 = vadd.f32 %v1622, %v1773
  %v1869 = vadd.f32 %v1623, %v1776
  %v1870 = vadd.f32 %v1624, %v1778
  %v1871 = vadd.f32 %v1625, %v1781
  %v1872 = vadd.f32 %v1626, %v1783
  %v1873 = vadd.f32 %v1627, %v1786
  %v1874 = vadd.f32 %v1628, %v1788
  %v1875 = vadd.f32 %v1629, %v1791
  %v1876 = vadd.f32 %v1630, %v1793
  %v1877 = vadd.f32 %v1631, %v1796
  %v1878 = vadd.f32 %v1632, %v1798
  %v1879 = vadd.f32 %v1633, %v1801
  %v1880 = vadd.f32 %v1634, %v1803
  %v1881 = vadd.f32 %v1635, %v1806
  %v1882 = vadd.f32 %v1636, %v1808
  %v1883 = vadd.f32 %v1637, %v1811
  %v1884 = vadd.f32 %v1638, %v1813
  %v1885 = vadd.f32 %v1639, %v1816
  %v1886 = vadd.f32 %v1640, %v1818
  %v1887 = vadd.f32 %v1641, %v1821
  %v1888 = vadd.f32 %v1642, %v1823
  %v1895 = vrot.slane %v66, 1
  %v1896 = vrot.slane %v67, 1
  %v1897 = vsel %vm255, %v1895, %v1896
  %v1898 = vrot.slane %v68, 1
  %v1899 = vsel %vm255, %v1896, %v1898
  %v1900 = vrot.slane %v120, 1
  %v1901 = vrot.slane %v121, 1
  %v1902 = vsel %vm255, %v1900, %v1901
  %v1903 = vrot.slane %v122, 1
  %v1904 = vsel %vm255, %v1901, %v1903
  %v1909 = vpack.c.bf16 %v1899, %v1897
  %v1910 = vpack.c.bf16 %v1904, %v1902
  %s1911 = scalar_lea.vmem %s1, 8
  %v1912 = vld [vmem:[%s1911] sm:$0x3]
  %v1914 = vsel %vm514, %v1909, 0
  %v1917 = vsel %vm514, %v1910, 0
  %v1920 = vsel %vm611, %v1912, 0
  %1922 = vmatpush.bf16.msra.mxu0 0
  %1923 = vmatpush.bf16.msra.mxu0 0
  %1924 = vmatpush.bf16.msra.mxu0 0
  %1925 = vmatpush.bf16.msra.mxu0 0
  %1926 = vmatpush.bf16.msra.mxu0 0
  %1927 = vmatpush.bf16.msra.mxu0 0
  %1928 = vmatpush.bf16.msra.mxu0 0
  %1929 = vmatpush.bf16.msra.mxu0 %v1920
  %1930 = vmatmul.bf16.gmra.mxu0 %v519
  %v1931 = vpop.f32.mrf.mxu0
  %v1932 = vadd.f32 0.0, %v1931
  %v1933 = vpop.f32.mrf.mxu0
  %v1934 = vadd.f32 0.0, %v1933
  %1935 = vmatmul.bf16.gmra.mxu0 %v522
  %v1936 = vpop.f32.mrf.mxu0
  %v1937 = vadd.f32 0.0, %v1936
  %v1938 = vpop.f32.mrf.mxu0
  %v1939 = vadd.f32 0.0, %v1938
  %1940 = vmatmul.bf16.gmra.mxu0 %v525
  %v1941 = vpop.f32.mrf.mxu0
  %v1942 = vadd.f32 0.0, %v1941
  %v1943 = vpop.f32.mrf.mxu0
  %v1944 = vadd.f32 0.0, %v1943
  %1945 = vmatmul.bf16.gmra.mxu0 %v528
  %v1946 = vpop.f32.mrf.mxu0
  %v1947 = vadd.f32 0.0, %v1946
  %v1948 = vpop.f32.mrf.mxu0
  %v1949 = vadd.f32 0.0, %v1948
  %1950 = vmatmul.bf16.gmra.mxu0 %v531
  %v1951 = vpop.f32.mrf.mxu0
  %v1952 = vadd.f32 0.0, %v1951
  %v1953 = vpop.f32.mrf.mxu0
  %v1954 = vadd.f32 0.0, %v1953
  %1955 = vmatmul.bf16.gmra.mxu0 %v534
  %v1956 = vpop.f32.mrf.mxu0
  %v1957 = vadd.f32 0.0, %v1956
  %v1958 = vpop.f32.mrf.mxu0
  %v1959 = vadd.f32 0.0, %v1958
  %1960 = vmatmul.bf16.gmra.mxu0 %v537
  %v1961 = vpop.f32.mrf.mxu0
  %v1962 = vadd.f32 0.0, %v1961
  %v1963 = vpop.f32.mrf.mxu0
  %v1964 = vadd.f32 0.0, %v1963
  %1965 = vmatmul.bf16.gmra.mxu0 %v540
  %v1966 = vpop.f32.mrf.mxu0
  %v1967 = vadd.f32 0.0, %v1966
  %v1968 = vpop.f32.mrf.mxu0
  %v1969 = vadd.f32 0.0, %v1968
  %1970 = vmatmul.bf16.gmra.mxu0 %v543
  %v1971 = vpop.f32.mrf.mxu0
  %v1972 = vadd.f32 0.0, %v1971
  %v1973 = vpop.f32.mrf.mxu0
  %v1974 = vadd.f32 0.0, %v1973
  %1975 = vmatmul.bf16.gmra.mxu0 %v546
  %v1976 = vpop.f32.mrf.mxu0
  %v1977 = vadd.f32 0.0, %v1976
  %v1978 = vpop.f32.mrf.mxu0
  %v1979 = vadd.f32 0.0, %v1978
  %1980 = vmatmul.bf16.gmra.mxu0 %v549
  %v1981 = vpop.f32.mrf.mxu0
  %v1982 = vadd.f32 0.0, %v1981
  %v1983 = vpop.f32.mrf.mxu0
  %v1984 = vadd.f32 0.0, %v1983
  %1985 = vmatmul.bf16.gmra.mxu0 %v552
  %v1986 = vpop.f32.mrf.mxu0
  %v1987 = vadd.f32 0.0, %v1986
  %v1988 = vpop.f32.mrf.mxu0
  %v1989 = vadd.f32 0.0, %v1988
  %1990 = vmatmul.bf16.gmra.mxu0 %v555
  %v1991 = vpop.f32.mrf.mxu0
  %v1992 = vadd.f32 0.0, %v1991
  %v1993 = vpop.f32.mrf.mxu0
  %v1994 = vadd.f32 0.0, %v1993
  %1995 = vmatmul.bf16.gmra.mxu0 %v558
  %v1996 = vpop.f32.mrf.mxu0
  %v1997 = vadd.f32 0.0, %v1996
  %v1998 = vpop.f32.mrf.mxu0
  %v1999 = vadd.f32 0.0, %v1998
  %2000 = vmatmul.bf16.gmra.mxu0 %v561
  %v2001 = vpop.f32.mrf.mxu0
  %v2002 = vadd.f32 0.0, %v2001
  %v2003 = vpop.f32.mrf.mxu0
  %v2004 = vadd.f32 0.0, %v2003
  %2005 = vmatmul.bf16.gmra.mxu0 %v1914
  %v2006 = vpop.f32.mrf.mxu0
  %v2007 = vadd.f32 0.0, %v2006
  %v2008 = vpop.f32.mrf.mxu0
  %v2009 = vadd.f32 0.0, %v2008
  %2010 = vmatmul.bf16.gmra.mxu0 %v567
  %v2011 = vpop.f32.mrf.mxu0
  %v2012 = vadd.f32 0.0, %v2011
  %v2013 = vpop.f32.mrf.mxu0
  %v2014 = vadd.f32 0.0, %v2013
  %2015 = vmatmul.bf16.gmra.mxu0 %v570
  %v2016 = vpop.f32.mrf.mxu0
  %v2017 = vadd.f32 0.0, %v2016
  %v2018 = vpop.f32.mrf.mxu0
  %v2019 = vadd.f32 0.0, %v2018
  %2020 = vmatmul.bf16.gmra.mxu0 %v573
  %v2021 = vpop.f32.mrf.mxu0
  %v2022 = vadd.f32 0.0, %v2021
  %v2023 = vpop.f32.mrf.mxu0
  %v2024 = vadd.f32 0.0, %v2023
  %2025 = vmatmul.bf16.gmra.mxu0 %v576
  %v2026 = vpop.f32.mrf.mxu0
  %v2027 = vadd.f32 0.0, %v2026
  %v2028 = vpop.f32.mrf.mxu0
  %v2029 = vadd.f32 0.0, %v2028
  %2030 = vmatmul.bf16.gmra.mxu0 %v579
  %v2031 = vpop.f32.mrf.mxu0
  %v2032 = vadd.f32 0.0, %v2031
  %v2033 = vpop.f32.mrf.mxu0
  %v2034 = vadd.f32 0.0, %v2033
  %2035 = vmatmul.bf16.gmra.mxu0 %v582
  %v2036 = vpop.f32.mrf.mxu0
  %v2037 = vadd.f32 0.0, %v2036
  %v2038 = vpop.f32.mrf.mxu0
  %v2039 = vadd.f32 0.0, %v2038
  %2040 = vmatmul.bf16.gmra.mxu0 %v585
  %v2041 = vpop.f32.mrf.mxu0
  %v2042 = vadd.f32 0.0, %v2041
  %v2043 = vpop.f32.mrf.mxu0
  %v2044 = vadd.f32 0.0, %v2043
  %2045 = vmatmul.bf16.gmra.mxu0 %v588
  %v2046 = vpop.f32.mrf.mxu0
  %v2047 = vadd.f32 0.0, %v2046
  %v2048 = vpop.f32.mrf.mxu0
  %v2049 = vadd.f32 0.0, %v2048
  %2050 = vmatmul.bf16.gmra.mxu0 %v591
  %v2051 = vpop.f32.mrf.mxu0
  %v2052 = vadd.f32 0.0, %v2051
  %v2053 = vpop.f32.mrf.mxu0
  %v2054 = vadd.f32 0.0, %v2053
  %2055 = vmatmul.bf16.gmra.mxu0 %v594
  %v2056 = vpop.f32.mrf.mxu0
  %v2057 = vadd.f32 0.0, %v2056
  %v2058 = vpop.f32.mrf.mxu0
  %v2059 = vadd.f32 0.0, %v2058
  %2060 = vmatmul.bf16.gmra.mxu0 %v597
  %v2061 = vpop.f32.mrf.mxu0
  %v2062 = vadd.f32 0.0, %v2061
  %v2063 = vpop.f32.mrf.mxu0
  %v2064 = vadd.f32 0.0, %v2063
  %2065 = vmatmul.bf16.gmra.mxu0 %v600
  %v2066 = vpop.f32.mrf.mxu0
  %v2067 = vadd.f32 0.0, %v2066
  %v2068 = vpop.f32.mrf.mxu0
  %v2069 = vadd.f32 0.0, %v2068
  %2070 = vmatmul.bf16.gmra.mxu0 %v603
  %v2071 = vpop.f32.mrf.mxu0
  %v2072 = vadd.f32 0.0, %v2071
  %v2073 = vpop.f32.mrf.mxu0
  %v2074 = vadd.f32 0.0, %v2073
  %2075 = vmatmul.bf16.gmra.mxu0 %v606
  %v2076 = vpop.f32.mrf.mxu0
  %v2077 = vadd.f32 0.0, %v2076
  %v2078 = vpop.f32.mrf.mxu0
  %v2079 = vadd.f32 0.0, %v2078
  %2080 = vmatmul.bf16.gmra.mxu0 %v609
  %v2081 = vpop.f32.mrf.mxu0
  %v2082 = vadd.f32 0.0, %v2081
  %v2083 = vpop.f32.mrf.mxu0
  %v2084 = vadd.f32 0.0, %v2083
  %2085 = vmatmul.bf16.gmra.mxu0 %v1917
  %v2086 = vpop.f32.mrf.mxu0
  %v2087 = vadd.f32 0.0, %v2086
  %v2088 = vpop.f32.mrf.mxu0
  %v2089 = vadd.f32 0.0, %v2088
  %2090 = vdwg.mxu0
  %v2091 = vadd.f32 %v1825, %v1932
  %v2092 = vadd.f32 %v1826, %v1934
  %v2093 = vadd.f32 %v1827, %v1937
  %v2094 = vadd.f32 %v1828, %v1939
  %v2095 = vadd.f32 %v1829, %v1942
  %v2096 = vadd.f32 %v1830, %v1944
  %v2097 = vadd.f32 %v1831, %v1947
  %v2098 = vadd.f32 %v1832, %v1949
  %v2099 = vadd.f32 %v1833, %v1952
  %v2100 = vadd.f32 %v1834, %v1954
  %v2101 = vadd.f32 %v1835, %v1957
  %v2102 = vadd.f32 %v1836, %v1959
  %v2103 = vadd.f32 %v1837, %v1962
  %v2104 = vadd.f32 %v1838, %v1964
  %v2105 = vadd.f32 %v1839, %v1967
  %v2106 = vadd.f32 %v1840, %v1969
  %v2107 = vadd.f32 %v1841, %v1972
  %v2108 = vadd.f32 %v1842, %v1974
  %v2109 = vadd.f32 %v1843, %v1977
  %v2110 = vadd.f32 %v1844, %v1979
  %v2111 = vadd.f32 %v1845, %v1982
  %v2112 = vadd.f32 %v1846, %v1984
  %v2113 = vadd.f32 %v1847, %v1987
  %v2114 = vadd.f32 %v1848, %v1989
  %v2115 = vadd.f32 %v1849, %v1992
  %v2116 = vadd.f32 %v1850, %v1994
  %v2117 = vadd.f32 %v1851, %v1997
  %v2118 = vadd.f32 %v1852, %v1999
  %v2119 = vadd.f32 %v1853, %v2002
  %v2120 = vadd.f32 %v1854, %v2004
  %v2121 = vadd.f32 %v1855, %v2007
  %v2122 = vadd.f32 %v1856, %v2009
  %v2123 = vadd.f32 %v1857, %v2012
  %v2124 = vadd.f32 %v1858, %v2014
  %v2125 = vadd.f32 %v1859, %v2017
  %v2126 = vadd.f32 %v1860, %v2019
  %v2127 = vadd.f32 %v1861, %v2022
  %v2128 = vadd.f32 %v1862, %v2024
  %v2129 = vadd.f32 %v1863, %v2027
  %v2130 = vadd.f32 %v1864, %v2029
  %v2131 = vadd.f32 %v1865, %v2032
  %v2132 = vadd.f32 %v1866, %v2034
  %v2133 = vadd.f32 %v1867, %v2037
  %v2134 = vadd.f32 %v1868, %v2039
  %v2135 = vadd.f32 %v1869, %v2042
  %v2136 = vadd.f32 %v1870, %v2044
  %v2137 = vadd.f32 %v1871, %v2047
  %v2138 = vadd.f32 %v1872, %v2049
  %v2139 = vadd.f32 %v1873, %v2052
  %v2140 = vadd.f32 %v1874, %v2054
  %v2141 = vadd.f32 %v1875, %v2057
  %v2142 = vadd.f32 %v1876, %v2059
  %v2143 = vadd.f32 %v1877, %v2062
  %v2144 = vadd.f32 %v1878, %v2064
  %v2145 = vadd.f32 %v1879, %v2067
  %v2146 = vadd.f32 %v1880, %v2069
  %v2147 = vadd.f32 %v1881, %v2072
  %v2148 = vadd.f32 %v1882, %v2074
  %v2149 = vadd.f32 %v1883, %v2077
  %v2150 = vadd.f32 %v1884, %v2079
  %v2151 = vadd.f32 %v1885, %v2082
  %v2152 = vadd.f32 %v1886, %v2084
  %v2153 = vadd.f32 %v1887, %v2087
  %v2154 = vadd.f32 %v1888, %v2089
  %v2155 = vrot.slane %v66, 2
  %v2156 = vrot.slane %v67, 2
  %v2157 = vsel %vm1052, %v2155, %v2156
  %v2158 = vrot.slane %v68, 2
  %v2159 = vsel %vm1052, %v2156, %v2158
  %v2160 = vrot.slane %v120, 2
  %v2161 = vrot.slane %v121, 2
  %v2162 = vsel %vm1052, %v2160, %v2161
  %v2163 = vrot.slane %v122, 2
  %v2164 = vsel %vm1052, %v2161, %v2163
  %v2169 = vpack.c.bf16 %v2159, %v2157
  %v2170 = vpack.c.bf16 %v2164, %v2162
  %s2171 = scalar_lea.vmem %s1, 10
  %v2172 = vld [vmem:[%s2171] sm:$0x3]
  %v2174 = vsel %vm514, %v2169, 0
  %v2177 = vsel %vm514, %v2170, 0
  %v2180 = vsel %vm611, %v2172, 0
  %2182 = vmatpush.bf16.msra.mxu0 0
  %2183 = vmatpush.bf16.msra.mxu0 0
  %2184 = vmatpush.bf16.msra.mxu0 0
  %2185 = vmatpush.bf16.msra.mxu0 0
  %2186 = vmatpush.bf16.msra.mxu0 0
  %2187 = vmatpush.bf16.msra.mxu0 0
  %2188 = vmatpush.bf16.msra.mxu0 0
  %2189 = vmatpush.bf16.msra.mxu0 %v2180
  %2190 = vmatmul.bf16.gmra.mxu0 %v1315
  %v2191 = vpop.f32.mrf.mxu0
  %v2192 = vadd.f32 0.0, %v2191
  %v2193 = vpop.f32.mrf.mxu0
  %v2194 = vadd.f32 0.0, %v2193
  %2195 = vmatmul.bf16.gmra.mxu0 %v1318
  %v2196 = vpop.f32.mrf.mxu0
  %v2197 = vadd.f32 0.0, %v2196
  %v2198 = vpop.f32.mrf.mxu0
  %v2199 = vadd.f32 0.0, %v2198
  %2200 = vmatmul.bf16.gmra.mxu0 %v1321
  %v2201 = vpop.f32.mrf.mxu0
  %v2202 = vadd.f32 0.0, %v2201
  %v2203 = vpop.f32.mrf.mxu0
  %v2204 = vadd.f32 0.0, %v2203
  %2205 = vmatmul.bf16.gmra.mxu0 %v1324
  %v2206 = vpop.f32.mrf.mxu0
  %v2207 = vadd.f32 0.0, %v2206
  %v2208 = vpop.f32.mrf.mxu0
  %v2209 = vadd.f32 0.0, %v2208
  %2210 = vmatmul.bf16.gmra.mxu0 %v1327
  %v2211 = vpop.f32.mrf.mxu0
  %v2212 = vadd.f32 0.0, %v2211
  %v2213 = vpop.f32.mrf.mxu0
  %v2214 = vadd.f32 0.0, %v2213
  %2215 = vmatmul.bf16.gmra.mxu0 %v1330
  %v2216 = vpop.f32.mrf.mxu0
  %v2217 = vadd.f32 0.0, %v2216
  %v2218 = vpop.f32.mrf.mxu0
  %v2219 = vadd.f32 0.0, %v2218
  %2220 = vmatmul.bf16.gmra.mxu0 %v1333
  %v2221 = vpop.f32.mrf.mxu0
  %v2222 = vadd.f32 0.0, %v2221
  %v2223 = vpop.f32.mrf.mxu0
  %v2224 = vadd.f32 0.0, %v2223
  %2225 = vmatmul.bf16.gmra.mxu0 %v1336
  %v2226 = vpop.f32.mrf.mxu0
  %v2227 = vadd.f32 0.0, %v2226
  %v2228 = vpop.f32.mrf.mxu0
  %v2229 = vadd.f32 0.0, %v2228
  %2230 = vmatmul.bf16.gmra.mxu0 %v1339
  %v2231 = vpop.f32.mrf.mxu0
  %v2232 = vadd.f32 0.0, %v2231
  %v2233 = vpop.f32.mrf.mxu0
  %v2234 = vadd.f32 0.0, %v2233
  %2235 = vmatmul.bf16.gmra.mxu0 %v1342
  %v2236 = vpop.f32.mrf.mxu0
  %v2237 = vadd.f32 0.0, %v2236
  %v2238 = vpop.f32.mrf.mxu0
  %v2239 = vadd.f32 0.0, %v2238
  %2240 = vmatmul.bf16.gmra.mxu0 %v1345
  %v2241 = vpop.f32.mrf.mxu0
  %v2242 = vadd.f32 0.0, %v2241
  %v2243 = vpop.f32.mrf.mxu0
  %v2244 = vadd.f32 0.0, %v2243
  %2245 = vmatmul.bf16.gmra.mxu0 %v1348
  %v2246 = vpop.f32.mrf.mxu0
  %v2247 = vadd.f32 0.0, %v2246
  %v2248 = vpop.f32.mrf.mxu0
  %v2249 = vadd.f32 0.0, %v2248
  %2250 = vmatmul.bf16.gmra.mxu0 %v1351
  %v2251 = vpop.f32.mrf.mxu0
  %v2252 = vadd.f32 0.0, %v2251
  %v2253 = vpop.f32.mrf.mxu0
  %v2254 = vadd.f32 0.0, %v2253
  %2255 = vmatmul.bf16.gmra.mxu0 %v1354
  %v2256 = vpop.f32.mrf.mxu0
  %v2257 = vadd.f32 0.0, %v2256
  %v2258 = vpop.f32.mrf.mxu0
  %v2259 = vadd.f32 0.0, %v2258
  %2260 = vmatmul.bf16.gmra.mxu0 %v1357
  %v2261 = vpop.f32.mrf.mxu0
  %v2262 = vadd.f32 0.0, %v2261
  %v2263 = vpop.f32.mrf.mxu0
  %v2264 = vadd.f32 0.0, %v2263
  %2265 = vmatmul.bf16.gmra.mxu0 %v2174
  %v2266 = vpop.f32.mrf.mxu0
  %v2267 = vadd.f32 0.0, %v2266
  %v2268 = vpop.f32.mrf.mxu0
  %v2269 = vadd.f32 0.0, %v2268
  %2270 = vmatmul.bf16.gmra.mxu0 %v1363
  %v2271 = vpop.f32.mrf.mxu0
  %v2272 = vadd.f32 0.0, %v2271
  %v2273 = vpop.f32.mrf.mxu0
  %v2274 = vadd.f32 0.0, %v2273
  %2275 = vmatmul.bf16.gmra.mxu0 %v1366
  %v2276 = vpop.f32.mrf.mxu0
  %v2277 = vadd.f32 0.0, %v2276
  %v2278 = vpop.f32.mrf.mxu0
  %v2279 = vadd.f32 0.0, %v2278
  %2280 = vmatmul.bf16.gmra.mxu0 %v1369
  %v2281 = vpop.f32.mrf.mxu0
  %v2282 = vadd.f32 0.0, %v2281
  %v2283 = vpop.f32.mrf.mxu0
  %v2284 = vadd.f32 0.0, %v2283
  %2285 = vmatmul.bf16.gmra.mxu0 %v1372
  %v2286 = vpop.f32.mrf.mxu0
  %v2287 = vadd.f32 0.0, %v2286
  %v2288 = vpop.f32.mrf.mxu0
  %v2289 = vadd.f32 0.0, %v2288
  %2290 = vmatmul.bf16.gmra.mxu0 %v1375
  %v2291 = vpop.f32.mrf.mxu0
  %v2292 = vadd.f32 0.0, %v2291
  %v2293 = vpop.f32.mrf.mxu0
  %v2294 = vadd.f32 0.0, %v2293
  %2295 = vmatmul.bf16.gmra.mxu0 %v1378
  %v2296 = vpop.f32.mrf.mxu0
  %v2297 = vadd.f32 0.0, %v2296
  %v2298 = vpop.f32.mrf.mxu0
  %v2299 = vadd.f32 0.0, %v2298
  %2300 = vmatmul.bf16.gmra.mxu0 %v1381
  %v2301 = vpop.f32.mrf.mxu0
  %v2302 = vadd.f32 0.0, %v2301
  %v2303 = vpop.f32.mrf.mxu0
  %v2304 = vadd.f32 0.0, %v2303
  %2305 = vmatmul.bf16.gmra.mxu0 %v1384
  %v2306 = vpop.f32.mrf.mxu0
  %v2307 = vadd.f32 0.0, %v2306
  %v2308 = vpop.f32.mrf.mxu0
  %v2309 = vadd.f32 0.0, %v2308
  %2310 = vmatmul.bf16.gmra.mxu0 %v1387
  %v2311 = vpop.f32.mrf.mxu0
  %v2312 = vadd.f32 0.0, %v2311
  %v2313 = vpop.f32.mrf.mxu0
  %v2314 = vadd.f32 0.0, %v2313
  %2315 = vmatmul.bf16.gmra.mxu0 %v1390
  %v2316 = vpop.f32.mrf.mxu0
  %v2317 = vadd.f32 0.0, %v2316
  %v2318 = vpop.f32.mrf.mxu0
  %v2319 = vadd.f32 0.0, %v2318
  %2320 = vmatmul.bf16.gmra.mxu0 %v1393
  %v2321 = vpop.f32.mrf.mxu0
  %v2322 = vadd.f32 0.0, %v2321
  %v2323 = vpop.f32.mrf.mxu0
  %v2324 = vadd.f32 0.0, %v2323
  %2325 = vmatmul.bf16.gmra.mxu0 %v1396
  %v2326 = vpop.f32.mrf.mxu0
  %v2327 = vadd.f32 0.0, %v2326
  %v2328 = vpop.f32.mrf.mxu0
  %v2329 = vadd.f32 0.0, %v2328
  %2330 = vmatmul.bf16.gmra.mxu0 %v1399
  %v2331 = vpop.f32.mrf.mxu0
  %v2332 = vadd.f32 0.0, %v2331
  %v2333 = vpop.f32.mrf.mxu0
  %v2334 = vadd.f32 0.0, %v2333
  %2335 = vmatmul.bf16.gmra.mxu0 %v1402
  %v2336 = vpop.f32.mrf.mxu0
  %v2337 = vadd.f32 0.0, %v2336
  %v2338 = vpop.f32.mrf.mxu0
  %v2339 = vadd.f32 0.0, %v2338
  %2340 = vmatmul.bf16.gmra.mxu0 %v1405
  %v2341 = vpop.f32.mrf.mxu0
  %v2342 = vadd.f32 0.0, %v2341
  %v2343 = vpop.f32.mrf.mxu0
  %v2344 = vadd.f32 0.0, %v2343
  %2345 = vmatmul.bf16.gmra.mxu0 %v2177
  %v2346 = vpop.f32.mrf.mxu0
  %v2347 = vadd.f32 0.0, %v2346
  %v2348 = vpop.f32.mrf.mxu0
  %v2349 = vadd.f32 0.0, %v2348
  %2350 = vdwg.mxu0
  %v2351 = vadd.f32 %v2091, %v2192
  %v2352 = vadd.f32 %v2092, %v2194
  %v2353 = vadd.f32 %v2093, %v2197
  %v2354 = vadd.f32 %v2094, %v2199
  %v2355 = vadd.f32 %v2095, %v2202
  %v2356 = vadd.f32 %v2096, %v2204
  %v2357 = vadd.f32 %v2097, %v2207
  %v2358 = vadd.f32 %v2098, %v2209
  %v2359 = vadd.f32 %v2099, %v2212
  %v2360 = vadd.f32 %v2100, %v2214
  %v2361 = vadd.f32 %v2101, %v2217
  %v2362 = vadd.f32 %v2102, %v2219
  %v2363 = vadd.f32 %v2103, %v2222
  %v2364 = vadd.f32 %v2104, %v2224
  %v2365 = vadd.f32 %v2105, %v2227
  %v2366 = vadd.f32 %v2106, %v2229
  %v2367 = vadd.f32 %v2107, %v2232
  %v2368 = vadd.f32 %v2108, %v2234
  %v2369 = vadd.f32 %v2109, %v2237
  %v2370 = vadd.f32 %v2110, %v2239
  %v2371 = vadd.f32 %v2111, %v2242
  %v2372 = vadd.f32 %v2112, %v2244
  %v2373 = vadd.f32 %v2113, %v2247
  %v2374 = vadd.f32 %v2114, %v2249
  %v2375 = vadd.f32 %v2115, %v2252
  %v2376 = vadd.f32 %v2116, %v2254
  %v2377 = vadd.f32 %v2117, %v2257
  %v2378 = vadd.f32 %v2118, %v2259
  %v2379 = vadd.f32 %v2119, %v2262
  %v2380 = vadd.f32 %v2120, %v2264
  %v2381 = vadd.f32 %v2121, %v2267
  %v2382 = vadd.f32 %v2122, %v2269
  %v2383 = vadd.f32 %v2123, %v2272
  %v2384 = vadd.f32 %v2124, %v2274
  %v2385 = vadd.f32 %v2125, %v2277
  %v2386 = vadd.f32 %v2126, %v2279
  %v2387 = vadd.f32 %v2127, %v2282
  %v2388 = vadd.f32 %v2128, %v2284
  %v2389 = vadd.f32 %v2129, %v2287
  %v2390 = vadd.f32 %v2130, %v2289
  %v2391 = vadd.f32 %v2131, %v2292
  %v2392 = vadd.f32 %v2132, %v2294
  %v2393 = vadd.f32 %v2133, %v2297
  %v2394 = vadd.f32 %v2134, %v2299
  %v2395 = vadd.f32 %v2135, %v2302
  %v2396 = vadd.f32 %v2136, %v2304
  %v2397 = vadd.f32 %v2137, %v2307
  %v2398 = vadd.f32 %v2138, %v2309
  %v2399 = vadd.f32 %v2139, %v2312
  %v2400 = vadd.f32 %v2140, %v2314
  %v2401 = vadd.f32 %v2141, %v2317
  %v2402 = vadd.f32 %v2142, %v2319
  %v2403 = vadd.f32 %v2143, %v2322
  %v2404 = vadd.f32 %v2144, %v2324
  %v2405 = vadd.f32 %v2145, %v2327
  %v2406 = vadd.f32 %v2146, %v2329
  %v2407 = vadd.f32 %v2147, %v2332
  %v2408 = vadd.f32 %v2148, %v2334
  %v2409 = vadd.f32 %v2149, %v2337
  %v2410 = vadd.f32 %v2150, %v2339
  %v2411 = vadd.f32 %v2151, %v2342
  %v2412 = vadd.f32 %v2152, %v2344
  %v2413 = vadd.f32 %v2153, %v2347
  %v2414 = vadd.f32 %v2154, %v2349
  %v2415 = vpack.c.bf16 %v70, %v69
  %v2416 = vpack.c.bf16 %v124, %v123
  %s2417 = scalar_lea.vmem %s1, 12
  %v2418 = vld [vmem:[%s2417] sm:$0x3]
  %v2420 = vsel %vm514, %v2415, 0
  %v2423 = vsel %vm514, %v2416, 0
  %v2426 = vsel %vm611, %v2418, 0
  %2428 = vmatpush.bf16.msra.mxu0 0
  %2429 = vmatpush.bf16.msra.mxu0 0
  %2430 = vmatpush.bf16.msra.mxu0 0
  %2431 = vmatpush.bf16.msra.mxu0 0
  %2432 = vmatpush.bf16.msra.mxu0 0
  %2433 = vmatpush.bf16.msra.mxu0 0
  %2434 = vmatpush.bf16.msra.mxu0 0
  %2435 = vmatpush.bf16.msra.mxu0 %v2426
  %2436 = vmatmul.bf16.gmra.mxu0 %v791
  %v2437 = vpop.f32.mrf.mxu0
  %v2438 = vadd.f32 0.0, %v2437
  %v2439 = vpop.f32.mrf.mxu0
  %v2440 = vadd.f32 0.0, %v2439
  %2441 = vmatmul.bf16.gmra.mxu0 %v794
  %v2442 = vpop.f32.mrf.mxu0
  %v2443 = vadd.f32 0.0, %v2442
  %v2444 = vpop.f32.mrf.mxu0
  %v2445 = vadd.f32 0.0, %v2444
  %2446 = vmatmul.bf16.gmra.mxu0 %v797
  %v2447 = vpop.f32.mrf.mxu0
  %v2448 = vadd.f32 0.0, %v2447
  %v2449 = vpop.f32.mrf.mxu0
  %v2450 = vadd.f32 0.0, %v2449
  %2451 = vmatmul.bf16.gmra.mxu0 %v800
  %v2452 = vpop.f32.mrf.mxu0
  %v2453 = vadd.f32 0.0, %v2452
  %v2454 = vpop.f32.mrf.mxu0
  %v2455 = vadd.f32 0.0, %v2454
  %2456 = vmatmul.bf16.gmra.mxu0 %v803
  %v2457 = vpop.f32.mrf.mxu0
  %v2458 = vadd.f32 0.0, %v2457
  %v2459 = vpop.f32.mrf.mxu0
  %v2460 = vadd.f32 0.0, %v2459
  %2461 = vmatmul.bf16.gmra.mxu0 %v806
  %v2462 = vpop.f32.mrf.mxu0
  %v2463 = vadd.f32 0.0, %v2462
  %v2464 = vpop.f32.mrf.mxu0
  %v2465 = vadd.f32 0.0, %v2464
  %2466 = vmatmul.bf16.gmra.mxu0 %v809
  %v2467 = vpop.f32.mrf.mxu0
  %v2468 = vadd.f32 0.0, %v2467
  %v2469 = vpop.f32.mrf.mxu0
  %v2470 = vadd.f32 0.0, %v2469
  %2471 = vmatmul.bf16.gmra.mxu0 %v812
  %v2472 = vpop.f32.mrf.mxu0
  %v2473 = vadd.f32 0.0, %v2472
  %v2474 = vpop.f32.mrf.mxu0
  %v2475 = vadd.f32 0.0, %v2474
  %2476 = vmatmul.bf16.gmra.mxu0 %v815
  %v2477 = vpop.f32.mrf.mxu0
  %v2478 = vadd.f32 0.0, %v2477
  %v2479 = vpop.f32.mrf.mxu0
  %v2480 = vadd.f32 0.0, %v2479
  %2481 = vmatmul.bf16.gmra.mxu0 %v818
  %v2482 = vpop.f32.mrf.mxu0
  %v2483 = vadd.f32 0.0, %v2482
  %v2484 = vpop.f32.mrf.mxu0
  %v2485 = vadd.f32 0.0, %v2484
  %2486 = vmatmul.bf16.gmra.mxu0 %v821
  %v2487 = vpop.f32.mrf.mxu0
  %v2488 = vadd.f32 0.0, %v2487
  %v2489 = vpop.f32.mrf.mxu0
  %v2490 = vadd.f32 0.0, %v2489
  %2491 = vmatmul.bf16.gmra.mxu0 %v824
  %v2492 = vpop.f32.mrf.mxu0
  %v2493 = vadd.f32 0.0, %v2492
  %v2494 = vpop.f32.mrf.mxu0
  %v2495 = vadd.f32 0.0, %v2494
  %2496 = vmatmul.bf16.gmra.mxu0 %v827
  %v2497 = vpop.f32.mrf.mxu0
  %v2498 = vadd.f32 0.0, %v2497
  %v2499 = vpop.f32.mrf.mxu0
  %v2500 = vadd.f32 0.0, %v2499
  %2501 = vmatmul.bf16.gmra.mxu0 %v830
  %v2502 = vpop.f32.mrf.mxu0
  %v2503 = vadd.f32 0.0, %v2502
  %v2504 = vpop.f32.mrf.mxu0
  %v2505 = vadd.f32 0.0, %v2504
  %2506 = vmatmul.bf16.gmra.mxu0 %v1648
  %v2507 = vpop.f32.mrf.mxu0
  %v2508 = vadd.f32 0.0, %v2507
  %v2509 = vpop.f32.mrf.mxu0
  %v2510 = vadd.f32 0.0, %v2509
  %2511 = vmatmul.bf16.gmra.mxu0 %v2420
  %v2512 = vpop.f32.mrf.mxu0
  %v2513 = vadd.f32 0.0, %v2512
  %v2514 = vpop.f32.mrf.mxu0
  %v2515 = vadd.f32 0.0, %v2514
  %2516 = vmatmul.bf16.gmra.mxu0 %v839
  %v2517 = vpop.f32.mrf.mxu0
  %v2518 = vadd.f32 0.0, %v2517
  %v2519 = vpop.f32.mrf.mxu0
  %v2520 = vadd.f32 0.0, %v2519
  %2521 = vmatmul.bf16.gmra.mxu0 %v842
  %v2522 = vpop.f32.mrf.mxu0
  %v2523 = vadd.f32 0.0, %v2522
  %v2524 = vpop.f32.mrf.mxu0
  %v2525 = vadd.f32 0.0, %v2524
  %2526 = vmatmul.bf16.gmra.mxu0 %v845
  %v2527 = vpop.f32.mrf.mxu0
  %v2528 = vadd.f32 0.0, %v2527
  %v2529 = vpop.f32.mrf.mxu0
  %v2530 = vadd.f32 0.0, %v2529
  %2531 = vmatmul.bf16.gmra.mxu0 %v848
  %v2532 = vpop.f32.mrf.mxu0
  %v2533 = vadd.f32 0.0, %v2532
  %v2534 = vpop.f32.mrf.mxu0
  %v2535 = vadd.f32 0.0, %v2534
  %2536 = vmatmul.bf16.gmra.mxu0 %v851
  %v2537 = vpop.f32.mrf.mxu0
  %v2538 = vadd.f32 0.0, %v2537
  %v2539 = vpop.f32.mrf.mxu0
  %v2540 = vadd.f32 0.0, %v2539
  %2541 = vmatmul.bf16.gmra.mxu0 %v854
  %v2542 = vpop.f32.mrf.mxu0
  %v2543 = vadd.f32 0.0, %v2542
  %v2544 = vpop.f32.mrf.mxu0
  %v2545 = vadd.f32 0.0, %v2544
  %2546 = vmatmul.bf16.gmra.mxu0 %v857
  %v2547 = vpop.f32.mrf.mxu0
  %v2548 = vadd.f32 0.0, %v2547
  %v2549 = vpop.f32.mrf.mxu0
  %v2550 = vadd.f32 0.0, %v2549
  %2551 = vmatmul.bf16.gmra.mxu0 %v860
  %v2552 = vpop.f32.mrf.mxu0
  %v2553 = vadd.f32 0.0, %v2552
  %v2554 = vpop.f32.mrf.mxu0
  %v2555 = vadd.f32 0.0, %v2554
  %2556 = vmatmul.bf16.gmra.mxu0 %v863
  %v2557 = vpop.f32.mrf.mxu0
  %v2558 = vadd.f32 0.0, %v2557
  %v2559 = vpop.f32.mrf.mxu0
  %v2560 = vadd.f32 0.0, %v2559
  %2561 = vmatmul.bf16.gmra.mxu0 %v866
  %v2562 = vpop.f32.mrf.mxu0
  %v2563 = vadd.f32 0.0, %v2562
  %v2564 = vpop.f32.mrf.mxu0
  %v2565 = vadd.f32 0.0, %v2564
  %2566 = vmatmul.bf16.gmra.mxu0 %v869
  %v2567 = vpop.f32.mrf.mxu0
  %v2568 = vadd.f32 0.0, %v2567
  %v2569 = vpop.f32.mrf.mxu0
  %v2570 = vadd.f32 0.0, %v2569
  %2571 = vmatmul.bf16.gmra.mxu0 %v872
  %v2572 = vpop.f32.mrf.mxu0
  %v2573 = vadd.f32 0.0, %v2572
  %v2574 = vpop.f32.mrf.mxu0
  %v2575 = vadd.f32 0.0, %v2574
  %2576 = vmatmul.bf16.gmra.mxu0 %v875
  %v2577 = vpop.f32.mrf.mxu0
  %v2578 = vadd.f32 0.0, %v2577
  %v2579 = vpop.f32.mrf.mxu0
  %v2580 = vadd.f32 0.0, %v2579
  %2581 = vmatmul.bf16.gmra.mxu0 %v878
  %v2582 = vpop.f32.mrf.mxu0
  %v2583 = vadd.f32 0.0, %v2582
  %v2584 = vpop.f32.mrf.mxu0
  %v2585 = vadd.f32 0.0, %v2584
  %2586 = vmatmul.bf16.gmra.mxu0 %v1651
  %v2587 = vpop.f32.mrf.mxu0
  %v2588 = vadd.f32 0.0, %v2587
  %v2589 = vpop.f32.mrf.mxu0
  %v2590 = vadd.f32 0.0, %v2589
  %2591 = vmatmul.bf16.gmra.mxu0 %v2423
  %v2592 = vpop.f32.mrf.mxu0
  %v2593 = vadd.f32 0.0, %v2592
  %v2594 = vpop.f32.mrf.mxu0
  %v2595 = vadd.f32 0.0, %v2594
  %2596 = vdwg.mxu0
  %v2597 = vadd.f32 %v2351, %v2438
  %v2598 = vadd.f32 %v2352, %v2440
  %v2599 = vadd.f32 %v2353, %v2443
  %v2600 = vadd.f32 %v2354, %v2445
  %v2601 = vadd.f32 %v2355, %v2448
  %v2602 = vadd.f32 %v2356, %v2450
  %v2603 = vadd.f32 %v2357, %v2453
  %v2604 = vadd.f32 %v2358, %v2455
  %v2605 = vadd.f32 %v2359, %v2458
  %v2606 = vadd.f32 %v2360, %v2460
  %v2607 = vadd.f32 %v2361, %v2463
  %v2608 = vadd.f32 %v2362, %v2465
  %v2609 = vadd.f32 %v2363, %v2468
  %v2610 = vadd.f32 %v2364, %v2470
  %v2611 = vadd.f32 %v2365, %v2473
  %v2612 = vadd.f32 %v2366, %v2475
  %v2613 = vadd.f32 %v2367, %v2478
  %v2614 = vadd.f32 %v2368, %v2480
  %v2615 = vadd.f32 %v2369, %v2483
  %v2616 = vadd.f32 %v2370, %v2485
  %v2617 = vadd.f32 %v2371, %v2488
  %v2618 = vadd.f32 %v2372, %v2490
  %v2619 = vadd.f32 %v2373, %v2493
  %v2620 = vadd.f32 %v2374, %v2495
  %v2621 = vadd.f32 %v2375, %v2498
  %v2622 = vadd.f32 %v2376, %v2500
  %v2623 = vadd.f32 %v2377, %v2503
  %v2624 = vadd.f32 %v2378, %v2505
  %v2625 = vadd.f32 %v2379, %v2508
  %v2626 = vadd.f32 %v2380, %v2510
  %v2627 = vadd.f32 %v2381, %v2513
  %v2628 = vadd.f32 %v2382, %v2515
  %v2629 = vadd.f32 %v2383, %v2518
  %v2630 = vadd.f32 %v2384, %v2520
  %v2631 = vadd.f32 %v2385, %v2523
  %v2632 = vadd.f32 %v2386, %v2525
  %v2633 = vadd.f32 %v2387, %v2528
  %v2634 = vadd.f32 %v2388, %v2530
  %v2635 = vadd.f32 %v2389, %v2533
  %v2636 = vadd.f32 %v2390, %v2535
  %v2637 = vadd.f32 %v2391, %v2538
  %v2638 = vadd.f32 %v2392, %v2540
  %v2639 = vadd.f32 %v2393, %v2543
  %v2640 = vadd.f32 %v2394, %v2545
  %v2641 = vadd.f32 %v2395, %v2548
  %v2642 = vadd.f32 %v2396, %v2550
  %v2643 = vadd.f32 %v2397, %v2553
  %v2644 = vadd.f32 %v2398, %v2555
  %v2645 = vadd.f32 %v2399, %v2558
  %v2646 = vadd.f32 %v2400, %v2560
  %v2647 = vadd.f32 %v2401, %v2563
  %v2648 = vadd.f32 %v2402, %v2565
  %v2649 = vadd.f32 %v2403, %v2568
  %v2650 = vadd.f32 %v2404, %v2570
  %v2651 = vadd.f32 %v2405, %v2573
  %v2652 = vadd.f32 %v2406, %v2575
  %v2653 = vadd.f32 %v2407, %v2578
  %v2654 = vadd.f32 %v2408, %v2580
  %v2655 = vadd.f32 %v2409, %v2583
  %v2656 = vadd.f32 %v2410, %v2585
  %v2657 = vadd.f32 %v2411, %v2588
  %v2658 = vadd.f32 %v2412, %v2590
  %v2659 = vadd.f32 %v2413, %v2593
  %v2660 = vadd.f32 %v2414, %v2595
  %v2667 = vrot.slane %v69, 1
  %v2668 = vrot.slane %v70, 1
  %v2669 = vsel %vm255, %v2667, %v2668
  %v2670 = vrot.slane %v71, 1
  %v2671 = vsel %vm255, %v2668, %v2670
  %v2672 = vrot.slane %v123, 1
  %v2673 = vrot.slane %v124, 1
  %v2674 = vsel %vm255, %v2672, %v2673
  %v2675 = vrot.slane %v125, 1
  %v2676 = vsel %vm255, %v2673, %v2675
  %v2681 = vpack.c.bf16 %v2671, %v2669
  %v2682 = vpack.c.bf16 %v2676, %v2674
  %s2683 = scalar_lea.vmem %s1, 14
  %v2684 = vld [vmem:[%s2683] sm:$0x3]
  %v2686 = vsel %vm514, %v2681, 0
  %v2689 = vsel %vm514, %v2682, 0
  %v2692 = vsel %vm611, %v2684, 0
  %2694 = vmatpush.bf16.msra.mxu0 0
  %2695 = vmatpush.bf16.msra.mxu0 0
  %2696 = vmatpush.bf16.msra.mxu0 0
  %2697 = vmatpush.bf16.msra.mxu0 0
  %2698 = vmatpush.bf16.msra.mxu0 0
  %2699 = vmatpush.bf16.msra.mxu0 0
  %2700 = vmatpush.bf16.msra.mxu0 0
  %2701 = vmatpush.bf16.msra.mxu0 %v2692
  %2702 = vmatmul.bf16.gmra.mxu0 %v522
  %v2703 = vpop.f32.mrf.mxu0
  %v2704 = vadd.f32 0.0, %v2703
  %v2705 = vpop.f32.mrf.mxu0
  %v2706 = vadd.f32 0.0, %v2705
  %2707 = vmatmul.bf16.gmra.mxu0 %v525
  %v2708 = vpop.f32.mrf.mxu0
  %v2709 = vadd.f32 0.0, %v2708
  %v2710 = vpop.f32.mrf.mxu0
  %v2711 = vadd.f32 0.0, %v2710
  %2712 = vmatmul.bf16.gmra.mxu0 %v528
  %v2713 = vpop.f32.mrf.mxu0
  %v2714 = vadd.f32 0.0, %v2713
  %v2715 = vpop.f32.mrf.mxu0
  %v2716 = vadd.f32 0.0, %v2715
  %2717 = vmatmul.bf16.gmra.mxu0 %v531
  %v2718 = vpop.f32.mrf.mxu0
  %v2719 = vadd.f32 0.0, %v2718
  %v2720 = vpop.f32.mrf.mxu0
  %v2721 = vadd.f32 0.0, %v2720
  %2722 = vmatmul.bf16.gmra.mxu0 %v534
  %v2723 = vpop.f32.mrf.mxu0
  %v2724 = vadd.f32 0.0, %v2723
  %v2725 = vpop.f32.mrf.mxu0
  %v2726 = vadd.f32 0.0, %v2725
  %2727 = vmatmul.bf16.gmra.mxu0 %v537
  %v2728 = vpop.f32.mrf.mxu0
  %v2729 = vadd.f32 0.0, %v2728
  %v2730 = vpop.f32.mrf.mxu0
  %v2731 = vadd.f32 0.0, %v2730
  %2732 = vmatmul.bf16.gmra.mxu0 %v540
  %v2733 = vpop.f32.mrf.mxu0
  %v2734 = vadd.f32 0.0, %v2733
  %v2735 = vpop.f32.mrf.mxu0
  %v2736 = vadd.f32 0.0, %v2735
  %2737 = vmatmul.bf16.gmra.mxu0 %v543
  %v2738 = vpop.f32.mrf.mxu0
  %v2739 = vadd.f32 0.0, %v2738
  %v2740 = vpop.f32.mrf.mxu0
  %v2741 = vadd.f32 0.0, %v2740
  %2742 = vmatmul.bf16.gmra.mxu0 %v546
  %v2743 = vpop.f32.mrf.mxu0
  %v2744 = vadd.f32 0.0, %v2743
  %v2745 = vpop.f32.mrf.mxu0
  %v2746 = vadd.f32 0.0, %v2745
  %2747 = vmatmul.bf16.gmra.mxu0 %v549
  %v2748 = vpop.f32.mrf.mxu0
  %v2749 = vadd.f32 0.0, %v2748
  %v2750 = vpop.f32.mrf.mxu0
  %v2751 = vadd.f32 0.0, %v2750
  %2752 = vmatmul.bf16.gmra.mxu0 %v552
  %v2753 = vpop.f32.mrf.mxu0
  %v2754 = vadd.f32 0.0, %v2753
  %v2755 = vpop.f32.mrf.mxu0
  %v2756 = vadd.f32 0.0, %v2755
  %2757 = vmatmul.bf16.gmra.mxu0 %v555
  %v2758 = vpop.f32.mrf.mxu0
  %v2759 = vadd.f32 0.0, %v2758
  %v2760 = vpop.f32.mrf.mxu0
  %v2761 = vadd.f32 0.0, %v2760
  %2762 = vmatmul.bf16.gmra.mxu0 %v558
  %v2763 = vpop.f32.mrf.mxu0
  %v2764 = vadd.f32 0.0, %v2763
  %v2765 = vpop.f32.mrf.mxu0
  %v2766 = vadd.f32 0.0, %v2765
  %2767 = vmatmul.bf16.gmra.mxu0 %v561
  %v2768 = vpop.f32.mrf.mxu0
  %v2769 = vadd.f32 0.0, %v2768
  %v2770 = vpop.f32.mrf.mxu0
  %v2771 = vadd.f32 0.0, %v2770
  %2772 = vmatmul.bf16.gmra.mxu0 %v1914
  %v2773 = vpop.f32.mrf.mxu0
  %v2774 = vadd.f32 0.0, %v2773
  %v2775 = vpop.f32.mrf.mxu0
  %v2776 = vadd.f32 0.0, %v2775
  %2777 = vmatmul.bf16.gmra.mxu0 %v2686
  %v2778 = vpop.f32.mrf.mxu0
  %v2779 = vadd.f32 0.0, %v2778
  %v2780 = vpop.f32.mrf.mxu0
  %v2781 = vadd.f32 0.0, %v2780
  %2782 = vmatmul.bf16.gmra.mxu0 %v570
  %v2783 = vpop.f32.mrf.mxu0
  %v2784 = vadd.f32 0.0, %v2783
  %v2785 = vpop.f32.mrf.mxu0
  %v2786 = vadd.f32 0.0, %v2785
  %2787 = vmatmul.bf16.gmra.mxu0 %v573
  %v2788 = vpop.f32.mrf.mxu0
  %v2789 = vadd.f32 0.0, %v2788
  %v2790 = vpop.f32.mrf.mxu0
  %v2791 = vadd.f32 0.0, %v2790
  %2792 = vmatmul.bf16.gmra.mxu0 %v576
  %v2793 = vpop.f32.mrf.mxu0
  %v2794 = vadd.f32 0.0, %v2793
  %v2795 = vpop.f32.mrf.mxu0
  %v2796 = vadd.f32 0.0, %v2795
  %2797 = vmatmul.bf16.gmra.mxu0 %v579
  %v2798 = vpop.f32.mrf.mxu0
  %v2799 = vadd.f32 0.0, %v2798
  %v2800 = vpop.f32.mrf.mxu0
  %v2801 = vadd.f32 0.0, %v2800
  %2802 = vmatmul.bf16.gmra.mxu0 %v582
  %v2803 = vpop.f32.mrf.mxu0
  %v2804 = vadd.f32 0.0, %v2803
  %v2805 = vpop.f32.mrf.mxu0
  %v2806 = vadd.f32 0.0, %v2805
  %2807 = vmatmul.bf16.gmra.mxu0 %v585
  %v2808 = vpop.f32.mrf.mxu0
  %v2809 = vadd.f32 0.0, %v2808
  %v2810 = vpop.f32.mrf.mxu0
  %v2811 = vadd.f32 0.0, %v2810
  %2812 = vmatmul.bf16.gmra.mxu0 %v588
  %v2813 = vpop.f32.mrf.mxu0
  %v2814 = vadd.f32 0.0, %v2813
  %v2815 = vpop.f32.mrf.mxu0
  %v2816 = vadd.f32 0.0, %v2815
  %2817 = vmatmul.bf16.gmra.mxu0 %v591
  %v2818 = vpop.f32.mrf.mxu0
  %v2819 = vadd.f32 0.0, %v2818
  %v2820 = vpop.f32.mrf.mxu0
  %v2821 = vadd.f32 0.0, %v2820
  %2822 = vmatmul.bf16.gmra.mxu0 %v594
  %v2823 = vpop.f32.mrf.mxu0
  %v2824 = vadd.f32 0.0, %v2823
  %v2825 = vpop.f32.mrf.mxu0
  %v2826 = vadd.f32 0.0, %v2825
  %2827 = vmatmul.bf16.gmra.mxu0 %v597
  %v2828 = vpop.f32.mrf.mxu0
  %v2829 = vadd.f32 0.0, %v2828
  %v2830 = vpop.f32.mrf.mxu0
  %v2831 = vadd.f32 0.0, %v2830
  %2832 = vmatmul.bf16.gmra.mxu0 %v600
  %v2833 = vpop.f32.mrf.mxu0
  %v2834 = vadd.f32 0.0, %v2833
  %v2835 = vpop.f32.mrf.mxu0
  %v2836 = vadd.f32 0.0, %v2835
  %2837 = vmatmul.bf16.gmra.mxu0 %v603
  %v2838 = vpop.f32.mrf.mxu0
  %v2839 = vadd.f32 0.0, %v2838
  %v2840 = vpop.f32.mrf.mxu0
  %v2841 = vadd.f32 0.0, %v2840
  %2842 = vmatmul.bf16.gmra.mxu0 %v606
  %v2843 = vpop.f32.mrf.mxu0
  %v2844 = vadd.f32 0.0, %v2843
  %v2845 = vpop.f32.mrf.mxu0
  %v2846 = vadd.f32 0.0, %v2845
  %2847 = vmatmul.bf16.gmra.mxu0 %v609
  %v2848 = vpop.f32.mrf.mxu0
  %v2849 = vadd.f32 0.0, %v2848
  %v2850 = vpop.f32.mrf.mxu0
  %v2851 = vadd.f32 0.0, %v2850
  %2852 = vmatmul.bf16.gmra.mxu0 %v1917
  %v2853 = vpop.f32.mrf.mxu0
  %v2854 = vadd.f32 0.0, %v2853
  %v2855 = vpop.f32.mrf.mxu0
  %v2856 = vadd.f32 0.0, %v2855
  %2857 = vmatmul.bf16.gmra.mxu0 %v2689
  %v2858 = vpop.f32.mrf.mxu0
  %v2859 = vadd.f32 0.0, %v2858
  %v2860 = vpop.f32.mrf.mxu0
  %v2861 = vadd.f32 0.0, %v2860
  %2862 = vdwg.mxu0
  %v2863 = vadd.f32 %v2597, %v2704
  %v2864 = vadd.f32 %v2598, %v2706
  %v2865 = vadd.f32 %v2599, %v2709
  %v2866 = vadd.f32 %v2600, %v2711
  %v2867 = vadd.f32 %v2601, %v2714
  %v2868 = vadd.f32 %v2602, %v2716
  %v2869 = vadd.f32 %v2603, %v2719
  %v2870 = vadd.f32 %v2604, %v2721
  %v2871 = vadd.f32 %v2605, %v2724
  %v2872 = vadd.f32 %v2606, %v2726
  %v2873 = vadd.f32 %v2607, %v2729
  %v2874 = vadd.f32 %v2608, %v2731
  %v2875 = vadd.f32 %v2609, %v2734
  %v2876 = vadd.f32 %v2610, %v2736
  %v2877 = vadd.f32 %v2611, %v2739
  %v2878 = vadd.f32 %v2612, %v2741
  %v2879 = vadd.f32 %v2613, %v2744
  %v2880 = vadd.f32 %v2614, %v2746
  %v2881 = vadd.f32 %v2615, %v2749
  %v2882 = vadd.f32 %v2616, %v2751
  %v2883 = vadd.f32 %v2617, %v2754
  %v2884 = vadd.f32 %v2618, %v2756
  %v2885 = vadd.f32 %v2619, %v2759
  %v2886 = vadd.f32 %v2620, %v2761
  %v2887 = vadd.f32 %v2621, %v2764
  %v2888 = vadd.f32 %v2622, %v2766
  %v2889 = vadd.f32 %v2623, %v2769
  %v2890 = vadd.f32 %v2624, %v2771
  %v2891 = vadd.f32 %v2625, %v2774
  %v2892 = vadd.f32 %v2626, %v2776
  %v2893 = vadd.f32 %v2627, %v2779
  %v2894 = vadd.f32 %v2628, %v2781
  %v2895 = vadd.f32 %v2629, %v2784
  %v2896 = vadd.f32 %v2630, %v2786
  %v2897 = vadd.f32 %v2631, %v2789
  %v2898 = vadd.f32 %v2632, %v2791
  %v2899 = vadd.f32 %v2633, %v2794
  %v2900 = vadd.f32 %v2634, %v2796
  %v2901 = vadd.f32 %v2635, %v2799
  %v2902 = vadd.f32 %v2636, %v2801
  %v2903 = vadd.f32 %v2637, %v2804
  %v2904 = vadd.f32 %v2638, %v2806
  %v2905 = vadd.f32 %v2639, %v2809
  %v2906 = vadd.f32 %v2640, %v2811
  %v2907 = vadd.f32 %v2641, %v2814
  %v2908 = vadd.f32 %v2642, %v2816
  %v2909 = vadd.f32 %v2643, %v2819
  %v2910 = vadd.f32 %v2644, %v2821
  %v2911 = vadd.f32 %v2645, %v2824
  %v2912 = vadd.f32 %v2646, %v2826
  %v2913 = vadd.f32 %v2647, %v2829
  %v2914 = vadd.f32 %v2648, %v2831
  %v2915 = vadd.f32 %v2649, %v2834
  %v2916 = vadd.f32 %v2650, %v2836
  %v2917 = vadd.f32 %v2651, %v2839
  %v2918 = vadd.f32 %v2652, %v2841
  %v2919 = vadd.f32 %v2653, %v2844
  %v2920 = vadd.f32 %v2654, %v2846
  %v2921 = vadd.f32 %v2655, %v2849
  %v2922 = vadd.f32 %v2656, %v2851
  %v2923 = vadd.f32 %v2657, %v2854
  %v2924 = vadd.f32 %v2658, %v2856
  %v2925 = vadd.f32 %v2659, %v2859
  %v2926 = vadd.f32 %v2660, %v2861
  %v2927 = vrot.slane %v69, 2
  %v2928 = vrot.slane %v70, 2
  %v2929 = vsel %vm1052, %v2927, %v2928
  %v2930 = vrot.slane %v71, 2
  %v2931 = vsel %vm1052, %v2928, %v2930
  %v2932 = vrot.slane %v123, 2
  %v2933 = vrot.slane %v124, 2
  %v2934 = vsel %vm1052, %v2932, %v2933
  %v2935 = vrot.slane %v125, 2
  %v2936 = vsel %vm1052, %v2933, %v2935
  %v2941 = vpack.c.bf16 %v2931, %v2929
  %v2942 = vpack.c.bf16 %v2936, %v2934
  %s2943 = scalar_lea.vmem %s1, 16
  %v2944 = vld [vmem:[%s2943] sm:$0x3]
  %v2946 = vsel %vm514, %v2941, 0
  %v2949 = vsel %vm514, %v2942, 0
  %v2952 = vsel %vm611, %v2944, 0
  %2954 = vmatpush.bf16.msra.mxu0 0
  %2955 = vmatpush.bf16.msra.mxu0 0
  %2956 = vmatpush.bf16.msra.mxu0 0
  %2957 = vmatpush.bf16.msra.mxu0 0
  %2958 = vmatpush.bf16.msra.mxu0 0
  %2959 = vmatpush.bf16.msra.mxu0 0
  %2960 = vmatpush.bf16.msra.mxu0 0
  %2961 = vmatpush.bf16.msra.mxu0 %v2952
  %2962 = vmatmul.bf16.gmra.mxu0 %v1318
  %v2963 = vpop.f32.mrf.mxu0
  %v2964 = vadd.f32 0.0, %v2963
  %v2965 = vpop.f32.mrf.mxu0
  %v2966 = vadd.f32 0.0, %v2965
  %2967 = vmatmul.bf16.gmra.mxu0 %v1321
  %v2968 = vpop.f32.mrf.mxu0
  %v2969 = vadd.f32 0.0, %v2968
  %v2970 = vpop.f32.mrf.mxu0
  %v2971 = vadd.f32 0.0, %v2970
  %2972 = vmatmul.bf16.gmra.mxu0 %v1324
  %v2973 = vpop.f32.mrf.mxu0
  %v2974 = vadd.f32 0.0, %v2973
  %v2975 = vpop.f32.mrf.mxu0
  %v2976 = vadd.f32 0.0, %v2975
  %2977 = vmatmul.bf16.gmra.mxu0 %v1327
  %v2978 = vpop.f32.mrf.mxu0
  %v2979 = vadd.f32 0.0, %v2978
  %v2980 = vpop.f32.mrf.mxu0
  %v2981 = vadd.f32 0.0, %v2980
  %2982 = vmatmul.bf16.gmra.mxu0 %v1330
  %v2983 = vpop.f32.mrf.mxu0
  %v2984 = vadd.f32 0.0, %v2983
  %v2985 = vpop.f32.mrf.mxu0
  %v2986 = vadd.f32 0.0, %v2985
  %2987 = vmatmul.bf16.gmra.mxu0 %v1333
  %v2988 = vpop.f32.mrf.mxu0
  %v2989 = vadd.f32 0.0, %v2988
  %v2990 = vpop.f32.mrf.mxu0
  %v2991 = vadd.f32 0.0, %v2990
  %2992 = vmatmul.bf16.gmra.mxu0 %v1336
  %v2993 = vpop.f32.mrf.mxu0
  %v2994 = vadd.f32 0.0, %v2993
  %v2995 = vpop.f32.mrf.mxu0
  %v2996 = vadd.f32 0.0, %v2995
  %2997 = vmatmul.bf16.gmra.mxu0 %v1339
  %v2998 = vpop.f32.mrf.mxu0
  %v2999 = vadd.f32 0.0, %v2998
  %v3000 = vpop.f32.mrf.mxu0
  %v3001 = vadd.f32 0.0, %v3000
  %3002 = vmatmul.bf16.gmra.mxu0 %v1342
  %v3003 = vpop.f32.mrf.mxu0
  %v3004 = vadd.f32 0.0, %v3003
  %v3005 = vpop.f32.mrf.mxu0
  %v3006 = vadd.f32 0.0, %v3005
  %3007 = vmatmul.bf16.gmra.mxu0 %v1345
  %v3008 = vpop.f32.mrf.mxu0
  %v3009 = vadd.f32 0.0, %v3008
  %v3010 = vpop.f32.mrf.mxu0
  %v3011 = vadd.f32 0.0, %v3010
  %3012 = vmatmul.bf16.gmra.mxu0 %v1348
  %v3013 = vpop.f32.mrf.mxu0
  %v3014 = vadd.f32 0.0, %v3013
  %v3015 = vpop.f32.mrf.mxu0
  %v3016 = vadd.f32 0.0, %v3015
  %3017 = vmatmul.bf16.gmra.mxu0 %v1351
  %v3018 = vpop.f32.mrf.mxu0
  %v3019 = vadd.f32 0.0, %v3018
  %v3020 = vpop.f32.mrf.mxu0
  %v3021 = vadd.f32 0.0, %v3020
  %3022 = vmatmul.bf16.gmra.mxu0 %v1354
  %v3023 = vpop.f32.mrf.mxu0
  %v3024 = vadd.f32 0.0, %v3023
  %v3025 = vpop.f32.mrf.mxu0
  %v3026 = vadd.f32 0.0, %v3025
  %3027 = vmatmul.bf16.gmra.mxu0 %v1357
  %v3028 = vpop.f32.mrf.mxu0
  %v3029 = vadd.f32 0.0, %v3028
  %v3030 = vpop.f32.mrf.mxu0
  %v3031 = vadd.f32 0.0, %v3030
  %3032 = vmatmul.bf16.gmra.mxu0 %v2174
  %v3033 = vpop.f32.mrf.mxu0
  %v3034 = vadd.f32 0.0, %v3033
  %v3035 = vpop.f32.mrf.mxu0
  %v3036 = vadd.f32 0.0, %v3035
  %3037 = vmatmul.bf16.gmra.mxu0 %v2946
  %v3038 = vpop.f32.mrf.mxu0
  %v3039 = vadd.f32 0.0, %v3038
  %v3040 = vpop.f32.mrf.mxu0
  %v3041 = vadd.f32 0.0, %v3040
  %3042 = vmatmul.bf16.gmra.mxu0 %v1366
  %v3043 = vpop.f32.mrf.mxu0
  %v3044 = vadd.f32 0.0, %v3043
  %v3045 = vpop.f32.mrf.mxu0
  %v3046 = vadd.f32 0.0, %v3045
  %3047 = vmatmul.bf16.gmra.mxu0 %v1369
  %v3048 = vpop.f32.mrf.mxu0
  %v3049 = vadd.f32 0.0, %v3048
  %v3050 = vpop.f32.mrf.mxu0
  %v3051 = vadd.f32 0.0, %v3050
  %3052 = vmatmul.bf16.gmra.mxu0 %v1372
  %v3053 = vpop.f32.mrf.mxu0
  %v3054 = vadd.f32 0.0, %v3053
  %v3055 = vpop.f32.mrf.mxu0
  %v3056 = vadd.f32 0.0, %v3055
  %3057 = vmatmul.bf16.gmra.mxu0 %v1375
  %v3058 = vpop.f32.mrf.mxu0
  %v3059 = vadd.f32 0.0, %v3058
  %v3060 = vpop.f32.mrf.mxu0
  %v3061 = vadd.f32 0.0, %v3060
  %3062 = vmatmul.bf16.gmra.mxu0 %v1378
  %v3063 = vpop.f32.mrf.mxu0
  %v3064 = vadd.f32 0.0, %v3063
  %v3065 = vpop.f32.mrf.mxu0
  %v3066 = vadd.f32 0.0, %v3065
  %3067 = vmatmul.bf16.gmra.mxu0 %v1381
  %v3068 = vpop.f32.mrf.mxu0
  %v3069 = vadd.f32 0.0, %v3068
  %v3070 = vpop.f32.mrf.mxu0
  %v3071 = vadd.f32 0.0, %v3070
  %3072 = vmatmul.bf16.gmra.mxu0 %v1384
  %v3073 = vpop.f32.mrf.mxu0
  %v3074 = vadd.f32 0.0, %v3073
  %v3075 = vpop.f32.mrf.mxu0
  %v3076 = vadd.f32 0.0, %v3075
  %3077 = vmatmul.bf16.gmra.mxu0 %v1387
  %v3078 = vpop.f32.mrf.mxu0
  %v3079 = vadd.f32 0.0, %v3078
  %v3080 = vpop.f32.mrf.mxu0
  %v3081 = vadd.f32 0.0, %v3080
  %3082 = vmatmul.bf16.gmra.mxu0 %v1390
  %v3083 = vpop.f32.mrf.mxu0
  %v3084 = vadd.f32 0.0, %v3083
  %v3085 = vpop.f32.mrf.mxu0
  %v3086 = vadd.f32 0.0, %v3085
  %3087 = vmatmul.bf16.gmra.mxu0 %v1393
  %v3088 = vpop.f32.mrf.mxu0
  %v3089 = vadd.f32 0.0, %v3088
  %v3090 = vpop.f32.mrf.mxu0
  %v3091 = vadd.f32 0.0, %v3090
  %3092 = vmatmul.bf16.gmra.mxu0 %v1396
  %v3093 = vpop.f32.mrf.mxu0
  %v3094 = vadd.f32 0.0, %v3093
  %v3095 = vpop.f32.mrf.mxu0
  %v3096 = vadd.f32 0.0, %v3095
  %3097 = vmatmul.bf16.gmra.mxu0 %v1399
  %v3098 = vpop.f32.mrf.mxu0
  %v3099 = vadd.f32 0.0, %v3098
  %v3100 = vpop.f32.mrf.mxu0
  %v3101 = vadd.f32 0.0, %v3100
  %3102 = vmatmul.bf16.gmra.mxu0 %v1402
  %v3103 = vpop.f32.mrf.mxu0
  %v3104 = vadd.f32 0.0, %v3103
  %v3105 = vpop.f32.mrf.mxu0
  %v3106 = vadd.f32 0.0, %v3105
  %3107 = vmatmul.bf16.gmra.mxu0 %v1405
  %v3108 = vpop.f32.mrf.mxu0
  %v3109 = vadd.f32 0.0, %v3108
  %v3110 = vpop.f32.mrf.mxu0
  %v3111 = vadd.f32 0.0, %v3110
  %3112 = vmatmul.bf16.gmra.mxu0 %v2177
  %v3113 = vpop.f32.mrf.mxu0
  %v3114 = vadd.f32 0.0, %v3113
  %v3115 = vpop.f32.mrf.mxu0
  %v3116 = vadd.f32 0.0, %v3115
  %3117 = vmatmul.bf16.gmra.mxu0 %v2949
  %v3118 = vpop.f32.mrf.mxu0
  %v3119 = vadd.f32 0.0, %v3118
  %v3120 = vpop.f32.mrf.mxu0
  %v3121 = vadd.f32 0.0, %v3120
  %3122 = vdwg.mxu0
  %v3123 = vadd.f32 %v2863, %v2964
  %v3124 = vadd.f32 %v2864, %v2966
  %v3125 = vadd.f32 %v2865, %v2969
  %v3126 = vadd.f32 %v2866, %v2971
  %v3127 = vadd.f32 %v2867, %v2974
  %v3128 = vadd.f32 %v2868, %v2976
  %v3129 = vadd.f32 %v2869, %v2979
  %v3130 = vadd.f32 %v2870, %v2981
  %v3131 = vadd.f32 %v2871, %v2984
  %v3132 = vadd.f32 %v2872, %v2986
  %v3133 = vadd.f32 %v2873, %v2989
  %v3134 = vadd.f32 %v2874, %v2991
  %v3135 = vadd.f32 %v2875, %v2994
  %v3136 = vadd.f32 %v2876, %v2996
  %v3137 = vadd.f32 %v2877, %v2999
  %v3138 = vadd.f32 %v2878, %v3001
  %v3139 = vadd.f32 %v2879, %v3004
  %v3140 = vadd.f32 %v2880, %v3006
  %v3141 = vadd.f32 %v2881, %v3009
  %v3142 = vadd.f32 %v2882, %v3011
  %v3143 = vadd.f32 %v2883, %v3014
  %v3144 = vadd.f32 %v2884, %v3016
  %v3145 = vadd.f32 %v2885, %v3019
  %v3146 = vadd.f32 %v2886, %v3021
  %v3147 = vadd.f32 %v2887, %v3024
  %v3148 = vadd.f32 %v2888, %v3026
  %v3149 = vadd.f32 %v2889, %v3029
  %v3150 = vadd.f32 %v2890, %v3031
  %v3151 = vadd.f32 %v2891, %v3034
  %v3152 = vadd.f32 %v2892, %v3036
  %v3153 = vadd.f32 %v2893, %v3039
  %v3154 = vadd.f32 %v2894, %v3041
  %v3155 = vadd.f32 %v2895, %v3044
  %v3156 = vadd.f32 %v2896, %v3046
  %v3157 = vadd.f32 %v2897, %v3049
  %v3158 = vadd.f32 %v2898, %v3051
  %v3159 = vadd.f32 %v2899, %v3054
  %v3160 = vadd.f32 %v2900, %v3056
  %v3161 = vadd.f32 %v2901, %v3059
  %v3162 = vadd.f32 %v2902, %v3061
  %v3163 = vadd.f32 %v2903, %v3064
  %v3164 = vadd.f32 %v2904, %v3066
  %v3165 = vadd.f32 %v2905, %v3069
  %v3166 = vadd.f32 %v2906, %v3071
  %v3167 = vadd.f32 %v2907, %v3074
  %v3168 = vadd.f32 %v2908, %v3076
  %v3169 = vadd.f32 %v2909, %v3079
  %v3170 = vadd.f32 %v2910, %v3081
  %v3171 = vadd.f32 %v2911, %v3084
  %v3172 = vadd.f32 %v2912, %v3086
  %v3173 = vadd.f32 %v2913, %v3089
  %v3174 = vadd.f32 %v2914, %v3091
  %v3175 = vadd.f32 %v2915, %v3094
  %v3176 = vadd.f32 %v2916, %v3096
  %v3177 = vadd.f32 %v2917, %v3099
  %v3178 = vadd.f32 %v2918, %v3101
  %v3179 = vadd.f32 %v2919, %v3104
  %v3180 = vadd.f32 %v2920, %v3106
  %v3181 = vadd.f32 %v2921, %v3109
  %v3182 = vadd.f32 %v2922, %v3111
  %v3183 = vadd.f32 %v2923, %v3114
  %v3184 = vadd.f32 %v2924, %v3116
  %v3185 = vadd.f32 %v2925, %v3119
  %v3186 = vadd.f32 %v2926, %v3121
  %vm3187 = vcmask 64512
  %v3188 = vsel %vm3187, %v3123, 0.0
  %v3189 = vsel %vm3187, %v3124, 0.0
  %v3190 = vadd.f32 %v3188, %v3189
  %v3191 = vsel %vm3187, %v3125, 0.0
  %v3192 = vadd.f32 %v3190, %v3191
  %v3193 = vsel %vm3187, %v3126, 0.0
  %v3194 = vadd.f32 %v3192, %v3193
  %v3195 = vsel %vm3187, %v3127, 0.0
  %v3196 = vadd.f32 %v3194, %v3195
  %v3197 = vsel %vm3187, %v3128, 0.0
  %v3198 = vadd.f32 %v3196, %v3197
  %v3199 = vsel %vm3187, %v3129, 0.0
  %v3200 = vadd.f32 %v3198, %v3199
  %v3201 = vsel %vm3187, %v3130, 0.0
  %v3202 = vadd.f32 %v3200, %v3201
  %v3203 = vsel %vm3187, %v3131, 0.0
  %v3204 = vadd.f32 %v3202, %v3203
  %v3205 = vsel %vm3187, %v3132, 0.0
  %v3206 = vadd.f32 %v3204, %v3205
  %v3207 = vsel %vm3187, %v3133, 0.0
  %v3208 = vadd.f32 %v3206, %v3207
  %v3209 = vsel %vm3187, %v3134, 0.0
  %v3210 = vadd.f32 %v3208, %v3209
  %v3211 = vsel %vm3187, %v3135, 0.0
  %v3212 = vadd.f32 %v3210, %v3211
  %v3213 = vsel %vm3187, %v3136, 0.0
  %v3214 = vadd.f32 %v3212, %v3213
  %v3215 = vsel %vm3187, %v3137, 0.0
  %v3216 = vadd.f32 %v3214, %v3215
  %v3217 = vsel %vm3187, %v3138, 0.0
  %v3218 = vadd.f32 %v3216, %v3217
  %v3219 = vsel %vm3187, %v3139, 0.0
  %v3220 = vadd.f32 %v3218, %v3219
  %v3221 = vsel %vm3187, %v3140, 0.0
  %v3222 = vadd.f32 %v3220, %v3221
  %v3223 = vsel %vm3187, %v3141, 0.0
  %v3224 = vadd.f32 %v3222, %v3223
  %v3225 = vsel %vm3187, %v3142, 0.0
  %v3226 = vadd.f32 %v3224, %v3225
  %v3227 = vsel %vm3187, %v3143, 0.0
  %v3228 = vadd.f32 %v3226, %v3227
  %v3229 = vsel %vm3187, %v3144, 0.0
  %v3230 = vadd.f32 %v3228, %v3229
  %v3231 = vsel %vm3187, %v3145, 0.0
  %v3232 = vadd.f32 %v3230, %v3231
  %v3233 = vsel %vm3187, %v3146, 0.0
  %v3234 = vadd.f32 %v3232, %v3233
  %v3235 = vsel %vm3187, %v3147, 0.0
  %v3236 = vadd.f32 %v3234, %v3235
  %v3237 = vsel %vm3187, %v3148, 0.0
  %v3238 = vadd.f32 %v3236, %v3237
  %v3239 = vsel %vm3187, %v3149, 0.0
  %v3240 = vadd.f32 %v3238, %v3239
  %v3241 = vsel %vm3187, %v3150, 0.0
  %v3242 = vadd.f32 %v3240, %v3241
  %v3243 = vsel %vm3187, %v3151, 0.0
  %v3244 = vadd.f32 %v3242, %v3243
  %v3245 = vsel %vm3187, %v3152, 0.0
  %v3246 = vadd.f32 %v3244, %v3245
  %v3247 = vsel %vm3187, %v3153, 0.0
  %v3248 = vadd.f32 %v3246, %v3247
  %v3249 = vsel %vm3187, %v3154, 0.0
  %v3250 = vadd.f32 %v3248, %v3249
  %v3251 = vsel %vm3187, %v3155, 0.0
  %v3252 = vadd.f32 %v3250, %v3251
  %v3253 = vsel %vm3187, %v3156, 0.0
  %v3254 = vadd.f32 %v3252, %v3253
  %v3255 = vsel %vm3187, %v3157, 0.0
  %v3256 = vadd.f32 %v3254, %v3255
  %v3257 = vsel %vm3187, %v3158, 0.0
  %v3258 = vadd.f32 %v3256, %v3257
  %v3259 = vsel %vm3187, %v3159, 0.0
  %v3260 = vadd.f32 %v3258, %v3259
  %v3261 = vsel %vm3187, %v3160, 0.0
  %v3262 = vadd.f32 %v3260, %v3261
  %v3263 = vsel %vm3187, %v3161, 0.0
  %v3264 = vadd.f32 %v3262, %v3263
  %v3265 = vsel %vm3187, %v3162, 0.0
  %v3266 = vadd.f32 %v3264, %v3265
  %v3267 = vsel %vm3187, %v3163, 0.0
  %v3268 = vadd.f32 %v3266, %v3267
  %v3269 = vsel %vm3187, %v3164, 0.0
  %v3270 = vadd.f32 %v3268, %v3269
  %v3271 = vsel %vm3187, %v3165, 0.0
  %v3272 = vadd.f32 %v3270, %v3271
  %v3273 = vsel %vm3187, %v3166, 0.0
  %v3274 = vadd.f32 %v3272, %v3273
  %v3275 = vsel %vm3187, %v3167, 0.0
  %v3276 = vadd.f32 %v3274, %v3275
  %v3277 = vsel %vm3187, %v3168, 0.0
  %v3278 = vadd.f32 %v3276, %v3277
  %v3279 = vsel %vm3187, %v3169, 0.0
  %v3280 = vadd.f32 %v3278, %v3279
  %v3281 = vsel %vm3187, %v3170, 0.0
  %v3282 = vadd.f32 %v3280, %v3281
  %v3283 = vsel %vm3187, %v3171, 0.0
  %v3284 = vadd.f32 %v3282, %v3283
  %v3285 = vsel %vm3187, %v3172, 0.0
  %v3286 = vadd.f32 %v3284, %v3285
  %v3287 = vsel %vm3187, %v3173, 0.0
  %v3288 = vadd.f32 %v3286, %v3287
  %v3289 = vsel %vm3187, %v3174, 0.0
  %v3290 = vadd.f32 %v3288, %v3289
  %v3291 = vsel %vm3187, %v3175, 0.0
  %v3292 = vadd.f32 %v3290, %v3291
  %v3293 = vsel %vm3187, %v3176, 0.0
  %v3294 = vadd.f32 %v3292, %v3293
  %v3295 = vsel %vm3187, %v3177, 0.0
  %v3296 = vadd.f32 %v3294, %v3295
  %v3297 = vsel %vm3187, %v3178, 0.0
  %v3298 = vadd.f32 %v3296, %v3297
  %v3299 = vsel %vm3187, %v3179, 0.0
  %v3300 = vadd.f32 %v3298, %v3299
  %v3301 = vsel %vm3187, %v3180, 0.0
  %v3302 = vadd.f32 %v3300, %v3301
  %v3303 = vsel %vm3187, %v3181, 0.0
  %v3304 = vadd.f32 %v3302, %v3303
  %v3305 = vsel %vm3187, %v3182, 0.0
  %v3306 = vadd.f32 %v3304, %v3305
  %v3307 = vsel %vm3187, %v3183, 0.0
  %v3308 = vadd.f32 %v3306, %v3307
  %v3309 = vsel %vm3187, %v3184, 0.0
  %v3310 = vadd.f32 %v3308, %v3309
  %v3311 = vsel %vm3187, %v3185, 0.0
  %v3312 = vadd.f32 %v3310, %v3311
  %v3313 = vsel %vm3187, %v3186, 0.0
  %v3314 = vadd.f32 %v3312, %v3313
  %v3315 = vrot.slane %v3314, 4
  %v3316 = vadd.f32 %v3314, %v3315
  %v3317 = vrot.slane %v3316, 2
  %v3318 = vadd.f32 %v3316, %v3317
  %v3319 = vrot.slane %v3318, 1
  %v3320 = vadd.f32 %v3318, %v3319
  %v3321 = vmul.f32 %v3320, 0.001953125
  %v3322 = vmul.f32 %v3123, %v3123
  %v3323 = vmul.f32 %v3124, %v3124
  %v3324 = vmul.f32 %v3125, %v3125
  %v3325 = vmul.f32 %v3126, %v3126
  %v3326 = vmul.f32 %v3127, %v3127
  %v3327 = vmul.f32 %v3128, %v3128
  %v3328 = vmul.f32 %v3129, %v3129
  %v3329 = vmul.f32 %v3130, %v3130
  %v3330 = vmul.f32 %v3131, %v3131
  %v3331 = vmul.f32 %v3132, %v3132
  %v3332 = vmul.f32 %v3133, %v3133
  %v3333 = vmul.f32 %v3134, %v3134
  %v3334 = vmul.f32 %v3135, %v3135
  %v3335 = vmul.f32 %v3136, %v3136
  %v3336 = vmul.f32 %v3137, %v3137
  %v3337 = vmul.f32 %v3138, %v3138
  %v3338 = vmul.f32 %v3139, %v3139
  %v3339 = vmul.f32 %v3140, %v3140
  %v3340 = vmul.f32 %v3141, %v3141
  %v3341 = vmul.f32 %v3142, %v3142
  %v3342 = vmul.f32 %v3143, %v3143
  %v3343 = vmul.f32 %v3144, %v3144
  %v3344 = vmul.f32 %v3145, %v3145
  %v3345 = vmul.f32 %v3146, %v3146
  %v3346 = vmul.f32 %v3147, %v3147
  %v3347 = vmul.f32 %v3148, %v3148
  %v3348 = vmul.f32 %v3149, %v3149
  %v3349 = vmul.f32 %v3150, %v3150
  %v3350 = vmul.f32 %v3151, %v3151
  %v3351 = vmul.f32 %v3152, %v3152
  %v3352 = vmul.f32 %v3153, %v3153
  %v3353 = vmul.f32 %v3154, %v3154
  %v3354 = vmul.f32 %v3155, %v3155
  %v3355 = vmul.f32 %v3156, %v3156
  %v3356 = vmul.f32 %v3157, %v3157
  %v3357 = vmul.f32 %v3158, %v3158
  %v3358 = vmul.f32 %v3159, %v3159
  %v3359 = vmul.f32 %v3160, %v3160
  %v3360 = vmul.f32 %v3161, %v3161
  %v3361 = vmul.f32 %v3162, %v3162
  %v3362 = vmul.f32 %v3163, %v3163
  %v3363 = vmul.f32 %v3164, %v3164
  %v3364 = vmul.f32 %v3165, %v3165
  %v3365 = vmul.f32 %v3166, %v3166
  %v3366 = vmul.f32 %v3167, %v3167
  %v3367 = vmul.f32 %v3168, %v3168
  %v3368 = vmul.f32 %v3169, %v3169
  %v3369 = vmul.f32 %v3170, %v3170
  %v3370 = vmul.f32 %v3171, %v3171
  %v3371 = vmul.f32 %v3172, %v3172
  %v3372 = vmul.f32 %v3173, %v3173
  %v3373 = vmul.f32 %v3174, %v3174
  %v3374 = vmul.f32 %v3175, %v3175
  %v3375 = vmul.f32 %v3176, %v3176
  %v3376 = vmul.f32 %v3177, %v3177
  %v3377 = vmul.f32 %v3178, %v3178
  %v3378 = vmul.f32 %v3179, %v3179
  %v3379 = vmul.f32 %v3180, %v3180
  %v3380 = vmul.f32 %v3181, %v3181
  %v3381 = vmul.f32 %v3182, %v3182
  %v3382 = vmul.f32 %v3183, %v3183
  %v3383 = vmul.f32 %v3184, %v3184
  %v3384 = vmul.f32 %v3185, %v3185
  %v3385 = vmul.f32 %v3186, %v3186
  %v3386 = vsel %vm3187, %v3322, 0.0
  %v3387 = vsel %vm3187, %v3323, 0.0
  %v3388 = vadd.f32 %v3386, %v3387
  %v3389 = vsel %vm3187, %v3324, 0.0
  %v3390 = vadd.f32 %v3388, %v3389
  %v3391 = vsel %vm3187, %v3325, 0.0
  %v3392 = vadd.f32 %v3390, %v3391
  %v3393 = vsel %vm3187, %v3326, 0.0
  %v3394 = vadd.f32 %v3392, %v3393
  %v3395 = vsel %vm3187, %v3327, 0.0
  %v3396 = vadd.f32 %v3394, %v3395
  %v3397 = vsel %vm3187, %v3328, 0.0
  %v3398 = vadd.f32 %v3396, %v3397
  %v3399 = vsel %vm3187, %v3329, 0.0
  %v3400 = vadd.f32 %v3398, %v3399
  %v3401 = vsel %vm3187, %v3330, 0.0
  %v3402 = vadd.f32 %v3400, %v3401
  %v3403 = vsel %vm3187, %v3331, 0.0
  %v3404 = vadd.f32 %v3402, %v3403
  %v3405 = vsel %vm3187, %v3332, 0.0
  %v3406 = vadd.f32 %v3404, %v3405
  %v3407 = vsel %vm3187, %v3333, 0.0
  %v3408 = vadd.f32 %v3406, %v3407
  %v3409 = vsel %vm3187, %v3334, 0.0
  %v3410 = vadd.f32 %v3408, %v3409
  %v3411 = vsel %vm3187, %v3335, 0.0
  %v3412 = vadd.f32 %v3410, %v3411
  %v3413 = vsel %vm3187, %v3336, 0.0
  %v3414 = vadd.f32 %v3412, %v3413
  %v3415 = vsel %vm3187, %v3337, 0.0
  %v3416 = vadd.f32 %v3414, %v3415
  %v3417 = vsel %vm3187, %v3338, 0.0
  %v3418 = vadd.f32 %v3416, %v3417
  %v3419 = vsel %vm3187, %v3339, 0.0
  %v3420 = vadd.f32 %v3418, %v3419
  %v3421 = vsel %vm3187, %v3340, 0.0
  %v3422 = vadd.f32 %v3420, %v3421
  %v3423 = vsel %vm3187, %v3341, 0.0
  %v3424 = vadd.f32 %v3422, %v3423
  %v3425 = vsel %vm3187, %v3342, 0.0
  %v3426 = vadd.f32 %v3424, %v3425
  %v3427 = vsel %vm3187, %v3343, 0.0
  %v3428 = vadd.f32 %v3426, %v3427
  %v3429 = vsel %vm3187, %v3344, 0.0
  %v3430 = vadd.f32 %v3428, %v3429
  %v3431 = vsel %vm3187, %v3345, 0.0
  %v3432 = vadd.f32 %v3430, %v3431
  %v3433 = vsel %vm3187, %v3346, 0.0
  %v3434 = vadd.f32 %v3432, %v3433
  %v3435 = vsel %vm3187, %v3347, 0.0
  %v3436 = vadd.f32 %v3434, %v3435
  %v3437 = vsel %vm3187, %v3348, 0.0
  %v3438 = vadd.f32 %v3436, %v3437
  %v3439 = vsel %vm3187, %v3349, 0.0
  %v3440 = vadd.f32 %v3438, %v3439
  %v3441 = vsel %vm3187, %v3350, 0.0
  %v3442 = vadd.f32 %v3440, %v3441
  %v3443 = vsel %vm3187, %v3351, 0.0
  %v3444 = vadd.f32 %v3442, %v3443
  %v3445 = vsel %vm3187, %v3352, 0.0
  %v3446 = vadd.f32 %v3444, %v3445
  %v3447 = vsel %vm3187, %v3353, 0.0
  %v3448 = vadd.f32 %v3446, %v3447
  %v3449 = vsel %vm3187, %v3354, 0.0
  %v3450 = vadd.f32 %v3448, %v3449
  %v3451 = vsel %vm3187, %v3355, 0.0
  %v3452 = vadd.f32 %v3450, %v3451
  %v3453 = vsel %vm3187, %v3356, 0.0
  %v3454 = vadd.f32 %v3452, %v3453
  %v3455 = vsel %vm3187, %v3357, 0.0
  %v3456 = vadd.f32 %v3454, %v3455
  %v3457 = vsel %vm3187, %v3358, 0.0
  %v3458 = vadd.f32 %v3456, %v3457
  %v3459 = vsel %vm3187, %v3359, 0.0
  %v3460 = vadd.f32 %v3458, %v3459
  %v3461 = vsel %vm3187, %v3360, 0.0
  %v3462 = vadd.f32 %v3460, %v3461
  %v3463 = vsel %vm3187, %v3361, 0.0
  %v3464 = vadd.f32 %v3462, %v3463
  %v3465 = vsel %vm3187, %v3362, 0.0
  %v3466 = vadd.f32 %v3464, %v3465
  %v3467 = vsel %vm3187, %v3363, 0.0
  %v3468 = vadd.f32 %v3466, %v3467
  %v3469 = vsel %vm3187, %v3364, 0.0
  %v3470 = vadd.f32 %v3468, %v3469
  %v3471 = vsel %vm3187, %v3365, 0.0
  %v3472 = vadd.f32 %v3470, %v3471
  %v3473 = vsel %vm3187, %v3366, 0.0
  %v3474 = vadd.f32 %v3472, %v3473
  %v3475 = vsel %vm3187, %v3367, 0.0
  %v3476 = vadd.f32 %v3474, %v3475
  %v3477 = vsel %vm3187, %v3368, 0.0
  %v3478 = vadd.f32 %v3476, %v3477
  %v3479 = vsel %vm3187, %v3369, 0.0
  %v3480 = vadd.f32 %v3478, %v3479
  %v3481 = vsel %vm3187, %v3370, 0.0
  %v3482 = vadd.f32 %v3480, %v3481
  %v3483 = vsel %vm3187, %v3371, 0.0
  %v3484 = vadd.f32 %v3482, %v3483
  %v3485 = vsel %vm3187, %v3372, 0.0
  %v3486 = vadd.f32 %v3484, %v3485
  %v3487 = vsel %vm3187, %v3373, 0.0
  %v3488 = vadd.f32 %v3486, %v3487
  %v3489 = vsel %vm3187, %v3374, 0.0
  %v3490 = vadd.f32 %v3488, %v3489
  %v3491 = vsel %vm3187, %v3375, 0.0
  %v3492 = vadd.f32 %v3490, %v3491
  %v3493 = vsel %vm3187, %v3376, 0.0
  %v3494 = vadd.f32 %v3492, %v3493
  %v3495 = vsel %vm3187, %v3377, 0.0
  %v3496 = vadd.f32 %v3494, %v3495
  %v3497 = vsel %vm3187, %v3378, 0.0
  %v3498 = vadd.f32 %v3496, %v3497
  %v3499 = vsel %vm3187, %v3379, 0.0
  %v3500 = vadd.f32 %v3498, %v3499
  %v3501 = vsel %vm3187, %v3380, 0.0
  %v3502 = vadd.f32 %v3500, %v3501
  %v3503 = vsel %vm3187, %v3381, 0.0
  %v3504 = vadd.f32 %v3502, %v3503
  %v3505 = vsel %vm3187, %v3382, 0.0
  %v3506 = vadd.f32 %v3504, %v3505
  %v3507 = vsel %vm3187, %v3383, 0.0
  %v3508 = vadd.f32 %v3506, %v3507
  %v3509 = vsel %vm3187, %v3384, 0.0
  %v3510 = vadd.f32 %v3508, %v3509
  %v3511 = vsel %vm3187, %v3385, 0.0
  %v3512 = vadd.f32 %v3510, %v3511
  %v3513 = vrot.slane %v3512, 4
  %v3514 = vadd.f32 %v3512, %v3513
  %v3515 = vrot.slane %v3514, 2
  %v3516 = vadd.f32 %v3514, %v3515
  %v3517 = vrot.slane %v3516, 1
  %v3518 = vadd.f32 %v3516, %v3517
  %v3519 = vmul.f32 %v3518, 0.001953125
  %v3520 = vmul.f32 %v3321, %v3321
  %v3521 = vsub.f32 %v3519, %v3520
  %v3522 = vmax.f32 %v3521, 0.0
  %v3523 = vsub.f32 %v3123, %v3321
  %v3524 = vsub.f32 %v3124, %v3321
  %v3525 = vsub.f32 %v3125, %v3321
  %v3526 = vsub.f32 %v3126, %v3321
  %v3527 = vsub.f32 %v3127, %v3321
  %v3528 = vsub.f32 %v3128, %v3321
  %v3529 = vsub.f32 %v3129, %v3321
  %v3530 = vsub.f32 %v3130, %v3321
  %v3531 = vsub.f32 %v3131, %v3321
  %v3532 = vsub.f32 %v3132, %v3321
  %v3533 = vsub.f32 %v3133, %v3321
  %v3534 = vsub.f32 %v3134, %v3321
  %v3535 = vsub.f32 %v3135, %v3321
  %v3536 = vsub.f32 %v3136, %v3321
  %v3537 = vsub.f32 %v3137, %v3321
  %v3538 = vsub.f32 %v3138, %v3321
  %v3539 = vsub.f32 %v3139, %v3321
  %v3540 = vsub.f32 %v3140, %v3321
  %v3541 = vsub.f32 %v3141, %v3321
  %v3542 = vsub.f32 %v3142, %v3321
  %v3543 = vsub.f32 %v3143, %v3321
  %v3544 = vsub.f32 %v3144, %v3321
  %v3545 = vsub.f32 %v3145, %v3321
  %v3546 = vsub.f32 %v3146, %v3321
  %v3547 = vsub.f32 %v3147, %v3321
  %v3548 = vsub.f32 %v3148, %v3321
  %v3549 = vsub.f32 %v3149, %v3321
  %v3550 = vsub.f32 %v3150, %v3321
  %v3551 = vsub.f32 %v3151, %v3321
  %v3552 = vsub.f32 %v3152, %v3321
  %v3553 = vsub.f32 %v3153, %v3321
  %v3554 = vsub.f32 %v3154, %v3321
  %v3555 = vsub.f32 %v3155, %v3321
  %v3556 = vsub.f32 %v3156, %v3321
  %v3557 = vsub.f32 %v3157, %v3321
  %v3558 = vsub.f32 %v3158, %v3321
  %v3559 = vsub.f32 %v3159, %v3321
  %v3560 = vsub.f32 %v3160, %v3321
  %v3561 = vsub.f32 %v3161, %v3321
  %v3562 = vsub.f32 %v3162, %v3321
  %v3563 = vsub.f32 %v3163, %v3321
  %v3564 = vsub.f32 %v3164, %v3321
  %v3565 = vsub.f32 %v3165, %v3321
  %v3566 = vsub.f32 %v3166, %v3321
  %v3567 = vsub.f32 %v3167, %v3321
  %v3568 = vsub.f32 %v3168, %v3321
  %v3569 = vsub.f32 %v3169, %v3321
  %v3570 = vsub.f32 %v3170, %v3321
  %v3571 = vsub.f32 %v3171, %v3321
  %v3572 = vsub.f32 %v3172, %v3321
  %v3573 = vsub.f32 %v3173, %v3321
  %v3574 = vsub.f32 %v3174, %v3321
  %v3575 = vsub.f32 %v3175, %v3321
  %v3576 = vsub.f32 %v3176, %v3321
  %v3577 = vsub.f32 %v3177, %v3321
  %v3578 = vsub.f32 %v3178, %v3321
  %v3579 = vsub.f32 %v3179, %v3321
  %v3580 = vsub.f32 %v3180, %v3321
  %v3581 = vsub.f32 %v3181, %v3321
  %v3582 = vsub.f32 %v3182, %v3321
  %v3583 = vsub.f32 %v3183, %v3321
  %v3584 = vsub.f32 %v3184, %v3321
  %v3585 = vsub.f32 %v3185, %v3321
  %v3586 = vsub.f32 %v3186, %v3321
  %v3587 = vadd.f32 %v3522, 1e-05
  %v3588 = vrsqrt.pop %v3587
  %v3589 = vmul.f32 %v3588, %v3587
  %v3590 = vmul.f32 %v3589, %v3588
  %v3591 = vmul.f32 0.5, %v3590
  %v3592 = vsub.f32 1.5, %v3591
  %v3593 = vmul.f32 %v3588, %v3592
  %vm3594 = vweird.f32 %v3587
  %vm3595 = vweird.f32 %v3588
  %vm3596 = vmor %vm3594, %vm3595
  %v3597 = vsel %vm3596, %v3588, %v3593
  %v3598 = vld [vmem:[%s2] sm:$0x1]
  %v3599 = vmul.f32 %v3597, %v3598
  %v3600 = vperm.slane %v3599, 0
  %v3601 = vmul.f32 %v3523, %v3600
  %v3602 = vmul.f32 %v3524, %v3600
  %v3603 = vmul.f32 %v3525, %v3600
  %v3604 = vmul.f32 %v3526, %v3600
  %v3605 = vmul.f32 %v3527, %v3600
  %v3606 = vmul.f32 %v3528, %v3600
  %v3607 = vmul.f32 %v3529, %v3600
  %v3608 = vmul.f32 %v3530, %v3600
  %v3609 = vmul.f32 %v3531, %v3600
  %v3610 = vmul.f32 %v3532, %v3600
  %v3611 = vmul.f32 %v3533, %v3600
  %v3612 = vmul.f32 %v3534, %v3600
  %v3613 = vmul.f32 %v3535, %v3600
  %v3614 = vmul.f32 %v3536, %v3600
  %v3615 = vmul.f32 %v3537, %v3600
  %v3616 = vmul.f32 %v3538, %v3600
  %v3617 = vmul.f32 %v3539, %v3600
  %v3618 = vmul.f32 %v3540, %v3600
  %v3619 = vmul.f32 %v3541, %v3600
  %v3620 = vmul.f32 %v3542, %v3600
  %v3621 = vmul.f32 %v3543, %v3600
  %v3622 = vmul.f32 %v3544, %v3600
  %v3623 = vmul.f32 %v3545, %v3600
  %v3624 = vmul.f32 %v3546, %v3600
  %v3625 = vmul.f32 %v3547, %v3600
  %v3626 = vmul.f32 %v3548, %v3600
  %v3627 = vmul.f32 %v3549, %v3600
  %v3628 = vmul.f32 %v3550, %v3600
  %v3629 = vmul.f32 %v3551, %v3600
  %v3630 = vmul.f32 %v3552, %v3600
  %v3631 = vmul.f32 %v3553, %v3600
  %v3632 = vmul.f32 %v3554, %v3600
  %v3633 = vmul.f32 %v3555, %v3600
  %v3634 = vmul.f32 %v3556, %v3600
  %v3635 = vmul.f32 %v3557, %v3600
  %v3636 = vmul.f32 %v3558, %v3600
  %v3637 = vmul.f32 %v3559, %v3600
  %v3638 = vmul.f32 %v3560, %v3600
  %v3639 = vmul.f32 %v3561, %v3600
  %v3640 = vmul.f32 %v3562, %v3600
  %v3641 = vmul.f32 %v3563, %v3600
  %v3642 = vmul.f32 %v3564, %v3600
  %v3643 = vmul.f32 %v3565, %v3600
  %v3644 = vmul.f32 %v3566, %v3600
  %v3645 = vmul.f32 %v3567, %v3600
  %v3646 = vmul.f32 %v3568, %v3600
  %v3647 = vmul.f32 %v3569, %v3600
  %v3648 = vmul.f32 %v3570, %v3600
  %v3649 = vmul.f32 %v3571, %v3600
  %v3650 = vmul.f32 %v3572, %v3600
  %v3651 = vmul.f32 %v3573, %v3600
  %v3652 = vmul.f32 %v3574, %v3600
  %v3653 = vmul.f32 %v3575, %v3600
  %v3654 = vmul.f32 %v3576, %v3600
  %v3655 = vmul.f32 %v3577, %v3600
  %v3656 = vmul.f32 %v3578, %v3600
  %v3657 = vmul.f32 %v3579, %v3600
  %v3658 = vmul.f32 %v3580, %v3600
  %v3659 = vmul.f32 %v3581, %v3600
  %v3660 = vmul.f32 %v3582, %v3600
  %v3661 = vmul.f32 %v3583, %v3600
  %v3662 = vmul.f32 %v3584, %v3600
  %v3663 = vmul.f32 %v3585, %v3600
  %v3664 = vmul.f32 %v3586, %v3600
  %v3665 = vld [vmem:[%s3] sm:$0x1]
  %v3667 = vperm.slane %v3665, 0
  %v3669 = vadd.f32 %v3601, %v3667
  %v3670 = vadd.f32 %v3602, %v3667
  %v3671 = vadd.f32 %v3603, %v3667
  %v3672 = vadd.f32 %v3604, %v3667
  %v3673 = vadd.f32 %v3605, %v3667
  %v3674 = vadd.f32 %v3606, %v3667
  %v3675 = vadd.f32 %v3607, %v3667
  %v3676 = vadd.f32 %v3608, %v3667
  %v3677 = vadd.f32 %v3609, %v3667
  %v3678 = vadd.f32 %v3610, %v3667
  %v3679 = vadd.f32 %v3611, %v3667
  %v3680 = vadd.f32 %v3612, %v3667
  %v3681 = vadd.f32 %v3613, %v3667
  %v3682 = vadd.f32 %v3614, %v3667
  %v3683 = vadd.f32 %v3615, %v3667
  %v3684 = vadd.f32 %v3616, %v3667
  %v3685 = vadd.f32 %v3617, %v3667
  %v3686 = vadd.f32 %v3618, %v3667
  %v3687 = vadd.f32 %v3619, %v3667
  %v3688 = vadd.f32 %v3620, %v3667
  %v3689 = vadd.f32 %v3621, %v3667
  %v3690 = vadd.f32 %v3622, %v3667
  %v3691 = vadd.f32 %v3623, %v3667
  %v3692 = vadd.f32 %v3624, %v3667
  %v3693 = vadd.f32 %v3625, %v3667
  %v3694 = vadd.f32 %v3626, %v3667
  %v3695 = vadd.f32 %v3627, %v3667
  %v3696 = vadd.f32 %v3628, %v3667
  %v3697 = vadd.f32 %v3629, %v3667
  %v3698 = vadd.f32 %v3630, %v3667
  %v3699 = vadd.f32 %v3631, %v3667
  %v3700 = vadd.f32 %v3632, %v3667
  %v3701 = vadd.f32 %v3633, %v3667
  %v3702 = vadd.f32 %v3634, %v3667
  %v3703 = vadd.f32 %v3635, %v3667
  %v3704 = vadd.f32 %v3636, %v3667
  %v3705 = vadd.f32 %v3637, %v3667
  %v3706 = vadd.f32 %v3638, %v3667
  %v3707 = vadd.f32 %v3639, %v3667
  %v3708 = vadd.f32 %v3640, %v3667
  %v3709 = vadd.f32 %v3641, %v3667
  %v3710 = vadd.f32 %v3642, %v3667
  %v3711 = vadd.f32 %v3643, %v3667
  %v3712 = vadd.f32 %v3644, %v3667
  %v3713 = vadd.f32 %v3645, %v3667
  %v3714 = vadd.f32 %v3646, %v3667
  %v3715 = vadd.f32 %v3647, %v3667
  %v3716 = vadd.f32 %v3648, %v3667
  %v3717 = vadd.f32 %v3649, %v3667
  %v3718 = vadd.f32 %v3650, %v3667
  %v3719 = vadd.f32 %v3651, %v3667
  %v3720 = vadd.f32 %v3652, %v3667
  %v3721 = vadd.f32 %v3653, %v3667
  %v3722 = vadd.f32 %v3654, %v3667
  %v3723 = vadd.f32 %v3655, %v3667
  %v3724 = vadd.f32 %v3656, %v3667
  %v3725 = vadd.f32 %v3657, %v3667
  %v3726 = vadd.f32 %v3658, %v3667
  %v3727 = vadd.f32 %v3659, %v3667
  %v3728 = vadd.f32 %v3660, %v3667
  %v3729 = vadd.f32 %v3661, %v3667
  %v3730 = vadd.f32 %v3662, %v3667
  %v3731 = vadd.f32 %v3663, %v3667
  %v3732 = vadd.f32 %v3664, %v3667
  %vm3733 = vcmp.gt.f32.partialorder %v3669, 0.0
  %vm3734 = vcmp.gt.f32.partialorder %v3670, 0.0
  %vm3735 = vcmp.gt.f32.partialorder %v3671, 0.0
  %vm3736 = vcmp.gt.f32.partialorder %v3672, 0.0
  %vm3737 = vcmp.gt.f32.partialorder %v3673, 0.0
  %vm3738 = vcmp.gt.f32.partialorder %v3674, 0.0
  %vm3739 = vcmp.gt.f32.partialorder %v3675, 0.0
  %vm3740 = vcmp.gt.f32.partialorder %v3676, 0.0
  %vm3741 = vcmp.gt.f32.partialorder %v3677, 0.0
  %vm3742 = vcmp.gt.f32.partialorder %v3678, 0.0
  %vm3743 = vcmp.gt.f32.partialorder %v3679, 0.0
  %vm3744 = vcmp.gt.f32.partialorder %v3680, 0.0
  %vm3745 = vcmp.gt.f32.partialorder %v3681, 0.0
  %vm3746 = vcmp.gt.f32.partialorder %v3682, 0.0
  %vm3747 = vcmp.gt.f32.partialorder %v3683, 0.0
  %vm3748 = vcmp.gt.f32.partialorder %v3684, 0.0
  %vm3749 = vcmp.gt.f32.partialorder %v3685, 0.0
  %vm3750 = vcmp.gt.f32.partialorder %v3686, 0.0
  %vm3751 = vcmp.gt.f32.partialorder %v3687, 0.0
  %vm3752 = vcmp.gt.f32.partialorder %v3688, 0.0
  %vm3753 = vcmp.gt.f32.partialorder %v3689, 0.0
  %vm3754 = vcmp.gt.f32.partialorder %v3690, 0.0
  %vm3755 = vcmp.gt.f32.partialorder %v3691, 0.0
  %vm3756 = vcmp.gt.f32.partialorder %v3692, 0.0
  %vm3757 = vcmp.gt.f32.partialorder %v3693, 0.0
  %vm3758 = vcmp.gt.f32.partialorder %v3694, 0.0
  %vm3759 = vcmp.gt.f32.partialorder %v3695, 0.0
  %vm3760 = vcmp.gt.f32.partialorder %v3696, 0.0
  %vm3761 = vcmp.gt.f32.partialorder %v3697, 0.0
  %vm3762 = vcmp.gt.f32.partialorder %v3698, 0.0
  %vm3763 = vcmp.gt.f32.partialorder %v3699, 0.0
  %vm3764 = vcmp.gt.f32.partialorder %v3700, 0.0
  %vm3765 = vcmp.gt.f32.partialorder %v3701, 0.0
  %vm3766 = vcmp.gt.f32.partialorder %v3702, 0.0
  %vm3767 = vcmp.gt.f32.partialorder %v3703, 0.0
  %vm3768 = vcmp.gt.f32.partialorder %v3704, 0.0
  %vm3769 = vcmp.gt.f32.partialorder %v3705, 0.0
  %vm3770 = vcmp.gt.f32.partialorder %v3706, 0.0
  %vm3771 = vcmp.gt.f32.partialorder %v3707, 0.0
  %vm3772 = vcmp.gt.f32.partialorder %v3708, 0.0
  %vm3773 = vcmp.gt.f32.partialorder %v3709, 0.0
  %vm3774 = vcmp.gt.f32.partialorder %v3710, 0.0
  %vm3775 = vcmp.gt.f32.partialorder %v3711, 0.0
  %vm3776 = vcmp.gt.f32.partialorder %v3712, 0.0
  %vm3777 = vcmp.gt.f32.partialorder %v3713, 0.0
  %vm3778 = vcmp.gt.f32.partialorder %v3714, 0.0
  %vm3779 = vcmp.gt.f32.partialorder %v3715, 0.0
  %vm3780 = vcmp.gt.f32.partialorder %v3716, 0.0
  %vm3781 = vcmp.gt.f32.partialorder %v3717, 0.0
  %vm3782 = vcmp.gt.f32.partialorder %v3718, 0.0
  %vm3783 = vcmp.gt.f32.partialorder %v3719, 0.0
  %vm3784 = vcmp.gt.f32.partialorder %v3720, 0.0
  %vm3785 = vcmp.gt.f32.partialorder %v3721, 0.0
  %vm3786 = vcmp.gt.f32.partialorder %v3722, 0.0
  %vm3787 = vcmp.gt.f32.partialorder %v3723, 0.0
  %vm3788 = vcmp.gt.f32.partialorder %v3724, 0.0
  %vm3789 = vcmp.gt.f32.partialorder %v3725, 0.0
  %vm3790 = vcmp.gt.f32.partialorder %v3726, 0.0
  %vm3791 = vcmp.gt.f32.partialorder %v3727, 0.0
  %vm3792 = vcmp.gt.f32.partialorder %v3728, 0.0
  %vm3793 = vcmp.gt.f32.partialorder %v3729, 0.0
  %vm3794 = vcmp.gt.f32.partialorder %v3730, 0.0
  %vm3795 = vcmp.gt.f32.partialorder %v3731, 0.0
  %vm3796 = vcmp.gt.f32.partialorder %v3732, 0.0
  %v3797 = vmul.f32 %v3669, 0.1
  %v3798 = vmul.f32 %v3670, 0.1
  %v3799 = vmul.f32 %v3671, 0.1
  %v3800 = vmul.f32 %v3672, 0.1
  %v3801 = vmul.f32 %v3673, 0.1
  %v3802 = vmul.f32 %v3674, 0.1
  %v3803 = vmul.f32 %v3675, 0.1
  %v3804 = vmul.f32 %v3676, 0.1
  %v3805 = vmul.f32 %v3677, 0.1
  %v3806 = vmul.f32 %v3678, 0.1
  %v3807 = vmul.f32 %v3679, 0.1
  %v3808 = vmul.f32 %v3680, 0.1
  %v3809 = vmul.f32 %v3681, 0.1
  %v3810 = vmul.f32 %v3682, 0.1
  %v3811 = vmul.f32 %v3683, 0.1
  %v3812 = vmul.f32 %v3684, 0.1
  %v3813 = vmul.f32 %v3685, 0.1
  %v3814 = vmul.f32 %v3686, 0.1
  %v3815 = vmul.f32 %v3687, 0.1
  %v3816 = vmul.f32 %v3688, 0.1
  %v3817 = vmul.f32 %v3689, 0.1
  %v3818 = vmul.f32 %v3690, 0.1
  %v3819 = vmul.f32 %v3691, 0.1
  %v3820 = vmul.f32 %v3692, 0.1
  %v3821 = vmul.f32 %v3693, 0.1
  %v3822 = vmul.f32 %v3694, 0.1
  %v3823 = vmul.f32 %v3695, 0.1
  %v3824 = vmul.f32 %v3696, 0.1
  %v3825 = vmul.f32 %v3697, 0.1
  %v3826 = vmul.f32 %v3698, 0.1
  %v3827 = vmul.f32 %v3699, 0.1
  %v3828 = vmul.f32 %v3700, 0.1
  %v3829 = vmul.f32 %v3701, 0.1
  %v3830 = vmul.f32 %v3702, 0.1
  %v3831 = vmul.f32 %v3703, 0.1
  %v3832 = vmul.f32 %v3704, 0.1
  %v3833 = vmul.f32 %v3705, 0.1
  %v3834 = vmul.f32 %v3706, 0.1
  %v3835 = vmul.f32 %v3707, 0.1
  %v3836 = vmul.f32 %v3708, 0.1
  %v3837 = vmul.f32 %v3709, 0.1
  %v3838 = vmul.f32 %v3710, 0.1
  %v3839 = vmul.f32 %v3711, 0.1
  %v3840 = vmul.f32 %v3712, 0.1
  %v3841 = vmul.f32 %v3713, 0.1
  %v3842 = vmul.f32 %v3714, 0.1
  %v3843 = vmul.f32 %v3715, 0.1
  %v3844 = vmul.f32 %v3716, 0.1
  %v3845 = vmul.f32 %v3717, 0.1
  %v3846 = vmul.f32 %v3718, 0.1
  %v3847 = vmul.f32 %v3719, 0.1
  %v3848 = vmul.f32 %v3720, 0.1
  %v3849 = vmul.f32 %v3721, 0.1
  %v3850 = vmul.f32 %v3722, 0.1
  %v3851 = vmul.f32 %v3723, 0.1
  %v3852 = vmul.f32 %v3724, 0.1
  %v3853 = vmul.f32 %v3725, 0.1
  %v3854 = vmul.f32 %v3726, 0.1
  %v3855 = vmul.f32 %v3727, 0.1
  %v3856 = vmul.f32 %v3728, 0.1
  %v3857 = vmul.f32 %v3729, 0.1
  %v3858 = vmul.f32 %v3730, 0.1
  %v3859 = vmul.f32 %v3731, 0.1
  %v3860 = vmul.f32 %v3732, 0.1
  %v3861 = vsel %vm3733, %v3669, %v3797
  %v3862 = vsel %vm3734, %v3670, %v3798
  %v3863 = vsel %vm3735, %v3671, %v3799
  %v3864 = vsel %vm3736, %v3672, %v3800
  %v3865 = vsel %vm3737, %v3673, %v3801
  %v3866 = vsel %vm3738, %v3674, %v3802
  %v3867 = vsel %vm3739, %v3675, %v3803
  %v3868 = vsel %vm3740, %v3676, %v3804
  %v3869 = vsel %vm3741, %v3677, %v3805
  %v3870 = vsel %vm3742, %v3678, %v3806
  %v3871 = vsel %vm3743, %v3679, %v3807
  %v3872 = vsel %vm3744, %v3680, %v3808
  %v3873 = vsel %vm3745, %v3681, %v3809
  %v3874 = vsel %vm3746, %v3682, %v3810
  %v3875 = vsel %vm3747, %v3683, %v3811
  %v3876 = vsel %vm3748, %v3684, %v3812
  %v3877 = vsel %vm3749, %v3685, %v3813
  %v3878 = vsel %vm3750, %v3686, %v3814
  %v3879 = vsel %vm3751, %v3687, %v3815
  %v3880 = vsel %vm3752, %v3688, %v3816
  %v3881 = vsel %vm3753, %v3689, %v3817
  %v3882 = vsel %vm3754, %v3690, %v3818
  %v3883 = vsel %vm3755, %v3691, %v3819
  %v3884 = vsel %vm3756, %v3692, %v3820
  %v3885 = vsel %vm3757, %v3693, %v3821
  %v3886 = vsel %vm3758, %v3694, %v3822
  %v3887 = vsel %vm3759, %v3695, %v3823
  %v3888 = vsel %vm3760, %v3696, %v3824
  %v3889 = vsel %vm3761, %v3697, %v3825
  %v3890 = vsel %vm3762, %v3698, %v3826
  %v3891 = vsel %vm3763, %v3699, %v3827
  %v3892 = vsel %vm3764, %v3700, %v3828
  %v3893 = vsel %vm3765, %v3701, %v3829
  %v3894 = vsel %vm3766, %v3702, %v3830
  %v3895 = vsel %vm3767, %v3703, %v3831
  %v3896 = vsel %vm3768, %v3704, %v3832
  %v3897 = vsel %vm3769, %v3705, %v3833
  %v3898 = vsel %vm3770, %v3706, %v3834
  %v3899 = vsel %vm3771, %v3707, %v3835
  %v3900 = vsel %vm3772, %v3708, %v3836
  %v3901 = vsel %vm3773, %v3709, %v3837
  %v3902 = vsel %vm3774, %v3710, %v3838
  %v3903 = vsel %vm3775, %v3711, %v3839
  %v3904 = vsel %vm3776, %v3712, %v3840
  %v3905 = vsel %vm3777, %v3713, %v3841
  %v3906 = vsel %vm3778, %v3714, %v3842
  %v3907 = vsel %vm3779, %v3715, %v3843
  %v3908 = vsel %vm3780, %v3716, %v3844
  %v3909 = vsel %vm3781, %v3717, %v3845
  %v3910 = vsel %vm3782, %v3718, %v3846
  %v3911 = vsel %vm3783, %v3719, %v3847
  %v3912 = vsel %vm3784, %v3720, %v3848
  %v3913 = vsel %vm3785, %v3721, %v3849
  %v3914 = vsel %vm3786, %v3722, %v3850
  %v3915 = vsel %vm3787, %v3723, %v3851
  %v3916 = vsel %vm3788, %v3724, %v3852
  %v3917 = vsel %vm3789, %v3725, %v3853
  %v3918 = vsel %vm3790, %v3726, %v3854
  %v3919 = vsel %vm3791, %v3727, %v3855
  %v3920 = vsel %vm3792, %v3728, %v3856
  %v3921 = vsel %vm3793, %v3729, %v3857
  %v3922 = vsel %vm3794, %v3730, %v3858
  %v3923 = vsel %vm3795, %v3731, %v3859
  %v3924 = vsel %vm3796, %v3732, %v3860
  %v3925 = vpack.c.bf16 %v3861, %v3861
  %v3926 = vpack.c.bf16 %v3862, %v3862
  %v3927 = vpack.c.bf16 %v3863, %v3863
  %v3928 = vpack.c.bf16 %v3864, %v3864
  %v3929 = vpack.c.bf16 %v3865, %v3865
  %v3930 = vpack.c.bf16 %v3866, %v3866
  %v3931 = vpack.c.bf16 %v3867, %v3867
  %v3932 = vpack.c.bf16 %v3868, %v3868
  %v3933 = vpack.c.bf16 %v3869, %v3869
  %v3934 = vpack.c.bf16 %v3870, %v3870
  %v3935 = vpack.c.bf16 %v3871, %v3871
  %v3936 = vpack.c.bf16 %v3872, %v3872
  %v3937 = vpack.c.bf16 %v3873, %v3873
  %v3938 = vpack.c.bf16 %v3874, %v3874
  %v3939 = vpack.c.bf16 %v3875, %v3875
  %v3940 = vpack.c.bf16 %v3876, %v3876
  %v3941 = vpack.c.bf16 %v3877, %v3877
  %v3942 = vpack.c.bf16 %v3878, %v3878
  %v3943 = vpack.c.bf16 %v3879, %v3879
  %v3944 = vpack.c.bf16 %v3880, %v3880
  %v3945 = vpack.c.bf16 %v3881, %v3881
  %v3946 = vpack.c.bf16 %v3882, %v3882
  %v3947 = vpack.c.bf16 %v3883, %v3883
  %v3948 = vpack.c.bf16 %v3884, %v3884
  %v3949 = vpack.c.bf16 %v3885, %v3885
  %v3950 = vpack.c.bf16 %v3886, %v3886
  %v3951 = vpack.c.bf16 %v3887, %v3887
  %v3952 = vpack.c.bf16 %v3888, %v3888
  %v3953 = vpack.c.bf16 %v3889, %v3889
  %v3954 = vpack.c.bf16 %v3890, %v3890
  %v3955 = vpack.c.bf16 %v3891, %v3891
  %v3956 = vpack.c.bf16 %v3892, %v3892
  %v3957 = vpack.c.bf16 %v3893, %v3893
  %v3958 = vpack.c.bf16 %v3894, %v3894
  %v3959 = vpack.c.bf16 %v3895, %v3895
  %v3960 = vpack.c.bf16 %v3896, %v3896
  %v3961 = vpack.c.bf16 %v3897, %v3897
  %v3962 = vpack.c.bf16 %v3898, %v3898
  %v3963 = vpack.c.bf16 %v3899, %v3899
  %v3964 = vpack.c.bf16 %v3900, %v3900
  %v3965 = vpack.c.bf16 %v3901, %v3901
  %v3966 = vpack.c.bf16 %v3902, %v3902
  %v3967 = vpack.c.bf16 %v3903, %v3903
  %v3968 = vpack.c.bf16 %v3904, %v3904
  %v3969 = vpack.c.bf16 %v3905, %v3905
  %v3970 = vpack.c.bf16 %v3906, %v3906
  %v3971 = vpack.c.bf16 %v3907, %v3907
  %v3972 = vpack.c.bf16 %v3908, %v3908
  %v3973 = vpack.c.bf16 %v3909, %v3909
  %v3974 = vpack.c.bf16 %v3910, %v3910
  %v3975 = vpack.c.bf16 %v3911, %v3911
  %v3976 = vpack.c.bf16 %v3912, %v3912
  %v3977 = vpack.c.bf16 %v3913, %v3913
  %v3978 = vpack.c.bf16 %v3914, %v3914
  %v3979 = vpack.c.bf16 %v3915, %v3915
  %v3980 = vpack.c.bf16 %v3916, %v3916
  %v3981 = vpack.c.bf16 %v3917, %v3917
  %v3982 = vpack.c.bf16 %v3918, %v3918
  %v3983 = vpack.c.bf16 %v3919, %v3919
  %v3984 = vpack.c.bf16 %v3920, %v3920
  %v3985 = vpack.c.bf16 %v3921, %v3921
  %v3986 = vpack.c.bf16 %v3922, %v3922
  %v3987 = vpack.c.bf16 %v3923, %v3923
  %v3988 = vpack.c.bf16 %v3924, %v3924
  %vm3989 = vcmask 60416
  %3990 = vst.msk [vmem:[%s4] sm:$0xf] %vm3989, %v3925
  %3991 = vst.msk [vmem:[%s4 + $0x4] sm:$0xf] %vm3989, %v3926
  %3992 = vst.msk [vmem:[%s4 + $0x8] sm:$0xf] %vm3989, %v3927
  %3993 = vst.msk [vmem:[%s4 + $0xc] sm:$0xf] %vm3989, %v3928
  %3994 = vst.msk [vmem:[%s4 + $0x10] sm:$0xf] %vm3989, %v3929
  %3995 = vst.msk [vmem:[%s4 + $0x14] sm:$0xf] %vm3989, %v3930
  %3996 = vst.msk [vmem:[%s4 + $0x18] sm:$0xf] %vm3989, %v3931
  %3997 = vst.msk [vmem:[%s4 + $0x1c] sm:$0xf] %vm3989, %v3932
  %3998 = vst.msk [vmem:[%s4 + $0x20] sm:$0xf] %vm3989, %v3933
  %3999 = vst.msk [vmem:[%s4 + $0x24] sm:$0xf] %vm3989, %v3934
  %4000 = vst.msk [vmem:[%s4 + $0x28] sm:$0xf] %vm3989, %v3935
  %4001 = vst.msk [vmem:[%s4 + $0x2c] sm:$0xf] %vm3989, %v3936
  %4002 = vst.msk [vmem:[%s4 + $0x30] sm:$0xf] %vm3989, %v3937
  %4003 = vst.msk [vmem:[%s4 + $0x34] sm:$0xf] %vm3989, %v3938
  %4004 = vst.msk [vmem:[%s4 + $0x38] sm:$0xf] %vm3989, %v3939
  %4005 = vst.msk [vmem:[%s4 + $0x3c] sm:$0xf] %vm3989, %v3940
  %4006 = vst.msk [vmem:[%s4 + $0x40] sm:$0xf] %vm3989, %v3941
  %4007 = vst.msk [vmem:[%s4 + $0x44] sm:$0xf] %vm3989, %v3942
  %4008 = vst.msk [vmem:[%s4 + $0x48] sm:$0xf] %vm3989, %v3943
  %4009 = vst.msk [vmem:[%s4 + $0x4c] sm:$0xf] %vm3989, %v3944
  %4010 = vst.msk [vmem:[%s4 + $0x50] sm:$0xf] %vm3989, %v3945
  %4011 = vst.msk [vmem:[%s4 + $0x54] sm:$0xf] %vm3989, %v3946
  %4012 = vst.msk [vmem:[%s4 + $0x58] sm:$0xf] %vm3989, %v3947
  %4013 = vst.msk [vmem:[%s4 + $0x5c] sm:$0xf] %vm3989, %v3948
  %4014 = vst.msk [vmem:[%s4 + $0x60] sm:$0xf] %vm3989, %v3949
  %4015 = vst.msk [vmem:[%s4 + $0x64] sm:$0xf] %vm3989, %v3950
  %4016 = vst.msk [vmem:[%s4 + $0x68] sm:$0xf] %vm3989, %v3951
  %4017 = vst.msk [vmem:[%s4 + $0x6c] sm:$0xf] %vm3989, %v3952
  %4018 = vst.msk [vmem:[%s4 + $0x70] sm:$0xf] %vm3989, %v3953
  %4019 = vst.msk [vmem:[%s4 + $0x74] sm:$0xf] %vm3989, %v3954
  %4020 = vst.msk [vmem:[%s4 + $0x78] sm:$0xf] %vm3989, %v3955
  %4021 = vst.msk [vmem:[%s4 + $0x7c] sm:$0xf] %vm3989, %v3956
  %4022 = vst.msk [vmem:[%s4 + $0x80] sm:$0xf] %vm3989, %v3957
  %4023 = vst.msk [vmem:[%s4 + $0x84] sm:$0xf] %vm3989, %v3958
  %4024 = vst.msk [vmem:[%s4 + $0x88] sm:$0xf] %vm3989, %v3959
  %4025 = vst.msk [vmem:[%s4 + $0x8c] sm:$0xf] %vm3989, %v3960
  %4026 = vst.msk [vmem:[%s4 + $0x90] sm:$0xf] %vm3989, %v3961
  %4027 = vst.msk [vmem:[%s4 + $0x94] sm:$0xf] %vm3989, %v3962
  %4028 = vst.msk [vmem:[%s4 + $0x98] sm:$0xf] %vm3989, %v3963
  %4029 = vst.msk [vmem:[%s4 + $0x9c] sm:$0xf] %vm3989, %v3964
  %4030 = vst.msk [vmem:[%s4 + $0xa0] sm:$0xf] %vm3989, %v3965
  %4031 = vst.msk [vmem:[%s4 + $0xa4] sm:$0xf] %vm3989, %v3966
  %4032 = vst.msk [vmem:[%s4 + $0xa8] sm:$0xf] %vm3989, %v3967
  %4033 = vst.msk [vmem:[%s4 + $0xac] sm:$0xf] %vm3989, %v3968
  %4034 = vst.msk [vmem:[%s4 + $0xb0] sm:$0xf] %vm3989, %v3969
  %4035 = vst.msk [vmem:[%s4 + $0xb4] sm:$0xf] %vm3989, %v3970
  %4036 = vst.msk [vmem:[%s4 + $0xb8] sm:$0xf] %vm3989, %v3971
  %4037 = vst.msk [vmem:[%s4 + $0xbc] sm:$0xf] %vm3989, %v3972
  %4038 = vst.msk [vmem:[%s4 + $0xc0] sm:$0xf] %vm3989, %v3973
  %4039 = vst.msk [vmem:[%s4 + $0xc4] sm:$0xf] %vm3989, %v3974
  %4040 = vst.msk [vmem:[%s4 + $0xc8] sm:$0xf] %vm3989, %v3975
  %4041 = vst.msk [vmem:[%s4 + $0xcc] sm:$0xf] %vm3989, %v3976
  %4042 = vst.msk [vmem:[%s4 + $0xd0] sm:$0xf] %vm3989, %v3977
  %4043 = vst.msk [vmem:[%s4 + $0xd4] sm:$0xf] %vm3989, %v3978
  %4044 = vst.msk [vmem:[%s4 + $0xd8] sm:$0xf] %vm3989, %v3979
  %4045 = vst.msk [vmem:[%s4 + $0xdc] sm:$0xf] %vm3989, %v3980
  %4046 = vst.msk [vmem:[%s4 + $0xe0] sm:$0xf] %vm3989, %v3981
  %4047 = vst.msk [vmem:[%s4 + $0xe4] sm:$0xf] %vm3989, %v3982
  %4048 = vst.msk [vmem:[%s4 + $0xe8] sm:$0xf] %vm3989, %v3983
  %4049 = vst.msk [vmem:[%s4 + $0xec] sm:$0xf] %vm3989, %v3984
  %4050 = vst.msk [vmem:[%s4 + $0xf0] sm:$0xf] %vm3989, %v3985
  %4051 = vst.msk [vmem:[%s4 + $0xf4] sm:$0xf] %vm3989, %v3986
  %4052 = vst.msk [vmem:[%s4 + $0xf8] sm:$0xf] %vm3989, %v3987
  %4053 = vst.msk [vmem:[%s4 + $0xfc] sm:$0xf] %vm3989, %v3988
  // Predicated region
  $region18: #{darknet_forward.8} parent=0 // pred_check
    _
  $region19: #{darknet_forward.8} parent=0 // pred_check_branch
    %4055 = sbr.rel (0) target = $region21
  $region20: #{darknet_forward.8} parent=0 // pred_region
    _
  $region21: #{darknet_forward.8} parent=0 // pred_fallthru
    _
  // Predicated region
  $region22: #{darknet_forward.8} parent=0 // pred_check
    _
  $region23: #{darknet_forward.8} parent=0 // pred_check_branch
    %4057 = sbr.rel (0) target = $region25
  $region24: #{darknet_forward.8} parent=0 // pred_region
    _
  $region25: #{darknet_forward.8} parent=0 // pred_fallthru
    _

// kernel: darknet_forward.15
$region0: #{darknet_forward.15}
  #allocation0 [shape = 'u32[]', space=smem, size = 0x4, offset = 0x4, fixed_abs, tag = 'smem constant byte address 0x4 - core index']
  #allocation1 [shape = 'u32[72,128]{1,0:T(1,128)}', space=vmem, size = 0x9000, scoped, tag = 'internal scratch']
  %s0 = inlined_call_operand.vmem [shape: bf16[2,16,16,16], index: 0, kind: input, shape index: {}]
  %s1 = inlined_call_operand.vmem [shape: bf16[1,1,16,12], index: 1, kind: input, shape index: {}]
  %s2 = inlined_call_operand.vmem [shape: f32[1,12], index: 2, kind: input, shape index: {}]
  %s3 = inlined_call_operand.vmem [shape: f32[1,12], index: 3, kind: input, shape index: {}]
  %s4 = inlined_call_operand.vmem [shape: f32[512,12], index: 4, kind: output, shape index: {}]
  %s5 = sld [smem:[#allocation0]]
  $region26: #{darknet_forward.15} parent=0
    _
  %s7 = ssub.s32 1, %s5
  %s8 = scalar_select 0, %s7, %s5
  // Predicated region
  $region2: #{darknet_forward.15} parent=0 // pred_check
    _
  $region3: #{darknet_forward.15} parent=0 // pred_check_branch
    %10 = sbr.rel (0) target = $region5
  $region4: #{darknet_forward.15} parent=0 // pred_region
    _
  $region5: #{darknet_forward.15} parent=0 // pred_fallthru
    _
  // Predicated region
  $region6: #{darknet_forward.15} parent=0 // pred_check
    _
  $region7: #{darknet_forward.15} parent=0 // pred_check_branch
    %12 = sbr.rel (0) target = $region9
  $region8: #{darknet_forward.15} parent=0 // pred_region
    _
  $region9: #{darknet_forward.15} parent=0 // pred_fallthru
    _
  // Predicated region
  $region10: #{darknet_forward.15} parent=0 // pred_check
    _
  $region11: #{darknet_forward.15} parent=0 // pred_check_branch
    %14 = sbr.rel (0) target = $region13
  $region12: #{darknet_forward.15} parent=0 // pred_region
    _
  $region13: #{darknet_forward.15} parent=0 // pred_fallthru
    _
  // Predicated region
  $region14: #{darknet_forward.15} parent=0 // pred_check
    _
  $region15: #{darknet_forward.15} parent=0 // pred_check_branch
    %16 = sbr.rel (0) target = $region17
  $region16: #{darknet_forward.15} parent=0 // pred_region
    _
  $region17: #{darknet_forward.15} parent=0 // pred_fallthru
    _
  %v18 = vld [vmem:[%s0] sm:$0xf]
  %v19 = vld [vmem:[%s0 + $0x4] sm:$0xf]
  %v20 = vld [vmem:[%s0 + $0x8] sm:$0xf]
  %v21 = vld [vmem:[%s0 + $0xc] sm:$0xf]
  %v22 = vld [vmem:[%s0 + $0x10] sm:$0xf]
  %v23 = vld [vmem:[%s0 + $0x14] sm:$0xf]
  %v24 = vld [vmem:[%s0 + $0x18] sm:$0xf]
  %v25 = vld [vmem:[%s0 + $0x1c] sm:$0xf]
  %v26 = vld [vmem:[%s0 + $0x20] sm:$0xf]
  %v27 = vld [vmem:[%s0 + $0x24] sm:$0xf]
  %v28 = vld [vmem:[%s0 + $0x28] sm:$0xf]
  %v29 = vld [vmem:[%s0 + $0x2c] sm:$0xf]
  %v30 = vld [vmem:[%s0 + $0x30] sm:$0xf]
  %v31 = vld [vmem:[%s0 + $0x34] sm:$0xf]
  %v32 = vld [vmem:[%s0 + $0x38] sm:$0xf]
  %v33 = vld [vmem:[%s0 + $0x3c] sm:$0xf]
  %v34 = vld [vmem:[%s0 + $0x40] sm:$0xf]
  %v35 = vld [vmem:[%s0 + $0x44] sm:$0xf]
  %v36 = vld [vmem:[%s0 + $0x48] sm:$0xf]
  %v37 = vld [vmem:[%s0 + $0x4c] sm:$0xf]
  %v38 = vld [vmem:[%s0 + $0x50] sm:$0xf]
  %v39 = vld [vmem:[%s0 + $0x54] sm:$0xf]
  %v40 = vld [vmem:[%s0 + $0x58] sm:$0xf]
  %v41 = vld [vmem:[%s0 + $0x5c] sm:$0xf]
  %v42 = vld [vmem:[%s0 + $0x60] sm:$0xf]
  %v43 = vld [vmem:[%s0 + $0x64] sm:$0xf]
  %v44 = vld [vmem:[%s0 + $0x68] sm:$0xf]
  %v45 = vld [vmem:[%s0 + $0x6c] sm:$0xf]
  %v46 = vld [vmem:[%s0 + $0x70] sm:$0xf]
  %v47 = vld [vmem:[%s0 + $0x74] sm:$0xf]
  %v48 = vld [vmem:[%s0 + $0x78] sm:$0xf]
  %v49 = vld [vmem:[%s0 + $0x7c] sm:$0xf]
  %v50 = vld [vmem:[%s0 + $0x80] sm:$0xf]
  %v51 = vld [vmem:[%s0 + $0x84] sm:$0xf]
  %v52 = vld [vmem:[%s0 + $0x88] sm:$0xf]
  %v53 = vld [vmem:[%s0 + $0x8c] sm:$0xf]
  %v54 = vld [vmem:[%s0 + $0x90] sm:$0xf]
  %v55 = vld [vmem:[%s0 + $0x94] sm:$0xf]
  %v56 = vld [vmem:[%s0 + $0x98] sm:$0xf]
  %v57 = vld [vmem:[%s0 + $0x9c] sm:$0xf]
  %v58 = vld [vmem:[%s0 + $0xa0] sm:$0xf]
  %v59 = vld [vmem:[%s0 + $0xa4] sm:$0xf]
  %v60 = vld [vmem:[%s0 + $0xa8] sm:$0xf]
  %v61 = vld [vmem:[%s0 + $0xac] sm:$0xf]
  %v62 = vld [vmem:[%s0 + $0xb0] sm:$0xf]
  %v63 = vld [vmem:[%s0 + $0xb4] sm:$0xf]
  %v64 = vld [vmem:[%s0 + $0xb8] sm:$0xf]
  %v65 = vld [vmem:[%s0 + $0xbc] sm:$0xf]
  %v66 = vld [vmem:[%s0 + $0xc0] sm:$0xf]
  %v67 = vld [vmem:[%s0 + $0xc4] sm:$0xf]
  %v68 = vld [vmem:[%s0 + $0xc8] sm:$0xf]
  %v69 = vld [vmem:[%s0 + $0xcc] sm:$0xf]
  %v70 = vld [vmem:[%s0 + $0xd0] sm:$0xf]
  %v71 = vld [vmem:[%s0 + $0xd4] sm:$0xf]
  %v72 = vld [vmem:[%s0 + $0xd8] sm:$0xf]
  %v73 = vld [vmem:[%s0 + $0xdc] sm:$0xf]
  %v74 = vld [vmem:[%s0 + $0xe0] sm:$0xf]
  %v75 = vld [vmem:[%s0 + $0xe4] sm:$0xf]
  %v76 = vld [vmem:[%s0 + $0xe8] sm:$0xf]
  %v77 = vld [vmem:[%s0 + $0xec] sm:$0xf]
  %v78 = vld [vmem:[%s0 + $0xf0] sm:$0xf]
  %v79 = vld [vmem:[%s0 + $0xf4] sm:$0xf]
  %v80 = vld [vmem:[%s0 + $0xf8] sm:$0xf]
  %v81 = vld [vmem:[%s0 + $0xfc] sm:$0xf]
  %v82 = vunpack.c.l.bf16 %v18
  %v83 = vunpack.c.l.bf16 %v19
  %v84 = vunpack.c.l.bf16 %v20
  %v85 = vunpack.c.l.bf16 %v21
  %v86 = vunpack.c.l.bf16 %v22
  %v87 = vunpack.c.l.bf16 %v23
  %v88 = vunpack.c.l.bf16 %v24
  %v89 = vunpack.c.l.bf16 %v25
  %v90 = vunpack.c.l.bf16 %v26
  %v91 = vunpack.c.l.bf16 %v27
  %v92 = vunpack.c.l.bf16 %v28
  %v93 = vunpack.c.l.bf16 %v29
  %v94 = vunpack.c.l.bf16 %v30
  %v95 = vunpack.c.l.bf16 %v31
  %v96 = vunpack.c.l.bf16 %v32
  %v97 = vunpack.c.l.bf16 %v33
  %v98 = vunpack.c.l.bf16 %v34
  %v99 = vunpack.c.l.bf16 %v35
  %v100 = vunpack.c.l.bf16 %v36
  %v101 = vunpack.c.l.bf16 %v37
  %v102 = vunpack.c.l.bf16 %v38
  %v103 = vunpack.c.l.bf16 %v39
  %v104 = vunpack.c.l.bf16 %v40
  %v105 = vunpack.c.l.bf16 %v41
  %v106 = vunpack.c.l.bf16 %v42
  %v107 = vunpack.c.l.bf16 %v43
  %v108 = vunpack.c.l.bf16 %v44
  %v109 = vunpack.c.l.bf16 %v45
  %v110 = vunpack.c.l.bf16 %v46
  %v111 = vunpack.c.l.bf16 %v47
  %v112 = vunpack.c.l.bf16 %v48
  %v113 = vunpack.c.l.bf16 %v49
  %v114 = vunpack.c.l.bf16 %v50
  %v115 = vunpack.c.l.bf16 %v51
  %v116 = vunpack.c.l.bf16 %v52
  %v117 = vunpack.c.l.bf16 %v53
  %v118 = vunpack.c.l.bf16 %v54
  %v119 = vunpack.c.l.bf16 %v55
  %v120 = vunpack.c.l.bf16 %v56
  %v121 = vunpack.c.l.bf16 %v57
  %v122 = vunpack.c.l.bf16 %v58
  %v123 = vunpack.c.l.bf16 %v59
  %v124 = vunpack.c.l.bf16 %v60
  %v125 = vunpack.c.l.bf16 %v61
  %v126 = vunpack.c.l.bf16 %v62
  %v127 = vunpack.c.l.bf16 %v63
  %v128 = vunpack.c.l.bf16 %v64
  %v129 = vunpack.c.l.bf16 %v65
  %v130 = vunpack.c.l.bf16 %v66
  %v131 = vunpack.c.l.bf16 %v67
  %v132 = vunpack.c.l.bf16 %v68
  %v133 = vunpack.c.l.bf16 %v69
  %v134 = vunpack.c.l.bf16 %v70
  %v135 = vunpack.c.l.bf16 %v71
  %v136 = vunpack.c.l.bf16 %v72
  %v137 = vunpack.c.l.bf16 %v73
  %v138 = vunpack.c.l.bf16 %v74
  %v139 = vunpack.c.l.bf16 %v75
  %v140 = vunpack.c.l.bf16 %v76
  %v141 = vunpack.c.l.bf16 %v77
  %v142 = vunpack.c.l.bf16 %v78
  %v143 = vunpack.c.l.bf16 %v79
  %v144 = vunpack.c.l.bf16 %v80
  %v145 = vunpack.c.l.bf16 %v81
  %v146 = vpack.c.bf16 %v83, %v82
  %v147 = vpack.c.bf16 %v85, %v84
  %v148 = vpack.c.bf16 %v87, %v86
  %v149 = vpack.c.bf16 %v89, %v88
  %v150 = vpack.c.bf16 %v91, %v90
  %v151 = vpack.c.bf16 %v93, %v92
  %v152 = vpack.c.bf16 %v95, %v94
  %v153 = vpack.c.bf16 %v97, %v96
  %v154 = vpack.c.bf16 %v99, %v98
  %v155 = vpack.c.bf16 %v101, %v100
  %v156 = vpack.c.bf16 %v103, %v102
  %v157 = vpack.c.bf16 %v105, %v104
  %v158 = vpack.c.bf16 %v107, %v106
  %v159 = vpack.c.bf16 %v109, %v108
  %v160 = vpack.c.bf16 %v111, %v110
  %v161 = vpack.c.bf16 %v113, %v112
  %v162 = vpack.c.bf16 %v115, %v114
  %v163 = vpack.c.bf16 %v117, %v116
  %v164 = vpack.c.bf16 %v119, %v118
  %v165 = vpack.c.bf16 %v121, %v120
  %v166 = vpack.c.bf16 %v123, %v122
  %v167 = vpack.c.bf16 %v125, %v124
  %v168 = vpack.c.bf16 %v127, %v126
  %v169 = vpack.c.bf16 %v129, %v128
  %v170 = vpack.c.bf16 %v131, %v130
  %v171 = vpack.c.bf16 %v133, %v132
  %v172 = vpack.c.bf16 %v135, %v134
  %v173 = vpack.c.bf16 %v137, %v136
  %v174 = vpack.c.bf16 %v139, %v138
  %v175 = vpack.c.bf16 %v141, %v140
  %v176 = vpack.c.bf16 %v143, %v142
  %v177 = vpack.c.bf16 %v145, %v144
  %v178 = vld [vmem:[%s1] sm:$0xf]
  %v179 = vld [vmem:[%s1 + $0x4] sm:$0xf]
  %v180 = vld [vmem:[%s3] sm:$0x1]
  %v182 = vperm.slane %v180, 0
  %v186 = vunpack.c.l.b16 %v178
  %v187 = vunpack.c.l.b16 %v179
  %v188 = vpack.c.b16 %v187, %v186
  %vm190 = vcmask 130048
  %v192 = vsel %vm190, %v146, 0
  %v195 = vsel %vm190, %v147, 0
  %v198 = vsel %vm190, %v148, 0
  %v201 = vsel %vm190, %v149, 0
  %v204 = vsel %vm190, %v150, 0
  %v207 = vsel %vm190, %v151, 0
  %v210 = vsel %vm190, %v152, 0
  %v213 = vsel %vm190, %v153, 0
  %v216 = vsel %vm190, %v154, 0
  %v219 = vsel %vm190, %v155, 0
  %v222 = vsel %vm190, %v156, 0
  %v225 = vsel %vm190, %v157, 0
  %v228 = vsel %vm190, %v158, 0
  %v231 = vsel %vm190, %v159, 0
  %v234 = vsel %vm190, %v160, 0
  %v237 = vsel %vm190, %v161, 0
  %v240 = vsel %vm190, %v162, 0
  %v243 = vsel %vm190, %v163, 0
  %v246 = vsel %vm190, %v164, 0
  %v249 = vsel %vm190, %v165, 0
  %v252 = vsel %vm190, %v166, 0
  %v255 = vsel %vm190, %v167, 0
  %v258 = vsel %vm190, %v168, 0
  %v261 = vsel %vm190, %v169, 0
  %v264 = vsel %vm190, %v170, 0
  %v267 = vsel %vm190, %v171, 0
  %v270 = vsel %vm190, %v172, 0
  %v273 = vsel %vm190, %v173, 0
  %v276 = vsel %vm190, %v174, 0
  %v279 = vsel %vm190, %v175, 0
  %v282 = vsel %vm190, %v176, 0
  %v285 = vsel %vm190, %v177, 0
  %287 = vmatpush.bf16.msra.mxu0 0
  %288 = vmatpush.bf16.msra.mxu0 0
  %289 = vmatpush.bf16.msra.mxu0 0
  %290 = vmatpush.bf16.msra.mxu0 0
  %291 = vmatpush.bf16.msra.mxu0 0
  %292 = vmatpush.bf16.msra.mxu0 0
  %293 = vmatpush.bf16.msra.mxu0 0
  %294 = vmatpush.bf16.msra.mxu0 %v188
  %295 = vmatmul.bf16.gmra.mxu0 %v192
  %v296 = vpop.f32.mrf.mxu0
  %v297 = vadd.f32 %v182, %v296
  %v298 = vpop.f32.mrf.mxu0
  %v299 = vadd.f32 %v182, %v298
  %300 = vmatmul.bf16.gmra.mxu0 %v195
  %v301 = vpop.f32.mrf.mxu0
  %v302 = vadd.f32 %v182, %v301
  %v303 = vpop.f32.mrf.mxu0
  %v304 = vadd.f32 %v182, %v303
  %305 = vmatmul.bf16.gmra.mxu0 %v198
  %v306 = vpop.f32.mrf.mxu0
  %v307 = vadd.f32 %v182, %v306
  %v308 = vpop.f32.mrf.mxu0
  %v309 = vadd.f32 %v182, %v308
  %310 = vmatmul.bf16.gmra.mxu0 %v201
  %v311 = vpop.f32.mrf.mxu0
  %v312 = vadd.f32 %v182, %v311
  %v313 = vpop.f32.mrf.mxu0
  %v314 = vadd.f32 %v182, %v313
  %315 = vmatmul.bf16.gmra.mxu0 %v204
  %v316 = vpop.f32.mrf.mxu0
  %v317 = vadd.f32 %v182, %v316
  %v318 = vpop.f32.mrf.mxu0
  %v319 = vadd.f32 %v182, %v318
  %320 = vmatmul.bf16.gmra.mxu0 %v207
  %v321 = vpop.f32.mrf.mxu0
  %v322 = vadd.f32 %v182, %v321
  %v323 = vpop.f32.mrf.mxu0
  %v324 = vadd.f32 %v182, %v323
  %325 = vmatmul.bf16.gmra.mxu0 %v210
  %v326 = vpop.f32.mrf.mxu0
  %v327 = vadd.f32 %v182, %v326
  %v328 = vpop.f32.mrf.mxu0
  %v329 = vadd.f32 %v182, %v328
  %330 = vmatmul.bf16.gmra.mxu0 %v213
  %v331 = vpop.f32.mrf.mxu0
  %v332 = vadd.f32 %v182, %v331
  %v333 = vpop.f32.mrf.mxu0
  %v334 = vadd.f32 %v182, %v333
  %335 = vmatmul.bf16.gmra.mxu0 %v216
  %v336 = vpop.f32.mrf.mxu0
  %v337 = vadd.f32 %v182, %v336
  %v338 = vpop.f32.mrf.mxu0
  %v339 = vadd.f32 %v182, %v338
  %340 = vmatmul.bf16.gmra.mxu0 %v219
  %v341 = vpop.f32.mrf.mxu0
  %v342 = vadd.f32 %v182, %v341
  %v343 = vpop.f32.mrf.mxu0
  %v344 = vadd.f32 %v182, %v343
  %345 = vmatmul.bf16.gmra.mxu0 %v222
  %v346 = vpop.f32.mrf.mxu0
  %v347 = vadd.f32 %v182, %v346
  %v348 = vpop.f32.mrf.mxu0
  %v349 = vadd.f32 %v182, %v348
  %350 = vmatmul.bf16.gmra.mxu0 %v225
  %v351 = vpop.f32.mrf.mxu0
  %v352 = vadd.f32 %v182, %v351
  %v353 = vpop.f32.mrf.mxu0
  %v354 = vadd.f32 %v182, %v353
  %355 = vmatmul.bf16.gmra.mxu0 %v228
  %v356 = vpop.f32.mrf.mxu0
  %v357 = vadd.f32 %v182, %v356
  %v358 = vpop.f32.mrf.mxu0
  %v359 = vadd.f32 %v182, %v358
  %360 = vmatmul.bf16.gmra.mxu0 %v231
  %v361 = vpop.f32.mrf.mxu0
  %v362 = vadd.f32 %v182, %v361
  %v363 = vpop.f32.mrf.mxu0
  %v364 = vadd.f32 %v182, %v363
  %365 = vmatmul.bf16.gmra.mxu0 %v234
  %v366 = vpop.f32.mrf.mxu0
  %v367 = vadd.f32 %v182, %v366
  %v368 = vpop.f32.mrf.mxu0
  %v369 = vadd.f32 %v182, %v368
  %370 = vmatmul.bf16.gmra.mxu0 %v237
  %v371 = vpop.f32.mrf.mxu0
  %v372 = vadd.f32 %v182, %v371
  %v373 = vpop.f32.mrf.mxu0
  %v374 = vadd.f32 %v182, %v373
  %375 = vmatmul.bf16.gmra.mxu0 %v240
  %v376 = vpop.f32.mrf.mxu0
  %v377 = vadd.f32 %v182, %v376
  %v378 = vpop.f32.mrf.mxu0
  %v379 = vadd.f32 %v182, %v378
  %380 = vmatmul.bf16.gmra.mxu0 %v243
  %v381 = vpop.f32.mrf.mxu0
  %v382 = vadd.f32 %v182, %v381
  %v383 = vpop.f32.mrf.mxu0
  %v384 = vadd.f32 %v182, %v383
  %385 = vmatmul.bf16.gmra.mxu0 %v246
  %v386 = vpop.f32.mrf.mxu0
  %v387 = vadd.f32 %v182, %v386
  %v388 = vpop.f32.mrf.mxu0
  %v389 = vadd.f32 %v182, %v388
  %390 = vmatmul.bf16.gmra.mxu0 %v249
  %v391 = vpop.f32.mrf.mxu0
  %v392 = vadd.f32 %v182, %v391
  %v393 = vpop.f32.mrf.mxu0
  %v394 = vadd.f32 %v182, %v393
  %395 = vmatmul.bf16.gmra.mxu0 %v252
  %v396 = vpop.f32.mrf.mxu0
  %v397 = vadd.f32 %v182, %v396
  %v398 = vpop.f32.mrf.mxu0
  %v399 = vadd.f32 %v182, %v398
  %400 = vmatmul.bf16.gmra.mxu0 %v255
  %v401 = vpop.f32.mrf.mxu0
  %v402 = vadd.f32 %v182, %v401
  %v403 = vpop.f32.mrf.mxu0
  %v404 = vadd.f32 %v182, %v403
  %405 = vmatmul.bf16.gmra.mxu0 %v258
  %v406 = vpop.f32.mrf.mxu0
  %v407 = vadd.f32 %v182, %v406
  %v408 = vpop.f32.mrf.mxu0
  %v409 = vadd.f32 %v182, %v408
  %410 = vmatmul.bf16.gmra.mxu0 %v261
  %v411 = vpop.f32.mrf.mxu0
  %v412 = vadd.f32 %v182, %v411
  %v413 = vpop.f32.mrf.mxu0
  %v414 = vadd.f32 %v182, %v413
  %415 = vmatmul.bf16.gmra.mxu0 %v264
  %v416 = vpop.f32.mrf.mxu0
  %v417 = vadd.f32 %v182, %v416
  %v418 = vpop.f32.mrf.mxu0
  %v419 = vadd.f32 %v182, %v418
  %420 = vmatmul.bf16.gmra.mxu0 %v267
  %v421 = vpop.f32.mrf.mxu0
  %v422 = vadd.f32 %v182, %v421
  %v423 = vpop.f32.mrf.mxu0
  %v424 = vadd.f32 %v182, %v423
  %425 = vmatmul.bf16.gmra.mxu0 %v270
  %v426 = vpop.f32.mrf.mxu0
  %v427 = vadd.f32 %v182, %v426
  %v428 = vpop.f32.mrf.mxu0
  %v429 = vadd.f32 %v182, %v428
  %430 = vmatmul.bf16.gmra.mxu0 %v273
  %v431 = vpop.f32.mrf.mxu0
  %v432 = vadd.f32 %v182, %v431
  %v433 = vpop.f32.mrf.mxu0
  %v434 = vadd.f32 %v182, %v433
  %435 = vmatmul.bf16.gmra.mxu0 %v276
  %v436 = vpop.f32.mrf.mxu0
  %v437 = vadd.f32 %v182, %v436
  %v438 = vpop.f32.mrf.mxu0
  %v439 = vadd.f32 %v182, %v438
  %440 = vmatmul.bf16.gmra.mxu0 %v279
  %v441 = vpop.f32.mrf.mxu0
  %v442 = vadd.f32 %v182, %v441
  %v443 = vpop.f32.mrf.mxu0
  %v444 = vadd.f32 %v182, %v443
  %445 = vmatmul.bf16.gmra.mxu0 %v282
  %v446 = vpop.f32.mrf.mxu0
  %v447 = vadd.f32 %v182, %v446
  %v448 = vpop.f32.mrf.mxu0
  %v449 = vadd.f32 %v182, %v448
  %450 = vmatmul.bf16.gmra.mxu0 %v285
  %v451 = vpop.f32.mrf.mxu0
  %v452 = vadd.f32 %v182, %v451
  %v453 = vpop.f32.mrf.mxu0
  %v454 = vadd.f32 %v182, %v453
  %455 = vdwg.mxu0
  %vm456 = vcmask 97280
  %457 = vst.msk [vmem:[%s4] sm:$0xff] %vm456, %v297
  %458 = vst.msk [vmem:[%s4 + $0x8] sm:$0xff] %vm456, %v299
  %459 = vst.msk [vmem:[%s4 + $0x10] sm:$0xff] %vm456, %v302
  %460 = vst.msk [vmem:[%s4 + $0x18] sm:$0xff] %vm456, %v304
  %461 = vst.msk [vmem:[%s4 + $0x20] sm:$0xff] %vm456, %v307
  %462 = vst.msk [vmem:[%s4 + $0x28] sm:$0xff] %vm456, %v309
  %463 = vst.msk [vmem:[%s4 + $0x30] sm:$0xff] %vm456, %v312
  %464 = vst.msk [vmem:[%s4 + $0x38] sm:$0xff] %vm456, %v314
  %465 = vst.msk [vmem:[%s4 + $0x40] sm:$0xff] %vm456, %v317
  %466 = vst.msk [vmem:[%s4 + $0x48] sm:$0xff] %vm456, %v319
  %467 = vst.msk [vmem:[%s4 + $0x50] sm:$0xff] %vm456, %v322
  %468 = vst.msk [vmem:[%s4 + $0x58] sm:$0xff] %vm456, %v324
  %469 = vst.msk [vmem:[%s4 + $0x60] sm:$0xff] %vm456, %v327
  %470 = vst.msk [vmem:[%s4 + $0x68] sm:$0xff] %vm456, %v329
  %471 = vst.msk [vmem:[%s4 + $0x70] sm:$0xff] %vm456, %v332
  %472 = vst.msk [vmem:[%s4 + $0x78] sm:$0xff] %vm456, %v334
  %473 = vst.msk [vmem:[%s4 + $0x80] sm:$0xff] %vm456, %v337
  %474 = vst.msk [vmem:[%s4 + $0x88] sm:$0xff] %vm456, %v339
  %475 = vst.msk [vmem:[%s4 + $0x90] sm:$0xff] %vm456, %v342
  %476 = vst.msk [vmem:[%s4 + $0x98] sm:$0xff] %vm456, %v344
  %477 = vst.msk [vmem:[%s4 + $0xa0] sm:$0xff] %vm456, %v347
  %478 = vst.msk [vmem:[%s4 + $0xa8] sm:$0xff] %vm456, %v349
  %479 = vst.msk [vmem:[%s4 + $0xb0] sm:$0xff] %vm456, %v352
  %480 = vst.msk [vmem:[%s4 + $0xb8] sm:$0xff] %vm456, %v354
  %481 = vst.msk [vmem:[%s4 + $0xc0] sm:$0xff] %vm456, %v357
  %482 = vst.msk [vmem:[%s4 + $0xc8] sm:$0xff] %vm456, %v359
  %483 = vst.msk [vmem:[%s4 + $0xd0] sm:$0xff] %vm456, %v362
  %484 = vst.msk [vmem:[%s4 + $0xd8] sm:$0xff] %vm456, %v364
  %485 = vst.msk [vmem:[%s4 + $0xe0] sm:$0xff] %vm456, %v367
  %486 = vst.msk [vmem:[%s4 + $0xe8] sm:$0xff] %vm456, %v369
  %487 = vst.msk [vmem:[%s4 + $0xf0] sm:$0xff] %vm456, %v372
  %488 = vst.msk [vmem:[%s4 + $0xf8] sm:$0xff] %vm456, %v374
  %489 = vst.msk [vmem:[%s4 + $0x100] sm:$0xff] %vm456, %v377
  %490 = vst.msk [vmem:[%s4 + $0x108] sm:$0xff] %vm456, %v379
  %491 = vst.msk [vmem:[%s4 + $0x110] sm:$0xff] %vm456, %v382
  %492 = vst.msk [vmem:[%s4 + $0x118] sm:$0xff] %vm456, %v384
  %493 = vst.msk [vmem:[%s4 + $0x120] sm:$0xff] %vm456, %v387
  %494 = vst.msk [vmem:[%s4 + $0x128] sm:$0xff] %vm456, %v389
  %495 = vst.msk [vmem:[%s4 + $0x130] sm:$0xff] %vm456, %v392
  %496 = vst.msk [vmem:[%s4 + $0x138] sm:$0xff] %vm456, %v394
  %497 = vst.msk [vmem:[%s4 + $0x140] sm:$0xff] %vm456, %v397
  %498 = vst.msk [vmem:[%s4 + $0x148] sm:$0xff] %vm456, %v399
  %499 = vst.msk [vmem:[%s4 + $0x150] sm:$0xff] %vm456, %v402
  %500 = vst.msk [vmem:[%s4 + $0x158] sm:$0xff] %vm456, %v404
  %501 = vst.msk [vmem:[%s4 + $0x160] sm:$0xff] %vm456, %v407
  %502 = vst.msk [vmem:[%s4 + $0x168] sm:$0xff] %vm456, %v409
  %503 = vst.msk [vmem:[%s4 + $0x170] sm:$0xff] %vm456, %v412
  %504 = vst.msk [vmem:[%s4 + $0x178] sm:$0xff] %vm456, %v414
  %505 = vst.msk [vmem:[%s4 + $0x180] sm:$0xff] %vm456, %v417
  %506 = vst.msk [vmem:[%s4 + $0x188] sm:$0xff] %vm456, %v419
  %507 = vst.msk [vmem:[%s4 + $0x190] sm:$0xff] %vm456, %v422
  %508 = vst.msk [vmem:[%s4 + $0x198] sm:$0xff] %vm456, %v424
  %509 = vst.msk [vmem:[%s4 + $0x1a0] sm:$0xff] %vm456, %v427
  %510 = vst.msk [vmem:[%s4 + $0x1a8] sm:$0xff] %vm456, %v429
  %511 = vst.msk [vmem:[%s4 + $0x1b0] sm:$0xff] %vm456, %v432
  %512 = vst.msk [vmem:[%s4 + $0x1b8] sm:$0xff] %vm456, %v434
  %513 = vst.msk [vmem:[%s4 + $0x1c0] sm:$0xff] %vm456, %v437
  %514 = vst.msk [vmem:[%s4 + $0x1c8] sm:$0xff] %vm456, %v439
  %515 = vst.msk [vmem:[%s4 + $0x1d0] sm:$0xff] %vm456, %v442
  %516 = vst.msk [vmem:[%s4 + $0x1d8] sm:$0xff] %vm456, %v444
  %517 = vst.msk [vmem:[%s4 + $0x1e0] sm:$0xff] %vm456, %v447
  %518 = vst.msk [vmem:[%s4 + $0x1e8] sm:$0xff] %vm456, %v449
  %519 = vst.msk [vmem:[%s4 + $0x1f0] sm:$0xff] %vm456, %v452
  %520 = vst.msk [vmem:[%s4 + $0x1f8] sm:$0xff] %vm456, %v454
  // Predicated region
  $region18: #{darknet_forward.15} parent=0 // pred_check
    _
  $region19: #{darknet_forward.15} parent=0 // pred_check_branch
    %522 = sbr.rel (0) target = $region21
  $region20: #{darknet_forward.15} parent=0 // pred_region
    _
  $region21: #{darknet_forward.15} parent=0 // pred_fallthru
    _
  // Predicated region
  $region22: #{darknet_forward.15} parent=0 // pred_check
    _
  $region23: #{darknet_forward.15} parent=0 // pred_check_branch
    %524 = sbr.rel (0) target = $region25
  $region24: #{darknet_forward.15} parent=0 // pred_region
    _
  $region25: #{darknet_forward.15} parent=0 // pred_fallthru
    _

// kernel: darknet_forward.14
$region0: #{darknet_forward.14}
  #allocation0 [shape = 'u32[]', space=smem, size = 0x4, offset = 0x4, fixed_abs, tag = 'smem constant byte address 0x4 - core index']
  #allocation1 [shape = 'u32[72,128]{1,0:T(1,128)}', space=vmem, size = 0x9000, scoped, tag = 'internal scratch']
  %s0 = inlined_call_operand.vmem [shape: bf16[2,18,18,16], index: 0, kind: input, shape index: {}]
  %s1 = inlined_call_operand.vmem [shape: bf16[3,3,16,16], index: 1, kind: input, shape index: {}]
  %s2 = inlined_call_operand.vmem [shape: f32[1,16], index: 2, kind: input, shape index: {}]
  %s3 = inlined_call_operand.vmem [shape: f32[1,16], index: 3, kind: input, shape index: {}]
  %s4 = inlined_call_operand.vmem [shape: bf16[512,16], index: 4, kind: output, shape index: {}]
  %s5 = sld [smem:[#allocation0]]
  $region26: #{darknet_forward.14} parent=0
    _
  %s7 = ssub.s32 1, %s5
  %s8 = scalar_select 0, %s7, %s5
  // Predicated region
  $region2: #{darknet_forward.14} parent=0 // pred_check
    _
  $region3: #{darknet_forward.14} parent=0 // pred_check_branch
    %10 = sbr.rel (0) target = $region5
  $region4: #{darknet_forward.14} parent=0 // pred_region
    _
  $region5: #{darknet_forward.14} parent=0 // pred_fallthru
    _
  // Predicated region
  $region6: #{darknet_forward.14} parent=0 // pred_check
    _
  $region7: #{darknet_forward.14} parent=0 // pred_check_branch
    %12 = sbr.rel (0) target = $region9
  $region8: #{darknet_forward.14} parent=0 // pred_region
    _
  $region9: #{darknet_forward.14} parent=0 // pred_fallthru
    _
  // Predicated region
  $region10: #{darknet_forward.14} parent=0 // pred_check
    _
  $region11: #{darknet_forward.14} parent=0 // pred_check_branch
    %14 = sbr.rel (0) target = $region13
  $region12: #{darknet_forward.14} parent=0 // pred_region
    _
  $region13: #{darknet_forward.14} parent=0 // pred_fallthru
    _
  // Predicated region
  $region14: #{darknet_forward.14} parent=0 // pred_check
    _
  $region15: #{darknet_forward.14} parent=0 // pred_check_branch
    %16 = sbr.rel (0) target = $region17
  $region16: #{darknet_forward.14} parent=0 // pred_region
    _
  $region17: #{darknet_forward.14} parent=0 // pred_fallthru
    _
  %v18 = vld [vmem:[%s0] sm:$0xf]
  %v19 = vld [vmem:[%s0 + $0x4] sm:$0xf]
  %v20 = vld [vmem:[%s0 + $0x8] sm:$0x1]
  %v21 = vld [vmem:[%s0 + $0xc] sm:$0xf]
  %v22 = vld [vmem:[%s0 + $0x10] sm:$0xf]
  %v23 = vld [vmem:[%s0 + $0x14] sm:$0x1]
  %v24 = vld [vmem:[%s0 + $0x18] sm:$0xf]
  %v25 = vld [vmem:[%s0 + $0x1c] sm:$0xf]
  %v26 = vld [vmem:[%s0 + $0x20] sm:$0x1]
  %v27 = vld [vmem:[%s0 + $0x24] sm:$0xf]
  %v28 = vld [vmem:[%s0 + $0x28] sm:$0xf]
  %v29 = vld [vmem:[%s0 + $0x2c] sm:$0x1]
  %v30 = vld [vmem:[%s0 + $0x30] sm:$0xf]
  %v31 = vld [vmem:[%s0 + $0x34] sm:$0xf]
  %v32 = vld [vmem:[%s0 + $0x38] sm:$0x1]
  %v33 = vld [vmem:[%s0 + $0x3c] sm:$0xf]
  %v34 = vld [vmem:[%s0 + $0x40] sm:$0xf]
  %v35 = vld [vmem:[%s0 + $0x44] sm:$0x1]
  %v36 = vld [vmem:[%s0 + $0x48] sm:$0xf]
  %v37 = vld [vmem:[%s0 + $0x4c] sm:$0xf]
  %v38 = vld [vmem:[%s0 + $0x50] sm:$0x1]
  %v39 = vld [vmem:[%s0 + $0x54] sm:$0xf]
  %v40 = vld [vmem:[%s0 + $0x58] sm:$0xf]
  %v41 = vld [vmem:[%s0 + $0x5c] sm:$0x1]
  %v42 = vld [vmem:[%s0 + $0x60] sm:$0xf]
  %v43 = vld [vmem:[%s0 + $0x64] sm:$0xf]
  %v44 = vld [vmem:[%s0 + $0x68] sm:$0x1]
  %v45 = vld [vmem:[%s0 + $0x6c] sm:$0xf]
  %v46 = vld [vmem:[%s0 + $0x70] sm:$0xf]
  %v47 = vld [vmem:[%s0 + $0x74] sm:$0x1]
  %v48 = vld [vmem:[%s0 + $0x78] sm:$0xf]
  %v49 = vld [vmem:[%s0 + $0x7c] sm:$0xf]
  %v50 = vld [vmem:[%s0 + $0x80] sm:$0x1]
  %v51 = vld [vmem:[%s0 + $0x84] sm:$0xf]
  %v52 = vld [vmem:[%s0 + $0x88] sm:$0xf]
  %v53 = vld [vmem:[%s0 + $0x8c] sm:$0x1]
  %v54 = vld [vmem:[%s0 + $0x90] sm:$0xf]
  %v55 = vld [vmem:[%s0 + $0x94] sm:$0xf]
  %v56 = vld [vmem:[%s0 + $0x98] sm:$0x1]
  %v57 = vld [vmem:[%s0 + $0x9c] sm:$0xf]
  %v58 = vld [vmem:[%s0 + $0xa0] sm:$0xf]
  %v59 = vld [vmem:[%s0 + $0xa4] sm:$0x1]
  %v60 = vld [vmem:[%s0 + $0xa8] sm:$0xf]
  %v61 = vld [vmem:[%s0 + $0xac] sm:$0xf]
  %v62 = vld [vmem:[%s0 + $0xb0] sm:$0x1]
  %v63 = vld [vmem:[%s0 + $0xb4] sm:$0xf]
  %v64 = vld [vmem:[%s0 + $0xb8] sm:$0xf]
  %v65 = vld [vmem:[%s0 + $0xbc] sm:$0x1]
  %v66 = vld [vmem:[%s0 + $0xc0] sm:$0xf]
  %v67 = vld [vmem:[%s0 + $0xc4] sm:$0xf]
  %v68 = vld [vmem:[%s0 + $0xc8] sm:$0x1]
  %v69 = vld [vmem:[%s0 + $0xcc] sm:$0xf]
  %v70 = vld [vmem:[%s0 + $0xd0] sm:$0xf]
  %v71 = vld [vmem:[%s0 + $0xd4] sm:$0x1]
  %v72 = vld [vmem:[%s0 + $0xd8] sm:$0xf]
  %v73 = vld [vmem:[%s0 + $0xdc] sm:$0xf]
  %v74 = vld [vmem:[%s0 + $0xe0] sm:$0x1]
  %v75 = vld [vmem:[%s0 + $0xe4] sm:$0xf]
  %v76 = vld [vmem:[%s0 + $0xe8] sm:$0xf]
  %v77 = vld [vmem:[%s0 + $0xec] sm:$0x1]
  %v78 = vld [vmem:[%s0 + $0xf0] sm:$0xf]
  %v79 = vld [vmem:[%s0 + $0xf4] sm:$0xf]
  %v80 = vld [vmem:[%s0 + $0xf8] sm:$0x1]
  %v81 = vld [vmem:[%s0 + $0xfc] sm:$0xf]
  %v82 = vld [vmem:[%s0 + $0x100] sm:$0xf]
  %v83 = vld [vmem:[%s0 + $0x104] sm:$0x1]
  %v84 = vld [vmem:[%s0 + $0x108] sm:$0xf]
  %v85 = vld [vmem:[%s0 + $0x10c] sm:$0xf]
  %v86 = vld [vmem:[%s0 + $0x110] sm:$0x1]
  %v87 = vld [vmem:[%s0 + $0x114] sm:$0xf]
  %v88 = vld [vmem:[%s0 + $0x118] sm:$0xf]
  %v89 = vld [vmem:[%s0 + $0x11c] sm:$0x1]
  %v90 = vld [vmem:[%s0 + $0x120] sm:$0xf]
  %v91 = vld [vmem:[%s0 + $0x124] sm:$0xf]
  %v92 = vld [vmem:[%s0 + $0x128] sm:$0x1]
  %v93 = vld [vmem:[%s0 + $0x12c] sm:$0xf]
  %v94 = vld [vmem:[%s0 + $0x130] sm:$0xf]
  %v95 = vld [vmem:[%s0 + $0x134] sm:$0x1]
  %v96 = vld [vmem:[%s0 + $0x138] sm:$0xf]
  %v97 = vld [vmem:[%s0 + $0x13c] sm:$0xf]
  %v98 = vld [vmem:[%s0 + $0x140] sm:$0x1]
  %v99 = vld [vmem:[%s0 + $0x144] sm:$0xf]
  %v100 = vld [vmem:[%s0 + $0x148] sm:$0xf]
  %v101 = vld [vmem:[%s0 + $0x14c] sm:$0x1]
  %v102 = vld [vmem:[%s0 + $0x150] sm:$0xf]
  %v103 = vld [vmem:[%s0 + $0x154] sm:$0xf]
  %v104 = vld [vmem:[%s0 + $0x158] sm:$0x1]
  %v105 = vld [vmem:[%s0 + $0x15c] sm:$0xf]
  %v106 = vld [vmem:[%s0 + $0x160] sm:$0xf]
  %v107 = vld [vmem:[%s0 + $0x164] sm:$0x1]
  %v108 = vld [vmem:[%s0 + $0x168] sm:$0xf]
  %v109 = vld [vmem:[%s0 + $0x16c] sm:$0xf]
  %v110 = vld [vmem:[%s0 + $0x170] sm:$0x1]
  %v111 = vld [vmem:[%s0 + $0x174] sm:$0xf]
  %v112 = vld [vmem:[%s0 + $0x178] sm:$0xf]
  %v113 = vld [vmem:[%s0 + $0x17c] sm:$0x1]
  %v114 = vld [vmem:[%s0 + $0x180] sm:$0xf]
  %v115 = vld [vmem:[%s0 + $0x184] sm:$0xf]
  %v116 = vld [vmem:[%s0 + $0x188] sm:$0x1]
  %v117 = vld [vmem:[%s0 + $0x18c] sm:$0xf]
  %v118 = vld [vmem:[%s0 + $0x190] sm:$0xf]
  %v119 = vld [vmem:[%s0 + $0x194] sm:$0x1]
  %v120 = vld [vmem:[%s0 + $0x198] sm:$0xf]
  %v121 = vld [vmem:[%s0 + $0x19c] sm:$0xf]
  %v122 = vld [vmem:[%s0 + $0x1a0] sm:$0x1]
  %v123 = vld [vmem:[%s0 + $0x1a4] sm:$0xf]
  %v124 = vld [vmem:[%s0 + $0x1a8] sm:$0xf]
  %v125 = vld [vmem:[%s0 + $0x1ac] sm:$0x1]
  %v126 = vunpack.c.l.bf16 %v18
  %v127 = vunpack.c.l.bf16 %v19
  %v128 = vunpack.c.l.bf16 %v20
  %v129 = vunpack.c.l.bf16 %v21
  %v130 = vunpack.c.l.bf16 %v22
  %v131 = vunpack.c.l.bf16 %v23
  %v132 = vunpack.c.l.bf16 %v24
  %v133 = vunpack.c.l.bf16 %v25
  %v134 = vunpack.c.l.bf16 %v26
  %v135 = vunpack.c.l.bf16 %v27
  %v136 = vunpack.c.l.bf16 %v28
  %v137 = vunpack.c.l.bf16 %v29
  %v138 = vunpack.c.l.bf16 %v30
  %v139 = vunpack.c.l.bf16 %v31
  %v140 = vunpack.c.l.bf16 %v32
  %v141 = vunpack.c.l.bf16 %v33
  %v142 = vunpack.c.l.bf16 %v34
  %v143 = vunpack.c.l.bf16 %v35
  %v144 = vunpack.c.l.bf16 %v36
  %v145 = vunpack.c.l.bf16 %v37
  %v146 = vunpack.c.l.bf16 %v38
  %v147 = vunpack.c.l.bf16 %v39
  %v148 = vunpack.c.l.bf16 %v40
  %v149 = vunpack.c.l.bf16 %v41
  %v150 = vunpack.c.l.bf16 %v42
  %v151 = vunpack.c.l.bf16 %v43
  %v152 = vunpack.c.l.bf16 %v44
  %v153 = vunpack.c.l.bf16 %v45
  %v154 = vunpack.c.l.bf16 %v46
  %v155 = vunpack.c.l.bf16 %v47
  %v156 = vunpack.c.l.bf16 %v48
  %v157 = vunpack.c.l.bf16 %v49
  %v158 = vunpack.c.l.bf16 %v50
  %v159 = vunpack.c.l.bf16 %v51
  %v160 = vunpack.c.l.bf16 %v52
  %v161 = vunpack.c.l.bf16 %v53
  %v162 = vunpack.c.l.bf16 %v54
  %v163 = vunpack.c.l.bf16 %v55
  %v164 = vunpack.c.l.bf16 %v56
  %v165 = vunpack.c.l.bf16 %v57
  %v166 = vunpack.c.l.bf16 %v58
  %v167 = vunpack.c.l.bf16 %v59
  %v168 = vunpack.c.l.bf16 %v60
  %v169 = vunpack.c.l.bf16 %v61
  %v170 = vunpack.c.l.bf16 %v62
  %v171 = vunpack.c.l.bf16 %v63
  %v172 = vunpack.c.l.bf16 %v64
  %v173 = vunpack.c.l.bf16 %v65
  %v174 = vunpack.c.l.bf16 %v66
  %v175 = vunpack.c.l.bf16 %v67
  %v176 = vunpack.c.l.bf16 %v68
  %v177 = vunpack.c.l.bf16 %v69
  %v178 = vunpack.c.l.bf16 %v70
  %v179 = vunpack.c.l.bf16 %v71
  %v180 = vunpack.c.l.bf16 %v72
  %v181 = vunpack.c.l.bf16 %v73
  %v182 = vunpack.c.l.bf16 %v74
  %v183 = vunpack.c.l.bf16 %v75
  %v184 = vunpack.c.l.bf16 %v76
  %v185 = vunpack.c.l.bf16 %v77
  %v186 = vunpack.c.l.bf16 %v78
  %v187 = vunpack.c.l.bf16 %v79
  %v188 = vunpack.c.l.bf16 %v80
  %v189 = vunpack.c.l.bf16 %v81
  %v190 = vunpack.c.l.bf16 %v82
  %v191 = vunpack.c.l.bf16 %v83
  %v192 = vunpack.c.l.bf16 %v84
  %v193 = vunpack.c.l.bf16 %v85
  %v194 = vunpack.c.l.bf16 %v86
  %v195 = vunpack.c.l.bf16 %v87
  %v196 = vunpack.c.l.bf16 %v88
  %v197 = vunpack.c.l.bf16 %v89
  %v198 = vunpack.c.l.bf16 %v90
  %v199 = vunpack.c.l.bf16 %v91
  %v200 = vunpack.c.l.bf16 %v92
  %v201 = vunpack.c.l.bf16 %v93
  %v202 = vunpack.c.l.bf16 %v94
  %v203 = vunpack.c.l.bf16 %v95
  %v204 = vunpack.c.l.bf16 %v96
  %v205 = vunpack.c.l.bf16 %v97
  %v206 = vunpack.c.l.bf16 %v98
  %v207 = vunpack.c.l.bf16 %v99
  %v208 = vunpack.c.l.bf16 %v100
  %v209 = vunpack.c.l.bf16 %v101
  %v210 = vunpack.c.l.bf16 %v102
  %v211 = vunpack.c.l.bf16 %v103
  %v212 = vunpack.c.l.bf16 %v104
  %v213 = vunpack.c.l.bf16 %v105
  %v214 = vunpack.c.l.bf16 %v106
  %v215 = vunpack.c.l.bf16 %v107
  %v216 = vunpack.c.l.bf16 %v108
  %v217 = vunpack.c.l.bf16 %v109
  %v218 = vunpack.c.l.bf16 %v110
  %v219 = vunpack.c.l.bf16 %v111
  %v220 = vunpack.c.l.bf16 %v112
  %v221 = vunpack.c.l.bf16 %v113
  %v222 = vunpack.c.l.bf16 %v114
  %v223 = vunpack.c.l.bf16 %v115
  %v224 = vunpack.c.l.bf16 %v116
  %v225 = vunpack.c.l.bf16 %v117
  %v226 = vunpack.c.l.bf16 %v118
  %v227 = vunpack.c.l.bf16 %v119
  %v228 = vunpack.c.l.bf16 %v120
  %v229 = vunpack.c.l.bf16 %v121
  %v230 = vunpack.c.l.bf16 %v122
  %v231 = vunpack.c.l.bf16 %v123
  %v232 = vunpack.c.l.bf16 %v124
  %v233 = vunpack.c.l.bf16 %v125
  %v234 = vpack.c.bf16 %v127, %v126
  %v235 = vpack.c.bf16 %v130, %v129
  %v236 = vpack.c.bf16 %v133, %v132
  %v237 = vpack.c.bf16 %v136, %v135
  %v238 = vpack.c.bf16 %v139, %v138
  %v239 = vpack.c.bf16 %v142, %v141
  %v240 = vpack.c.bf16 %v145, %v144
  %v241 = vpack.c.bf16 %v148, %v147
  %v242 = vpack.c.bf16 %v151, %v150
  %v243 = vpack.c.bf16 %v154, %v153
  %v244 = vpack.c.bf16 %v157, %v156
  %v245 = vpack.c.bf16 %v160, %v159
  %v246 = vpack.c.bf16 %v163, %v162
  %v247 = vpack.c.bf16 %v166, %v165
  %v248 = vpack.c.bf16 %v169, %v168
  %v249 = vpack.c.bf16 %v172, %v171
  %v250 = vpack.c.bf16 %v181, %v180
  %v251 = vpack.c.bf16 %v184, %v183
  %v252 = vpack.c.bf16 %v187, %v186
  %v253 = vpack.c.bf16 %v190, %v189
  %v254 = vpack.c.bf16 %v193, %v192
  %v255 = vpack.c.bf16 %v196, %v195
  %v256 = vpack.c.bf16 %v199, %v198
  %v257 = vpack.c.bf16 %v202, %v201
  %v258 = vpack.c.bf16 %v205, %v204
  %v259 = vpack.c.bf16 %v208, %v207
  %v260 = vpack.c.bf16 %v211, %v210
  %v261 = vpack.c.bf16 %v214, %v213
  %v262 = vpack.c.bf16 %v217, %v216
  %v263 = vpack.c.bf16 %v220, %v219
  %v264 = vpack.c.bf16 %v223, %v222
  %v265 = vpack.c.bf16 %v226, %v225
  %v266 = vld [vmem:[%s1] sm:$0xf]
  %v267 = vld [vmem:[%s1 + $0x4] sm:$0xf]
  %vm364 = vcmask 1046528
  %v365 = vrot.slane %v126, 1
  %v366 = vrot.slane %v127, 1
  %v367 = vsel %vm364, %v365, %v366
  %v368 = vrot.slane %v128, 1
  %v369 = vsel %vm364, %v366, %v368
  %v370 = vrot.slane %v129, 1
  %v371 = vrot.slane %v130, 1
  %v372 = vsel %vm364, %v370, %v371
  %v373 = vrot.slane %v131, 1
  %v374 = vsel %vm364, %v371, %v373
  %v375 = vrot.slane %v132, 1
  %v376 = vrot.slane %v133, 1
  %v377 = vsel %vm364, %v375, %v376
  %v378 = vrot.slane %v134, 1
  %v379 = vsel %vm364, %v376, %v378
  %v380 = vrot.slane %v135, 1
  %v381 = vrot.slane %v136, 1
  %v382 = vsel %vm364, %v380, %v381
  %v383 = vrot.slane %v137, 1
  %v384 = vsel %vm364, %v381, %v383
  %v385 = vrot.slane %v138, 1
  %v386 = vrot.slane %v139, 1
  %v387 = vsel %vm364, %v385, %v386
  %v388 = vrot.slane %v140, 1
  %v389 = vsel %vm364, %v386, %v388
  %v390 = vrot.slane %v141, 1
  %v391 = vrot.slane %v142, 1
  %v392 = vsel %vm364, %v390, %v391
  %v393 = vrot.slane %v143, 1
  %v394 = vsel %vm364, %v391, %v393
  %v395 = vrot.slane %v144, 1
  %v396 = vrot.slane %v145, 1
  %v397 = vsel %vm364, %v395, %v396
  %v398 = vrot.slane %v146, 1
  %v399 = vsel %vm364, %v396, %v398
  %v400 = vrot.slane %v147, 1
  %v401 = vrot.slane %v148, 1
  %v402 = vsel %vm364, %v400, %v401
  %v403 = vrot.slane %v149, 1
  %v404 = vsel %vm364, %v401, %v403
  %v405 = vrot.slane %v150, 1
  %v406 = vrot.slane %v151, 1
  %v407 = vsel %vm364, %v405, %v406
  %v408 = vrot.slane %v152, 1
  %v409 = vsel %vm364, %v406, %v408
  %v410 = vrot.slane %v153, 1
  %v411 = vrot.slane %v154, 1
  %v412 = vsel %vm364, %v410, %v411
  %v413 = vrot.slane %v155, 1
  %v414 = vsel %vm364, %v411, %v413
  %v415 = vrot.slane %v156, 1
  %v416 = vrot.slane %v157, 1
  %v417 = vsel %vm364, %v415, %v416
  %v418 = vrot.slane %v158, 1
  %v419 = vsel %vm364, %v416, %v418
  %v420 = vrot.slane %v159, 1
  %v421 = vrot.slane %v160, 1
  %v422 = vsel %vm364, %v420, %v421
  %v423 = vrot.slane %v161, 1
  %v424 = vsel %vm364, %v421, %v423
  %v425 = vrot.slane %v162, 1
  %v426 = vrot.slane %v163, 1
  %v427 = vsel %vm364, %v425, %v426
  %v428 = vrot.slane %v164, 1
  %v429 = vsel %vm364, %v426, %v428
  %v430 = vrot.slane %v165, 1
  %v431 = vrot.slane %v166, 1
  %v432 = vsel %vm364, %v430, %v431
  %v433 = vrot.slane %v167, 1
  %v434 = vsel %vm364, %v431, %v433
  %v435 = vrot.slane %v168, 1
  %v436 = vrot.slane %v169, 1
  %v437 = vsel %vm364, %v435, %v436
  %v438 = vrot.slane %v170, 1
  %v439 = vsel %vm364, %v436, %v438
  %v440 = vrot.slane %v171, 1
  %v441 = vrot.slane %v172, 1
  %v442 = vsel %vm364, %v440, %v441
  %v443 = vrot.slane %v173, 1
  %v444 = vsel %vm364, %v441, %v443
  %v445 = vrot.slane %v180, 1
  %v446 = vrot.slane %v181, 1
  %v447 = vsel %vm364, %v445, %v446
  %v448 = vrot.slane %v182, 1
  %v449 = vsel %vm364, %v446, %v448
  %v450 = vrot.slane %v183, 1
  %v451 = vrot.slane %v184, 1
  %v452 = vsel %vm364, %v450, %v451
  %v453 = vrot.slane %v185, 1
  %v454 = vsel %vm364, %v451, %v453
  %v455 = vrot.slane %v186, 1
  %v456 = vrot.slane %v187, 1
  %v457 = vsel %vm364, %v455, %v456
  %v458 = vrot.slane %v188, 1
  %v459 = vsel %vm364, %v456, %v458
  %v460 = vrot.slane %v189, 1
  %v461 = vrot.slane %v190, 1
  %v462 = vsel %vm364, %v460, %v461
  %v463 = vrot.slane %v191, 1
  %v464 = vsel %vm364, %v461, %v463
  %v465 = vrot.slane %v192, 1
  %v466 = vrot.slane %v193, 1
  %v467 = vsel %vm364, %v465, %v466
  %v468 = vrot.slane %v194, 1
  %v469 = vsel %vm364, %v466, %v468
  %v470 = vrot.slane %v195, 1
  %v471 = vrot.slane %v196, 1
  %v472 = vsel %vm364, %v470, %v471
  %v473 = vrot.slane %v197, 1
  %v474 = vsel %vm364, %v471, %v473
  %v475 = vrot.slane %v198, 1
  %v476 = vrot.slane %v199, 1
  %v477 = vsel %vm364, %v475, %v476
  %v478 = vrot.slane %v200, 1
  %v479 = vsel %vm364, %v476, %v478
  %v480 = vrot.slane %v201, 1
  %v481 = vrot.slane %v202, 1
  %v482 = vsel %vm364, %v480, %v481
  %v483 = vrot.slane %v203, 1
  %v484 = vsel %vm364, %v481, %v483
  %v485 = vrot.slane %v204, 1
  %v486 = vrot.slane %v205, 1
  %v487 = vsel %vm364, %v485, %v486
  %v488 = vrot.slane %v206, 1
  %v489 = vsel %vm364, %v486, %v488
  %v490 = vrot.slane %v207, 1
  %v491 = vrot.slane %v208, 1
  %v492 = vsel %vm364, %v490, %v491
  %v493 = vrot.slane %v209, 1
  %v494 = vsel %vm364, %v491, %v493
  %v495 = vrot.slane %v210, 1
  %v496 = vrot.slane %v211, 1
  %v497 = vsel %vm364, %v495, %v496
  %v498 = vrot.slane %v212, 1
  %v499 = vsel %vm364, %v496, %v498
  %v500 = vrot.slane %v213, 1
  %v501 = vrot.slane %v214, 1
  %v502 = vsel %vm364, %v500, %v501
  %v503 = vrot.slane %v215, 1
  %v504 = vsel %vm364, %v501, %v503
  %v505 = vrot.slane %v216, 1
  %v506 = vrot.slane %v217, 1
  %v507 = vsel %vm364, %v505, %v506
  %v508 = vrot.slane %v218, 1
  %v509 = vsel %vm364, %v506, %v508
  %v510 = vrot.slane %v219, 1
  %v511 = vrot.slane %v220, 1
  %v512 = vsel %vm364, %v510, %v511
  %v513 = vrot.slane %v221, 1
  %v514 = vsel %vm364, %v511, %v513
  %v515 = vrot.slane %v222, 1
  %v516 = vrot.slane %v223, 1
  %v517 = vsel %vm364, %v515, %v516
  %v518 = vrot.slane %v224, 1
  %v519 = vsel %vm364, %v516, %v518
  %v520 = vrot.slane %v225, 1
  %v521 = vrot.slane %v226, 1
  %v522 = vsel %vm364, %v520, %v521
  %v523 = vrot.slane %v227, 1
  %v524 = vsel %vm364, %v521, %v523
  %v589 = vpack.c.bf16 %v369, %v367
  %v590 = vpack.c.bf16 %v374, %v372
  %v591 = vpack.c.bf16 %v379, %v377
  %v592 = vpack.c.bf16 %v384, %v382
  %v593 = vpack.c.bf16 %v389, %v387
  %v594 = vpack.c.bf16 %v394, %v392
  %v595 = vpack.c.bf16 %v399, %v397
  %v596 = vpack.c.bf16 %v404, %v402
  %v597 = vpack.c.bf16 %v409, %v407
  %v598 = vpack.c.bf16 %v414, %v412
  %v599 = vpack.c.bf16 %v419, %v417
  %v600 = vpack.c.bf16 %v424, %v422
  %v601 = vpack.c.bf16 %v429, %v427
  %v602 = vpack.c.bf16 %v434, %v432
  %v603 = vpack.c.bf16 %v439, %v437
  %v604 = vpack.c.bf16 %v444, %v442
  %v605 = vpack.c.bf16 %v449, %v447
  %v606 = vpack.c.bf16 %v454, %v452
  %v607 = vpack.c.bf16 %v459, %v457
  %v608 = vpack.c.bf16 %v464, %v462
  %v609 = vpack.c.bf16 %v469, %v467
  %v610 = vpack.c.bf16 %v474, %v472
  %v611 = vpack.c.bf16 %v479, %v477
  %v612 = vpack.c.bf16 %v484, %v482
  %v613 = vpack.c.bf16 %v489, %v487
  %v614 = vpack.c.bf16 %v494, %v492
  %v615 = vpack.c.bf16 %v499, %v497
  %v616 = vpack.c.bf16 %v504, %v502
  %v617 = vpack.c.bf16 %v509, %v507
  %v618 = vpack.c.bf16 %v514, %v512
  %v619 = vpack.c.bf16 %v519, %v517
  %v620 = vpack.c.bf16 %v524, %v522
  %s621 = scalar_lea.vmem %s1, 8
  %v622 = vld [vmem:[%s621] sm:$0xf]
  %v623 = vld [vmem:[%s621 + $0x4] sm:$0xf]
  %v626 = vunpack.c.l.b16 %v622
  %v627 = vunpack.c.l.b16 %v623
  %v628 = vpack.c.b16 %v627, %v626
  %vm630 = vcmask 130048
  %v632 = vsel %vm630, %v589, 0
  %v635 = vsel %vm630, %v590, 0
  %v638 = vsel %vm630, %v591, 0
  %v641 = vsel %vm630, %v592, 0
  %v644 = vsel %vm630, %v593, 0
  %v647 = vsel %vm630, %v594, 0
  %v650 = vsel %vm630, %v595, 0
  %v653 = vsel %vm630, %v596, 0
  %v656 = vsel %vm630, %v597, 0
  %v659 = vsel %vm630, %v598, 0
  %v662 = vsel %vm630, %v599, 0
  %v665 = vsel %vm630, %v600, 0
  %v668 = vsel %vm630, %v601, 0
  %v671 = vsel %vm630, %v602, 0
  %v674 = vsel %vm630, %v603, 0
  %v677 = vsel %vm630, %v604, 0
  %v680 = vsel %vm630, %v605, 0
  %v683 = vsel %vm630, %v606, 0
  %v686 = vsel %vm630, %v607, 0
  %v689 = vsel %vm630, %v608, 0
  %v692 = vsel %vm630, %v609, 0
  %v695 = vsel %vm630, %v610, 0
  %v698 = vsel %vm630, %v611, 0
  %v701 = vsel %vm630, %v612, 0
  %v704 = vsel %vm630, %v613, 0
  %v707 = vsel %vm630, %v614, 0
  %v710 = vsel %vm630, %v615, 0
  %v713 = vsel %vm630, %v616, 0
  %v716 = vsel %vm630, %v617, 0
  %v719 = vsel %vm630, %v618, 0
  %v722 = vsel %vm630, %v619, 0
  %v725 = vsel %vm630, %v620, 0
  %727 = vmatpush.bf16.msra.mxu0 0
  %728 = vmatpush.bf16.msra.mxu0 0
  %729 = vmatpush.bf16.msra.mxu0 0
  %730 = vmatpush.bf16.msra.mxu0 0
  %731 = vmatpush.bf16.msra.mxu0 0
  %732 = vmatpush.bf16.msra.mxu0 0
  %733 = vmatpush.bf16.msra.mxu0 0
  %734 = vmatpush.bf16.msra.mxu0 %v628
  %735 = vmatmul.bf16.gmra.mxu0 %v632
  %v736 = vpop.f32.mrf.mxu0
  %v737 = vadd.f32 0.0, %v736
  %v738 = vpop.f32.mrf.mxu0
  %v739 = vadd.f32 0.0, %v738
  %740 = vmatmul.bf16.gmra.mxu0 %v635
  %v741 = vpop.f32.mrf.mxu0
  %v742 = vadd.f32 0.0, %v741
  %v743 = vpop.f32.mrf.mxu0
  %v744 = vadd.f32 0.0, %v743
  %745 = vmatmul.bf16.gmra.mxu0 %v638
  %v746 = vpop.f32.mrf.mxu0
  %v747 = vadd.f32 0.0, %v746
  %v748 = vpop.f32.mrf.mxu0
  %v749 = vadd.f32 0.0, %v748
  %750 = vmatmul.bf16.gmra.mxu0 %v641
  %v751 = vpop.f32.mrf.mxu0
  %v752 = vadd.f32 0.0, %v751
  %v753 = vpop.f32.mrf.mxu0
  %v754 = vadd.f32 0.0, %v753
  %755 = vmatmul.bf16.gmra.mxu0 %v644
  %v756 = vpop.f32.mrf.mxu0
  %v757 = vadd.f32 0.0, %v756
  %v758 = vpop.f32.mrf.mxu0
  %v759 = vadd.f32 0.0, %v758
  %760 = vmatmul.bf16.gmra.mxu0 %v647
  %v761 = vpop.f32.mrf.mxu0
  %v762 = vadd.f32 0.0, %v761
  %v763 = vpop.f32.mrf.mxu0
  %v764 = vadd.f32 0.0, %v763
  %765 = vmatmul.bf16.gmra.mxu0 %v650
  %v766 = vpop.f32.mrf.mxu0
  %v767 = vadd.f32 0.0, %v766
  %v768 = vpop.f32.mrf.mxu0
  %v769 = vadd.f32 0.0, %v768
  %770 = vmatmul.bf16.gmra.mxu0 %v653
  %v771 = vpop.f32.mrf.mxu0
  %v772 = vadd.f32 0.0, %v771
  %v773 = vpop.f32.mrf.mxu0
  %v774 = vadd.f32 0.0, %v773
  %775 = vmatmul.bf16.gmra.mxu0 %v656
  %v776 = vpop.f32.mrf.mxu0
  %v777 = vadd.f32 0.0, %v776
  %v778 = vpop.f32.mrf.mxu0
  %v779 = vadd.f32 0.0, %v778
  %780 = vmatmul.bf16.gmra.mxu0 %v659
  %v781 = vpop.f32.mrf.mxu0
  %v782 = vadd.f32 0.0, %v781
  %v783 = vpop.f32.mrf.mxu0
  %v784 = vadd.f32 0.0, %v783
  %785 = vmatmul.bf16.gmra.mxu0 %v662
  %v786 = vpop.f32.mrf.mxu0
  %v787 = vadd.f32 0.0, %v786
  %v788 = vpop.f32.mrf.mxu0
  %v789 = vadd.f32 0.0, %v788
  %790 = vmatmul.bf16.gmra.mxu0 %v665
  %v791 = vpop.f32.mrf.mxu0
  %v792 = vadd.f32 0.0, %v791
  %v793 = vpop.f32.mrf.mxu0
  %v794 = vadd.f32 0.0, %v793
  %795 = vmatmul.bf16.gmra.mxu0 %v668
  %v796 = vpop.f32.mrf.mxu0
  %v797 = vadd.f32 0.0, %v796
  %v798 = vpop.f32.mrf.mxu0
  %v799 = vadd.f32 0.0, %v798
  %800 = vmatmul.bf16.gmra.mxu0 %v671
  %v801 = vpop.f32.mrf.mxu0
  %v802 = vadd.f32 0.0, %v801
  %v803 = vpop.f32.mrf.mxu0
  %v804 = vadd.f32 0.0, %v803
  %805 = vmatmul.bf16.gmra.mxu0 %v674
  %v806 = vpop.f32.mrf.mxu0
  %v807 = vadd.f32 0.0, %v806
  %v808 = vpop.f32.mrf.mxu0
  %v809 = vadd.f32 0.0, %v808
  %810 = vmatmul.bf16.gmra.mxu0 %v677
  %v811 = vpop.f32.mrf.mxu0
  %v812 = vadd.f32 0.0, %v811
  %v813 = vpop.f32.mrf.mxu0
  %v814 = vadd.f32 0.0, %v813
  %815 = vmatmul.bf16.gmra.mxu0 %v680
  %v816 = vpop.f32.mrf.mxu0
  %v817 = vadd.f32 0.0, %v816
  %v818 = vpop.f32.mrf.mxu0
  %v819 = vadd.f32 0.0, %v818
  %820 = vmatmul.bf16.gmra.mxu0 %v683
  %v821 = vpop.f32.mrf.mxu0
  %v822 = vadd.f32 0.0, %v821
  %v823 = vpop.f32.mrf.mxu0
  %v824 = vadd.f32 0.0, %v823
  %825 = vmatmul.bf16.gmra.mxu0 %v686
  %v826 = vpop.f32.mrf.mxu0
  %v827 = vadd.f32 0.0, %v826
  %v828 = vpop.f32.mrf.mxu0
  %v829 = vadd.f32 0.0, %v828
  %830 = vmatmul.bf16.gmra.mxu0 %v689
  %v831 = vpop.f32.mrf.mxu0
  %v832 = vadd.f32 0.0, %v831
  %v833 = vpop.f32.mrf.mxu0
  %v834 = vadd.f32 0.0, %v833
  %835 = vmatmul.bf16.gmra.mxu0 %v692
  %v836 = vpop.f32.mrf.mxu0
  %v837 = vadd.f32 0.0, %v836
  %v838 = vpop.f32.mrf.mxu0
  %v839 = vadd.f32 0.0, %v838
  %840 = vmatmul.bf16.gmra.mxu0 %v695
  %v841 = vpop.f32.mrf.mxu0
  %v842 = vadd.f32 0.0, %v841
  %v843 = vpop.f32.mrf.mxu0
  %v844 = vadd.f32 0.0, %v843
  %845 = vmatmul.bf16.gmra.mxu0 %v698
  %v846 = vpop.f32.mrf.mxu0
  %v847 = vadd.f32 0.0, %v846
  %v848 = vpop.f32.mrf.mxu0
  %v849 = vadd.f32 0.0, %v848
  %850 = vmatmul.bf16.gmra.mxu0 %v701
  %v851 = vpop.f32.mrf.mxu0
  %v852 = vadd.f32 0.0, %v851
  %v853 = vpop.f32.mrf.mxu0
  %v854 = vadd.f32 0.0, %v853
  %855 = vmatmul.bf16.gmra.mxu0 %v704
  %v856 = vpop.f32.mrf.mxu0
  %v857 = vadd.f32 0.0, %v856
  %v858 = vpop.f32.mrf.mxu0
  %v859 = vadd.f32 0.0, %v858
  %860 = vmatmul.bf16.gmra.mxu0 %v707
  %v861 = vpop.f32.mrf.mxu0
  %v862 = vadd.f32 0.0, %v861
  %v863 = vpop.f32.mrf.mxu0
  %v864 = vadd.f32 0.0, %v863
  %865 = vmatmul.bf16.gmra.mxu0 %v710
  %v866 = vpop.f32.mrf.mxu0
  %v867 = vadd.f32 0.0, %v866
  %v868 = vpop.f32.mrf.mxu0
  %v869 = vadd.f32 0.0, %v868
  %870 = vmatmul.bf16.gmra.mxu0 %v713
  %v871 = vpop.f32.mrf.mxu0
  %v872 = vadd.f32 0.0, %v871
  %v873 = vpop.f32.mrf.mxu0
  %v874 = vadd.f32 0.0, %v873
  %875 = vmatmul.bf16.gmra.mxu0 %v716
  %v876 = vpop.f32.mrf.mxu0
  %v877 = vadd.f32 0.0, %v876
  %v878 = vpop.f32.mrf.mxu0
  %v879 = vadd.f32 0.0, %v878
  %880 = vmatmul.bf16.gmra.mxu0 %v719
  %v881 = vpop.f32.mrf.mxu0
  %v882 = vadd.f32 0.0, %v881
  %v883 = vpop.f32.mrf.mxu0
  %v884 = vadd.f32 0.0, %v883
  %885 = vmatmul.bf16.gmra.mxu0 %v722
  %v886 = vpop.f32.mrf.mxu0
  %v887 = vadd.f32 0.0, %v886
  %v888 = vpop.f32.mrf.mxu0
  %v889 = vadd.f32 0.0, %v888
  %890 = vmatmul.bf16.gmra.mxu0 %v725
  %v891 = vpop.f32.mrf.mxu0
  %v892 = vadd.f32 0.0, %v891
  %v893 = vpop.f32.mrf.mxu0
  %v894 = vadd.f32 0.0, %v893
  %895 = vdwg.mxu0
  %v898 = vunpack.c.l.b16 %v266
  %v899 = vunpack.c.l.b16 %v267
  %v900 = vpack.c.b16 %v899, %v898
  %v903 = vsel %vm630, %v234, 0
  %v906 = vsel %vm630, %v235, 0
  %v909 = vsel %vm630, %v236, 0
  %v912 = vsel %vm630, %v237, 0
  %v915 = vsel %vm630, %v238, 0
  %v918 = vsel %vm630, %v239, 0
  %v921 = vsel %vm630, %v240, 0
  %v924 = vsel %vm630, %v241, 0
  %v927 = vsel %vm630, %v242, 0
  %v930 = vsel %vm630, %v243, 0
  %v933 = vsel %vm630, %v244, 0
  %v936 = vsel %vm630, %v245, 0
  %v939 = vsel %vm630, %v246, 0
  %v942 = vsel %vm630, %v247, 0
  %v945 = vsel %vm630, %v248, 0
  %v948 = vsel %vm630, %v249, 0
  %v951 = vsel %vm630, %v250, 0
  %v954 = vsel %vm630, %v251, 0
  %v957 = vsel %vm630, %v252, 0
  %v960 = vsel %vm630, %v253, 0
  %v963 = vsel %vm630, %v254, 0
  %v966 = vsel %vm630, %v255, 0
  %v969 = vsel %vm630, %v256, 0
  %v972 = vsel %vm630, %v257, 0
  %v975 = vsel %vm630, %v258, 0
  %v978 = vsel %vm630, %v259, 0
  %v981 = vsel %vm630, %v260, 0
  %v984 = vsel %vm630, %v261, 0
  %v987 = vsel %vm630, %v262, 0
  %v990 = vsel %vm630, %v263, 0
  %v993 = vsel %vm630, %v264, 0
  %v996 = vsel %vm630, %v265, 0
  %998 = vmatpush.bf16.msra.mxu0 0
  %999 = vmatpush.bf16.msra.mxu0 0
  %1000 = vmatpush.bf16.msra.mxu0 0
  %1001 = vmatpush.bf16.msra.mxu0 0
  %1002 = vmatpush.bf16.msra.mxu0 0
  %1003 = vmatpush.bf16.msra.mxu0 0
  %1004 = vmatpush.bf16.msra.mxu0 0
  %1005 = vmatpush.bf16.msra.mxu0 %v900
  %1006 = vmatmul.bf16.gmra.mxu0 %v903
  %v1007 = vpop.f32.mrf.mxu0
  %v1008 = vadd.f32 %v737, %v1007
  %v1009 = vpop.f32.mrf.mxu0
  %v1010 = vadd.f32 %v739, %v1009
  %1011 = vmatmul.bf16.gmra.mxu0 %v906
  %v1012 = vpop.f32.mrf.mxu0
  %v1013 = vadd.f32 %v742, %v1012
  %v1014 = vpop.f32.mrf.mxu0
  %v1015 = vadd.f32 %v744, %v1014
  %1016 = vmatmul.bf16.gmra.mxu0 %v909
  %v1017 = vpop.f32.mrf.mxu0
  %v1018 = vadd.f32 %v747, %v1017
  %v1019 = vpop.f32.mrf.mxu0
  %v1020 = vadd.f32 %v749, %v1019
  %1021 = vmatmul.bf16.gmra.mxu0 %v912
  %v1022 = vpop.f32.mrf.mxu0
  %v1023 = vadd.f32 %v752, %v1022
  %v1024 = vpop.f32.mrf.mxu0
  %v1025 = vadd.f32 %v754, %v1024
  %1026 = vmatmul.bf16.gmra.mxu0 %v915
  %v1027 = vpop.f32.mrf.mxu0
  %v1028 = vadd.f32 %v757, %v1027
  %v1029 = vpop.f32.mrf.mxu0
  %v1030 = vadd.f32 %v759, %v1029
  %1031 = vmatmul.bf16.gmra.mxu0 %v918
  %v1032 = vpop.f32.mrf.mxu0
  %v1033 = vadd.f32 %v762, %v1032
  %v1034 = vpop.f32.mrf.mxu0
  %v1035 = vadd.f32 %v764, %v1034
  %1036 = vmatmul.bf16.gmra.mxu0 %v921
  %v1037 = vpop.f32.mrf.mxu0
  %v1038 = vadd.f32 %v767, %v1037
  %v1039 = vpop.f32.mrf.mxu0
  %v1040 = vadd.f32 %v769, %v1039
  %1041 = vmatmul.bf16.gmra.mxu0 %v924
  %v1042 = vpop.f32.mrf.mxu0
  %v1043 = vadd.f32 %v772, %v1042
  %v1044 = vpop.f32.mrf.mxu0
  %v1045 = vadd.f32 %v774, %v1044
  %1046 = vmatmul.bf16.gmra.mxu0 %v927
  %v1047 = vpop.f32.mrf.mxu0
  %v1048 = vadd.f32 %v777, %v1047
  %v1049 = vpop.f32.mrf.mxu0
  %v1050 = vadd.f32 %v779, %v1049
  %1051 = vmatmul.bf16.gmra.mxu0 %v930
  %v1052 = vpop.f32.mrf.mxu0
  %v1053 = vadd.f32 %v782, %v1052
  %v1054 = vpop.f32.mrf.mxu0
  %v1055 = vadd.f32 %v784, %v1054
  %1056 = vmatmul.bf16.gmra.mxu0 %v933
  %v1057 = vpop.f32.mrf.mxu0
  %v1058 = vadd.f32 %v787, %v1057
  %v1059 = vpop.f32.mrf.mxu0
  %v1060 = vadd.f32 %v789, %v1059
  %1061 = vmatmul.bf16.gmra.mxu0 %v936
  %v1062 = vpop.f32.mrf.mxu0
  %v1063 = vadd.f32 %v792, %v1062
  %v1064 = vpop.f32.mrf.mxu0
  %v1065 = vadd.f32 %v794, %v1064
  %1066 = vmatmul.bf16.gmra.mxu0 %v939
  %v1067 = vpop.f32.mrf.mxu0
  %v1068 = vadd.f32 %v797, %v1067
  %v1069 = vpop.f32.mrf.mxu0
  %v1070 = vadd.f32 %v799, %v1069
  %1071 = vmatmul.bf16.gmra.mxu0 %v942
  %v1072 = vpop.f32.mrf.mxu0
  %v1073 = vadd.f32 %v802, %v1072
  %v1074 = vpop.f32.mrf.mxu0
  %v1075 = vadd.f32 %v804, %v1074
  %1076 = vmatmul.bf16.gmra.mxu0 %v945
  %v1077 = vpop.f32.mrf.mxu0
  %v1078 = vadd.f32 %v807, %v1077
  %v1079 = vpop.f32.mrf.mxu0
  %v1080 = vadd.f32 %v809, %v1079
  %1081 = vmatmul.bf16.gmra.mxu0 %v948
  %v1082 = vpop.f32.mrf.mxu0
  %v1083 = vadd.f32 %v812, %v1082
  %v1084 = vpop.f32.mrf.mxu0
  %v1085 = vadd.f32 %v814, %v1084
  %1086 = vmatmul.bf16.gmra.mxu0 %v951
  %v1087 = vpop.f32.mrf.mxu0
  %v1088 = vadd.f32 %v817, %v1087
  %v1089 = vpop.f32.mrf.mxu0
  %v1090 = vadd.f32 %v819, %v1089
  %1091 = vmatmul.bf16.gmra.mxu0 %v954
  %v1092 = vpop.f32.mrf.mxu0
  %v1093 = vadd.f32 %v822, %v1092
  %v1094 = vpop.f32.mrf.mxu0
  %v1095 = vadd.f32 %v824, %v1094
  %1096 = vmatmul.bf16.gmra.mxu0 %v957
  %v1097 = vpop.f32.mrf.mxu0
  %v1098 = vadd.f32 %v827, %v1097
  %v1099 = vpop.f32.mrf.mxu0
  %v1100 = vadd.f32 %v829, %v1099
  %1101 = vmatmul.bf16.gmra.mxu0 %v960
  %v1102 = vpop.f32.mrf.mxu0
  %v1103 = vadd.f32 %v832, %v1102
  %v1104 = vpop.f32.mrf.mxu0
  %v1105 = vadd.f32 %v834, %v1104
  %1106 = vmatmul.bf16.gmra.mxu0 %v963
  %v1107 = vpop.f32.mrf.mxu0
  %v1108 = vadd.f32 %v837, %v1107
  %v1109 = vpop.f32.mrf.mxu0
  %v1110 = vadd.f32 %v839, %v1109
  %1111 = vmatmul.bf16.gmra.mxu0 %v966
  %v1112 = vpop.f32.mrf.mxu0
  %v1113 = vadd.f32 %v842, %v1112
  %v1114 = vpop.f32.mrf.mxu0
  %v1115 = vadd.f32 %v844, %v1114
  %1116 = vmatmul.bf16.gmra.mxu0 %v969
  %v1117 = vpop.f32.mrf.mxu0
  %v1118 = vadd.f32 %v847, %v1117
  %v1119 = vpop.f32.mrf.mxu0
  %v1120 = vadd.f32 %v849, %v1119
  %1121 = vmatmul.bf16.gmra.mxu0 %v972
  %v1122 = vpop.f32.mrf.mxu0
  %v1123 = vadd.f32 %v852, %v1122
  %v1124 = vpop.f32.mrf.mxu0
  %v1125 = vadd.f32 %v854, %v1124
  %1126 = vmatmul.bf16.gmra.mxu0 %v975
  %v1127 = vpop.f32.mrf.mxu0
  %v1128 = vadd.f32 %v857, %v1127
  %v1129 = vpop.f32.mrf.mxu0
  %v1130 = vadd.f32 %v859, %v1129
  %1131 = vmatmul.bf16.gmra.mxu0 %v978
  %v1132 = vpop.f32.mrf.mxu0
  %v1133 = vadd.f32 %v862, %v1132
  %v1134 = vpop.f32.mrf.mxu0
  %v1135 = vadd.f32 %v864, %v1134
  %1136 = vmatmul.bf16.gmra.mxu0 %v981
  %v1137 = vpop.f32.mrf.mxu0
  %v1138 = vadd.f32 %v867, %v1137
  %v1139 = vpop.f32.mrf.mxu0
  %v1140 = vadd.f32 %v869, %v1139
  %1141 = vmatmul.bf16.gmra.mxu0 %v984
  %v1142 = vpop.f32.mrf.mxu0
  %v1143 = vadd.f32 %v872, %v1142
  %v1144 = vpop.f32.mrf.mxu0
  %v1145 = vadd.f32 %v874, %v1144
  %1146 = vmatmul.bf16.gmra.mxu0 %v987
  %v1147 = vpop.f32.mrf.mxu0
  %v1148 = vadd.f32 %v877, %v1147
  %v1149 = vpop.f32.mrf.mxu0
  %v1150 = vadd.f32 %v879, %v1149
  %1151 = vmatmul.bf16.gmra.mxu0 %v990
  %v1152 = vpop.f32.mrf.mxu0
  %v1153 = vadd.f32 %v882, %v1152
  %v1154 = vpop.f32.mrf.mxu0
  %v1155 = vadd.f32 %v884, %v1154
  %1156 = vmatmul.bf16.gmra.mxu0 %v993
  %v1157 = vpop.f32.mrf.mxu0
  %v1158 = vadd.f32 %v887, %v1157
  %v1159 = vpop.f32.mrf.mxu0
  %v1160 = vadd.f32 %v889, %v1159
  %1161 = vmatmul.bf16.gmra.mxu0 %v996
  %v1162 = vpop.f32.mrf.mxu0
  %v1163 = vadd.f32 %v892, %v1162
  %v1164 = vpop.f32.mrf.mxu0
  %v1165 = vadd.f32 %v894, %v1164
  %1166 = vdwg.mxu0
  %vm1167 = vcmask 1045504
  %v1168 = vrot.slane %v126, 2
  %v1169 = vrot.slane %v127, 2
  %v1170 = vsel %vm1167, %v1168, %v1169
  %v1171 = vrot.slane %v128, 2
  %v1172 = vsel %vm1167, %v1169, %v1171
  %v1173 = vrot.slane %v129, 2
  %v1174 = vrot.slane %v130, 2
  %v1175 = vsel %vm1167, %v1173, %v1174
  %v1176 = vrot.slane %v131, 2
  %v1177 = vsel %vm1167, %v1174, %v1176
  %v1178 = vrot.slane %v132, 2
  %v1179 = vrot.slane %v133, 2
  %v1180 = vsel %vm1167, %v1178, %v1179
  %v1181 = vrot.slane %v134, 2
  %v1182 = vsel %vm1167, %v1179, %v1181
  %v1183 = vrot.slane %v135, 2
  %v1184 = vrot.slane %v136, 2
  %v1185 = vsel %vm1167, %v1183, %v1184
  %v1186 = vrot.slane %v137, 2
  %v1187 = vsel %vm1167, %v1184, %v1186
  %v1188 = vrot.slane %v138, 2
  %v1189 = vrot.slane %v139, 2
  %v1190 = vsel %vm1167, %v1188, %v1189
  %v1191 = vrot.slane %v140, 2
  %v1192 = vsel %vm1167, %v1189, %v1191
  %v1193 = vrot.slane %v141, 2
  %v1194 = vrot.slane %v142, 2
  %v1195 = vsel %vm1167, %v1193, %v1194
  %v1196 = vrot.slane %v143, 2
  %v1197 = vsel %vm1167, %v1194, %v1196
  %v1198 = vrot.slane %v144, 2
  %v1199 = vrot.slane %v145, 2
  %v1200 = vsel %vm1167, %v1198, %v1199
  %v1201 = vrot.slane %v146, 2
  %v1202 = vsel %vm1167, %v1199, %v1201
  %v1203 = vrot.slane %v147, 2
  %v1204 = vrot.slane %v148, 2
  %v1205 = vsel %vm1167, %v1203, %v1204
  %v1206 = vrot.slane %v149, 2
  %v1207 = vsel %vm1167, %v1204, %v1206
  %v1208 = vrot.slane %v150, 2
  %v1209 = vrot.slane %v151, 2
  %v1210 = vsel %vm1167, %v1208, %v1209
  %v1211 = vrot.slane %v152, 2
  %v1212 = vsel %vm1167, %v1209, %v1211
  %v1213 = vrot.slane %v153, 2
  %v1214 = vrot.slane %v154, 2
  %v1215 = vsel %vm1167, %v1213, %v1214
  %v1216 = vrot.slane %v155, 2
  %v1217 = vsel %vm1167, %v1214, %v1216
  %v1218 = vrot.slane %v156, 2
  %v1219 = vrot.slane %v157, 2
  %v1220 = vsel %vm1167, %v1218, %v1219
  %v1221 = vrot.slane %v158, 2
  %v1222 = vsel %vm1167, %v1219, %v1221
  %v1223 = vrot.slane %v159, 2
  %v1224 = vrot.slane %v160, 2
  %v1225 = vsel %vm1167, %v1223, %v1224
  %v1226 = vrot.slane %v161, 2
  %v1227 = vsel %vm1167, %v1224, %v1226
  %v1228 = vrot.slane %v162, 2
  %v1229 = vrot.slane %v163, 2
  %v1230 = vsel %vm1167, %v1228, %v1229
  %v1231 = vrot.slane %v164, 2
  %v1232 = vsel %vm1167, %v1229, %v1231
  %v1233 = vrot.slane %v165, 2
  %v1234 = vrot.slane %v166, 2
  %v1235 = vsel %vm1167, %v1233, %v1234
  %v1236 = vrot.slane %v167, 2
  %v1237 = vsel %vm1167, %v1234, %v1236
  %v1238 = vrot.slane %v168, 2
  %v1239 = vrot.slane %v169, 2
  %v1240 = vsel %vm1167, %v1238, %v1239
  %v1241 = vrot.slane %v170, 2
  %v1242 = vsel %vm1167, %v1239, %v1241
  %v1243 = vrot.slane %v171, 2
  %v1244 = vrot.slane %v172, 2
  %v1245 = vsel %vm1167, %v1243, %v1244
  %v1246 = vrot.slane %v173, 2
  %v1247 = vsel %vm1167, %v1244, %v1246
  %v1248 = vrot.slane %v180, 2
  %v1249 = vrot.slane %v181, 2
  %v1250 = vsel %vm1167, %v1248, %v1249
  %v1251 = vrot.slane %v182, 2
  %v1252 = vsel %vm1167, %v1249, %v1251
  %v1253 = vrot.slane %v183, 2
  %v1254 = vrot.slane %v184, 2
  %v1255 = vsel %vm1167, %v1253, %v1254
  %v1256 = vrot.slane %v185, 2
  %v1257 = vsel %vm1167, %v1254, %v1256
  %v1258 = vrot.slane %v186, 2
  %v1259 = vrot.slane %v187, 2
  %v1260 = vsel %vm1167, %v1258, %v1259
  %v1261 = vrot.slane %v188, 2
  %v1262 = vsel %vm1167, %v1259, %v1261
  %v1263 = vrot.slane %v189, 2
  %v1264 = vrot.slane %v190, 2
  %v1265 = vsel %vm1167, %v1263, %v1264
  %v1266 = vrot.slane %v191, 2
  %v1267 = vsel %vm1167, %v1264, %v1266
  %v1268 = vrot.slane %v192, 2
  %v1269 = vrot.slane %v193, 2
  %v1270 = vsel %vm1167, %v1268, %v1269
  %v1271 = vrot.slane %v194, 2
  %v1272 = vsel %vm1167, %v1269, %v1271
  %v1273 = vrot.slane %v195, 2
  %v1274 = vrot.slane %v196, 2
  %v1275 = vsel %vm1167, %v1273, %v1274
  %v1276 = vrot.slane %v197, 2
  %v1277 = vsel %vm1167, %v1274, %v1276
  %v1278 = vrot.slane %v198, 2
  %v1279 = vrot.slane %v199, 2
  %v1280 = vsel %vm1167, %v1278, %v1279
  %v1281 = vrot.slane %v200, 2
  %v1282 = vsel %vm1167, %v1279, %v1281
  %v1283 = vrot.slane %v201, 2
  %v1284 = vrot.slane %v202, 2
  %v1285 = vsel %vm1167, %v1283, %v1284
  %v1286 = vrot.slane %v203, 2
  %v1287 = vsel %vm1167, %v1284, %v1286
  %v1288 = vrot.slane %v204, 2
  %v1289 = vrot.slane %v205, 2
  %v1290 = vsel %vm1167, %v1288, %v1289
  %v1291 = vrot.slane %v206, 2
  %v1292 = vsel %vm1167, %v1289, %v1291
  %v1293 = vrot.slane %v207, 2
  %v1294 = vrot.slane %v208, 2
  %v1295 = vsel %vm1167, %v1293, %v1294
  %v1296 = vrot.slane %v209, 2
  %v1297 = vsel %vm1167, %v1294, %v1296
  %v1298 = vrot.slane %v210, 2
  %v1299 = vrot.slane %v211, 2
  %v1300 = vsel %vm1167, %v1298, %v1299
  %v1301 = vrot.slane %v212, 2
  %v1302 = vsel %vm1167, %v1299, %v1301
  %v1303 = vrot.slane %v213, 2
  %v1304 = vrot.slane %v214, 2
  %v1305 = vsel %vm1167, %v1303, %v1304
  %v1306 = vrot.slane %v215, 2
  %v1307 = vsel %vm1167, %v1304, %v1306
  %v1308 = vrot.slane %v216, 2
  %v1309 = vrot.slane %v217, 2
  %v1310 = vsel %vm1167, %v1308, %v1309
  %v1311 = vrot.slane %v218, 2
  %v1312 = vsel %vm1167, %v1309, %v1311
  %v1313 = vrot.slane %v219, 2
  %v1314 = vrot.slane %v220, 2
  %v1315 = vsel %vm1167, %v1313, %v1314
  %v1316 = vrot.slane %v221, 2
  %v1317 = vsel %vm1167, %v1314, %v1316
  %v1318 = vrot.slane %v222, 2
  %v1319 = vrot.slane %v223, 2
  %v1320 = vsel %vm1167, %v1318, %v1319
  %v1321 = vrot.slane %v224, 2
  %v1322 = vsel %vm1167, %v1319, %v1321
  %v1323 = vrot.slane %v225, 2
  %v1324 = vrot.slane %v226, 2
  %v1325 = vsel %vm1167, %v1323, %v1324
  %v1326 = vrot.slane %v227, 2
  %v1327 = vsel %vm1167, %v1324, %v1326
  %v1392 = vpack.c.bf16 %v1172, %v1170
  %v1393 = vpack.c.bf16 %v1177, %v1175
  %v1394 = vpack.c.bf16 %v1182, %v1180
  %v1395 = vpack.c.bf16 %v1187, %v1185
  %v1396 = vpack.c.bf16 %v1192, %v1190
  %v1397 = vpack.c.bf16 %v1197, %v1195
  %v1398 = vpack.c.bf16 %v1202, %v1200
  %v1399 = vpack.c.bf16 %v1207, %v1205
  %v1400 = vpack.c.bf16 %v1212, %v1210
  %v1401 = vpack.c.bf16 %v1217, %v1215
  %v1402 = vpack.c.bf16 %v1222, %v1220
  %v1403 = vpack.c.bf16 %v1227, %v1225
  %v1404 = vpack.c.bf16 %v1232, %v1230
  %v1405 = vpack.c.bf16 %v1237, %v1235
  %v1406 = vpack.c.bf16 %v1242, %v1240
  %v1407 = vpack.c.bf16 %v1247, %v1245
  %v1408 = vpack.c.bf16 %v1252, %v1250
  %v1409 = vpack.c.bf16 %v1257, %v1255
  %v1410 = vpack.c.bf16 %v1262, %v1260
  %v1411 = vpack.c.bf16 %v1267, %v1265
  %v1412 = vpack.c.bf16 %v1272, %v1270
  %v1413 = vpack.c.bf16 %v1277, %v1275
  %v1414 = vpack.c.bf16 %v1282, %v1280
  %v1415 = vpack.c.bf16 %v1287, %v1285
  %v1416 = vpack.c.bf16 %v1292, %v1290
  %v1417 = vpack.c.bf16 %v1297, %v1295
  %v1418 = vpack.c.bf16 %v1302, %v1300
  %v1419 = vpack.c.bf16 %v1307, %v1305
  %v1420 = vpack.c.bf16 %v1312, %v1310
  %v1421 = vpack.c.bf16 %v1317, %v1315
  %v1422 = vpack.c.bf16 %v1322, %v1320
  %v1423 = vpack.c.bf16 %v1327, %v1325
  %s1424 = scalar_lea.vmem %s1, 16
  %v1425 = vld [vmem:[%s1424] sm:$0xf]
  %v1426 = vld [vmem:[%s1424 + $0x4] sm:$0xf]
  %v1429 = vunpack.c.l.b16 %v1425
  %v1430 = vunpack.c.l.b16 %v1426
  %v1431 = vpack.c.b16 %v1430, %v1429
  %v1434 = vsel %vm630, %v1392, 0
  %v1437 = vsel %vm630, %v1393, 0
  %v1440 = vsel %vm630, %v1394, 0
  %v1443 = vsel %vm630, %v1395, 0
  %v1446 = vsel %vm630, %v1396, 0
  %v1449 = vsel %vm630, %v1397, 0
  %v1452 = vsel %vm630, %v1398, 0
  %v1455 = vsel %vm630, %v1399, 0
  %v1458 = vsel %vm630, %v1400, 0
  %v1461 = vsel %vm630, %v1401, 0
  %v1464 = vsel %vm630, %v1402, 0
  %v1467 = vsel %vm630, %v1403, 0
  %v1470 = vsel %vm630, %v1404, 0
  %v1473 = vsel %vm630, %v1405, 0
  %v1476 = vsel %vm630, %v1406, 0
  %v1479 = vsel %vm630, %v1407, 0
  %v1482 = vsel %vm630, %v1408, 0
  %v1485 = vsel %vm630, %v1409, 0
  %v1488 = vsel %vm630, %v1410, 0
  %v1491 = vsel %vm630, %v1411, 0
  %v1494 = vsel %vm630, %v1412, 0
  %v1497 = vsel %vm630, %v1413, 0
  %v1500 = vsel %vm630, %v1414, 0
  %v1503 = vsel %vm630, %v1415, 0
  %v1506 = vsel %vm630, %v1416, 0
  %v1509 = vsel %vm630, %v1417, 0
  %v1512 = vsel %vm630, %v1418, 0
  %v1515 = vsel %vm630, %v1419, 0
  %v1518 = vsel %vm630, %v1420, 0
  %v1521 = vsel %vm630, %v1421, 0
  %v1524 = vsel %vm630, %v1422, 0
  %v1527 = vsel %vm630, %v1423, 0
  %1529 = vmatpush.bf16.msra.mxu0 0
  %1530 = vmatpush.bf16.msra.mxu0 0
  %1531 = vmatpush.bf16.msra.mxu0 0
  %1532 = vmatpush.bf16.msra.mxu0 0
  %1533 = vmatpush.bf16.msra.mxu0 0
  %1534 = vmatpush.bf16.msra.mxu0 0
  %1535 = vmatpush.bf16.msra.mxu0 0
  %1536 = vmatpush.bf16.msra.mxu0 %v1431
  %1537 = vmatmul.bf16.gmra.mxu0 %v1434
  %v1538 = vpop.f32.mrf.mxu0
  %v1539 = vadd.f32 0.0, %v1538
  %v1540 = vpop.f32.mrf.mxu0
  %v1541 = vadd.f32 0.0, %v1540
  %1542 = vmatmul.bf16.gmra.mxu0 %v1437
  %v1543 = vpop.f32.mrf.mxu0
  %v1544 = vadd.f32 0.0, %v1543
  %v1545 = vpop.f32.mrf.mxu0
  %v1546 = vadd.f32 0.0, %v1545
  %1547 = vmatmul.bf16.gmra.mxu0 %v1440
  %v1548 = vpop.f32.mrf.mxu0
  %v1549 = vadd.f32 0.0, %v1548
  %v1550 = vpop.f32.mrf.mxu0
  %v1551 = vadd.f32 0.0, %v1550
  %1552 = vmatmul.bf16.gmra.mxu0 %v1443
  %v1553 = vpop.f32.mrf.mxu0
  %v1554 = vadd.f32 0.0, %v1553
  %v1555 = vpop.f32.mrf.mxu0
  %v1556 = vadd.f32 0.0, %v1555
  %1557 = vmatmul.bf16.gmra.mxu0 %v1446
  %v1558 = vpop.f32.mrf.mxu0
  %v1559 = vadd.f32 0.0, %v1558
  %v1560 = vpop.f32.mrf.mxu0
  %v1561 = vadd.f32 0.0, %v1560
  %1562 = vmatmul.bf16.gmra.mxu0 %v1449
  %v1563 = vpop.f32.mrf.mxu0
  %v1564 = vadd.f32 0.0, %v1563
  %v1565 = vpop.f32.mrf.mxu0
  %v1566 = vadd.f32 0.0, %v1565
  %1567 = vmatmul.bf16.gmra.mxu0 %v1452
  %v1568 = vpop.f32.mrf.mxu0
  %v1569 = vadd.f32 0.0, %v1568
  %v1570 = vpop.f32.mrf.mxu0
  %v1571 = vadd.f32 0.0, %v1570
  %1572 = vmatmul.bf16.gmra.mxu0 %v1455
  %v1573 = vpop.f32.mrf.mxu0
  %v1574 = vadd.f32 0.0, %v1573
  %v1575 = vpop.f32.mrf.mxu0
  %v1576 = vadd.f32 0.0, %v1575
  %1577 = vmatmul.bf16.gmra.mxu0 %v1458
  %v1578 = vpop.f32.mrf.mxu0
  %v1579 = vadd.f32 0.0, %v1578
  %v1580 = vpop.f32.mrf.mxu0
  %v1581 = vadd.f32 0.0, %v1580
  %1582 = vmatmul.bf16.gmra.mxu0 %v1461
  %v1583 = vpop.f32.mrf.mxu0
  %v1584 = vadd.f32 0.0, %v1583
  %v1585 = vpop.f32.mrf.mxu0
  %v1586 = vadd.f32 0.0, %v1585
  %1587 = vmatmul.bf16.gmra.mxu0 %v1464
  %v1588 = vpop.f32.mrf.mxu0
  %v1589 = vadd.f32 0.0, %v1588
  %v1590 = vpop.f32.mrf.mxu0
  %v1591 = vadd.f32 0.0, %v1590
  %1592 = vmatmul.bf16.gmra.mxu0 %v1467
  %v1593 = vpop.f32.mrf.mxu0
  %v1594 = vadd.f32 0.0, %v1593
  %v1595 = vpop.f32.mrf.mxu0
  %v1596 = vadd.f32 0.0, %v1595
  %1597 = vmatmul.bf16.gmra.mxu0 %v1470
  %v1598 = vpop.f32.mrf.mxu0
  %v1599 = vadd.f32 0.0, %v1598
  %v1600 = vpop.f32.mrf.mxu0
  %v1601 = vadd.f32 0.0, %v1600
  %1602 = vmatmul.bf16.gmra.mxu0 %v1473
  %v1603 = vpop.f32.mrf.mxu0
  %v1604 = vadd.f32 0.0, %v1603
  %v1605 = vpop.f32.mrf.mxu0
  %v1606 = vadd.f32 0.0, %v1605
  %1607 = vmatmul.bf16.gmra.mxu0 %v1476
  %v1608 = vpop.f32.mrf.mxu0
  %v1609 = vadd.f32 0.0, %v1608
  %v1610 = vpop.f32.mrf.mxu0
  %v1611 = vadd.f32 0.0, %v1610
  %1612 = vmatmul.bf16.gmra.mxu0 %v1479
  %v1613 = vpop.f32.mrf.mxu0
  %v1614 = vadd.f32 0.0, %v1613
  %v1615 = vpop.f32.mrf.mxu0
  %v1616 = vadd.f32 0.0, %v1615
  %1617 = vmatmul.bf16.gmra.mxu0 %v1482
  %v1618 = vpop.f32.mrf.mxu0
  %v1619 = vadd.f32 0.0, %v1618
  %v1620 = vpop.f32.mrf.mxu0
  %v1621 = vadd.f32 0.0, %v1620
  %1622 = vmatmul.bf16.gmra.mxu0 %v1485
  %v1623 = vpop.f32.mrf.mxu0
  %v1624 = vadd.f32 0.0, %v1623
  %v1625 = vpop.f32.mrf.mxu0
  %v1626 = vadd.f32 0.0, %v1625
  %1627 = vmatmul.bf16.gmra.mxu0 %v1488
  %v1628 = vpop.f32.mrf.mxu0
  %v1629 = vadd.f32 0.0, %v1628
  %v1630 = vpop.f32.mrf.mxu0
  %v1631 = vadd.f32 0.0, %v1630
  %1632 = vmatmul.bf16.gmra.mxu0 %v1491
  %v1633 = vpop.f32.mrf.mxu0
  %v1634 = vadd.f32 0.0, %v1633
  %v1635 = vpop.f32.mrf.mxu0
  %v1636 = vadd.f32 0.0, %v1635
  %1637 = vmatmul.bf16.gmra.mxu0 %v1494
  %v1638 = vpop.f32.mrf.mxu0
  %v1639 = vadd.f32 0.0, %v1638
  %v1640 = vpop.f32.mrf.mxu0
  %v1641 = vadd.f32 0.0, %v1640
  %1642 = vmatmul.bf16.gmra.mxu0 %v1497
  %v1643 = vpop.f32.mrf.mxu0
  %v1644 = vadd.f32 0.0, %v1643
  %v1645 = vpop.f32.mrf.mxu0
  %v1646 = vadd.f32 0.0, %v1645
  %1647 = vmatmul.bf16.gmra.mxu0 %v1500
  %v1648 = vpop.f32.mrf.mxu0
  %v1649 = vadd.f32 0.0, %v1648
  %v1650 = vpop.f32.mrf.mxu0
  %v1651 = vadd.f32 0.0, %v1650
  %1652 = vmatmul.bf16.gmra.mxu0 %v1503
  %v1653 = vpop.f32.mrf.mxu0
  %v1654 = vadd.f32 0.0, %v1653
  %v1655 = vpop.f32.mrf.mxu0
  %v1656 = vadd.f32 0.0, %v1655
  %1657 = vmatmul.bf16.gmra.mxu0 %v1506
  %v1658 = vpop.f32.mrf.mxu0
  %v1659 = vadd.f32 0.0, %v1658
  %v1660 = vpop.f32.mrf.mxu0
  %v1661 = vadd.f32 0.0, %v1660
  %1662 = vmatmul.bf16.gmra.mxu0 %v1509
  %v1663 = vpop.f32.mrf.mxu0
  %v1664 = vadd.f32 0.0, %v1663
  %v1665 = vpop.f32.mrf.mxu0
  %v1666 = vadd.f32 0.0, %v1665
  %1667 = vmatmul.bf16.gmra.mxu0 %v1512
  %v1668 = vpop.f32.mrf.mxu0
  %v1669 = vadd.f32 0.0, %v1668
  %v1670 = vpop.f32.mrf.mxu0
  %v1671 = vadd.f32 0.0, %v1670
  %1672 = vmatmul.bf16.gmra.mxu0 %v1515
  %v1673 = vpop.f32.mrf.mxu0
  %v1674 = vadd.f32 0.0, %v1673
  %v1675 = vpop.f32.mrf.mxu0
  %v1676 = vadd.f32 0.0, %v1675
  %1677 = vmatmul.bf16.gmra.mxu0 %v1518
  %v1678 = vpop.f32.mrf.mxu0
  %v1679 = vadd.f32 0.0, %v1678
  %v1680 = vpop.f32.mrf.mxu0
  %v1681 = vadd.f32 0.0, %v1680
  %1682 = vmatmul.bf16.gmra.mxu0 %v1521
  %v1683 = vpop.f32.mrf.mxu0
  %v1684 = vadd.f32 0.0, %v1683
  %v1685 = vpop.f32.mrf.mxu0
  %v1686 = vadd.f32 0.0, %v1685
  %1687 = vmatmul.bf16.gmra.mxu0 %v1524
  %v1688 = vpop.f32.mrf.mxu0
  %v1689 = vadd.f32 0.0, %v1688
  %v1690 = vpop.f32.mrf.mxu0
  %v1691 = vadd.f32 0.0, %v1690
  %1692 = vmatmul.bf16.gmra.mxu0 %v1527
  %v1693 = vpop.f32.mrf.mxu0
  %v1694 = vadd.f32 0.0, %v1693
  %v1695 = vpop.f32.mrf.mxu0
  %v1696 = vadd.f32 0.0, %v1695
  %1697 = vdwg.mxu0
  %v1698 = vadd.f32 %v1008, %v1539
  %v1699 = vadd.f32 %v1010, %v1541
  %v1700 = vadd.f32 %v1013, %v1544
  %v1701 = vadd.f32 %v1015, %v1546
  %v1702 = vadd.f32 %v1018, %v1549
  %v1703 = vadd.f32 %v1020, %v1551
  %v1704 = vadd.f32 %v1023, %v1554
  %v1705 = vadd.f32 %v1025, %v1556
  %v1706 = vadd.f32 %v1028, %v1559
  %v1707 = vadd.f32 %v1030, %v1561
  %v1708 = vadd.f32 %v1033, %v1564
  %v1709 = vadd.f32 %v1035, %v1566
  %v1710 = vadd.f32 %v1038, %v1569
  %v1711 = vadd.f32 %v1040, %v1571
  %v1712 = vadd.f32 %v1043, %v1574
  %v1713 = vadd.f32 %v1045, %v1576
  %v1714 = vadd.f32 %v1048, %v1579
  %v1715 = vadd.f32 %v1050, %v1581
  %v1716 = vadd.f32 %v1053, %v1584
  %v1717 = vadd.f32 %v1055, %v1586
  %v1718 = vadd.f32 %v1058, %v1589
  %v1719 = vadd.f32 %v1060, %v1591
  %v1720 = vadd.f32 %v1063, %v1594
  %v1721 = vadd.f32 %v1065, %v1596
  %v1722 = vadd.f32 %v1068, %v1599
  %v1723 = vadd.f32 %v1070, %v1601
  %v1724 = vadd.f32 %v1073, %v1604
  %v1725 = vadd.f32 %v1075, %v1606
  %v1726 = vadd.f32 %v1078, %v1609
  %v1727 = vadd.f32 %v1080, %v1611
  %v1728 = vadd.f32 %v1083, %v1614
  %v1729 = vadd.f32 %v1085, %v1616
  %v1730 = vadd.f32 %v1088, %v1619
  %v1731 = vadd.f32 %v1090, %v1621
  %v1732 = vadd.f32 %v1093, %v1624
  %v1733 = vadd.f32 %v1095, %v1626
  %v1734 = vadd.f32 %v1098, %v1629
  %v1735 = vadd.f32 %v1100, %v1631
  %v1736 = vadd.f32 %v1103, %v1634
  %v1737 = vadd.f32 %v1105, %v1636
  %v1738 = vadd.f32 %v1108, %v1639
  %v1739 = vadd.f32 %v1110, %v1641
  %v1740 = vadd.f32 %v1113, %v1644
  %v1741 = vadd.f32 %v1115, %v1646
  %v1742 = vadd.f32 %v1118, %v1649
  %v1743 = vadd.f32 %v1120, %v1651
  %v1744 = vadd.f32 %v1123, %v1654
  %v1745 = vadd.f32 %v1125, %v1656
  %v1746 = vadd.f32 %v1128, %v1659
  %v1747 = vadd.f32 %v1130, %v1661
  %v1748 = vadd.f32 %v1133, %v1664
  %v1749 = vadd.f32 %v1135, %v1666
  %v1750 = vadd.f32 %v1138, %v1669
  %v1751 = vadd.f32 %v1140, %v1671
  %v1752 = vadd.f32 %v1143, %v1674
  %v1753 = vadd.f32 %v1145, %v1676
  %v1754 = vadd.f32 %v1148, %v1679
  %v1755 = vadd.f32 %v1150, %v1681
  %v1756 = vadd.f32 %v1153, %v1684
  %v1757 = vadd.f32 %v1155, %v1686
  %v1758 = vadd.f32 %v1158, %v1689
  %v1759 = vadd.f32 %v1160, %v1691
  %v1760 = vadd.f32 %v1163, %v1694
  %v1761 = vadd.f32 %v1165, %v1696
  %v1762 = vpack.c.bf16 %v175, %v174
  %v1763 = vpack.c.bf16 %v229, %v228
  %s1764 = scalar_lea.vmem %s1, 24
  %v1765 = vld [vmem:[%s1764] sm:$0xf]
  %v1766 = vld [vmem:[%s1764 + $0x4] sm:$0xf]
  %v1769 = vunpack.c.l.b16 %v1765
  %v1770 = vunpack.c.l.b16 %v1766
  %v1771 = vpack.c.b16 %v1770, %v1769
  %v1774 = vsel %vm630, %v1762, 0
  %v1777 = vsel %vm630, %v1763, 0
  %1779 = vmatpush.bf16.msra.mxu0 0
  %1780 = vmatpush.bf16.msra.mxu0 0
  %1781 = vmatpush.bf16.msra.mxu0 0
  %1782 = vmatpush.bf16.msra.mxu0 0
  %1783 = vmatpush.bf16.msra.mxu0 0
  %1784 = vmatpush.bf16.msra.mxu0 0
  %1785 = vmatpush.bf16.msra.mxu0 0
  %1786 = vmatpush.bf16.msra.mxu0 %v1771
  %1787 = vmatmul.bf16.gmra.mxu0 %v906
  %v1788 = vpop.f32.mrf.mxu0
  %v1789 = vadd.f32 0.0, %v1788
  %v1790 = vpop.f32.mrf.mxu0
  %v1791 = vadd.f32 0.0, %v1790
  %1792 = vmatmul.bf16.gmra.mxu0 %v909
  %v1793 = vpop.f32.mrf.mxu0
  %v1794 = vadd.f32 0.0, %v1793
  %v1795 = vpop.f32.mrf.mxu0
  %v1796 = vadd.f32 0.0, %v1795
  %1797 = vmatmul.bf16.gmra.mxu0 %v912
  %v1798 = vpop.f32.mrf.mxu0
  %v1799 = vadd.f32 0.0, %v1798
  %v1800 = vpop.f32.mrf.mxu0
  %v1801 = vadd.f32 0.0, %v1800
  %1802 = vmatmul.bf16.gmra.mxu0 %v915
  %v1803 = vpop.f32.mrf.mxu0
  %v1804 = vadd.f32 0.0, %v1803
  %v1805 = vpop.f32.mrf.mxu0
  %v1806 = vadd.f32 0.0, %v1805
  %1807 = vmatmul.bf16.gmra.mxu0 %v918
  %v1808 = vpop.f32.mrf.mxu0
  %v1809 = vadd.f32 0.0, %v1808
  %v1810 = vpop.f32.mrf.mxu0
  %v1811 = vadd.f32 0.0, %v1810
  %1812 = vmatmul.bf16.gmra.mxu0 %v921
  %v1813 = vpop.f32.mrf.mxu0
  %v1814 = vadd.f32 0.0, %v1813
  %v1815 = vpop.f32.mrf.mxu0
  %v1816 = vadd.f32 0.0, %v1815
  %1817 = vmatmul.bf16.gmra.mxu0 %v924
  %v1818 = vpop.f32.mrf.mxu0
  %v1819 = vadd.f32 0.0, %v1818
  %v1820 = vpop.f32.mrf.mxu0
  %v1821 = vadd.f32 0.0, %v1820
  %1822 = vmatmul.bf16.gmra.mxu0 %v927
  %v1823 = vpop.f32.mrf.mxu0
  %v1824 = vadd.f32 0.0, %v1823
  %v1825 = vpop.f32.mrf.mxu0
  %v1826 = vadd.f32 0.0, %v1825
  %1827 = vmatmul.bf16.gmra.mxu0 %v930
  %v1828 = vpop.f32.mrf.mxu0
  %v1829 = vadd.f32 0.0, %v1828
  %v1830 = vpop.f32.mrf.mxu0
  %v1831 = vadd.f32 0.0, %v1830
  %1832 = vmatmul.bf16.gmra.mxu0 %v933
  %v1833 = vpop.f32.mrf.mxu0
  %v1834 = vadd.f32 0.0, %v1833
  %v1835 = vpop.f32.mrf.mxu0
  %v1836 = vadd.f32 0.0, %v1835
  %1837 = vmatmul.bf16.gmra.mxu0 %v936
  %v1838 = vpop.f32.mrf.mxu0
  %v1839 = vadd.f32 0.0, %v1838
  %v1840 = vpop.f32.mrf.mxu0
  %v1841 = vadd.f32 0.0, %v1840
  %1842 = vmatmul.bf16.gmra.mxu0 %v939
  %v1843 = vpop.f32.mrf.mxu0
  %v1844 = vadd.f32 0.0, %v1843
  %v1845 = vpop.f32.mrf.mxu0
  %v1846 = vadd.f32 0.0, %v1845
  %1847 = vmatmul.bf16.gmra.mxu0 %v942
  %v1848 = vpop.f32.mrf.mxu0
  %v1849 = vadd.f32 0.0, %v1848
  %v1850 = vpop.f32.mrf.mxu0
  %v1851 = vadd.f32 0.0, %v1850
  %1852 = vmatmul.bf16.gmra.mxu0 %v945
  %v1853 = vpop.f32.mrf.mxu0
  %v1854 = vadd.f32 0.0, %v1853
  %v1855 = vpop.f32.mrf.mxu0
  %v1856 = vadd.f32 0.0, %v1855
  %1857 = vmatmul.bf16.gmra.mxu0 %v948
  %v1858 = vpop.f32.mrf.mxu0
  %v1859 = vadd.f32 0.0, %v1858
  %v1860 = vpop.f32.mrf.mxu0
  %v1861 = vadd.f32 0.0, %v1860
  %1862 = vmatmul.bf16.gmra.mxu0 %v1774
  %v1863 = vpop.f32.mrf.mxu0
  %v1864 = vadd.f32 0.0, %v1863
  %v1865 = vpop.f32.mrf.mxu0
  %v1866 = vadd.f32 0.0, %v1865
  %1867 = vmatmul.bf16.gmra.mxu0 %v954
  %v1868 = vpop.f32.mrf.mxu0
  %v1869 = vadd.f32 0.0, %v1868
  %v1870 = vpop.f32.mrf.mxu0
  %v1871 = vadd.f32 0.0, %v1870
  %1872 = vmatmul.bf16.gmra.mxu0 %v957
  %v1873 = vpop.f32.mrf.mxu0
  %v1874 = vadd.f32 0.0, %v1873
  %v1875 = vpop.f32.mrf.mxu0
  %v1876 = vadd.f32 0.0, %v1875
  %1877 = vmatmul.bf16.gmra.mxu0 %v960
  %v1878 = vpop.f32.mrf.mxu0
  %v1879 = vadd.f32 0.0, %v1878
  %v1880 = vpop.f32.mrf.mxu0
  %v1881 = vadd.f32 0.0, %v1880
  %1882 = vmatmul.bf16.gmra.mxu0 %v963
  %v1883 = vpop.f32.mrf.mxu0
  %v1884 = vadd.f32 0.0, %v1883
  %v1885 = vpop.f32.mrf.mxu0
  %v1886 = vadd.f32 0.0, %v1885
  %1887 = vmatmul.bf16.gmra.mxu0 %v966
  %v1888 = vpop.f32.mrf.mxu0
  %v1889 = vadd.f32 0.0, %v1888
  %v1890 = vpop.f32.mrf.mxu0
  %v1891 = vadd.f32 0.0, %v1890
  %1892 = vmatmul.bf16.gmra.mxu0 %v969
  %v1893 = vpop.f32.mrf.mxu0
  %v1894 = vadd.f32 0.0, %v1893
  %v1895 = vpop.f32.mrf.mxu0
  %v1896 = vadd.f32 0.0, %v1895
  %1897 = vmatmul.bf16.gmra.mxu0 %v972
  %v1898 = vpop.f32.mrf.mxu0
  %v1899 = vadd.f32 0.0, %v1898
  %v1900 = vpop.f32.mrf.mxu0
  %v1901 = vadd.f32 0.0, %v1900
  %1902 = vmatmul.bf16.gmra.mxu0 %v975
  %v1903 = vpop.f32.mrf.mxu0
  %v1904 = vadd.f32 0.0, %v1903
  %v1905 = vpop.f32.mrf.mxu0
  %v1906 = vadd.f32 0.0, %v1905
  %1907 = vmatmul.bf16.gmra.mxu0 %v978
  %v1908 = vpop.f32.mrf.mxu0
  %v1909 = vadd.f32 0.0, %v1908
  %v1910 = vpop.f32.mrf.mxu0
  %v1911 = vadd.f32 0.0, %v1910
  %1912 = vmatmul.bf16.gmra.mxu0 %v981
  %v1913 = vpop.f32.mrf.mxu0
  %v1914 = vadd.f32 0.0, %v1913
  %v1915 = vpop.f32.mrf.mxu0
  %v1916 = vadd.f32 0.0, %v1915
  %1917 = vmatmul.bf16.gmra.mxu0 %v984
  %v1918 = vpop.f32.mrf.mxu0
  %v1919 = vadd.f32 0.0, %v1918
  %v1920 = vpop.f32.mrf.mxu0
  %v1921 = vadd.f32 0.0, %v1920
  %1922 = vmatmul.bf16.gmra.mxu0 %v987
  %v1923 = vpop.f32.mrf.mxu0
  %v1924 = vadd.f32 0.0, %v1923
  %v1925 = vpop.f32.mrf.mxu0
  %v1926 = vadd.f32 0.0, %v1925
  %1927 = vmatmul.bf16.gmra.mxu0 %v990
  %v1928 = vpop.f32.mrf.mxu0
  %v1929 = vadd.f32 0.0, %v1928
  %v1930 = vpop.f32.mrf.mxu0
  %v1931 = vadd.f32 0.0, %v1930
  %1932 = vmatmul.bf16.gmra.mxu0 %v993
  %v1933 = vpop.f32.mrf.mxu0
  %v1934 = vadd.f32 0.0, %v1933
  %v1935 = vpop.f32.mrf.mxu0
  %v1936 = vadd.f32 0.0, %v1935
  %1937 = vmatmul.bf16.gmra.mxu0 %v996
  %v1938 = vpop.f32.mrf.mxu0
  %v1939 = vadd.f32 0.0, %v1938
  %v1940 = vpop.f32.mrf.mxu0
  %v1941 = vadd.f32 0.0, %v1940
  %1942 = vmatmul.bf16.gmra.mxu0 %v1777
  %v1943 = vpop.f32.mrf.mxu0
  %v1944 = vadd.f32 0.0, %v1943
  %v1945 = vpop.f32.mrf.mxu0
  %v1946 = vadd.f32 0.0, %v1945
  %1947 = vdwg.mxu0
  %v1948 = vadd.f32 %v1698, %v1789
  %v1949 = vadd.f32 %v1699, %v1791
  %v1950 = vadd.f32 %v1700, %v1794
  %v1951 = vadd.f32 %v1701, %v1796
  %v1952 = vadd.f32 %v1702, %v1799
  %v1953 = vadd.f32 %v1703, %v1801
  %v1954 = vadd.f32 %v1704, %v1804
  %v1955 = vadd.f32 %v1705, %v1806
  %v1956 = vadd.f32 %v1706, %v1809
  %v1957 = vadd.f32 %v1707, %v1811
  %v1958 = vadd.f32 %v1708, %v1814
  %v1959 = vadd.f32 %v1709, %v1816
  %v1960 = vadd.f32 %v1710, %v1819
  %v1961 = vadd.f32 %v1711, %v1821
  %v1962 = vadd.f32 %v1712, %v1824
  %v1963 = vadd.f32 %v1713, %v1826
  %v1964 = vadd.f32 %v1714, %v1829
  %v1965 = vadd.f32 %v1715, %v1831
  %v1966 = vadd.f32 %v1716, %v1834
  %v1967 = vadd.f32 %v1717, %v1836
  %v1968 = vadd.f32 %v1718, %v1839
  %v1969 = vadd.f32 %v1719, %v1841
  %v1970 = vadd.f32 %v1720, %v1844
  %v1971 = vadd.f32 %v1721, %v1846
  %v1972 = vadd.f32 %v1722, %v1849
  %v1973 = vadd.f32 %v1723, %v1851
  %v1974 = vadd.f32 %v1724, %v1854
  %v1975 = vadd.f32 %v1725, %v1856
  %v1976 = vadd.f32 %v1726, %v1859
  %v1977 = vadd.f32 %v1727, %v1861
  %v1978 = vadd.f32 %v1728, %v1864
  %v1979 = vadd.f32 %v1729, %v1866
  %v1980 = vadd.f32 %v1730, %v1869
  %v1981 = vadd.f32 %v1731, %v1871
  %v1982 = vadd.f32 %v1732, %v1874
  %v1983 = vadd.f32 %v1733, %v1876
  %v1984 = vadd.f32 %v1734, %v1879
  %v1985 = vadd.f32 %v1735, %v1881
  %v1986 = vadd.f32 %v1736, %v1884
  %v1987 = vadd.f32 %v1737, %v1886
  %v1988 = vadd.f32 %v1738, %v1889
  %v1989 = vadd.f32 %v1739, %v1891
  %v1990 = vadd.f32 %v1740, %v1894
  %v1991 = vadd.f32 %v1741, %v1896
  %v1992 = vadd.f32 %v1742, %v1899
  %v1993 = vadd.f32 %v1743, %v1901
  %v1994 = vadd.f32 %v1744, %v1904
  %v1995 = vadd.f32 %v1745, %v1906
  %v1996 = vadd.f32 %v1746, %v1909
  %v1997 = vadd.f32 %v1747, %v1911
  %v1998 = vadd.f32 %v1748, %v1914
  %v1999 = vadd.f32 %v1749, %v1916
  %v2000 = vadd.f32 %v1750, %v1919
  %v2001 = vadd.f32 %v1751, %v1921
  %v2002 = vadd.f32 %v1752, %v1924
  %v2003 = vadd.f32 %v1753, %v1926
  %v2004 = vadd.f32 %v1754, %v1929
  %v2005 = vadd.f32 %v1755, %v1931
  %v2006 = vadd.f32 %v1756, %v1934
  %v2007 = vadd.f32 %v1757, %v1936
  %v2008 = vadd.f32 %v1758, %v1939
  %v2009 = vadd.f32 %v1759, %v1941
  %v2010 = vadd.f32 %v1760, %v1944
  %v2011 = vadd.f32 %v1761, %v1946
  %v2018 = vrot.slane %v174, 1
  %v2019 = vrot.slane %v175, 1
  %v2020 = vsel %vm364, %v2018, %v2019
  %v2021 = vrot.slane %v176, 1
  %v2022 = vsel %vm364, %v2019, %v2021
  %v2023 = vrot.slane %v228, 1
  %v2024 = vrot.slane %v229, 1
  %v2025 = vsel %vm364, %v2023, %v2024
  %v2026 = vrot.slane %v230, 1
  %v2027 = vsel %vm364, %v2024, %v2026
  %v2032 = vpack.c.bf16 %v2022, %v2020
  %v2033 = vpack.c.bf16 %v2027, %v2025
  %s2034 = scalar_lea.vmem %s1, 32
  %v2035 = vld [vmem:[%s2034] sm:$0xf]
  %v2036 = vld [vmem:[%s2034 + $0x4] sm:$0xf]
  %v2039 = vunpack.c.l.b16 %v2035
  %v2040 = vunpack.c.l.b16 %v2036
  %v2041 = vpack.c.b16 %v2040, %v2039
  %v2044 = vsel %vm630, %v2032, 0
  %v2047 = vsel %vm630, %v2033, 0
  %2049 = vmatpush.bf16.msra.mxu0 0
  %2050 = vmatpush.bf16.msra.mxu0 0
  %2051 = vmatpush.bf16.msra.mxu0 0
  %2052 = vmatpush.bf16.msra.mxu0 0
  %2053 = vmatpush.bf16.msra.mxu0 0
  %2054 = vmatpush.bf16.msra.mxu0 0
  %2055 = vmatpush.bf16.msra.mxu0 0
  %2056 = vmatpush.bf16.msra.mxu0 %v2041
  %2057 = vmatmul.bf16.gmra.mxu0 %v635
  %v2058 = vpop.f32.mrf.mxu0
  %v2059 = vadd.f32 0.0, %v2058
  %v2060 = vpop.f32.mrf.mxu0
  %v2061 = vadd.f32 0.0, %v2060
  %2062 = vmatmul.bf16.gmra.mxu0 %v638
  %v2063 = vpop.f32.mrf.mxu0
  %v2064 = vadd.f32 0.0, %v2063
  %v2065 = vpop.f32.mrf.mxu0
  %v2066 = vadd.f32 0.0, %v2065
  %2067 = vmatmul.bf16.gmra.mxu0 %v641
  %v2068 = vpop.f32.mrf.mxu0
  %v2069 = vadd.f32 0.0, %v2068
  %v2070 = vpop.f32.mrf.mxu0
  %v2071 = vadd.f32 0.0, %v2070
  %2072 = vmatmul.bf16.gmra.mxu0 %v644
  %v2073 = vpop.f32.mrf.mxu0
  %v2074 = vadd.f32 0.0, %v2073
  %v2075 = vpop.f32.mrf.mxu0
  %v2076 = vadd.f32 0.0, %v2075
  %2077 = vmatmul.bf16.gmra.mxu0 %v647
  %v2078 = vpop.f32.mrf.mxu0
  %v2079 = vadd.f32 0.0, %v2078
  %v2080 = vpop.f32.mrf.mxu0
  %v2081 = vadd.f32 0.0, %v2080
  %2082 = vmatmul.bf16.gmra.mxu0 %v650
  %v2083 = vpop.f32.mrf.mxu0
  %v2084 = vadd.f32 0.0, %v2083
  %v2085 = vpop.f32.mrf.mxu0
  %v2086 = vadd.f32 0.0, %v2085
  %2087 = vmatmul.bf16.gmra.mxu0 %v653
  %v2088 = vpop.f32.mrf.mxu0
  %v2089 = vadd.f32 0.0, %v2088
  %v2090 = vpop.f32.mrf.mxu0
  %v2091 = vadd.f32 0.0, %v2090
  %2092 = vmatmul.bf16.gmra.mxu0 %v656
  %v2093 = vpop.f32.mrf.mxu0
  %v2094 = vadd.f32 0.0, %v2093
  %v2095 = vpop.f32.mrf.mxu0
  %v2096 = vadd.f32 0.0, %v2095
  %2097 = vmatmul.bf16.gmra.mxu0 %v659
  %v2098 = vpop.f32.mrf.mxu0
  %v2099 = vadd.f32 0.0, %v2098
  %v2100 = vpop.f32.mrf.mxu0
  %v2101 = vadd.f32 0.0, %v2100
  %2102 = vmatmul.bf16.gmra.mxu0 %v662
  %v2103 = vpop.f32.mrf.mxu0
  %v2104 = vadd.f32 0.0, %v2103
  %v2105 = vpop.f32.mrf.mxu0
  %v2106 = vadd.f32 0.0, %v2105
  %2107 = vmatmul.bf16.gmra.mxu0 %v665
  %v2108 = vpop.f32.mrf.mxu0
  %v2109 = vadd.f32 0.0, %v2108
  %v2110 = vpop.f32.mrf.mxu0
  %v2111 = vadd.f32 0.0, %v2110
  %2112 = vmatmul.bf16.gmra.mxu0 %v668
  %v2113 = vpop.f32.mrf.mxu0
  %v2114 = vadd.f32 0.0, %v2113
  %v2115 = vpop.f32.mrf.mxu0
  %v2116 = vadd.f32 0.0, %v2115
  %2117 = vmatmul.bf16.gmra.mxu0 %v671
  %v2118 = vpop.f32.mrf.mxu0
  %v2119 = vadd.f32 0.0, %v2118
  %v2120 = vpop.f32.mrf.mxu0
  %v2121 = vadd.f32 0.0, %v2120
  %2122 = vmatmul.bf16.gmra.mxu0 %v674
  %v2123 = vpop.f32.mrf.mxu0
  %v2124 = vadd.f32 0.0, %v2123
  %v2125 = vpop.f32.mrf.mxu0
  %v2126 = vadd.f32 0.0, %v2125
  %2127 = vmatmul.bf16.gmra.mxu0 %v677
  %v2128 = vpop.f32.mrf.mxu0
  %v2129 = vadd.f32 0.0, %v2128
  %v2130 = vpop.f32.mrf.mxu0
  %v2131 = vadd.f32 0.0, %v2130
  %2132 = vmatmul.bf16.gmra.mxu0 %v2044
  %v2133 = vpop.f32.mrf.mxu0
  %v2134 = vadd.f32 0.0, %v2133
  %v2135 = vpop.f32.mrf.mxu0
  %v2136 = vadd.f32 0.0, %v2135
  %2137 = vmatmul.bf16.gmra.mxu0 %v683
  %v2138 = vpop.f32.mrf.mxu0
  %v2139 = vadd.f32 0.0, %v2138
  %v2140 = vpop.f32.mrf.mxu0
  %v2141 = vadd.f32 0.0, %v2140
  %2142 = vmatmul.bf16.gmra.mxu0 %v686
  %v2143 = vpop.f32.mrf.mxu0
  %v2144 = vadd.f32 0.0, %v2143
  %v2145 = vpop.f32.mrf.mxu0
  %v2146 = vadd.f32 0.0, %v2145
  %2147 = vmatmul.bf16.gmra.mxu0 %v689
  %v2148 = vpop.f32.mrf.mxu0
  %v2149 = vadd.f32 0.0, %v2148
  %v2150 = vpop.f32.mrf.mxu0
  %v2151 = vadd.f32 0.0, %v2150
  %2152 = vmatmul.bf16.gmra.mxu0 %v692
  %v2153 = vpop.f32.mrf.mxu0
  %v2154 = vadd.f32 0.0, %v2153
  %v2155 = vpop.f32.mrf.mxu0
  %v2156 = vadd.f32 0.0, %v2155
  %2157 = vmatmul.bf16.gmra.mxu0 %v695
  %v2158 = vpop.f32.mrf.mxu0
  %v2159 = vadd.f32 0.0, %v2158
  %v2160 = vpop.f32.mrf.mxu0
  %v2161 = vadd.f32 0.0, %v2160
  %2162 = vmatmul.bf16.gmra.mxu0 %v698
  %v2163 = vpop.f32.mrf.mxu0
  %v2164 = vadd.f32 0.0, %v2163
  %v2165 = vpop.f32.mrf.mxu0
  %v2166 = vadd.f32 0.0, %v2165
  %2167 = vmatmul.bf16.gmra.mxu0 %v701
  %v2168 = vpop.f32.mrf.mxu0
  %v2169 = vadd.f32 0.0, %v2168
  %v2170 = vpop.f32.mrf.mxu0
  %v2171 = vadd.f32 0.0, %v2170
  %2172 = vmatmul.bf16.gmra.mxu0 %v704
  %v2173 = vpop.f32.mrf.mxu0
  %v2174 = vadd.f32 0.0, %v2173
  %v2175 = vpop.f32.mrf.mxu0
  %v2176 = vadd.f32 0.0, %v2175
  %2177 = vmatmul.bf16.gmra.mxu0 %v707
  %v2178 = vpop.f32.mrf.mxu0
  %v2179 = vadd.f32 0.0, %v2178
  %v2180 = vpop.f32.mrf.mxu0
  %v2181 = vadd.f32 0.0, %v2180
  %2182 = vmatmul.bf16.gmra.mxu0 %v710
  %v2183 = vpop.f32.mrf.mxu0
  %v2184 = vadd.f32 0.0, %v2183
  %v2185 = vpop.f32.mrf.mxu0
  %v2186 = vadd.f32 0.0, %v2185
  %2187 = vmatmul.bf16.gmra.mxu0 %v713
  %v2188 = vpop.f32.mrf.mxu0
  %v2189 = vadd.f32 0.0, %v2188
  %v2190 = vpop.f32.mrf.mxu0
  %v2191 = vadd.f32 0.0, %v2190
  %2192 = vmatmul.bf16.gmra.mxu0 %v716
  %v2193 = vpop.f32.mrf.mxu0
  %v2194 = vadd.f32 0.0, %v2193
  %v2195 = vpop.f32.mrf.mxu0
  %v2196 = vadd.f32 0.0, %v2195
  %2197 = vmatmul.bf16.gmra.mxu0 %v719
  %v2198 = vpop.f32.mrf.mxu0
  %v2199 = vadd.f32 0.0, %v2198
  %v2200 = vpop.f32.mrf.mxu0
  %v2201 = vadd.f32 0.0, %v2200
  %2202 = vmatmul.bf16.gmra.mxu0 %v722
  %v2203 = vpop.f32.mrf.mxu0
  %v2204 = vadd.f32 0.0, %v2203
  %v2205 = vpop.f32.mrf.mxu0
  %v2206 = vadd.f32 0.0, %v2205
  %2207 = vmatmul.bf16.gmra.mxu0 %v725
  %v2208 = vpop.f32.mrf.mxu0
  %v2209 = vadd.f32 0.0, %v2208
  %v2210 = vpop.f32.mrf.mxu0
  %v2211 = vadd.f32 0.0, %v2210
  %2212 = vmatmul.bf16.gmra.mxu0 %v2047
  %v2213 = vpop.f32.mrf.mxu0
  %v2214 = vadd.f32 0.0, %v2213
  %v2215 = vpop.f32.mrf.mxu0
  %v2216 = vadd.f32 0.0, %v2215
  %2217 = vdwg.mxu0
  %v2218 = vadd.f32 %v1948, %v2059
  %v2219 = vadd.f32 %v1949, %v2061
  %v2220 = vadd.f32 %v1950, %v2064
  %v2221 = vadd.f32 %v1951, %v2066
  %v2222 = vadd.f32 %v1952, %v2069
  %v2223 = vadd.f32 %v1953, %v2071
  %v2224 = vadd.f32 %v1954, %v2074
  %v2225 = vadd.f32 %v1955, %v2076
  %v2226 = vadd.f32 %v1956, %v2079
  %v2227 = vadd.f32 %v1957, %v2081
  %v2228 = vadd.f32 %v1958, %v2084
  %v2229 = vadd.f32 %v1959, %v2086
  %v2230 = vadd.f32 %v1960, %v2089
  %v2231 = vadd.f32 %v1961, %v2091
  %v2232 = vadd.f32 %v1962, %v2094
  %v2233 = vadd.f32 %v1963, %v2096
  %v2234 = vadd.f32 %v1964, %v2099
  %v2235 = vadd.f32 %v1965, %v2101
  %v2236 = vadd.f32 %v1966, %v2104
  %v2237 = vadd.f32 %v1967, %v2106
  %v2238 = vadd.f32 %v1968, %v2109
  %v2239 = vadd.f32 %v1969, %v2111
  %v2240 = vadd.f32 %v1970, %v2114
  %v2241 = vadd.f32 %v1971, %v2116
  %v2242 = vadd.f32 %v1972, %v2119
  %v2243 = vadd.f32 %v1973, %v2121
  %v2244 = vadd.f32 %v1974, %v2124
  %v2245 = vadd.f32 %v1975, %v2126
  %v2246 = vadd.f32 %v1976, %v2129
  %v2247 = vadd.f32 %v1977, %v2131
  %v2248 = vadd.f32 %v1978, %v2134
  %v2249 = vadd.f32 %v1979, %v2136
  %v2250 = vadd.f32 %v1980, %v2139
  %v2251 = vadd.f32 %v1981, %v2141
  %v2252 = vadd.f32 %v1982, %v2144
  %v2253 = vadd.f32 %v1983, %v2146
  %v2254 = vadd.f32 %v1984, %v2149
  %v2255 = vadd.f32 %v1985, %v2151
  %v2256 = vadd.f32 %v1986, %v2154
  %v2257 = vadd.f32 %v1987, %v2156
  %v2258 = vadd.f32 %v1988, %v2159
  %v2259 = vadd.f32 %v1989, %v2161
  %v2260 = vadd.f32 %v1990, %v2164
  %v2261 = vadd.f32 %v1991, %v2166
  %v2262 = vadd.f32 %v1992, %v2169
  %v2263 = vadd.f32 %v1993, %v2171
  %v2264 = vadd.f32 %v1994, %v2174
  %v2265 = vadd.f32 %v1995, %v2176
  %v2266 = vadd.f32 %v1996, %v2179
  %v2267 = vadd.f32 %v1997, %v2181
  %v2268 = vadd.f32 %v1998, %v2184
  %v2269 = vadd.f32 %v1999, %v2186
  %v2270 = vadd.f32 %v2000, %v2189
  %v2271 = vadd.f32 %v2001, %v2191
  %v2272 = vadd.f32 %v2002, %v2194
  %v2273 = vadd.f32 %v2003, %v2196
  %v2274 = vadd.f32 %v2004, %v2199
  %v2275 = vadd.f32 %v2005, %v2201
  %v2276 = vadd.f32 %v2006, %v2204
  %v2277 = vadd.f32 %v2007, %v2206
  %v2278 = vadd.f32 %v2008, %v2209
  %v2279 = vadd.f32 %v2009, %v2211
  %v2280 = vadd.f32 %v2010, %v2214
  %v2281 = vadd.f32 %v2011, %v2216
  %v2282 = vrot.slane %v174, 2
  %v2283 = vrot.slane %v175, 2
  %v2284 = vsel %vm1167, %v2282, %v2283
  %v2285 = vrot.slane %v176, 2
  %v2286 = vsel %vm1167, %v2283, %v2285
  %v2287 = vrot.slane %v228, 2
  %v2288 = vrot.slane %v229, 2
  %v2289 = vsel %vm1167, %v2287, %v2288
  %v2290 = vrot.slane %v230, 2
  %v2291 = vsel %vm1167, %v2288, %v2290
  %v2296 = vpack.c.bf16 %v2286, %v2284
  %v2297 = vpack.c.bf16 %v2291, %v2289
  %s2298 = scalar_lea.vmem %s1, 40
  %v2299 = vld [vmem:[%s2298] sm:$0xf]
  %v2300 = vld [vmem:[%s2298 + $0x4] sm:$0xf]
  %v2303 = vunpack.c.l.b16 %v2299
  %v2304 = vunpack.c.l.b16 %v2300
  %v2305 = vpack.c.b16 %v2304, %v2303
  %v2308 = vsel %vm630, %v2296, 0
  %v2311 = vsel %vm630, %v2297, 0
  %2313 = vmatpush.bf16.msra.mxu0 0
  %2314 = vmatpush.bf16.msra.mxu0 0
  %2315 = vmatpush.bf16.msra.mxu0 0
  %2316 = vmatpush.bf16.msra.mxu0 0
  %2317 = vmatpush.bf16.msra.mxu0 0
  %2318 = vmatpush.bf16.msra.mxu0 0
  %2319 = vmatpush.bf16.msra.mxu0 0
  %2320 = vmatpush.bf16.msra.mxu0 %v2305
  %2321 = vmatmul.bf16.gmra.mxu0 %v1437
  %v2322 = vpop.f32.mrf.mxu0
  %v2323 = vadd.f32 0.0, %v2322
  %v2324 = vpop.f32.mrf.mxu0
  %v2325 = vadd.f32 0.0, %v2324
  %2326 = vmatmul.bf16.gmra.mxu0 %v1440
  %v2327 = vpop.f32.mrf.mxu0
  %v2328 = vadd.f32 0.0, %v2327
  %v2329 = vpop.f32.mrf.mxu0
  %v2330 = vadd.f32 0.0, %v2329
  %2331 = vmatmul.bf16.gmra.mxu0 %v1443
  %v2332 = vpop.f32.mrf.mxu0
  %v2333 = vadd.f32 0.0, %v2332
  %v2334 = vpop.f32.mrf.mxu0
  %v2335 = vadd.f32 0.0, %v2334
  %2336 = vmatmul.bf16.gmra.mxu0 %v1446
  %v2337 = vpop.f32.mrf.mxu0
  %v2338 = vadd.f32 0.0, %v2337
  %v2339 = vpop.f32.mrf.mxu0
  %v2340 = vadd.f32 0.0, %v2339
  %2341 = vmatmul.bf16.gmra.mxu0 %v1449
  %v2342 = vpop.f32.mrf.mxu0
  %v2343 = vadd.f32 0.0, %v2342
  %v2344 = vpop.f32.mrf.mxu0
  %v2345 = vadd.f32 0.0, %v2344
  %2346 = vmatmul.bf16.gmra.mxu0 %v1452
  %v2347 = vpop.f32.mrf.mxu0
  %v2348 = vadd.f32 0.0, %v2347
  %v2349 = vpop.f32.mrf.mxu0
  %v2350 = vadd.f32 0.0, %v2349
  %2351 = vmatmul.bf16.gmra.mxu0 %v1455
  %v2352 = vpop.f32.mrf.mxu0
  %v2353 = vadd.f32 0.0, %v2352
  %v2354 = vpop.f32.mrf.mxu0
  %v2355 = vadd.f32 0.0, %v2354
  %2356 = vmatmul.bf16.gmra.mxu0 %v1458
  %v2357 = vpop.f32.mrf.mxu0
  %v2358 = vadd.f32 0.0, %v2357
  %v2359 = vpop.f32.mrf.mxu0
  %v2360 = vadd.f32 0.0, %v2359
  %2361 = vmatmul.bf16.gmra.mxu0 %v1461
  %v2362 = vpop.f32.mrf.mxu0
  %v2363 = vadd.f32 0.0, %v2362
  %v2364 = vpop.f32.mrf.mxu0
  %v2365 = vadd.f32 0.0, %v2364
  %2366 = vmatmul.bf16.gmra.mxu0 %v1464
  %v2367 = vpop.f32.mrf.mxu0
  %v2368 = vadd.f32 0.0, %v2367
  %v2369 = vpop.f32.mrf.mxu0
  %v2370 = vadd.f32 0.0, %v2369
  %2371 = vmatmul.bf16.gmra.mxu0 %v1467
  %v2372 = vpop.f32.mrf.mxu0
  %v2373 = vadd.f32 0.0, %v2372
  %v2374 = vpop.f32.mrf.mxu0
  %v2375 = vadd.f32 0.0, %v2374
  %2376 = vmatmul.bf16.gmra.mxu0 %v1470
  %v2377 = vpop.f32.mrf.mxu0
  %v2378 = vadd.f32 0.0, %v2377
  %v2379 = vpop.f32.mrf.mxu0
  %v2380 = vadd.f32 0.0, %v2379
  %2381 = vmatmul.bf16.gmra.mxu0 %v1473
  %v2382 = vpop.f32.mrf.mxu0
  %v2383 = vadd.f32 0.0, %v2382
  %v2384 = vpop.f32.mrf.mxu0
  %v2385 = vadd.f32 0.0, %v2384
  %2386 = vmatmul.bf16.gmra.mxu0 %v1476
  %v2387 = vpop.f32.mrf.mxu0
  %v2388 = vadd.f32 0.0, %v2387
  %v2389 = vpop.f32.mrf.mxu0
  %v2390 = vadd.f32 0.0, %v2389
  %2391 = vmatmul.bf16.gmra.mxu0 %v1479
  %v2392 = vpop.f32.mrf.mxu0
  %v2393 = vadd.f32 0.0, %v2392
  %v2394 = vpop.f32.mrf.mxu0
  %v2395 = vadd.f32 0.0, %v2394
  %2396 = vmatmul.bf16.gmra.mxu0 %v2308
  %v2397 = vpop.f32.mrf.mxu0
  %v2398 = vadd.f32 0.0, %v2397
  %v2399 = vpop.f32.mrf.mxu0
  %v2400 = vadd.f32 0.0, %v2399
  %2401 = vmatmul.bf16.gmra.mxu0 %v1485
  %v2402 = vpop.f32.mrf.mxu0
  %v2403 = vadd.f32 0.0, %v2402
  %v2404 = vpop.f32.mrf.mxu0
  %v2405 = vadd.f32 0.0, %v2404
  %2406 = vmatmul.bf16.gmra.mxu0 %v1488
  %v2407 = vpop.f32.mrf.mxu0
  %v2408 = vadd.f32 0.0, %v2407
  %v2409 = vpop.f32.mrf.mxu0
  %v2410 = vadd.f32 0.0, %v2409
  %2411 = vmatmul.bf16.gmra.mxu0 %v1491
  %v2412 = vpop.f32.mrf.mxu0
  %v2413 = vadd.f32 0.0, %v2412
  %v2414 = vpop.f32.mrf.mxu0
  %v2415 = vadd.f32 0.0, %v2414
  %2416 = vmatmul.bf16.gmra.mxu0 %v1494
  %v2417 = vpop.f32.mrf.mxu0
  %v2418 = vadd.f32 0.0, %v2417
  %v2419 = vpop.f32.mrf.mxu0
  %v2420 = vadd.f32 0.0, %v2419
  %2421 = vmatmul.bf16.gmra.mxu0 %v1497
  %v2422 = vpop.f32.mrf.mxu0
  %v2423 = vadd.f32 0.0, %v2422
  %v2424 = vpop.f32.mrf.mxu0
  %v2425 = vadd.f32 0.0, %v2424
  %2426 = vmatmul.bf16.gmra.mxu0 %v1500
  %v2427 = vpop.f32.mrf.mxu0
  %v2428 = vadd.f32 0.0, %v2427
  %v2429 = vpop.f32.mrf.mxu0
  %v2430 = vadd.f32 0.0, %v2429
  %2431 = vmatmul.bf16.gmra.mxu0 %v1503
  %v2432 = vpop.f32.mrf.mxu0
  %v2433 = vadd.f32 0.0, %v2432
  %v2434 = vpop.f32.mrf.mxu0
  %v2435 = vadd.f32 0.0, %v2434
  %2436 = vmatmul.bf16.gmra.mxu0 %v1506
  %v2437 = vpop.f32.mrf.mxu0
  %v2438 = vadd.f32 0.0, %v2437
  %v2439 = vpop.f32.mrf.mxu0
  %v2440 = vadd.f32 0.0, %v2439
  %2441 = vmatmul.bf16.gmra.mxu0 %v1509
  %v2442 = vpop.f32.mrf.mxu0
  %v2443 = vadd.f32 0.0, %v2442
  %v2444 = vpop.f32.mrf.mxu0
  %v2445 = vadd.f32 0.0, %v2444
  %2446 = vmatmul.bf16.gmra.mxu0 %v1512
  %v2447 = vpop.f32.mrf.mxu0
  %v2448 = vadd.f32 0.0, %v2447
  %v2449 = vpop.f32.mrf.mxu0
  %v2450 = vadd.f32 0.0, %v2449
  %2451 = vmatmul.bf16.gmra.mxu0 %v1515
  %v2452 = vpop.f32.mrf.mxu0
  %v2453 = vadd.f32 0.0, %v2452
  %v2454 = vpop.f32.mrf.mxu0
  %v2455 = vadd.f32 0.0, %v2454
  %2456 = vmatmul.bf16.gmra.mxu0 %v1518
  %v2457 = vpop.f32.mrf.mxu0
  %v2458 = vadd.f32 0.0, %v2457
  %v2459 = vpop.f32.mrf.mxu0
  %v2460 = vadd.f32 0.0, %v2459
  %2461 = vmatmul.bf16.gmra.mxu0 %v1521
  %v2462 = vpop.f32.mrf.mxu0
  %v2463 = vadd.f32 0.0, %v2462
  %v2464 = vpop.f32.mrf.mxu0
  %v2465 = vadd.f32 0.0, %v2464
  %2466 = vmatmul.bf16.gmra.mxu0 %v1524
  %v2467 = vpop.f32.mrf.mxu0
  %v2468 = vadd.f32 0.0, %v2467
  %v2469 = vpop.f32.mrf.mxu0
  %v2470 = vadd.f32 0.0, %v2469
  %2471 = vmatmul.bf16.gmra.mxu0 %v1527
  %v2472 = vpop.f32.mrf.mxu0
  %v2473 = vadd.f32 0.0, %v2472
  %v2474 = vpop.f32.mrf.mxu0
  %v2475 = vadd.f32 0.0, %v2474
  %2476 = vmatmul.bf16.gmra.mxu0 %v2311
  %v2477 = vpop.f32.mrf.mxu0
  %v2478 = vadd.f32 0.0, %v2477
  %v2479 = vpop.f32.mrf.mxu0
  %v2480 = vadd.f32 0.0, %v2479
  %2481 = vdwg.mxu0
  %v2482 = vadd.f32 %v2218, %v2323
  %v2483 = vadd.f32 %v2219, %v2325
  %v2484 = vadd.f32 %v2220, %v2328
  %v2485 = vadd.f32 %v2221, %v2330
  %v2486 = vadd.f32 %v2222, %v2333
  %v2487 = vadd.f32 %v2223, %v2335
  %v2488 = vadd.f32 %v2224, %v2338
  %v2489 = vadd.f32 %v2225, %v2340
  %v2490 = vadd.f32 %v2226, %v2343
  %v2491 = vadd.f32 %v2227, %v2345
  %v2492 = vadd.f32 %v2228, %v2348
  %v2493 = vadd.f32 %v2229, %v2350
  %v2494 = vadd.f32 %v2230, %v2353
  %v2495 = vadd.f32 %v2231, %v2355
  %v2496 = vadd.f32 %v2232, %v2358
  %v2497 = vadd.f32 %v2233, %v2360
  %v2498 = vadd.f32 %v2234, %v2363
  %v2499 = vadd.f32 %v2235, %v2365
  %v2500 = vadd.f32 %v2236, %v2368
  %v2501 = vadd.f32 %v2237, %v2370
  %v2502 = vadd.f32 %v2238, %v2373
  %v2503 = vadd.f32 %v2239, %v2375
  %v2504 = vadd.f32 %v2240, %v2378
  %v2505 = vadd.f32 %v2241, %v2380
  %v2506 = vadd.f32 %v2242, %v2383
  %v2507 = vadd.f32 %v2243, %v2385
  %v2508 = vadd.f32 %v2244, %v2388
  %v2509 = vadd.f32 %v2245, %v2390
  %v2510 = vadd.f32 %v2246, %v2393
  %v2511 = vadd.f32 %v2247, %v2395
  %v2512 = vadd.f32 %v2248, %v2398
  %v2513 = vadd.f32 %v2249, %v2400
  %v2514 = vadd.f32 %v2250, %v2403
  %v2515 = vadd.f32 %v2251, %v2405
  %v2516 = vadd.f32 %v2252, %v2408
  %v2517 = vadd.f32 %v2253, %v2410
  %v2518 = vadd.f32 %v2254, %v2413
  %v2519 = vadd.f32 %v2255, %v2415
  %v2520 = vadd.f32 %v2256, %v2418
  %v2521 = vadd.f32 %v2257, %v2420
  %v2522 = vadd.f32 %v2258, %v2423
  %v2523 = vadd.f32 %v2259, %v2425
  %v2524 = vadd.f32 %v2260, %v2428
  %v2525 = vadd.f32 %v2261, %v2430
  %v2526 = vadd.f32 %v2262, %v2433
  %v2527 = vadd.f32 %v2263, %v2435
  %v2528 = vadd.f32 %v2264, %v2438
  %v2529 = vadd.f32 %v2265, %v2440
  %v2530 = vadd.f32 %v2266, %v2443
  %v2531 = vadd.f32 %v2267, %v2445
  %v2532 = vadd.f32 %v2268, %v2448
  %v2533 = vadd.f32 %v2269, %v2450
  %v2534 = vadd.f32 %v2270, %v2453
  %v2535 = vadd.f32 %v2271, %v2455
  %v2536 = vadd.f32 %v2272, %v2458
  %v2537 = vadd.f32 %v2273, %v2460
  %v2538 = vadd.f32 %v2274, %v2463
  %v2539 = vadd.f32 %v2275, %v2465
  %v2540 = vadd.f32 %v2276, %v2468
  %v2541 = vadd.f32 %v2277, %v2470
  %v2542 = vadd.f32 %v2278, %v2473
  %v2543 = vadd.f32 %v2279, %v2475
  %v2544 = vadd.f32 %v2280, %v2478
  %v2545 = vadd.f32 %v2281, %v2480
  %v2546 = vpack.c.bf16 %v178, %v177
  %v2547 = vpack.c.bf16 %v232, %v231
  %s2548 = scalar_lea.vmem %s1, 48
  %v2549 = vld [vmem:[%s2548] sm:$0xf]
  %v2550 = vld [vmem:[%s2548 + $0x4] sm:$0xf]
  %v2553 = vunpack.c.l.b16 %v2549
  %v2554 = vunpack.c.l.b16 %v2550
  %v2555 = vpack.c.b16 %v2554, %v2553
  %v2558 = vsel %vm630, %v2546, 0
  %v2561 = vsel %vm630, %v2547, 0
  %2563 = vmatpush.bf16.msra.mxu0 0
  %2564 = vmatpush.bf16.msra.mxu0 0
  %2565 = vmatpush.bf16.msra.mxu0 0
  %2566 = vmatpush.bf16.msra.mxu0 0
  %2567 = vmatpush.bf16.msra.mxu0 0
  %2568 = vmatpush.bf16.msra.mxu0 0
  %2569 = vmatpush.bf16.msra.mxu0 0
  %2570 = vmatpush.bf16.msra.mxu0 %v2555
  %2571 = vmatmul.bf16.gmra.mxu0 %v909
  %v2572 = vpop.f32.mrf.mxu0
  %v2573 = vadd.f32 0.0, %v2572
  %v2574 = vpop.f32.mrf.mxu0
  %v2575 = vadd.f32 0.0, %v2574
  %2576 = vmatmul.bf16.gmra.mxu0 %v912
  %v2577 = vpop.f32.mrf.mxu0
  %v2578 = vadd.f32 0.0, %v2577
  %v2579 = vpop.f32.mrf.mxu0
  %v2580 = vadd.f32 0.0, %v2579
  %2581 = vmatmul.bf16.gmra.mxu0 %v915
  %v2582 = vpop.f32.mrf.mxu0
  %v2583 = vadd.f32 0.0, %v2582
  %v2584 = vpop.f32.mrf.mxu0
  %v2585 = vadd.f32 0.0, %v2584
  %2586 = vmatmul.bf16.gmra.mxu0 %v918
  %v2587 = vpop.f32.mrf.mxu0
  %v2588 = vadd.f32 0.0, %v2587
  %v2589 = vpop.f32.mrf.mxu0
  %v2590 = vadd.f32 0.0, %v2589
  %2591 = vmatmul.bf16.gmra.mxu0 %v921
  %v2592 = vpop.f32.mrf.mxu0
  %v2593 = vadd.f32 0.0, %v2592
  %v2594 = vpop.f32.mrf.mxu0
  %v2595 = vadd.f32 0.0, %v2594
  %2596 = vmatmul.bf16.gmra.mxu0 %v924
  %v2597 = vpop.f32.mrf.mxu0
  %v2598 = vadd.f32 0.0, %v2597
  %v2599 = vpop.f32.mrf.mxu0
  %v2600 = vadd.f32 0.0, %v2599
  %2601 = vmatmul.bf16.gmra.mxu0 %v927
  %v2602 = vpop.f32.mrf.mxu0
  %v2603 = vadd.f32 0.0, %v2602
  %v2604 = vpop.f32.mrf.mxu0
  %v2605 = vadd.f32 0.0, %v2604
  %2606 = vmatmul.bf16.gmra.mxu0 %v930
  %v2607 = vpop.f32.mrf.mxu0
  %v2608 = vadd.f32 0.0, %v2607
  %v2609 = vpop.f32.mrf.mxu0
  %v2610 = vadd.f32 0.0, %v2609
  %2611 = vmatmul.bf16.gmra.mxu0 %v933
  %v2612 = vpop.f32.mrf.mxu0
  %v2613 = vadd.f32 0.0, %v2612
  %v2614 = vpop.f32.mrf.mxu0
  %v2615 = vadd.f32 0.0, %v2614
  %2616 = vmatmul.bf16.gmra.mxu0 %v936
  %v2617 = vpop.f32.mrf.mxu0
  %v2618 = vadd.f32 0.0, %v2617
  %v2619 = vpop.f32.mrf.mxu0
  %v2620 = vadd.f32 0.0, %v2619
  %2621 = vmatmul.bf16.gmra.mxu0 %v939
  %v2622 = vpop.f32.mrf.mxu0
  %v2623 = vadd.f32 0.0, %v2622
  %v2624 = vpop.f32.mrf.mxu0
  %v2625 = vadd.f32 0.0, %v2624
  %2626 = vmatmul.bf16.gmra.mxu0 %v942
  %v2627 = vpop.f32.mrf.mxu0
  %v2628 = vadd.f32 0.0, %v2627
  %v2629 = vpop.f32.mrf.mxu0
  %v2630 = vadd.f32 0.0, %v2629
  %2631 = vmatmul.bf16.gmra.mxu0 %v945
  %v2632 = vpop.f32.mrf.mxu0
  %v2633 = vadd.f32 0.0, %v2632
  %v2634 = vpop.f32.mrf.mxu0
  %v2635 = vadd.f32 0.0, %v2634
  %2636 = vmatmul.bf16.gmra.mxu0 %v948
  %v2637 = vpop.f32.mrf.mxu0
  %v2638 = vadd.f32 0.0, %v2637
  %v2639 = vpop.f32.mrf.mxu0
  %v2640 = vadd.f32 0.0, %v2639
  %2641 = vmatmul.bf16.gmra.mxu0 %v1774
  %v2642 = vpop.f32.mrf.mxu0
  %v2643 = vadd.f32 0.0, %v2642
  %v2644 = vpop.f32.mrf.mxu0
  %v2645 = vadd.f32 0.0, %v2644
  %2646 = vmatmul.bf16.gmra.mxu0 %v2558
  %v2647 = vpop.f32.mrf.mxu0
  %v2648 = vadd.f32 0.0, %v2647
  %v2649 = vpop.f32.mrf.mxu0
  %v2650 = vadd.f32 0.0, %v2649
  %2651 = vmatmul.bf16.gmra.mxu0 %v957
  %v2652 = vpop.f32.mrf.mxu0
  %v2653 = vadd.f32 0.0, %v2652
  %v2654 = vpop.f32.mrf.mxu0
  %v2655 = vadd.f32 0.0, %v2654
  %2656 = vmatmul.bf16.gmra.mxu0 %v960
  %v2657 = vpop.f32.mrf.mxu0
  %v2658 = vadd.f32 0.0, %v2657
  %v2659 = vpop.f32.mrf.mxu0
  %v2660 = vadd.f32 0.0, %v2659
  %2661 = vmatmul.bf16.gmra.mxu0 %v963
  %v2662 = vpop.f32.mrf.mxu0
  %v2663 = vadd.f32 0.0, %v2662
  %v2664 = vpop.f32.mrf.mxu0
  %v2665 = vadd.f32 0.0, %v2664
  %2666 = vmatmul.bf16.gmra.mxu0 %v966
  %v2667 = vpop.f32.mrf.mxu0
  %v2668 = vadd.f32 0.0, %v2667
  %v2669 = vpop.f32.mrf.mxu0
  %v2670 = vadd.f32 0.0, %v2669
  %2671 = vmatmul.bf16.gmra.mxu0 %v969
  %v2672 = vpop.f32.mrf.mxu0
  %v2673 = vadd.f32 0.0, %v2672
  %v2674 = vpop.f32.mrf.mxu0
  %v2675 = vadd.f32 0.0, %v2674
  %2676 = vmatmul.bf16.gmra.mxu0 %v972
  %v2677 = vpop.f32.mrf.mxu0
  %v2678 = vadd.f32 0.0, %v2677
  %v2679 = vpop.f32.mrf.mxu0
  %v2680 = vadd.f32 0.0, %v2679
  %2681 = vmatmul.bf16.gmra.mxu0 %v975
  %v2682 = vpop.f32.mrf.mxu0
  %v2683 = vadd.f32 0.0, %v2682
  %v2684 = vpop.f32.mrf.mxu0
  %v2685 = vadd.f32 0.0, %v2684
  %2686 = vmatmul.bf16.gmra.mxu0 %v978
  %v2687 = vpop.f32.mrf.mxu0
  %v2688 = vadd.f32 0.0, %v2687
  %v2689 = vpop.f32.mrf.mxu0
  %v2690 = vadd.f32 0.0, %v2689
  %2691 = vmatmul.bf16.gmra.mxu0 %v981
  %v2692 = vpop.f32.mrf.mxu0
  %v2693 = vadd.f32 0.0, %v2692
  %v2694 = vpop.f32.mrf.mxu0
  %v2695 = vadd.f32 0.0, %v2694
  %2696 = vmatmul.bf16.gmra.mxu0 %v984
  %v2697 = vpop.f32.mrf.mxu0
  %v2698 = vadd.f32 0.0, %v2697
  %v2699 = vpop.f32.mrf.mxu0
  %v2700 = vadd.f32 0.0, %v2699
  %2701 = vmatmul.bf16.gmra.mxu0 %v987
  %v2702 = vpop.f32.mrf.mxu0
  %v2703 = vadd.f32 0.0, %v2702
  %v2704 = vpop.f32.mrf.mxu0
  %v2705 = vadd.f32 0.0, %v2704
  %2706 = vmatmul.bf16.gmra.mxu0 %v990
  %v2707 = vpop.f32.mrf.mxu0
  %v2708 = vadd.f32 0.0, %v2707
  %v2709 = vpop.f32.mrf.mxu0
  %v2710 = vadd.f32 0.0, %v2709
  %2711 = vmatmul.bf16.gmra.mxu0 %v993
  %v2712 = vpop.f32.mrf.mxu0
  %v2713 = vadd.f32 0.0, %v2712
  %v2714 = vpop.f32.mrf.mxu0
  %v2715 = vadd.f32 0.0, %v2714
  %2716 = vmatmul.bf16.gmra.mxu0 %v996
  %v2717 = vpop.f32.mrf.mxu0
  %v2718 = vadd.f32 0.0, %v2717
  %v2719 = vpop.f32.mrf.mxu0
  %v2720 = vadd.f32 0.0, %v2719
  %2721 = vmatmul.bf16.gmra.mxu0 %v1777
  %v2722 = vpop.f32.mrf.mxu0
  %v2723 = vadd.f32 0.0, %v2722
  %v2724 = vpop.f32.mrf.mxu0
  %v2725 = vadd.f32 0.0, %v2724
  %2726 = vmatmul.bf16.gmra.mxu0 %v2561
  %v2727 = vpop.f32.mrf.mxu0
  %v2728 = vadd.f32 0.0, %v2727
  %v2729 = vpop.f32.mrf.mxu0
  %v2730 = vadd.f32 0.0, %v2729
  %2731 = vdwg.mxu0
  %v2732 = vadd.f32 %v2482, %v2573
  %v2733 = vadd.f32 %v2483, %v2575
  %v2734 = vadd.f32 %v2484, %v2578
  %v2735 = vadd.f32 %v2485, %v2580
  %v2736 = vadd.f32 %v2486, %v2583
  %v2737 = vadd.f32 %v2487, %v2585
  %v2738 = vadd.f32 %v2488, %v2588
  %v2739 = vadd.f32 %v2489, %v2590
  %v2740 = vadd.f32 %v2490, %v2593
  %v2741 = vadd.f32 %v2491, %v2595
  %v2742 = vadd.f32 %v2492, %v2598
  %v2743 = vadd.f32 %v2493, %v2600
  %v2744 = vadd.f32 %v2494, %v2603
  %v2745 = vadd.f32 %v2495, %v2605
  %v2746 = vadd.f32 %v2496, %v2608
  %v2747 = vadd.f32 %v2497, %v2610
  %v2748 = vadd.f32 %v2498, %v2613
  %v2749 = vadd.f32 %v2499, %v2615
  %v2750 = vadd.f32 %v2500, %v2618
  %v2751 = vadd.f32 %v2501, %v2620
  %v2752 = vadd.f32 %v2502, %v2623
  %v2753 = vadd.f32 %v2503, %v2625
  %v2754 = vadd.f32 %v2504, %v2628
  %v2755 = vadd.f32 %v2505, %v2630
  %v2756 = vadd.f32 %v2506, %v2633
  %v2757 = vadd.f32 %v2507, %v2635
  %v2758 = vadd.f32 %v2508, %v2638
  %v2759 = vadd.f32 %v2509, %v2640
  %v2760 = vadd.f32 %v2510, %v2643
  %v2761 = vadd.f32 %v2511, %v2645
  %v2762 = vadd.f32 %v2512, %v2648
  %v2763 = vadd.f32 %v2513, %v2650
  %v2764 = vadd.f32 %v2514, %v2653
  %v2765 = vadd.f32 %v2515, %v2655
  %v2766 = vadd.f32 %v2516, %v2658
  %v2767 = vadd.f32 %v2517, %v2660
  %v2768 = vadd.f32 %v2518, %v2663
  %v2769 = vadd.f32 %v2519, %v2665
  %v2770 = vadd.f32 %v2520, %v2668
  %v2771 = vadd.f32 %v2521, %v2670
  %v2772 = vadd.f32 %v2522, %v2673
  %v2773 = vadd.f32 %v2523, %v2675
  %v2774 = vadd.f32 %v2524, %v2678
  %v2775 = vadd.f32 %v2525, %v2680
  %v2776 = vadd.f32 %v2526, %v2683
  %v2777 = vadd.f32 %v2527, %v2685
  %v2778 = vadd.f32 %v2528, %v2688
  %v2779 = vadd.f32 %v2529, %v2690
  %v2780 = vadd.f32 %v2530, %v2693
  %v2781 = vadd.f32 %v2531, %v2695
  %v2782 = vadd.f32 %v2532, %v2698
  %v2783 = vadd.f32 %v2533, %v2700
  %v2784 = vadd.f32 %v2534, %v2703
  %v2785 = vadd.f32 %v2535, %v2705
  %v2786 = vadd.f32 %v2536, %v2708
  %v2787 = vadd.f32 %v2537, %v2710
  %v2788 = vadd.f32 %v2538, %v2713
  %v2789 = vadd.f32 %v2539, %v2715
  %v2790 = vadd.f32 %v2540, %v2718
  %v2791 = vadd.f32 %v2541, %v2720
  %v2792 = vadd.f32 %v2542, %v2723
  %v2793 = vadd.f32 %v2543, %v2725
  %v2794 = vadd.f32 %v2544, %v2728
  %v2795 = vadd.f32 %v2545, %v2730
  %v2802 = vrot.slane %v177, 1
  %v2803 = vrot.slane %v178, 1
  %v2804 = vsel %vm364, %v2802, %v2803
  %v2805 = vrot.slane %v179, 1
  %v2806 = vsel %vm364, %v2803, %v2805
  %v2807 = vrot.slane %v231, 1
  %v2808 = vrot.slane %v232, 1
  %v2809 = vsel %vm364, %v2807, %v2808
  %v2810 = vrot.slane %v233, 1
  %v2811 = vsel %vm364, %v2808, %v2810
  %v2816 = vpack.c.bf16 %v2806, %v2804
  %v2817 = vpack.c.bf16 %v2811, %v2809
  %s2818 = scalar_lea.vmem %s1, 56
  %v2819 = vld [vmem:[%s2818] sm:$0xf]
  %v2820 = vld [vmem:[%s2818 + $0x4] sm:$0xf]
  %v2823 = vunpack.c.l.b16 %v2819
  %v2824 = vunpack.c.l.b16 %v2820
  %v2825 = vpack.c.b16 %v2824, %v2823
  %v2828 = vsel %vm630, %v2816, 0
  %v2831 = vsel %vm630, %v2817, 0
  %2833 = vmatpush.bf16.msra.mxu0 0
  %2834 = vmatpush.bf16.msra.mxu0 0
  %2835 = vmatpush.bf16.msra.mxu0 0
  %2836 = vmatpush.bf16.msra.mxu0 0
  %2837 = vmatpush.bf16.msra.mxu0 0
  %2838 = vmatpush.bf16.msra.mxu0 0
  %2839 = vmatpush.bf16.msra.mxu0 0
  %2840 = vmatpush.bf16.msra.mxu0 %v2825
  %2841 = vmatmul.bf16.gmra.mxu0 %v638
  %v2842 = vpop.f32.mrf.mxu0
  %v2843 = vadd.f32 0.0, %v2842
  %v2844 = vpop.f32.mrf.mxu0
  %v2845 = vadd.f32 0.0, %v2844
  %2846 = vmatmul.bf16.gmra.mxu0 %v641
  %v2847 = vpop.f32.mrf.mxu0
  %v2848 = vadd.f32 0.0, %v2847
  %v2849 = vpop.f32.mrf.mxu0
  %v2850 = vadd.f32 0.0, %v2849
  %2851 = vmatmul.bf16.gmra.mxu0 %v644
  %v2852 = vpop.f32.mrf.mxu0
  %v2853 = vadd.f32 0.0, %v2852
  %v2854 = vpop.f32.mrf.mxu0
  %v2855 = vadd.f32 0.0, %v2854
  %2856 = vmatmul.bf16.gmra.mxu0 %v647
  %v2857 = vpop.f32.mrf.mxu0
  %v2858 = vadd.f32 0.0, %v2857
  %v2859 = vpop.f32.mrf.mxu0
  %v2860 = vadd.f32 0.0, %v2859
  %2861 = vmatmul.bf16.gmra.mxu0 %v650
  %v2862 = vpop.f32.mrf.mxu0
  %v2863 = vadd.f32 0.0, %v2862
  %v2864 = vpop.f32.mrf.mxu0
  %v2865 = vadd.f32 0.0, %v2864
  %2866 = vmatmul.bf16.gmra.mxu0 %v653
  %v2867 = vpop.f32.mrf.mxu0
  %v2868 = vadd.f32 0.0, %v2867
  %v2869 = vpop.f32.mrf.mxu0
  %v2870 = vadd.f32 0.0, %v2869
  %2871 = vmatmul.bf16.gmra.mxu0 %v656
  %v2872 = vpop.f32.mrf.mxu0
  %v2873 = vadd.f32 0.0, %v2872
  %v2874 = vpop.f32.mrf.mxu0
  %v2875 = vadd.f32 0.0, %v2874
  %2876 = vmatmul.bf16.gmra.mxu0 %v659
  %v2877 = vpop.f32.mrf.mxu0
  %v2878 = vadd.f32 0.0, %v2877
  %v2879 = vpop.f32.mrf.mxu0
  %v2880 = vadd.f32 0.0, %v2879
  %2881 = vmatmul.bf16.gmra.mxu0 %v662
  %v2882 = vpop.f32.mrf.mxu0
  %v2883 = vadd.f32 0.0, %v2882
  %v2884 = vpop.f32.mrf.mxu0
  %v2885 = vadd.f32 0.0, %v2884
  %2886 = vmatmul.bf16.gmra.mxu0 %v665
  %v2887 = vpop.f32.mrf.mxu0
  %v2888 = vadd.f32 0.0, %v2887
  %v2889 = vpop.f32.mrf.mxu0
  %v2890 = vadd.f32 0.0, %v2889
  %2891 = vmatmul.bf16.gmra.mxu0 %v668
  %v2892 = vpop.f32.mrf.mxu0
  %v2893 = vadd.f32 0.0, %v2892
  %v2894 = vpop.f32.mrf.mxu0
  %v2895 = vadd.f32 0.0, %v2894
  %2896 = vmatmul.bf16.gmra.mxu0 %v671
  %v2897 = vpop.f32.mrf.mxu0
  %v2898 = vadd.f32 0.0, %v2897
  %v2899 = vpop.f32.mrf.mxu0
  %v2900 = vadd.f32 0.0, %v2899
  %2901 = vmatmul.bf16.gmra.mxu0 %v674
  %v2902 = vpop.f32.mrf.mxu0
  %v2903 = vadd.f32 0.0, %v2902
  %v2904 = vpop.f32.mrf.mxu0
  %v2905 = vadd.f32 0.0, %v2904
  %2906 = vmatmul.bf16.gmra.mxu0 %v677
  %v2907 = vpop.f32.mrf.mxu0
  %v2908 = vadd.f32 0.0, %v2907
  %v2909 = vpop.f32.mrf.mxu0
  %v2910 = vadd.f32 0.0, %v2909
  %2911 = vmatmul.bf16.gmra.mxu0 %v2044
  %v2912 = vpop.f32.mrf.mxu0
  %v2913 = vadd.f32 0.0, %v2912
  %v2914 = vpop.f32.mrf.mxu0
  %v2915 = vadd.f32 0.0, %v2914
  %2916 = vmatmul.bf16.gmra.mxu0 %v2828
  %v2917 = vpop.f32.mrf.mxu0
  %v2918 = vadd.f32 0.0, %v2917
  %v2919 = vpop.f32.mrf.mxu0
  %v2920 = vadd.f32 0.0, %v2919
  %2921 = vmatmul.bf16.gmra.mxu0 %v686
  %v2922 = vpop.f32.mrf.mxu0
  %v2923 = vadd.f32 0.0, %v2922
  %v2924 = vpop.f32.mrf.mxu0
  %v2925 = vadd.f32 0.0, %v2924
  %2926 = vmatmul.bf16.gmra.mxu0 %v689
  %v2927 = vpop.f32.mrf.mxu0
  %v2928 = vadd.f32 0.0, %v2927
  %v2929 = vpop.f32.mrf.mxu0
  %v2930 = vadd.f32 0.0, %v2929
  %2931 = vmatmul.bf16.gmra.mxu0 %v692
  %v2932 = vpop.f32.mrf.mxu0
  %v2933 = vadd.f32 0.0, %v2932
  %v2934 = vpop.f32.mrf.mxu0
  %v2935 = vadd.f32 0.0, %v2934
  %2936 = vmatmul.bf16.gmra.mxu0 %v695
  %v2937 = vpop.f32.mrf.mxu0
  %v2938 = vadd.f32 0.0, %v2937
  %v2939 = vpop.f32.mrf.mxu0
  %v2940 = vadd.f32 0.0, %v2939
  %2941 = vmatmul.bf16.gmra.mxu0 %v698
  %v2942 = vpop.f32.mrf.mxu0
  %v2943 = vadd.f32 0.0, %v2942
  %v2944 = vpop.f32.mrf.mxu0
  %v2945 = vadd.f32 0.0, %v2944
  %2946 = vmatmul.bf16.gmra.mxu0 %v701
  %v2947 = vpop.f32.mrf.mxu0
  %v2948 = vadd.f32 0.0, %v2947
  %v2949 = vpop.f32.mrf.mxu0
  %v2950 = vadd.f32 0.0, %v2949
  %2951 = vmatmul.bf16.gmra.mxu0 %v704
  %v2952 = vpop.f32.mrf.mxu0
  %v2953 = vadd.f32 0.0, %v2952
  %v2954 = vpop.f32.mrf.mxu0
  %v2955 = vadd.f32 0.0, %v2954
  %2956 = vmatmul.bf16.gmra.mxu0 %v707
  %v2957 = vpop.f32.mrf.mxu0
  %v2958 = vadd.f32 0.0, %v2957
  %v2959 = vpop.f32.mrf.mxu0
  %v2960 = vadd.f32 0.0, %v2959
  %2961 = vmatmul.bf16.gmra.mxu0 %v710
  %v2962 = vpop.f32.mrf.mxu0
  %v2963 = vadd.f32 0.0, %v2962
  %v2964 = vpop.f32.mrf.mxu0
  %v2965 = vadd.f32 0.0, %v2964
  %2966 = vmatmul.bf16.gmra.mxu0 %v713
  %v2967 = vpop.f32.mrf.mxu0
  %v2968 = vadd.f32 0.0, %v2967
  %v2969 = vpop.f32.mrf.mxu0
  %v2970 = vadd.f32 0.0, %v2969
  %2971 = vmatmul.bf16.gmra.mxu0 %v716
  %v2972 = vpop.f32.mrf.mxu0
  %v2973 = vadd.f32 0.0, %v2972
  %v2974 = vpop.f32.mrf.mxu0
  %v2975 = vadd.f32 0.0, %v2974
  %2976 = vmatmul.bf16.gmra.mxu0 %v719
  %v2977 = vpop.f32.mrf.mxu0
  %v2978 = vadd.f32 0.0, %v2977
  %v2979 = vpop.f32.mrf.mxu0
  %v2980 = vadd.f32 0.0, %v2979
  %2981 = vmatmul.bf16.gmra.mxu0 %v722
  %v2982 = vpop.f32.mrf.mxu0
  %v2983 = vadd.f32 0.0, %v2982
  %v2984 = vpop.f32.mrf.mxu0
  %v2985 = vadd.f32 0.0, %v2984
  %2986 = vmatmul.bf16.gmra.mxu0 %v725
  %v2987 = vpop.f32.mrf.mxu0
  %v2988 = vadd.f32 0.0, %v2987
  %v2989 = vpop.f32.mrf.mxu0
  %v2990 = vadd.f32 0.0, %v2989
  %2991 = vmatmul.bf16.gmra.mxu0 %v2047
  %v2992 = vpop.f32.mrf.mxu0
  %v2993 = vadd.f32 0.0, %v2992
  %v2994 = vpop.f32.mrf.mxu0
  %v2995 = vadd.f32 0.0, %v2994
  %2996 = vmatmul.bf16.gmra.mxu0 %v2831
  %v2997 = vpop.f32.mrf.mxu0
  %v2998 = vadd.f32 0.0, %v2997
  %v2999 = vpop.f32.mrf.mxu0
  %v3000 = vadd.f32 0.0, %v2999
  %3001 = vdwg.mxu0
  %v3002 = vadd.f32 %v2732, %v2843
  %v3003 = vadd.f32 %v2733, %v2845
  %v3004 = vadd.f32 %v2734, %v2848
  %v3005 = vadd.f32 %v2735, %v2850
  %v3006 = vadd.f32 %v2736, %v2853
  %v3007 = vadd.f32 %v2737, %v2855
  %v3008 = vadd.f32 %v2738, %v2858
  %v3009 = vadd.f32 %v2739, %v2860
  %v3010 = vadd.f32 %v2740, %v2863
  %v3011 = vadd.f32 %v2741, %v2865
  %v3012 = vadd.f32 %v2742, %v2868
  %v3013 = vadd.f32 %v2743, %v2870
  %v3014 = vadd.f32 %v2744, %v2873
  %v3015 = vadd.f32 %v2745, %v2875
  %v3016 = vadd.f32 %v2746, %v2878
  %v3017 = vadd.f32 %v2747, %v2880
  %v3018 = vadd.f32 %v2748, %v2883
  %v3019 = vadd.f32 %v2749, %v2885
  %v3020 = vadd.f32 %v2750, %v2888
  %v3021 = vadd.f32 %v2751, %v2890
  %v3022 = vadd.f32 %v2752, %v2893
  %v3023 = vadd.f32 %v2753, %v2895
  %v3024 = vadd.f32 %v2754, %v2898
  %v3025 = vadd.f32 %v2755, %v2900
  %v3026 = vadd.f32 %v2756, %v2903
  %v3027 = vadd.f32 %v2757, %v2905
  %v3028 = vadd.f32 %v2758, %v2908
  %v3029 = vadd.f32 %v2759, %v2910
  %v3030 = vadd.f32 %v2760, %v2913
  %v3031 = vadd.f32 %v2761, %v2915
  %v3032 = vadd.f32 %v2762, %v2918
  %v3033 = vadd.f32 %v2763, %v2920
  %v3034 = vadd.f32 %v2764, %v2923
  %v3035 = vadd.f32 %v2765, %v2925
  %v3036 = vadd.f32 %v2766, %v2928
  %v3037 = vadd.f32 %v2767, %v2930
  %v3038 = vadd.f32 %v2768, %v2933
  %v3039 = vadd.f32 %v2769, %v2935
  %v3040 = vadd.f32 %v2770, %v2938
  %v3041 = vadd.f32 %v2771, %v2940
  %v3042 = vadd.f32 %v2772, %v2943
  %v3043 = vadd.f32 %v2773, %v2945
  %v3044 = vadd.f32 %v2774, %v2948
  %v3045 = vadd.f32 %v2775, %v2950
  %v3046 = vadd.f32 %v2776, %v2953
  %v3047 = vadd.f32 %v2777, %v2955
  %v3048 = vadd.f32 %v2778, %v2958
  %v3049 = vadd.f32 %v2779, %v2960
  %v3050 = vadd.f32 %v2780, %v2963
  %v3051 = vadd.f32 %v2781, %v2965
  %v3052 = vadd.f32 %v2782, %v2968
  %v3053 = vadd.f32 %v2783, %v2970
  %v3054 = vadd.f32 %v2784, %v2973
  %v3055 = vadd.f32 %v2785, %v2975
  %v3056 = vadd.f32 %v2786, %v2978
  %v3057 = vadd.f32 %v2787, %v2980
  %v3058 = vadd.f32 %v2788, %v2983
  %v3059 = vadd.f32 %v2789, %v2985
  %v3060 = vadd.f32 %v2790, %v2988
  %v3061 = vadd.f32 %v2791, %v2990
  %v3062 = vadd.f32 %v2792, %v2993
  %v3063 = vadd.f32 %v2793, %v2995
  %v3064 = vadd.f32 %v2794, %v2998
  %v3065 = vadd.f32 %v2795, %v3000
  %v3066 = vrot.slane %v177, 2
  %v3067 = vrot.slane %v178, 2
  %v3068 = vsel %vm1167, %v3066, %v3067
  %v3069 = vrot.slane %v179, 2
  %v3070 = vsel %vm1167, %v3067, %v3069
  %v3071 = vrot.slane %v231, 2
  %v3072 = vrot.slane %v232, 2
  %v3073 = vsel %vm1167, %v3071, %v3072
  %v3074 = vrot.slane %v233, 2
  %v3075 = vsel %vm1167, %v3072, %v3074
  %v3080 = vpack.c.bf16 %v3070, %v3068
  %v3081 = vpack.c.bf16 %v3075, %v3073
  %s3082 = scalar_lea.vmem %s1, 64
  %v3083 = vld [vmem:[%s3082] sm:$0xf]
  %v3084 = vld [vmem:[%s3082 + $0x4] sm:$0xf]
  %v3087 = vunpack.c.l.b16 %v3083
  %v3088 = vunpack.c.l.b16 %v3084
  %v3089 = vpack.c.b16 %v3088, %v3087
  %v3092 = vsel %vm630, %v3080, 0
  %v3095 = vsel %vm630, %v3081, 0
  %3097 = vmatpush.bf16.msra.mxu0 0
  %3098 = vmatpush.bf16.msra.mxu0 0
  %3099 = vmatpush.bf16.msra.mxu0 0
  %3100 = vmatpush.bf16.msra.mxu0 0
  %3101 = vmatpush.bf16.msra.mxu0 0
  %3102 = vmatpush.bf16.msra.mxu0 0
  %3103 = vmatpush.bf16.msra.mxu0 0
  %3104 = vmatpush.bf16.msra.mxu0 %v3089
  %3105 = vmatmul.bf16.gmra.mxu0 %v1440
  %v3106 = vpop.f32.mrf.mxu0
  %v3107 = vadd.f32 0.0, %v3106
  %v3108 = vpop.f32.mrf.mxu0
  %v3109 = vadd.f32 0.0, %v3108
  %3110 = vmatmul.bf16.gmra.mxu0 %v1443
  %v3111 = vpop.f32.mrf.mxu0
  %v3112 = vadd.f32 0.0, %v3111
  %v3113 = vpop.f32.mrf.mxu0
  %v3114 = vadd.f32 0.0, %v3113
  %3115 = vmatmul.bf16.gmra.mxu0 %v1446
  %v3116 = vpop.f32.mrf.mxu0
  %v3117 = vadd.f32 0.0, %v3116
  %v3118 = vpop.f32.mrf.mxu0
  %v3119 = vadd.f32 0.0, %v3118
  %3120 = vmatmul.bf16.gmra.mxu0 %v1449
  %v3121 = vpop.f32.mrf.mxu0
  %v3122 = vadd.f32 0.0, %v3121
  %v3123 = vpop.f32.mrf.mxu0
  %v3124 = vadd.f32 0.0, %v3123
  %3125 = vmatmul.bf16.gmra.mxu0 %v1452
  %v3126 = vpop.f32.mrf.mxu0
  %v3127 = vadd.f32 0.0, %v3126
  %v3128 = vpop.f32.mrf.mxu0
  %v3129 = vadd.f32 0.0, %v3128
  %3130 = vmatmul.bf16.gmra.mxu0 %v1455
  %v3131 = vpop.f32.mrf.mxu0
  %v3132 = vadd.f32 0.0, %v3131
  %v3133 = vpop.f32.mrf.mxu0
  %v3134 = vadd.f32 0.0, %v3133
  %3135 = vmatmul.bf16.gmra.mxu0 %v1458
  %v3136 = vpop.f32.mrf.mxu0
  %v3137 = vadd.f32 0.0, %v3136
  %v3138 = vpop.f32.mrf.mxu0
  %v3139 = vadd.f32 0.0, %v3138
  %3140 = vmatmul.bf16.gmra.mxu0 %v1461
  %v3141 = vpop.f32.mrf.mxu0
  %v3142 = vadd.f32 0.0, %v3141
  %v3143 = vpop.f32.mrf.mxu0
  %v3144 = vadd.f32 0.0, %v3143
  %3145 = vmatmul.bf16.gmra.mxu0 %v1464
  %v3146 = vpop.f32.mrf.mxu0
  %v3147 = vadd.f32 0.0, %v3146
  %v3148 = vpop.f32.mrf.mxu0
  %v3149 = vadd.f32 0.0, %v3148
  %3150 = vmatmul.bf16.gmra.mxu0 %v1467
  %v3151 = vpop.f32.mrf.mxu0
  %v3152 = vadd.f32 0.0, %v3151
  %v3153 = vpop.f32.mrf.mxu0
  %v3154 = vadd.f32 0.0, %v3153
  %3155 = vmatmul.bf16.gmra.mxu0 %v1470
  %v3156 = vpop.f32.mrf.mxu0
  %v3157 = vadd.f32 0.0, %v3156
  %v3158 = vpop.f32.mrf.mxu0
  %v3159 = vadd.f32 0.0, %v3158
  %3160 = vmatmul.bf16.gmra.mxu0 %v1473
  %v3161 = vpop.f32.mrf.mxu0
  %v3162 = vadd.f32 0.0, %v3161
  %v3163 = vpop.f32.mrf.mxu0
  %v3164 = vadd.f32 0.0, %v3163
  %3165 = vmatmul.bf16.gmra.mxu0 %v1476
  %v3166 = vpop.f32.mrf.mxu0
  %v3167 = vadd.f32 0.0, %v3166
  %v3168 = vpop.f32.mrf.mxu0
  %v3169 = vadd.f32 0.0, %v3168
  %3170 = vmatmul.bf16.gmra.mxu0 %v1479
  %v3171 = vpop.f32.mrf.mxu0
  %v3172 = vadd.f32 0.0, %v3171
  %v3173 = vpop.f32.mrf.mxu0
  %v3174 = vadd.f32 0.0, %v3173
  %3175 = vmatmul.bf16.gmra.mxu0 %v2308
  %v3176 = vpop.f32.mrf.mxu0
  %v3177 = vadd.f32 0.0, %v3176
  %v3178 = vpop.f32.mrf.mxu0
  %v3179 = vadd.f32 0.0, %v3178
  %3180 = vmatmul.bf16.gmra.mxu0 %v3092
  %v3181 = vpop.f32.mrf.mxu0
  %v3182 = vadd.f32 0.0, %v3181
  %v3183 = vpop.f32.mrf.mxu0
  %v3184 = vadd.f32 0.0, %v3183
  %3185 = vmatmul.bf16.gmra.mxu0 %v1488
  %v3186 = vpop.f32.mrf.mxu0
  %v3187 = vadd.f32 0.0, %v3186
  %v3188 = vpop.f32.mrf.mxu0
  %v3189 = vadd.f32 0.0, %v3188
  %3190 = vmatmul.bf16.gmra.mxu0 %v1491
  %v3191 = vpop.f32.mrf.mxu0
  %v3192 = vadd.f32 0.0, %v3191
  %v3193 = vpop.f32.mrf.mxu0
  %v3194 = vadd.f32 0.0, %v3193
  %3195 = vmatmul.bf16.gmra.mxu0 %v1494
  %v3196 = vpop.f32.mrf.mxu0
  %v3197 = vadd.f32 0.0, %v3196
  %v3198 = vpop.f32.mrf.mxu0
  %v3199 = vadd.f32 0.0, %v3198
  %3200 = vmatmul.bf16.gmra.mxu0 %v1497
  %v3201 = vpop.f32.mrf.mxu0
  %v3202 = vadd.f32 0.0, %v3201
  %v3203 = vpop.f32.mrf.mxu0
  %v3204 = vadd.f32 0.0, %v3203
  %3205 = vmatmul.bf16.gmra.mxu0 %v1500
  %v3206 = vpop.f32.mrf.mxu0
  %v3207 = vadd.f32 0.0, %v3206
  %v3208 = vpop.f32.mrf.mxu0
  %v3209 = vadd.f32 0.0, %v3208
  %3210 = vmatmul.bf16.gmra.mxu0 %v1503
  %v3211 = vpop.f32.mrf.mxu0
  %v3212 = vadd.f32 0.0, %v3211
  %v3213 = vpop.f32.mrf.mxu0
  %v3214 = vadd.f32 0.0, %v3213
  %3215 = vmatmul.bf16.gmra.mxu0 %v1506
  %v3216 = vpop.f32.mrf.mxu0
  %v3217 = vadd.f32 0.0, %v3216
  %v3218 = vpop.f32.mrf.mxu0
  %v3219 = vadd.f32 0.0, %v3218
  %3220 = vmatmul.bf16.gmra.mxu0 %v1509
  %v3221 = vpop.f32.mrf.mxu0
  %v3222 = vadd.f32 0.0, %v3221
  %v3223 = vpop.f32.mrf.mxu0
  %v3224 = vadd.f32 0.0, %v3223
  %3225 = vmatmul.bf16.gmra.mxu0 %v1512
  %v3226 = vpop.f32.mrf.mxu0
  %v3227 = vadd.f32 0.0, %v3226
  %v3228 = vpop.f32.mrf.mxu0
  %v3229 = vadd.f32 0.0, %v3228
  %3230 = vmatmul.bf16.gmra.mxu0 %v1515
  %v3231 = vpop.f32.mrf.mxu0
  %v3232 = vadd.f32 0.0, %v3231
  %v3233 = vpop.f32.mrf.mxu0
  %v3234 = vadd.f32 0.0, %v3233
  %3235 = vmatmul.bf16.gmra.mxu0 %v1518
  %v3236 = vpop.f32.mrf.mxu0
  %v3237 = vadd.f32 0.0, %v3236
  %v3238 = vpop.f32.mrf.mxu0
  %v3239 = vadd.f32 0.0, %v3238
  %3240 = vmatmul.bf16.gmra.mxu0 %v1521
  %v3241 = vpop.f32.mrf.mxu0
  %v3242 = vadd.f32 0.0, %v3241
  %v3243 = vpop.f32.mrf.mxu0
  %v3244 = vadd.f32 0.0, %v3243
  %3245 = vmatmul.bf16.gmra.mxu0 %v1524
  %v3246 = vpop.f32.mrf.mxu0
  %v3247 = vadd.f32 0.0, %v3246
  %v3248 = vpop.f32.mrf.mxu0
  %v3249 = vadd.f32 0.0, %v3248
  %3250 = vmatmul.bf16.gmra.mxu0 %v1527
  %v3251 = vpop.f32.mrf.mxu0
  %v3252 = vadd.f32 0.0, %v3251
  %v3253 = vpop.f32.mrf.mxu0
  %v3254 = vadd.f32 0.0, %v3253
  %3255 = vmatmul.bf16.gmra.mxu0 %v2311
  %v3256 = vpop.f32.mrf.mxu0
  %v3257 = vadd.f32 0.0, %v3256
  %v3258 = vpop.f32.mrf.mxu0
  %v3259 = vadd.f32 0.0, %v3258
  %3260 = vmatmul.bf16.gmra.mxu0 %v3095
  %v3261 = vpop.f32.mrf.mxu0
  %v3262 = vadd.f32 0.0, %v3261
  %v3263 = vpop.f32.mrf.mxu0
  %v3264 = vadd.f32 0.0, %v3263
  %3265 = vdwg.mxu0
  %v3266 = vadd.f32 %v3002, %v3107
  %v3267 = vadd.f32 %v3003, %v3109
  %v3268 = vadd.f32 %v3004, %v3112
  %v3269 = vadd.f32 %v3005, %v3114
  %v3270 = vadd.f32 %v3006, %v3117
  %v3271 = vadd.f32 %v3007, %v3119
  %v3272 = vadd.f32 %v3008, %v3122
  %v3273 = vadd.f32 %v3009, %v3124
  %v3274 = vadd.f32 %v3010, %v3127
  %v3275 = vadd.f32 %v3011, %v3129
  %v3276 = vadd.f32 %v3012, %v3132
  %v3277 = vadd.f32 %v3013, %v3134
  %v3278 = vadd.f32 %v3014, %v3137
  %v3279 = vadd.f32 %v3015, %v3139
  %v3280 = vadd.f32 %v3016, %v3142
  %v3281 = vadd.f32 %v3017, %v3144
  %v3282 = vadd.f32 %v3018, %v3147
  %v3283 = vadd.f32 %v3019, %v3149
  %v3284 = vadd.f32 %v3020, %v3152
  %v3285 = vadd.f32 %v3021, %v3154
  %v3286 = vadd.f32 %v3022, %v3157
  %v3287 = vadd.f32 %v3023, %v3159
  %v3288 = vadd.f32 %v3024, %v3162
  %v3289 = vadd.f32 %v3025, %v3164
  %v3290 = vadd.f32 %v3026, %v3167
  %v3291 = vadd.f32 %v3027, %v3169
  %v3292 = vadd.f32 %v3028, %v3172
  %v3293 = vadd.f32 %v3029, %v3174
  %v3294 = vadd.f32 %v3030, %v3177
  %v3295 = vadd.f32 %v3031, %v3179
  %v3296 = vadd.f32 %v3032, %v3182
  %v3297 = vadd.f32 %v3033, %v3184
  %v3298 = vadd.f32 %v3034, %v3187
  %v3299 = vadd.f32 %v3035, %v3189
  %v3300 = vadd.f32 %v3036, %v3192
  %v3301 = vadd.f32 %v3037, %v3194
  %v3302 = vadd.f32 %v3038, %v3197
  %v3303 = vadd.f32 %v3039, %v3199
  %v3304 = vadd.f32 %v3040, %v3202
  %v3305 = vadd.f32 %v3041, %v3204
  %v3306 = vadd.f32 %v3042, %v3207
  %v3307 = vadd.f32 %v3043, %v3209
  %v3308 = vadd.f32 %v3044, %v3212
  %v3309 = vadd.f32 %v3045, %v3214
  %v3310 = vadd.f32 %v3046, %v3217
  %v3311 = vadd.f32 %v3047, %v3219
  %v3312 = vadd.f32 %v3048, %v3222
  %v3313 = vadd.f32 %v3049, %v3224
  %v3314 = vadd.f32 %v3050, %v3227
  %v3315 = vadd.f32 %v3051, %v3229
  %v3316 = vadd.f32 %v3052, %v3232
  %v3317 = vadd.f32 %v3053, %v3234
  %v3318 = vadd.f32 %v3054, %v3237
  %v3319 = vadd.f32 %v3055, %v3239
  %v3320 = vadd.f32 %v3056, %v3242
  %v3321 = vadd.f32 %v3057, %v3244
  %v3322 = vadd.f32 %v3058, %v3247
  %v3323 = vadd.f32 %v3059, %v3249
  %v3324 = vadd.f32 %v3060, %v3252
  %v3325 = vadd.f32 %v3061, %v3254
  %v3326 = vadd.f32 %v3062, %v3257
  %v3327 = vadd.f32 %v3063, %v3259
  %v3328 = vadd.f32 %v3064, %v3262
  %v3329 = vadd.f32 %v3065, %v3264
  %v3330 = vsel %vm630, %v3266, 0.0
  %v3331 = vsel %vm630, %v3267, 0.0
  %v3332 = vadd.f32 %v3330, %v3331
  %v3333 = vsel %vm630, %v3268, 0.0
  %v3334 = vadd.f32 %v3332, %v3333
  %v3335 = vsel %vm630, %v3269, 0.0
  %v3336 = vadd.f32 %v3334, %v3335
  %v3337 = vsel %vm630, %v3270, 0.0
  %v3338 = vadd.f32 %v3336, %v3337
  %v3339 = vsel %vm630, %v3271, 0.0
  %v3340 = vadd.f32 %v3338, %v3339
  %v3341 = vsel %vm630, %v3272, 0.0
  %v3342 = vadd.f32 %v3340, %v3341
  %v3343 = vsel %vm630, %v3273, 0.0
  %v3344 = vadd.f32 %v3342, %v3343
  %v3345 = vsel %vm630, %v3274, 0.0
  %v3346 = vadd.f32 %v3344, %v3345
  %v3347 = vsel %vm630, %v3275, 0.0
  %v3348 = vadd.f32 %v3346, %v3347
  %v3349 = vsel %vm630, %v3276, 0.0
  %v3350 = vadd.f32 %v3348, %v3349
  %v3351 = vsel %vm630, %v3277, 0.0
  %v3352 = vadd.f32 %v3350, %v3351
  %v3353 = vsel %vm630, %v3278, 0.0
  %v3354 = vadd.f32 %v3352, %v3353
  %v3355 = vsel %vm630, %v3279, 0.0
  %v3356 = vadd.f32 %v3354, %v3355
  %v3357 = vsel %vm630, %v3280, 0.0
  %v3358 = vadd.f32 %v3356, %v3357
  %v3359 = vsel %vm630, %v3281, 0.0
  %v3360 = vadd.f32 %v3358, %v3359
  %v3361 = vsel %vm630, %v3282, 0.0
  %v3362 = vadd.f32 %v3360, %v3361
  %v3363 = vsel %vm630, %v3283, 0.0
  %v3364 = vadd.f32 %v3362, %v3363
  %v3365 = vsel %vm630, %v3284, 0.0
  %v3366 = vadd.f32 %v3364, %v3365
  %v3367 = vsel %vm630, %v3285, 0.0
  %v3368 = vadd.f32 %v3366, %v3367
  %v3369 = vsel %vm630, %v3286, 0.0
  %v3370 = vadd.f32 %v3368, %v3369
  %v3371 = vsel %vm630, %v3287, 0.0
  %v3372 = vadd.f32 %v3370, %v3371
  %v3373 = vsel %vm630, %v3288, 0.0
  %v3374 = vadd.f32 %v3372, %v3373
  %v3375 = vsel %vm630, %v3289, 0.0
  %v3376 = vadd.f32 %v3374, %v3375
  %v3377 = vsel %vm630, %v3290, 0.0
  %v3378 = vadd.f32 %v3376, %v3377
  %v3379 = vsel %vm630, %v3291, 0.0
  %v3380 = vadd.f32 %v3378, %v3379
  %v3381 = vsel %vm630, %v3292, 0.0
  %v3382 = vadd.f32 %v3380, %v3381
  %v3383 = vsel %vm630, %v3293, 0.0
  %v3384 = vadd.f32 %v3382, %v3383
  %v3385 = vsel %vm630, %v3294, 0.0
  %v3386 = vadd.f32 %v3384, %v3385
  %v3387 = vsel %vm630, %v3295, 0.0
  %v3388 = vadd.f32 %v3386, %v3387
  %v3389 = vsel %vm630, %v3296, 0.0
  %v3390 = vadd.f32 %v3388, %v3389
  %v3391 = vsel %vm630, %v3297, 0.0
  %v3392 = vadd.f32 %v3390, %v3391
  %v3393 = vsel %vm630, %v3298, 0.0
  %v3394 = vadd.f32 %v3392, %v3393
  %v3395 = vsel %vm630, %v3299, 0.0
  %v3396 = vadd.f32 %v3394, %v3395
  %v3397 = vsel %vm630, %v3300, 0.0
  %v3398 = vadd.f32 %v3396, %v3397
  %v3399 = vsel %vm630, %v3301, 0.0
  %v3400 = vadd.f32 %v3398, %v3399
  %v3401 = vsel %vm630, %v3302, 0.0
  %v3402 = vadd.f32 %v3400, %v3401
  %v3403 = vsel %vm630, %v3303, 0.0
  %v3404 = vadd.f32 %v3402, %v3403
  %v3405 = vsel %vm630, %v3304, 0.0
  %v3406 = vadd.f32 %v3404, %v3405
  %v3407 = vsel %vm630, %v3305, 0.0
  %v3408 = vadd.f32 %v3406, %v3407
  %v3409 = vsel %vm630, %v3306, 0.0
  %v3410 = vadd.f32 %v3408, %v3409
  %v3411 = vsel %vm630, %v3307, 0.0
  %v3412 = vadd.f32 %v3410, %v3411
  %v3413 = vsel %vm630, %v3308, 0.0
  %v3414 = vadd.f32 %v3412, %v3413
  %v3415 = vsel %vm630, %v3309, 0.0
  %v3416 = vadd.f32 %v3414, %v3415
  %v3417 = vsel %vm630, %v3310, 0.0
  %v3418 = vadd.f32 %v3416, %v3417
  %v3419 = vsel %vm630, %v3311, 0.0
  %v3420 = vadd.f32 %v3418, %v3419
  %v3421 = vsel %vm630, %v3312, 0.0
  %v3422 = vadd.f32 %v3420, %v3421
  %v3423 = vsel %vm630, %v3313, 0.0
  %v3424 = vadd.f32 %v3422, %v3423
  %v3425 = vsel %vm630, %v3314, 0.0
  %v3426 = vadd.f32 %v3424, %v3425
  %v3427 = vsel %vm630, %v3315, 0.0
  %v3428 = vadd.f32 %v3426, %v3427
  %v3429 = vsel %vm630, %v3316, 0.0
  %v3430 = vadd.f32 %v3428, %v3429
  %v3431 = vsel %vm630, %v3317, 0.0
  %v3432 = vadd.f32 %v3430, %v3431
  %v3433 = vsel %vm630, %v3318, 0.0
  %v3434 = vadd.f32 %v3432, %v3433
  %v3435 = vsel %vm630, %v3319, 0.0
  %v3436 = vadd.f32 %v3434, %v3435
  %v3437 = vsel %vm630, %v3320, 0.0
  %v3438 = vadd.f32 %v3436, %v3437
  %v3439 = vsel %vm630, %v3321, 0.0
  %v3440 = vadd.f32 %v3438, %v3439
  %v3441 = vsel %vm630, %v3322, 0.0
  %v3442 = vadd.f32 %v3440, %v3441
  %v3443 = vsel %vm630, %v3323, 0.0
  %v3444 = vadd.f32 %v3442, %v3443
  %v3445 = vsel %vm630, %v3324, 0.0
  %v3446 = vadd.f32 %v3444, %v3445
  %v3447 = vsel %vm630, %v3325, 0.0
  %v3448 = vadd.f32 %v3446, %v3447
  %v3449 = vsel %vm630, %v3326, 0.0
  %v3450 = vadd.f32 %v3448, %v3449
  %v3451 = vsel %vm630, %v3327, 0.0
  %v3452 = vadd.f32 %v3450, %v3451
  %v3453 = vsel %vm630, %v3328, 0.0
  %v3454 = vadd.f32 %v3452, %v3453
  %v3455 = vsel %vm630, %v3329, 0.0
  %v3456 = vadd.f32 %v3454, %v3455
  %v3457 = vrot.slane %v3456, 4
  %v3458 = vadd.f32 %v3456, %v3457
  %v3459 = vrot.slane %v3458, 2
  %v3460 = vadd.f32 %v3458, %v3459
  %v3461 = vrot.slane %v3460, 1
  %v3462 = vadd.f32 %v3460, %v3461
  %v3463 = vmul.f32 %v3462, 0.001953125
  %v3464 = vmul.f32 %v3266, %v3266
  %v3465 = vmul.f32 %v3267, %v3267
  %v3466 = vmul.f32 %v3268, %v3268
  %v3467 = vmul.f32 %v3269, %v3269
  %v3468 = vmul.f32 %v3270, %v3270
  %v3469 = vmul.f32 %v3271, %v3271
  %v3470 = vmul.f32 %v3272, %v3272
  %v3471 = vmul.f32 %v3273, %v3273
  %v3472 = vmul.f32 %v3274, %v3274
  %v3473 = vmul.f32 %v3275, %v3275
  %v3474 = vmul.f32 %v3276, %v3276
  %v3475 = vmul.f32 %v3277, %v3277
  %v3476 = vmul.f32 %v3278, %v3278
  %v3477 = vmul.f32 %v3279, %v3279
  %v3478 = vmul.f32 %v3280, %v3280
  %v3479 = vmul.f32 %v3281, %v3281
  %v3480 = vmul.f32 %v3282, %v3282
  %v3481 = vmul.f32 %v3283, %v3283
  %v3482 = vmul.f32 %v3284, %v3284
  %v3483 = vmul.f32 %v3285, %v3285
  %v3484 = vmul.f32 %v3286, %v3286
  %v3485 = vmul.f32 %v3287, %v3287
  %v3486 = vmul.f32 %v3288, %v3288
  %v3487 = vmul.f32 %v3289, %v3289
  %v3488 = vmul.f32 %v3290, %v3290
  %v3489 = vmul.f32 %v3291, %v3291
  %v3490 = vmul.f32 %v3292, %v3292
  %v3491 = vmul.f32 %v3293, %v3293
  %v3492 = vmul.f32 %v3294, %v3294
  %v3493 = vmul.f32 %v3295, %v3295
  %v3494 = vmul.f32 %v3296, %v3296
  %v3495 = vmul.f32 %v3297, %v3297
  %v3496 = vmul.f32 %v3298, %v3298
  %v3497 = vmul.f32 %v3299, %v3299
  %v3498 = vmul.f32 %v3300, %v3300
  %v3499 = vmul.f32 %v3301, %v3301
  %v3500 = vmul.f32 %v3302, %v3302
  %v3501 = vmul.f32 %v3303, %v3303
  %v3502 = vmul.f32 %v3304, %v3304
  %v3503 = vmul.f32 %v3305, %v3305
  %v3504 = vmul.f32 %v3306, %v3306
  %v3505 = vmul.f32 %v3307, %v3307
  %v3506 = vmul.f32 %v3308, %v3308
  %v3507 = vmul.f32 %v3309, %v3309
  %v3508 = vmul.f32 %v3310, %v3310
  %v3509 = vmul.f32 %v3311, %v3311
  %v3510 = vmul.f32 %v3312, %v3312
  %v3511 = vmul.f32 %v3313, %v3313
  %v3512 = vmul.f32 %v3314, %v3314
  %v3513 = vmul.f32 %v3315, %v3315
  %v3514 = vmul.f32 %v3316, %v3316
  %v3515 = vmul.f32 %v3317, %v3317
  %v3516 = vmul.f32 %v3318, %v3318
  %v3517 = vmul.f32 %v3319, %v3319
  %v3518 = vmul.f32 %v3320, %v3320
  %v3519 = vmul.f32 %v3321, %v3321
  %v3520 = vmul.f32 %v3322, %v3322
  %v3521 = vmul.f32 %v3323, %v3323
  %v3522 = vmul.f32 %v3324, %v3324
  %v3523 = vmul.f32 %v3325, %v3325
  %v3524 = vmul.f32 %v3326, %v3326
  %v3525 = vmul.f32 %v3327, %v3327
  %v3526 = vmul.f32 %v3328, %v3328
  %v3527 = vmul.f32 %v3329, %v3329
  %v3528 = vsel %vm630, %v3464, 0.0
  %v3529 = vsel %vm630, %v3465, 0.0
  %v3530 = vadd.f32 %v3528, %v3529
  %v3531 = vsel %vm630, %v3466, 0.0
  %v3532 = vadd.f32 %v3530, %v3531
  %v3533 = vsel %vm630, %v3467, 0.0
  %v3534 = vadd.f32 %v3532, %v3533
  %v3535 = vsel %vm630, %v3468, 0.0
  %v3536 = vadd.f32 %v3534, %v3535
  %v3537 = vsel %vm630, %v3469, 0.0
  %v3538 = vadd.f32 %v3536, %v3537
  %v3539 = vsel %vm630, %v3470, 0.0
  %v3540 = vadd.f32 %v3538, %v3539
  %v3541 = vsel %vm630, %v3471, 0.0
  %v3542 = vadd.f32 %v3540, %v3541
  %v3543 = vsel %vm630, %v3472, 0.0
  %v3544 = vadd.f32 %v3542, %v3543
  %v3545 = vsel %vm630, %v3473, 0.0
  %v3546 = vadd.f32 %v3544, %v3545
  %v3547 = vsel %vm630, %v3474, 0.0
  %v3548 = vadd.f32 %v3546, %v3547
  %v3549 = vsel %vm630, %v3475, 0.0
  %v3550 = vadd.f32 %v3548, %v3549
  %v3551 = vsel %vm630, %v3476, 0.0
  %v3552 = vadd.f32 %v3550, %v3551
  %v3553 = vsel %vm630, %v3477, 0.0
  %v3554 = vadd.f32 %v3552, %v3553
  %v3555 = vsel %vm630, %v3478, 0.0
  %v3556 = vadd.f32 %v3554, %v3555
  %v3557 = vsel %vm630, %v3479, 0.0
  %v3558 = vadd.f32 %v3556, %v3557
  %v3559 = vsel %vm630, %v3480, 0.0
  %v3560 = vadd.f32 %v3558, %v3559
  %v3561 = vsel %vm630, %v3481, 0.0
  %v3562 = vadd.f32 %v3560, %v3561
  %v3563 = vsel %vm630, %v3482, 0.0
  %v3564 = vadd.f32 %v3562, %v3563
  %v3565 = vsel %vm630, %v3483, 0.0
  %v3566 = vadd.f32 %v3564, %v3565
  %v3567 = vsel %vm630, %v3484, 0.0
  %v3568 = vadd.f32 %v3566, %v3567
  %v3569 = vsel %vm630, %v3485, 0.0
  %v3570 = vadd.f32 %v3568, %v3569
  %v3571 = vsel %vm630, %v3486, 0.0
  %v3572 = vadd.f32 %v3570, %v3571
  %v3573 = vsel %vm630, %v3487, 0.0
  %v3574 = vadd.f32 %v3572, %v3573
  %v3575 = vsel %vm630, %v3488, 0.0
  %v3576 = vadd.f32 %v3574, %v3575
  %v3577 = vsel %vm630, %v3489, 0.0
  %v3578 = vadd.f32 %v3576, %v3577
  %v3579 = vsel %vm630, %v3490, 0.0
  %v3580 = vadd.f32 %v3578, %v3579
  %v3581 = vsel %vm630, %v3491, 0.0
  %v3582 = vadd.f32 %v3580, %v3581
  %v3583 = vsel %vm630, %v3492, 0.0
  %v3584 = vadd.f32 %v3582, %v3583
  %v3585 = vsel %vm630, %v3493, 0.0
  %v3586 = vadd.f32 %v3584, %v3585
  %v3587 = vsel %vm630, %v3494, 0.0
  %v3588 = vadd.f32 %v3586, %v3587
  %v3589 = vsel %vm630, %v3495, 0.0
  %v3590 = vadd.f32 %v3588, %v3589
  %v3591 = vsel %vm630, %v3496, 0.0
  %v3592 = vadd.f32 %v3590, %v3591
  %v3593 = vsel %vm630, %v3497, 0.0
  %v3594 = vadd.f32 %v3592, %v3593
  %v3595 = vsel %vm630, %v3498, 0.0
  %v3596 = vadd.f32 %v3594, %v3595
  %v3597 = vsel %vm630, %v3499, 0.0
  %v3598 = vadd.f32 %v3596, %v3597
  %v3599 = vsel %vm630, %v3500, 0.0
  %v3600 = vadd.f32 %v3598, %v3599
  %v3601 = vsel %vm630, %v3501, 0.0
  %v3602 = vadd.f32 %v3600, %v3601
  %v3603 = vsel %vm630, %v3502, 0.0
  %v3604 = vadd.f32 %v3602, %v3603
  %v3605 = vsel %vm630, %v3503, 0.0
  %v3606 = vadd.f32 %v3604, %v3605
  %v3607 = vsel %vm630, %v3504, 0.0
  %v3608 = vadd.f32 %v3606, %v3607
  %v3609 = vsel %vm630, %v3505, 0.0
  %v3610 = vadd.f32 %v3608, %v3609
  %v3611 = vsel %vm630, %v3506, 0.0
  %v3612 = vadd.f32 %v3610, %v3611
  %v3613 = vsel %vm630, %v3507, 0.0
  %v3614 = vadd.f32 %v3612, %v3613
  %v3615 = vsel %vm630, %v3508, 0.0
  %v3616 = vadd.f32 %v3614, %v3615
  %v3617 = vsel %vm630, %v3509, 0.0
  %v3618 = vadd.f32 %v3616, %v3617
  %v3619 = vsel %vm630, %v3510, 0.0
  %v3620 = vadd.f32 %v3618, %v3619
  %v3621 = vsel %vm630, %v3511, 0.0
  %v3622 = vadd.f32 %v3620, %v3621
  %v3623 = vsel %vm630, %v3512, 0.0
  %v3624 = vadd.f32 %v3622, %v3623
  %v3625 = vsel %vm630, %v3513, 0.0
  %v3626 = vadd.f32 %v3624, %v3625
  %v3627 = vsel %vm630, %v3514, 0.0
  %v3628 = vadd.f32 %v3626, %v3627
  %v3629 = vsel %vm630, %v3515, 0.0
  %v3630 = vadd.f32 %v3628, %v3629
  %v3631 = vsel %vm630, %v3516, 0.0
  %v3632 = vadd.f32 %v3630, %v3631
  %v3633 = vsel %vm630, %v3517, 0.0
  %v3634 = vadd.f32 %v3632, %v3633
  %v3635 = vsel %vm630, %v3518, 0.0
  %v3636 = vadd.f32 %v3634, %v3635
  %v3637 = vsel %vm630, %v3519, 0.0
  %v3638 = vadd.f32 %v3636, %v3637
  %v3639 = vsel %vm630, %v3520, 0.0
  %v3640 = vadd.f32 %v3638, %v3639
  %v3641 = vsel %vm630, %v3521, 0.0
  %v3642 = vadd.f32 %v3640, %v3641
  %v3643 = vsel %vm630, %v3522, 0.0
  %v3644 = vadd.f32 %v3642, %v3643
  %v3645 = vsel %vm630, %v3523, 0.0
  %v3646 = vadd.f32 %v3644, %v3645
  %v3647 = vsel %vm630, %v3524, 0.0
  %v3648 = vadd.f32 %v3646, %v3647
  %v3649 = vsel %vm630, %v3525, 0.0
  %v3650 = vadd.f32 %v3648, %v3649
  %v3651 = vsel %vm630, %v3526, 0.0
  %v3652 = vadd.f32 %v3650, %v3651
  %v3653 = vsel %vm630, %v3527, 0.0
  %v3654 = vadd.f32 %v3652, %v3653
  %v3655 = vrot.slane %v3654, 4
  %v3656 = vadd.f32 %v3654, %v3655
  %v3657 = vrot.slane %v3656, 2
  %v3658 = vadd.f32 %v3656, %v3657
  %v3659 = vrot.slane %v3658, 1
  %v3660 = vadd.f32 %v3658, %v3659
  %v3661 = vmul.f32 %v3660, 0.001953125
  %v3662 = vmul.f32 %v3463, %v3463
  %v3663 = vsub.f32 %v3661, %v3662
  %v3664 = vmax.f32 %v3663, 0.0
  %v3665 = vsub.f32 %v3266, %v3463
  %v3666 = vsub.f32 %v3267, %v3463
  %v3667 = vsub.f32 %v3268, %v3463
  %v3668 = vsub.f32 %v3269, %v3463
  %v3669 = vsub.f32 %v3270, %v3463
  %v3670 = vsub.f32 %v3271, %v3463
  %v3671 = vsub.f32 %v3272, %v3463
  %v3672 = vsub.f32 %v3273, %v3463
  %v3673 = vsub.f32 %v3274, %v3463
  %v3674 = vsub.f32 %v3275, %v3463
  %v3675 = vsub.f32 %v3276, %v3463
  %v3676 = vsub.f32 %v3277, %v3463
  %v3677 = vsub.f32 %v3278, %v3463
  %v3678 = vsub.f32 %v3279, %v3463
  %v3679 = vsub.f32 %v3280, %v3463
  %v3680 = vsub.f32 %v3281, %v3463
  %v3681 = vsub.f32 %v3282, %v3463
  %v3682 = vsub.f32 %v3283, %v3463
  %v3683 = vsub.f32 %v3284, %v3463
  %v3684 = vsub.f32 %v3285, %v3463
  %v3685 = vsub.f32 %v3286, %v3463
  %v3686 = vsub.f32 %v3287, %v3463
  %v3687 = vsub.f32 %v3288, %v3463
  %v3688 = vsub.f32 %v3289, %v3463
  %v3689 = vsub.f32 %v3290, %v3463
  %v3690 = vsub.f32 %v3291, %v3463
  %v3691 = vsub.f32 %v3292, %v3463
  %v3692 = vsub.f32 %v3293, %v3463
  %v3693 = vsub.f32 %v3294, %v3463
  %v3694 = vsub.f32 %v3295, %v3463
  %v3695 = vsub.f32 %v3296, %v3463
  %v3696 = vsub.f32 %v3297, %v3463
  %v3697 = vsub.f32 %v3298, %v3463
  %v3698 = vsub.f32 %v3299, %v3463
  %v3699 = vsub.f32 %v3300, %v3463
  %v3700 = vsub.f32 %v3301, %v3463
  %v3701 = vsub.f32 %v3302, %v3463
  %v3702 = vsub.f32 %v3303, %v3463
  %v3703 = vsub.f32 %v3304, %v3463
  %v3704 = vsub.f32 %v3305, %v3463
  %v3705 = vsub.f32 %v3306, %v3463
  %v3706 = vsub.f32 %v3307, %v3463
  %v3707 = vsub.f32 %v3308, %v3463
  %v3708 = vsub.f32 %v3309, %v3463
  %v3709 = vsub.f32 %v3310, %v3463
  %v3710 = vsub.f32 %v3311, %v3463
  %v3711 = vsub.f32 %v3312, %v3463
  %v3712 = vsub.f32 %v3313, %v3463
  %v3713 = vsub.f32 %v3314, %v3463
  %v3714 = vsub.f32 %v3315, %v3463
  %v3715 = vsub.f32 %v3316, %v3463
  %v3716 = vsub.f32 %v3317, %v3463
  %v3717 = vsub.f32 %v3318, %v3463
  %v3718 = vsub.f32 %v3319, %v3463
  %v3719 = vsub.f32 %v3320, %v3463
  %v3720 = vsub.f32 %v3321, %v3463
  %v3721 = vsub.f32 %v3322, %v3463
  %v3722 = vsub.f32 %v3323, %v3463
  %v3723 = vsub.f32 %v3324, %v3463
  %v3724 = vsub.f32 %v3325, %v3463
  %v3725 = vsub.f32 %v3326, %v3463
  %v3726 = vsub.f32 %v3327, %v3463
  %v3727 = vsub.f32 %v3328, %v3463
  %v3728 = vsub.f32 %v3329, %v3463
  %v3729 = vadd.f32 %v3664, 1e-05
  %v3730 = vrsqrt.pop %v3729
  %v3731 = vmul.f32 %v3730, %v3729
  %v3732 = vmul.f32 %v3731, %v3730
  %v3733 = vmul.f32 0.5, %v3732
  %v3734 = vsub.f32 1.5, %v3733
  %v3735 = vmul.f32 %v3730, %v3734
  %vm3736 = vweird.f32 %v3729
  %vm3737 = vweird.f32 %v3730
  %vm3738 = vmor %vm3736, %vm3737
  %v3739 = vsel %vm3738, %v3730, %v3735
  %v3740 = vld [vmem:[%s2] sm:$0x1]
  %v3741 = vmul.f32 %v3739, %v3740
  %v3742 = vperm.slane %v3741, 0
  %v3743 = vmul.f32 %v3665, %v3742
  %v3744 = vmul.f32 %v3666, %v3742
  %v3745 = vmul.f32 %v3667, %v3742
  %v3746 = vmul.f32 %v3668, %v3742
  %v3747 = vmul.f32 %v3669, %v3742
  %v3748 = vmul.f32 %v3670, %v3742
  %v3749 = vmul.f32 %v3671, %v3742
  %v3750 = vmul.f32 %v3672, %v3742
  %v3751 = vmul.f32 %v3673, %v3742
  %v3752 = vmul.f32 %v3674, %v3742
  %v3753 = vmul.f32 %v3675, %v3742
  %v3754 = vmul.f32 %v3676, %v3742
  %v3755 = vmul.f32 %v3677, %v3742
  %v3756 = vmul.f32 %v3678, %v3742
  %v3757 = vmul.f32 %v3679, %v3742
  %v3758 = vmul.f32 %v3680, %v3742
  %v3759 = vmul.f32 %v3681, %v3742
  %v3760 = vmul.f32 %v3682, %v3742
  %v3761 = vmul.f32 %v3683, %v3742
  %v3762 = vmul.f32 %v3684, %v3742
  %v3763 = vmul.f32 %v3685, %v3742
  %v3764 = vmul.f32 %v3686, %v3742
  %v3765 = vmul.f32 %v3687, %v3742
  %v3766 = vmul.f32 %v3688, %v3742
  %v3767 = vmul.f32 %v3689, %v3742
  %v3768 = vmul.f32 %v3690, %v3742
  %v3769 = vmul.f32 %v3691, %v3742
  %v3770 = vmul.f32 %v3692, %v3742
  %v3771 = vmul.f32 %v3693, %v3742
  %v3772 = vmul.f32 %v3694, %v3742
  %v3773 = vmul.f32 %v3695, %v3742
  %v3774 = vmul.f32 %v3696, %v3742
  %v3775 = vmul.f32 %v3697, %v3742
  %v3776 = vmul.f32 %v3698, %v3742
  %v3777 = vmul.f32 %v3699, %v3742
  %v3778 = vmul.f32 %v3700, %v3742
  %v3779 = vmul.f32 %v3701, %v3742
  %v3780 = vmul.f32 %v3702, %v3742
  %v3781 = vmul.f32 %v3703, %v3742
  %v3782 = vmul.f32 %v3704, %v3742
  %v3783 = vmul.f32 %v3705, %v3742
  %v3784 = vmul.f32 %v3706, %v3742
  %v3785 = vmul.f32 %v3707, %v3742
  %v3786 = vmul.f32 %v3708, %v3742
  %v3787 = vmul.f32 %v3709, %v3742
  %v3788 = vmul.f32 %v3710, %v3742
  %v3789 = vmul.f32 %v3711, %v3742
  %v3790 = vmul.f32 %v3712, %v3742
  %v3791 = vmul.f32 %v3713, %v3742
  %v3792 = vmul.f32 %v3714, %v3742
  %v3793 = vmul.f32 %v3715, %v3742
  %v3794 = vmul.f32 %v3716, %v3742
  %v3795 = vmul.f32 %v3717, %v3742
  %v3796 = vmul.f32 %v3718, %v3742
  %v3797 = vmul.f32 %v3719, %v3742
  %v3798 = vmul.f32 %v3720, %v3742
  %v3799 = vmul.f32 %v3721, %v3742
  %v3800 = vmul.f32 %v3722, %v3742
  %v3801 = vmul.f32 %v3723, %v3742
  %v3802 = vmul.f32 %v3724, %v3742
  %v3803 = vmul.f32 %v3725, %v3742
  %v3804 = vmul.f32 %v3726, %v3742
  %v3805 = vmul.f32 %v3727, %v3742
  %v3806 = vmul.f32 %v3728, %v3742
  %v3807 = vld [vmem:[%s3] sm:$0x1]
  %v3809 = vperm.slane %v3807, 0
  %v3811 = vadd.f32 %v3743, %v3809
  %v3812 = vadd.f32 %v3744, %v3809
  %v3813 = vadd.f32 %v3745, %v3809
  %v3814 = vadd.f32 %v3746, %v3809
  %v3815 = vadd.f32 %v3747, %v3809
  %v3816 = vadd.f32 %v3748, %v3809
  %v3817 = vadd.f32 %v3749, %v3809
  %v3818 = vadd.f32 %v3750, %v3809
  %v3819 = vadd.f32 %v3751, %v3809
  %v3820 = vadd.f32 %v3752, %v3809
  %v3821 = vadd.f32 %v3753, %v3809
  %v3822 = vadd.f32 %v3754, %v3809
  %v3823 = vadd.f32 %v3755, %v3809
  %v3824 = vadd.f32 %v3756, %v3809
  %v3825 = vadd.f32 %v3757, %v3809
  %v3826 = vadd.f32 %v3758, %v3809
  %v3827 = vadd.f32 %v3759, %v3809
  %v3828 = vadd.f32 %v3760, %v3809
  %v3829 = vadd.f32 %v3761, %v3809
  %v3830 = vadd.f32 %v3762, %v3809
  %v3831 = vadd.f32 %v3763, %v3809
  %v3832 = vadd.f32 %v3764, %v3809
  %v3833 = vadd.f32 %v3765, %v3809
  %v3834 = vadd.f32 %v3766, %v3809
  %v3835 = vadd.f32 %v3767, %v3809
  %v3836 = vadd.f32 %v3768, %v3809
  %v3837 = vadd.f32 %v3769, %v3809
  %v3838 = vadd.f32 %v3770, %v3809
  %v3839 = vadd.f32 %v3771, %v3809
  %v3840 = vadd.f32 %v3772, %v3809
  %v3841 = vadd.f32 %v3773, %v3809
  %v3842 = vadd.f32 %v3774, %v3809
  %v3843 = vadd.f32 %v3775, %v3809
  %v3844 = vadd.f32 %v3776, %v3809
  %v3845 = vadd.f32 %v3777, %v3809
  %v3846 = vadd.f32 %v3778, %v3809
  %v3847 = vadd.f32 %v3779, %v3809
  %v3848 = vadd.f32 %v3780, %v3809
  %v3849 = vadd.f32 %v3781, %v3809
  %v3850 = vadd.f32 %v3782, %v3809
  %v3851 = vadd.f32 %v3783, %v3809
  %v3852 = vadd.f32 %v3784, %v3809
  %v3853 = vadd.f32 %v3785, %v3809
  %v3854 = vadd.f32 %v3786, %v3809
  %v3855 = vadd.f32 %v3787, %v3809
  %v3856 = vadd.f32 %v3788, %v3809
  %v3857 = vadd.f32 %v3789, %v3809
  %v3858 = vadd.f32 %v3790, %v3809
  %v3859 = vadd.f32 %v3791, %v3809
  %v3860 = vadd.f32 %v3792, %v3809
  %v3861 = vadd.f32 %v3793, %v3809
  %v3862 = vadd.f32 %v3794, %v3809
  %v3863 = vadd.f32 %v3795, %v3809
  %v3864 = vadd.f32 %v3796, %v3809
  %v3865 = vadd.f32 %v3797, %v3809
  %v3866 = vadd.f32 %v3798, %v3809
  %v3867 = vadd.f32 %v3799, %v3809
  %v3868 = vadd.f32 %v3800, %v3809
  %v3869 = vadd.f32 %v3801, %v3809
  %v3870 = vadd.f32 %v3802, %v3809
  %v3871 = vadd.f32 %v3803, %v3809
  %v3872 = vadd.f32 %v3804, %v3809
  %v3873 = vadd.f32 %v3805, %v3809
  %v3874 = vadd.f32 %v3806, %v3809
  %vm3875 = vcmp.gt.f32.partialorder %v3811, 0.0
  %vm3876 = vcmp.gt.f32.partialorder %v3812, 0.0
  %vm3877 = vcmp.gt.f32.partialorder %v3813, 0.0
  %vm3878 = vcmp.gt.f32.partialorder %v3814, 0.0
  %vm3879 = vcmp.gt.f32.partialorder %v3815, 0.0
  %vm3880 = vcmp.gt.f32.partialorder %v3816, 0.0
  %vm3881 = vcmp.gt.f32.partialorder %v3817, 0.0
  %vm3882 = vcmp.gt.f32.partialorder %v3818, 0.0
  %vm3883 = vcmp.gt.f32.partialorder %v3819, 0.0
  %vm3884 = vcmp.gt.f32.partialorder %v3820, 0.0
  %vm3885 = vcmp.gt.f32.partialorder %v3821, 0.0
  %vm3886 = vcmp.gt.f32.partialorder %v3822, 0.0
  %vm3887 = vcmp.gt.f32.partialorder %v3823, 0.0
  %vm3888 = vcmp.gt.f32.partialorder %v3824, 0.0
  %vm3889 = vcmp.gt.f32.partialorder %v3825, 0.0
  %vm3890 = vcmp.gt.f32.partialorder %v3826, 0.0
  %vm3891 = vcmp.gt.f32.partialorder %v3827, 0.0
  %vm3892 = vcmp.gt.f32.partialorder %v3828, 0.0
  %vm3893 = vcmp.gt.f32.partialorder %v3829, 0.0
  %vm3894 = vcmp.gt.f32.partialorder %v3830, 0.0
  %vm3895 = vcmp.gt.f32.partialorder %v3831, 0.0
  %vm3896 = vcmp.gt.f32.partialorder %v3832, 0.0
  %vm3897 = vcmp.gt.f32.partialorder %v3833, 0.0
  %vm3898 = vcmp.gt.f32.partialorder %v3834, 0.0
  %vm3899 = vcmp.gt.f32.partialorder %v3835, 0.0
  %vm3900 = vcmp.gt.f32.partialorder %v3836, 0.0
  %vm3901 = vcmp.gt.f32.partialorder %v3837, 0.0
  %vm3902 = vcmp.gt.f32.partialorder %v3838, 0.0
  %vm3903 = vcmp.gt.f32.partialorder %v3839, 0.0
  %vm3904 = vcmp.gt.f32.partialorder %v3840, 0.0
  %vm3905 = vcmp.gt.f32.partialorder %v3841, 0.0
  %vm3906 = vcmp.gt.f32.partialorder %v3842, 0.0
  %vm3907 = vcmp.gt.f32.partialorder %v3843, 0.0
  %vm3908 = vcmp.gt.f32.partialorder %v3844, 0.0
  %vm3909 = vcmp.gt.f32.partialorder %v3845, 0.0
  %vm3910 = vcmp.gt.f32.partialorder %v3846, 0.0
  %vm3911 = vcmp.gt.f32.partialorder %v3847, 0.0
  %vm3912 = vcmp.gt.f32.partialorder %v3848, 0.0
  %vm3913 = vcmp.gt.f32.partialorder %v3849, 0.0
  %vm3914 = vcmp.gt.f32.partialorder %v3850, 0.0
  %vm3915 = vcmp.gt.f32.partialorder %v3851, 0.0
  %vm3916 = vcmp.gt.f32.partialorder %v3852, 0.0
  %vm3917 = vcmp.gt.f32.partialorder %v3853, 0.0
  %vm3918 = vcmp.gt.f32.partialorder %v3854, 0.0
  %vm3919 = vcmp.gt.f32.partialorder %v3855, 0.0
  %vm3920 = vcmp.gt.f32.partialorder %v3856, 0.0
  %vm3921 = vcmp.gt.f32.partialorder %v3857, 0.0
  %vm3922 = vcmp.gt.f32.partialorder %v3858, 0.0
  %vm3923 = vcmp.gt.f32.partialorder %v3859, 0.0
  %vm3924 = vcmp.gt.f32.partialorder %v3860, 0.0
  %vm3925 = vcmp.gt.f32.partialorder %v3861, 0.0
  %vm3926 = vcmp.gt.f32.partialorder %v3862, 0.0
  %vm3927 = vcmp.gt.f32.partialorder %v3863, 0.0
  %vm3928 = vcmp.gt.f32.partialorder %v3864, 0.0
  %vm3929 = vcmp.gt.f32.partialorder %v3865, 0.0
  %vm3930 = vcmp.gt.f32.partialorder %v3866, 0.0
  %vm3931 = vcmp.gt.f32.partialorder %v3867, 0.0
  %vm3932 = vcmp.gt.f32.partialorder %v3868, 0.0
  %vm3933 = vcmp.gt.f32.partialorder %v3869, 0.0
  %vm3934 = vcmp.gt.f32.partialorder %v3870, 0.0
  %vm3935 = vcmp.gt.f32.partialorder %v3871, 0.0
  %vm3936 = vcmp.gt.f32.partialorder %v3872, 0.0
  %vm3937 = vcmp.gt.f32.partialorder %v3873, 0.0
  %vm3938 = vcmp.gt.f32.partialorder %v3874, 0.0
  %v3939 = vmul.f32 %v3811, 0.1
  %v3940 = vmul.f32 %v3812, 0.1
  %v3941 = vmul.f32 %v3813, 0.1
  %v3942 = vmul.f32 %v3814, 0.1
  %v3943 = vmul.f32 %v3815, 0.1
  %v3944 = vmul.f32 %v3816, 0.1
  %v3945 = vmul.f32 %v3817, 0.1
  %v3946 = vmul.f32 %v3818, 0.1
  %v3947 = vmul.f32 %v3819, 0.1
  %v3948 = vmul.f32 %v3820, 0.1
  %v3949 = vmul.f32 %v3821, 0.1
  %v3950 = vmul.f32 %v3822, 0.1
  %v3951 = vmul.f32 %v3823, 0.1
  %v3952 = vmul.f32 %v3824, 0.1
  %v3953 = vmul.f32 %v3825, 0.1
  %v3954 = vmul.f32 %v3826, 0.1
  %v3955 = vmul.f32 %v3827, 0.1
  %v3956 = vmul.f32 %v3828, 0.1
  %v3957 = vmul.f32 %v3829, 0.1
  %v3958 = vmul.f32 %v3830, 0.1
  %v3959 = vmul.f32 %v3831, 0.1
  %v3960 = vmul.f32 %v3832, 0.1
  %v3961 = vmul.f32 %v3833, 0.1
  %v3962 = vmul.f32 %v3834, 0.1
  %v3963 = vmul.f32 %v3835, 0.1
  %v3964 = vmul.f32 %v3836, 0.1
  %v3965 = vmul.f32 %v3837, 0.1
  %v3966 = vmul.f32 %v3838, 0.1
  %v3967 = vmul.f32 %v3839, 0.1
  %v3968 = vmul.f32 %v3840, 0.1
  %v3969 = vmul.f32 %v3841, 0.1
  %v3970 = vmul.f32 %v3842, 0.1
  %v3971 = vmul.f32 %v3843, 0.1
  %v3972 = vmul.f32 %v3844, 0.1
  %v3973 = vmul.f32 %v3845, 0.1
  %v3974 = vmul.f32 %v3846, 0.1
  %v3975 = vmul.f32 %v3847, 0.1
  %v3976 = vmul.f32 %v3848, 0.1
  %v3977 = vmul.f32 %v3849, 0.1
  %v3978 = vmul.f32 %v3850, 0.1
  %v3979 = vmul.f32 %v3851, 0.1
  %v3980 = vmul.f32 %v3852, 0.1
  %v3981 = vmul.f32 %v3853, 0.1
  %v3982 = vmul.f32 %v3854, 0.1
  %v3983 = vmul.f32 %v3855, 0.1
  %v3984 = vmul.f32 %v3856, 0.1
  %v3985 = vmul.f32 %v3857, 0.1
  %v3986 = vmul.f32 %v3858, 0.1
  %v3987 = vmul.f32 %v3859, 0.1
  %v3988 = vmul.f32 %v3860, 0.1
  %v3989 = vmul.f32 %v3861, 0.1
  %v3990 = vmul.f32 %v3862, 0.1
  %v3991 = vmul.f32 %v3863, 0.1
  %v3992 = vmul.f32 %v3864, 0.1
  %v3993 = vmul.f32 %v3865, 0.1
  %v3994 = vmul.f32 %v3866, 0.1
  %v3995 = vmul.f32 %v3867, 0.1
  %v3996 = vmul.f32 %v3868, 0.1
  %v3997 = vmul.f32 %v3869, 0.1
  %v3998 = vmul.f32 %v3870, 0.1
  %v3999 = vmul.f32 %v3871, 0.1
  %v4000 = vmul.f32 %v3872, 0.1
  %v4001 = vmul.f32 %v3873, 0.1
  %v4002 = vmul.f32 %v3874, 0.1
  %v4003 = vsel %vm3875, %v3811, %v3939
  %v4004 = vsel %vm3876, %v3812, %v3940
  %v4005 = vsel %vm3877, %v3813, %v3941
  %v4006 = vsel %vm3878, %v3814, %v3942
  %v4007 = vsel %vm3879, %v3815, %v3943
  %v4008 = vsel %vm3880, %v3816, %v3944
  %v4009 = vsel %vm3881, %v3817, %v3945
  %v4010 = vsel %vm3882, %v3818, %v3946
  %v4011 = vsel %vm3883, %v3819, %v3947
  %v4012 = vsel %vm3884, %v3820, %v3948
  %v4013 = vsel %vm3885, %v3821, %v3949
  %v4014 = vsel %vm3886, %v3822, %v3950
  %v4015 = vsel %vm3887, %v3823, %v3951
  %v4016 = vsel %vm3888, %v3824, %v3952
  %v4017 = vsel %vm3889, %v3825, %v3953
  %v4018 = vsel %vm3890, %v3826, %v3954
  %v4019 = vsel %vm3891, %v3827, %v3955
  %v4020 = vsel %vm3892, %v3828, %v3956
  %v4021 = vsel %vm3893, %v3829, %v3957
  %v4022 = vsel %vm3894, %v3830, %v3958
  %v4023 = vsel %vm3895, %v3831, %v3959
  %v4024 = vsel %vm3896, %v3832, %v3960
  %v4025 = vsel %vm3897, %v3833, %v3961
  %v4026 = vsel %vm3898, %v3834, %v3962
  %v4027 = vsel %vm3899, %v3835, %v3963
  %v4028 = vsel %vm3900, %v3836, %v3964
  %v4029 = vsel %vm3901, %v3837, %v3965
  %v4030 = vsel %vm3902, %v3838, %v3966
  %v4031 = vsel %vm3903, %v3839, %v3967
  %v4032 = vsel %vm3904, %v3840, %v3968
  %v4033 = vsel %vm3905, %v3841, %v3969
  %v4034 = vsel %vm3906, %v3842, %v3970
  %v4035 = vsel %vm3907, %v3843, %v3971
  %v4036 = vsel %vm3908, %v3844, %v3972
  %v4037 = vsel %vm3909, %v3845, %v3973
  %v4038 = vsel %vm3910, %v3846, %v3974
  %v4039 = vsel %vm3911, %v3847, %v3975
  %v4040 = vsel %vm3912, %v3848, %v3976
  %v4041 = vsel %vm3913, %v3849, %v3977
  %v4042 = vsel %vm3914, %v3850, %v3978
  %v4043 = vsel %vm3915, %v3851, %v3979
  %v4044 = vsel %vm3916, %v3852, %v3980
  %v4045 = vsel %vm3917, %v3853, %v3981
  %v4046 = vsel %vm3918, %v3854, %v3982
  %v4047 = vsel %vm3919, %v3855, %v3983
  %v4048 = vsel %vm3920, %v3856, %v3984
  %v4049 = vsel %vm3921, %v3857, %v3985
  %v4050 = vsel %vm3922, %v3858, %v3986
  %v4051 = vsel %vm3923, %v3859, %v3987
  %v4052 = vsel %vm3924, %v3860, %v3988
  %v4053 = vsel %vm3925, %v3861, %v3989
  %v4054 = vsel %vm3926, %v3862, %v3990
  %v4055 = vsel %vm3927, %v3863, %v3991
  %v4056 = vsel %vm3928, %v3864, %v3992
  %v4057 = vsel %vm3929, %v3865, %v3993
  %v4058 = vsel %vm3930, %v3866, %v3994
  %v4059 = vsel %vm3931, %v3867, %v3995
  %v4060 = vsel %vm3932, %v3868, %v3996
  %v4061 = vsel %vm3933, %v3869, %v3997
  %v4062 = vsel %vm3934, %v3870, %v3998
  %v4063 = vsel %vm3935, %v3871, %v3999
  %v4064 = vsel %vm3936, %v3872, %v4000
  %v4065 = vsel %vm3937, %v3873, %v4001
  %v4066 = vsel %vm3938, %v3874, %v4002
  %v4067 = vpack.c.bf16 %v4003, %v4003
  %v4068 = vpack.c.bf16 %v4004, %v4004
  %v4069 = vpack.c.bf16 %v4005, %v4005
  %v4070 = vpack.c.bf16 %v4006, %v4006
  %v4071 = vpack.c.bf16 %v4007, %v4007
  %v4072 = vpack.c.bf16 %v4008, %v4008
  %v4073 = vpack.c.bf16 %v4009, %v4009
  %v4074 = vpack.c.bf16 %v4010, %v4010
  %v4075 = vpack.c.bf16 %v4011, %v4011
  %v4076 = vpack.c.bf16 %v4012, %v4012
  %v4077 = vpack.c.bf16 %v4013, %v4013
  %v4078 = vpack.c.bf16 %v4014, %v4014
  %v4079 = vpack.c.bf16 %v4015, %v4015
  %v4080 = vpack.c.bf16 %v4016, %v4016
  %v4081 = vpack.c.bf16 %v4017, %v4017
  %v4082 = vpack.c.bf16 %v4018, %v4018
  %v4083 = vpack.c.bf16 %v4019, %v4019
  %v4084 = vpack.c.bf16 %v4020, %v4020
  %v4085 = vpack.c.bf16 %v4021, %v4021
  %v4086 = vpack.c.bf16 %v4022, %v4022
  %v4087 = vpack.c.bf16 %v4023, %v4023
  %v4088 = vpack.c.bf16 %v4024, %v4024
  %v4089 = vpack.c.bf16 %v4025, %v4025
  %v4090 = vpack.c.bf16 %v4026, %v4026
  %v4091 = vpack.c.bf16 %v4027, %v4027
  %v4092 = vpack.c.bf16 %v4028, %v4028
  %v4093 = vpack.c.bf16 %v4029, %v4029
  %v4094 = vpack.c.bf16 %v4030, %v4030
  %v4095 = vpack.c.bf16 %v4031, %v4031
  %v4096 = vpack.c.bf16 %v4032, %v4032
  %v4097 = vpack.c.bf16 %v4033, %v4033
  %v4098 = vpack.c.bf16 %v4034, %v4034
  %v4099 = vpack.c.bf16 %v4035, %v4035
  %v4100 = vpack.c.bf16 %v4036, %v4036
  %v4101 = vpack.c.bf16 %v4037, %v4037
  %v4102 = vpack.c.bf16 %v4038, %v4038
  %v4103 = vpack.c.bf16 %v4039, %v4039
  %v4104 = vpack.c.bf16 %v4040, %v4040
  %v4105 = vpack.c.bf16 %v4041, %v4041
  %v4106 = vpack.c.bf16 %v4042, %v4042
  %v4107 = vpack.c.bf16 %v4043, %v4043
  %v4108 = vpack.c.bf16 %v4044, %v4044
  %v4109 = vpack.c.bf16 %v4045, %v4045
  %v4110 = vpack.c.bf16 %v4046, %v4046
  %v4111 = vpack.c.bf16 %v4047, %v4047
  %v4112 = vpack.c.bf16 %v4048, %v4048
  %v4113 = vpack.c.bf16 %v4049, %v4049
  %v4114 = vpack.c.bf16 %v4050, %v4050
  %v4115 = vpack.c.bf16 %v4051, %v4051
  %v4116 = vpack.c.bf16 %v4052, %v4052
  %v4117 = vpack.c.bf16 %v4053, %v4053
  %v4118 = vpack.c.bf16 %v4054, %v4054
  %v4119 = vpack.c.bf16 %v4055, %v4055
  %v4120 = vpack.c.bf16 %v4056, %v4056
  %v4121 = vpack.c.bf16 %v4057, %v4057
  %v4122 = vpack.c.bf16 %v4058, %v4058
  %v4123 = vpack.c.bf16 %v4059, %v4059
  %v4124 = vpack.c.bf16 %v4060, %v4060
  %v4125 = vpack.c.bf16 %v4061, %v4061
  %v4126 = vpack.c.bf16 %v4062, %v4062
  %v4127 = vpack.c.bf16 %v4063, %v4063
  %v4128 = vpack.c.bf16 %v4064, %v4064
  %v4129 = vpack.c.bf16 %v4065, %v4065
  %v4130 = vpack.c.bf16 %v4066, %v4066
  %vm4131 = vcmask 125952
  %4132 = vst.msk [vmem:[%s4] sm:$0xf] %vm4131, %v4067
  %4133 = vst.msk [vmem:[%s4 + $0x4] sm:$0xf] %vm4131, %v4068
  %4134 = vst.msk [vmem:[%s4 + $0x8] sm:$0xf] %vm4131, %v4069
  %4135 = vst.msk [vmem:[%s4 + $0xc] sm:$0xf] %vm4131, %v4070
  %4136 = vst.msk [vmem:[%s4 + $0x10] sm:$0xf] %vm4131, %v4071
  %4137 = vst.msk [vmem:[%s4 + $0x14] sm:$0xf] %vm4131, %v4072
  %4138 = vst.msk [vmem:[%s4 + $0x18] sm:$0xf] %vm4131, %v4073
  %4139 = vst.msk [vmem:[%s4 + $0x1c] sm:$0xf] %vm4131, %v4074
  %4140 = vst.msk [vmem:[%s4 + $0x20] sm:$0xf] %vm4131, %v4075
  %4141 = vst.msk [vmem:[%s4 + $0x24] sm:$0xf] %vm4131, %v4076
  %4142 = vst.msk [vmem:[%s4 + $0x28] sm:$0xf] %vm4131, %v4077
  %4143 = vst.msk [vmem:[%s4 + $0x2c] sm:$0xf] %vm4131, %v4078
  %4144 = vst.msk [vmem:[%s4 + $0x30] sm:$0xf] %vm4131, %v4079
  %4145 = vst.msk [vmem:[%s4 + $0x34] sm:$0xf] %vm4131, %v4080
  %4146 = vst.msk [vmem:[%s4 + $0x38] sm:$0xf] %vm4131, %v4081
  %4147 = vst.msk [vmem:[%s4 + $0x3c] sm:$0xf] %vm4131, %v4082
  %4148 = vst.msk [vmem:[%s4 + $0x40] sm:$0xf] %vm4131, %v4083
  %4149 = vst.msk [vmem:[%s4 + $0x44] sm:$0xf] %vm4131, %v4084
  %4150 = vst.msk [vmem:[%s4 + $0x48] sm:$0xf] %vm4131, %v4085
  %4151 = vst.msk [vmem:[%s4 + $0x4c] sm:$0xf] %vm4131, %v4086
  %4152 = vst.msk [vmem:[%s4 + $0x50] sm:$0xf] %vm4131, %v4087
  %4153 = vst.msk [vmem:[%s4 + $0x54] sm:$0xf] %vm4131, %v4088
  %4154 = vst.msk [vmem:[%s4 + $0x58] sm:$0xf] %vm4131, %v4089
  %4155 = vst.msk [vmem:[%s4 + $0x5c] sm:$0xf] %vm4131, %v4090
  %4156 = vst.msk [vmem:[%s4 + $0x60] sm:$0xf] %vm4131, %v4091
  %4157 = vst.msk [vmem:[%s4 + $0x64] sm:$0xf] %vm4131, %v4092
  %4158 = vst.msk [vmem:[%s4 + $0x68] sm:$0xf] %vm4131, %v4093
  %4159 = vst.msk [vmem:[%s4 + $0x6c] sm:$0xf] %vm4131, %v4094
  %4160 = vst.msk [vmem:[%s4 + $0x70] sm:$0xf] %vm4131, %v4095
  %4161 = vst.msk [vmem:[%s4 + $0x74] sm:$0xf] %vm4131, %v4096
  %4162 = vst.msk [vmem:[%s4 + $0x78] sm:$0xf] %vm4131, %v4097
  %4163 = vst.msk [vmem:[%s4 + $0x7c] sm:$0xf] %vm4131, %v4098
  %4164 = vst.msk [vmem:[%s4 + $0x80] sm:$0xf] %vm4131, %v4099
  %4165 = vst.msk [vmem:[%s4 + $0x84] sm:$0xf] %vm4131, %v4100
  %4166 = vst.msk [vmem:[%s4 + $0x88] sm:$0xf] %vm4131, %v4101
  %4167 = vst.msk [vmem:[%s4 + $0x8c] sm:$0xf] %vm4131, %v4102
  %4168 = vst.msk [vmem:[%s4 + $0x90] sm:$0xf] %vm4131, %v4103
  %4169 = vst.msk [vmem:[%s4 + $0x94] sm:$0xf] %vm4131, %v4104
  %4170 = vst.msk [vmem:[%s4 + $0x98] sm:$0xf] %vm4131, %v4105
  %4171 = vst.msk [vmem:[%s4 + $0x9c] sm:$0xf] %vm4131, %v4106
  %4172 = vst.msk [vmem:[%s4 + $0xa0] sm:$0xf] %vm4131, %v4107
  %4173 = vst.msk [vmem:[%s4 + $0xa4] sm:$0xf] %vm4131, %v4108
  %4174 = vst.msk [vmem:[%s4 + $0xa8] sm:$0xf] %vm4131, %v4109
  %4175 = vst.msk [vmem:[%s4 + $0xac] sm:$0xf] %vm4131, %v4110
  %4176 = vst.msk [vmem:[%s4 + $0xb0] sm:$0xf] %vm4131, %v4111
  %4177 = vst.msk [vmem:[%s4 + $0xb4] sm:$0xf] %vm4131, %v4112
  %4178 = vst.msk [vmem:[%s4 + $0xb8] sm:$0xf] %vm4131, %v4113
  %4179 = vst.msk [vmem:[%s4 + $0xbc] sm:$0xf] %vm4131, %v4114
  %4180 = vst.msk [vmem:[%s4 + $0xc0] sm:$0xf] %vm4131, %v4115
  %4181 = vst.msk [vmem:[%s4 + $0xc4] sm:$0xf] %vm4131, %v4116
  %4182 = vst.msk [vmem:[%s4 + $0xc8] sm:$0xf] %vm4131, %v4117
  %4183 = vst.msk [vmem:[%s4 + $0xcc] sm:$0xf] %vm4131, %v4118
  %4184 = vst.msk [vmem:[%s4 + $0xd0] sm:$0xf] %vm4131, %v4119
  %4185 = vst.msk [vmem:[%s4 + $0xd4] sm:$0xf] %vm4131, %v4120
  %4186 = vst.msk [vmem:[%s4 + $0xd8] sm:$0xf] %vm4131, %v4121
  %4187 = vst.msk [vmem:[%s4 + $0xdc] sm:$0xf] %vm4131, %v4122
  %4188 = vst.msk [vmem:[%s4 + $0xe0] sm:$0xf] %vm4131, %v4123
  %4189 = vst.msk [vmem:[%s4 + $0xe4] sm:$0xf] %vm4131, %v4124
  %4190 = vst.msk [vmem:[%s4 + $0xe8] sm:$0xf] %vm4131, %v4125
  %4191 = vst.msk [vmem:[%s4 + $0xec] sm:$0xf] %vm4131, %v4126
  %4192 = vst.msk [vmem:[%s4 + $0xf0] sm:$0xf] %vm4131, %v4127
  %4193 = vst.msk [vmem:[%s4 + $0xf4] sm:$0xf] %vm4131, %v4128
  %4194 = vst.msk [vmem:[%s4 + $0xf8] sm:$0xf] %vm4131, %v4129
  %4195 = vst.msk [vmem:[%s4 + $0xfc] sm:$0xf] %vm4131, %v4130
  // Predicated region
  $region18: #{darknet_forward.14} parent=0 // pred_check
    _
  $region19: #{darknet_forward.14} parent=0 // pred_check_branch
    %4197 = sbr.rel (0) target = $region21
  $region20: #{darknet_forward.14} parent=0 // pred_region
    _
  $region21: #{darknet_forward.14} parent=0 // pred_fallthru
    _
  // Predicated region
  $region22: #{darknet_forward.14} parent=0 // pred_check
    _
  $region23: #{darknet_forward.14} parent=0 // pred_check_branch
    %4199 = sbr.rel (0) target = $region25
  $region24: #{darknet_forward.14} parent=0 // pred_region
    _
  $region25: #{darknet_forward.14} parent=0 // pred_fallthru
    _

</llo_original>
